<compile_context>
chip_gen: v7x
topology: tpu7x:2x2x1
jax: 0.10.0
libtpu: 0.0.40
codegen_flags: <defaults>
</compile_context>

<pallas_src>
import functools

import numpy as np
import jax
import jax.numpy as jnp
from jax.experimental import pallas as pl
from jax.experimental.pallas import tpu as pltpu


def _round_up(v, m):
    return (v + m - 1) // m * m


# --------------------------------------------------------------------------- #
# fused Decouple kernel (one grid step == one image of the batch)             #
# --------------------------------------------------------------------------- #
def _silu(y):
    return y * jax.nn.sigmoid(y)


def _dense(x_bf16, w_ref, b_ref, act):
    """1x1 conv over flattened pixels: act(x @ W + b), f32 accumulation."""
    y = jnp.dot(x_bf16, w_ref[...], preferred_element_type=jnp.float32)
    y = y + b_ref[...]
    return _silu(y) if act else y


def _conv3x3_flat(x_f32, w_ref, b_ref, mask_l, mask_r, nx, pad):
    """3x3 SAME conv + bias + SiLU on a row-major flattened (ny*nx, cin) image.

    The 9 taps are shifted static slices of the flat image zero-padded with
    `pad` rows top/bottom (handles the top/bottom image borders); `mask_l` /
    `mask_r` zero the contributions that would wrap across the left / right
    image borders.  Patches are cast to bf16 right before the MXU matmul.
    """
    L, cin = x_f32.shape
    cout = w_ref.shape[-1]
    zeros = jnp.zeros((pad, cin), jnp.float32)
    padded = jnp.concatenate([zeros, x_f32, zeros], axis=0)   # (L + 2*pad, cin)
    acc = jnp.zeros((L, cout), jnp.float32)
    for di in range(3):
        for dj in range(3):
            shift = (di - 1) * nx + (dj - 1)
            patch = padded[pad + shift: pad + shift + L, :].astype(jnp.bfloat16)
            if dj == 0:
                patch = patch * mask_l
            elif dj == 2:
                patch = patch * mask_r
            acc = acc + jnp.dot(patch, w_ref[3 * di + dj],
                                preferred_element_type=jnp.float32)
    return _silu(acc + b_ref[...])


def _decouple_kernel(x_ref, m_ref,
                     wa_ref, ba_ref,
                     wb1_ref, bb1_ref, wb2_ref, bb2_ref, wb3_ref, bb3_ref,
                     wc1_ref, bc1_ref, wc2_ref, bc2_ref, wc3_ref, bc3_ref,
                     ob_ref, oc_ref, *, nx, pad):
    x = x_ref[0]                        # (L, c1)  bf16
    mask_l = m_ref[0]                   # (L, 1)   bf16, 0 where column j == 0
    mask_r = m_ref[1]                   # (L, 1)   bf16, 0 where column j == nx-1

    # stem: a = Conv(c1, c_, 1)  (BN folded, SiLU)
    xa = _dense(x, wa_ref, ba_ref, act=True)          # f32 (L, c_)
    xa_bf = xa.astype(jnp.bfloat16)

    # ---- classification branch: c1 (1x1) -> c2 (1x1) -> c3 (1x1, no act) ----
    t = _dense(xa_bf, wc1_ref, bc1_ref, act=True).astype(jnp.bfloat16)
    t = _dense(t, wc2_ref, bc2_ref, act=True).astype(jnp.bfloat16)
    oc_ref[0] = _dense(t, wc3_ref, bc3_ref, act=False)

    # ---- box/objectness branch: b1 (3x3) -> b2 (3x3) -> b3 (1x1, no act) ----
    y = _conv3x3_flat(xa, wb1_ref, bb1_ref, mask_l, mask_r, nx, pad)
    y = _conv3x3_flat(y, wb2_ref, bb2_ref, mask_l, mask_r, nx, pad)
    ob_ref[0] = _dense(y.astype(jnp.bfloat16), wb3_ref, bb3_ref, act=False)


# --------------------------------------------------------------------------- #
# host-side wrapper                                                            #
# --------------------------------------------------------------------------- #
def decouple_forward(params, x_nchw, *, na, nc):
    """Forward of `Decouple` on NCHW input; returns (bs, na*(nc+5), ny, nx)."""
    bs, c1, ny, nx = x_nchw.shape
    L = ny * nx
    pad = _round_up(nx + 1, 16)                 # tile-aligned flat halo
    assert L % 16 == 0, "ny*nx must be a multiple of 16 for the fused kernel"

    # NCHW -> flattened NHWC pixels; bf16 operands for the MXU.
    x_flat = jnp.transpose(x_nchw, (0, 2, 3, 1)).reshape(bs, L, c1)
    x_flat = x_flat.astype(jnp.bfloat16)

    # left/right image-border masks (column 0 / column nx-1 of every row)
    col = np.arange(L, dtype=np.int64) % nx
    masks_np = np.stack([(col != 0), (col != nx - 1)], axis=0).astype(np.float32)
    masks = jnp.asarray(masks_np.reshape(2, L, 1), jnp.bfloat16)

    wnames = ["a", "b1", "b2", "b3", "c1", "c2", "c3"]
    operands = []
    for n in wnames:
        operands.append(params[n + "_w"].astype(jnp.bfloat16))
        operands.append(params[n + "_b"].astype(jnp.float32))

    c_ = params["a_w"].shape[-1]
    cb1 = params["b1_w"].shape[-1]
    cb2 = params["b2_w"].shape[-1]
    nb = params["b3_w"].shape[-1]               # na * 5
    ncl = params["c3_w"].shape[-1]              # na * nc

    def _full_spec(shape):
        ndim = len(shape)

        def idx(b):
            return (0,) * ndim

        return pl.BlockSpec(shape, idx)

    in_specs = [pl.BlockSpec((1, L, c1), lambda b: (b, 0, 0)),
                pl.BlockSpec((2, L, 1), lambda b: (0, 0, 0))]
    in_specs += [_full_spec(op.shape) for op in operands]

    out_specs = (pl.BlockSpec((1, L, nb), lambda b: (b, 0, 0)),
                 pl.BlockSpec((1, L, ncl), lambda b: (b, 0, 0)))
    out_shape = (jax.ShapeDtypeStruct((bs, L, nb), jnp.float32),
                 jax.ShapeDtypeStruct((bs, L, ncl), jnp.float32))

    flops = 2 * bs * L * (c1 * c_              # a
                          + 9 * c_ * cb1       # b1
                          + 9 * cb1 * cb2      # b2
                          + cb2 * nb           # b3
                          + 2 * c_ * c_        # c1, c2
                          + c_ * ncl)          # c3
    transcendentals = bs * L * (c_ + cb1 + cb2 + 2 * c_)     # one sigmoid / SiLU elt
    bytes_accessed = int(
        bs * L * c1 * 2 + masks.size * 2
        + sum(int(np.prod(op.shape)) * op.dtype.itemsize for op in operands)
        + bs * L * (nb + ncl) * 4)

    ob, oc = pl.pallas_call(
        functools.partial(_decouple_kernel, nx=nx, pad=pad),
        out_shape=out_shape,
        grid=(bs,),
        in_specs=in_specs,
        out_specs=out_specs,
        compiler_params=pltpu.CompilerParams(
            dimension_semantics=("parallel",),     # one image per TC on v7x
            vmem_limit_bytes=32 * 1024 * 1024),
        cost_estimate=pl.CostEstimate(flops=flops,
                                      transcendentals=transcendentals,
                                      bytes_accessed=bytes_accessed),
    )(x_flat, masks, *operands)

    # channel interleave exactly as the torch .view / .cat / .view sequence
    b_nchw = jnp.transpose(ob.reshape(bs, ny, nx, na, 5), (0, 3, 4, 1, 2))
    c_nchw = jnp.transpose(oc.reshape(bs, ny, nx, na, nc), (0, 3, 4, 1, 2))
    out = jnp.concatenate([b_nchw, c_nchw], axis=2)
    return out.reshape(bs, na * (5 + nc), ny, nx)


# --------------------------------------------------------------------------- #
# synthetic parameters (BN folded into conv weight/bias)                       #
# --------------------------------------------------------------------------- #
def make_decouple_params(key, c1, nc, na):
    c_ = min(c1, 256)
    lin = (c_ - na * 5) * np.linspace(1.0, 0.0, 4, dtype=np.float32)
    c = [int(v + na * 5) for v in lin]          # mirrors the torch channel plan

    def w1x1(k, cin, cout):
        return jax.random.normal(k, (cin, cout), jnp.float32) / np.sqrt(cin)

    def w3x3(k, cin, cout):
        return jax.random.normal(k, (9, cin, cout), jnp.float32) / np.sqrt(9 * cin)

    def bias(k, cout):
        return 0.02 * jax.random.normal(k, (1, cout), jnp.float32)

    ks = jax.random.split(key, 14)
    return {
        "a_w": w1x1(ks[0], c1, c_),        "a_b": bias(ks[1], c_),
        "b1_w": w3x3(ks[2], c_, c[1]),     "b1_b": bias(ks[3], c[1]),
        "b2_w": w3x3(ks[4], c[1], c[2]),   "b2_b": bias(ks[5], c[2]),
        "b3_w": w1x1(ks[6], c[2], na * 5), "b3_b": bias(ks[7], na * 5),
        "c1_w": w1x1(ks[8], c_, c_),       "c1_b": bias(ks[9], c_),
        "c2_w": w1x1(ks[10], c_, c_),      "c2_b": bias(ks[11], c_),
        "c3_w": w1x1(ks[12], c_, na * nc), "c3_b": bias(ks[13], na * nc),
    }


# --------------------------------------------------------------------------- #
# pure-JAX reference (uses the same bf16-rounded operands as the kernel)       #
# --------------------------------------------------------------------------- #
def decouple_reference(params, x_nchw, *, na, nc):
    rnd = lambda a: a.astype(jnp.bfloat16).astype(jnp.float32)
    x = rnd(jnp.transpose(x_nchw, (0, 2, 3, 1)))

    def conv1(x, w, b, act):
        y = jnp.einsum("bhwc,co->bhwo", x, rnd(w)) + b.reshape(-1)
        return y * jax.nn.sigmoid(y) if act else y

    def conv3(x, w, b):
        w4 = rnd(w).reshape(3, 3, w.shape[1], w.shape[2])
        y = jax.lax.conv_general_dilated(
            x, w4, window_strides=(1, 1), padding="SAME",
            dimension_numbers=("NHWC", "HWIO", "NHWC")) + b.reshape(-1)
        return y * jax.nn.sigmoid(y)

    xa = rnd(conv1(x, params["a_w"], params["a_b"], True))
    t = rnd(conv1(xa, params["c1_w"], params["c1_b"], True))
    t = rnd(conv1(t, params["c2_w"], params["c2_b"], True))
    cc = conv1(t, params["c3_w"], params["c3_b"], False)

    y = rnd(conv3(xa, params["b1_w"], params["b1_b"]))
    y = rnd(conv3(y, params["b2_w"], params["b2_b"]))
    bb = conv1(y, params["b3_w"], params["b3_b"], False)

    bs, ny, nx, _ = x.shape
    b_nchw = jnp.transpose(bb.reshape(bs, ny, nx, na, 5), (0, 3, 4, 1, 2))
    c_nchw = jnp.transpose(cc.reshape(bs, ny, nx, na, nc), (0, 3, 4, 1, 2))
    out = jnp.concatenate([b_nchw, c_nchw], axis=2)
    return out.reshape(bs, na * (5 + nc), ny, nx)


# --------------------------------------------------------------------------- #
if __name__ == "__main__":
    key = jax.random.PRNGKey(0)
    kp, kx = jax.random.split(key)

    BS, C1, NY, NX = 2, 64, 16, 16              # small deterministic example
    NC, NA = 16, 3                              # num classes / anchors

    params = make_decouple_params(kp, C1, NC, NA)
    x = jax.random.normal(kx, (BS, C1, NY, NX), jnp.float32)

    fwd = jax.jit(functools.partial(decouple_forward, na=NA, nc=NC))
    out = fwd(params, x)
    jax.block_until_ready(out)

    ref = jax.jit(functools.partial(decouple_reference, na=NA, nc=NC))(params, x)
    jax.block_until_ready(ref)

    assert out.shape == (BS, NA * (NC + 5), NY, NX), out.shape
    assert bool(jnp.all(jnp.isfinite(out)))
    max_err = float(jnp.max(jnp.abs(out - ref)))
    assert max_err < 0.1, f"kernel/reference mismatch: max |diff| = {max_err}"
    print("KERNEL_OK")
</pallas_src>

<mosaic_0001>
module attributes {stable_mosaic.version = 11 : i64} {
  func.func @_decouple_kernel(%arg0: i32, %arg1: memref<1x256x64xbf16, #tpu.memory_space<vmem>>, %arg2: memref<2x256x1xbf16, #tpu.memory_space<vmem>>, %arg3: memref<64x64xbf16, #tpu.memory_space<vmem>>, %arg4: memref<1x64xf32, #tpu.memory_space<vmem>>, %arg5: memref<9x64x47xbf16, #tpu.memory_space<vmem>>, %arg6: memref<1x47xf32, #tpu.memory_space<vmem>>, %arg7: memref<9x47x31xbf16, #tpu.memory_space<vmem>>, %arg8: memref<1x31xf32, #tpu.memory_space<vmem>>, %arg9: memref<31x15xbf16, #tpu.memory_space<vmem>>, %arg10: memref<1x15xf32, #tpu.memory_space<vmem>>, %arg11: memref<64x64xbf16, #tpu.memory_space<vmem>>, %arg12: memref<1x64xf32, #tpu.memory_space<vmem>>, %arg13: memref<64x64xbf16, #tpu.memory_space<vmem>>, %arg14: memref<1x64xf32, #tpu.memory_space<vmem>>, %arg15: memref<64x48xbf16, #tpu.memory_space<vmem>>, %arg16: memref<1x48xf32, #tpu.memory_space<vmem>>, %arg17: memref<1x256x15xf32, #tpu.memory_space<vmem>>, %arg18: memref<1x256x48xf32, #tpu.memory_space<vmem>>) attributes {dimension_semantics = [#tpu.dimension_semantics<parallel>], iteration_bounds = array<i64: 2>, scalar_prefetch = 0 : i64, scratch_operands = 0 : i64, tpu.core_type = #tpu.core_type<tc>, window_params = [{transform_indices = @transform_0, window_bounds = array<i64: 1, 256, 64>}, {pipeline_mode = #tpu.pipeline_mode<synchronous>, transform_indices = @transform_1, window_bounds = array<i64: 2, 256, 1>}, {pipeline_mode = #tpu.pipeline_mode<synchronous>, transform_indices = @transform_2, window_bounds = array<i64: 64, 64>}, {pipeline_mode = #tpu.pipeline_mode<synchronous>, transform_indices = @transform_3, window_bounds = array<i64: 1, 64>}, {pipeline_mode = #tpu.pipeline_mode<synchronous>, transform_indices = @transform_4, window_bounds = array<i64: 9, 64, 47>}, {pipeline_mode = #tpu.pipeline_mode<synchronous>, transform_indices = @transform_5, window_bounds = array<i64: 1, 47>}, {pipeline_mode = #tpu.pipeline_mode<synchronous>, transform_indices = @transform_6, window_bounds = array<i64: 9, 47, 31>}, {pipeline_mode = #tpu.pipeline_mode<synchronous>, transform_indices = @transform_7, window_bounds = array<i64: 1, 31>}, {pipeline_mode = #tpu.pipeline_mode<synchronous>, transform_indices = @transform_8, window_bounds = array<i64: 31, 15>}, {pipeline_mode = #tpu.pipeline_mode<synchronous>, transform_indices = @transform_9, window_bounds = array<i64: 1, 15>}, {pipeline_mode = #tpu.pipeline_mode<synchronous>, transform_indices = @transform_10, window_bounds = array<i64: 64, 64>}, {pipeline_mode = #tpu.pipeline_mode<synchronous>, transform_indices = @transform_11, window_bounds = array<i64: 1, 64>}, {pipeline_mode = #tpu.pipeline_mode<synchronous>, transform_indices = @transform_12, window_bounds = array<i64: 64, 64>}, {pipeline_mode = #tpu.pipeline_mode<synchronous>, transform_indices = @transform_13, window_bounds = array<i64: 1, 64>}, {pipeline_mode = #tpu.pipeline_mode<synchronous>, transform_indices = @transform_14, window_bounds = array<i64: 64, 48>}, {pipeline_mode = #tpu.pipeline_mode<synchronous>, transform_indices = @transform_15, window_bounds = array<i64: 1, 48>}, {transform_indices = @transform_16, window_bounds = array<i64: 1, 256, 15>}, {transform_indices = @transform_17, window_bounds = array<i64: 1, 256, 48>}]} {
    %c0 = arith.constant 0 : index
    %c0_0 = arith.constant 0 : index
    %c0_1 = arith.constant 0 : index
    %0 = vector.load %arg1[%c0, %c0_0, %c0_1] : memref<1x256x64xbf16, #tpu.memory_space<vmem>>, vector<1x256x64xbf16>
    %1 = vector.shape_cast %0 : vector<1x256x64xbf16> to vector<256x64xbf16>
    %c0_2 = arith.constant 0 : index
    %c0_3 = arith.constant 0 : index
    %c0_4 = arith.constant 0 : index
    %2 = vector.load %arg2[%c0_2, %c0_3, %c0_4] : memref<2x256x1xbf16, #tpu.memory_space<vmem>>, vector<1x256x1xbf16>
    %3 = vector.shape_cast %2 : vector<1x256x1xbf16> to vector<256x1xbf16>
    %c1 = arith.constant 1 : index
    %c0_5 = arith.constant 0 : index
    %c0_6 = arith.constant 0 : index
    %4 = vector.load %arg2[%c1, %c0_5, %c0_6] : memref<2x256x1xbf16, #tpu.memory_space<vmem>>, vector<1x256x1xbf16>
    %5 = vector.shape_cast %4 : vector<1x256x1xbf16> to vector<256x1xbf16>
    %c0_7 = arith.constant 0 : index
    %c0_8 = arith.constant 0 : index
    %6 = vector.load %arg3[%c0_7, %c0_8] : memref<64x64xbf16, #tpu.memory_space<vmem>>, vector<64x64xbf16>
    %cst = arith.constant dense<0.000000e+00> : vector<256x64xf32>
    %7 = tpu.matmul %1, %6, %cst {dimension_numbers = #tpu.dot_dimension_numbers<[1], [0], [0], [1], [0, 0, 1, 1], [], []>} : vector<256x64xbf16>, vector<64x64xbf16>, vector<256x64xf32> -> vector<256x64xf32>
    %c0_9 = arith.constant 0 : index
    %c0_10 = arith.constant 0 : index
    %8 = vector.load %arg4[%c0_9, %c0_10] : memref<1x64xf32, #tpu.memory_space<vmem>>, vector<1x64xf32>
    %9 = vector.broadcast %8 : vector<1x64xf32> to vector<256x64xf32>
    %10 = arith.addf %7, %9 : vector<256x64xf32>
    %11 = arith.negf %10 : vector<256x64xf32>
    %12 = math.exp %11 : vector<256x64xf32>
    %cst_11 = arith.constant 1.000000e+00 : f32
    %13 = vector.broadcast %cst_11 : f32 to vector<256x64xf32>
    %14 = arith.addf %13, %12 : vector<256x64xf32>
    %15 = arith.divf %13, %14 : vector<256x64xf32>
    %16 = arith.mulf %10, %15 : vector<256x64xf32>
    %17 = arith.truncf %16 : vector<256x64xf32> to vector<256x64xbf16>
    %c0_12 = arith.constant 0 : index
    %c0_13 = arith.constant 0 : index
    %18 = vector.load %arg11[%c0_12, %c0_13] : memref<64x64xbf16, #tpu.memory_space<vmem>>, vector<64x64xbf16>
    %cst_14 = arith.constant dense<0.000000e+00> : vector<256x64xf32>
    %19 = tpu.matmul %17, %18, %cst_14 {dimension_numbers = #tpu.dot_dimension_numbers<[1], [0], [0], [1], [0, 0, 1, 1], [], []>} : vector<256x64xbf16>, vector<64x64xbf16>, vector<256x64xf32> -> vector<256x64xf32>
    %c0_15 = arith.constant 0 : index
    %c0_16 = arith.constant 0 : index
    %20 = vector.load %arg12[%c0_15, %c0_16] : memref<1x64xf32, #tpu.memory_space<vmem>>, vector<1x64xf32>
    %21 = vector.broadcast %20 : vector<1x64xf32> to vector<256x64xf32>
    %22 = arith.addf %19, %21 : vector<256x64xf32>
    %23 = arith.negf %22 : vector<256x64xf32>
    %24 = math.exp %23 : vector<256x64xf32>
    %cst_17 = arith.constant 1.000000e+00 : f32
    %25 = vector.broadcast %cst_17 : f32 to vector<256x64xf32>
    %26 = arith.addf %25, %24 : vector<256x64xf32>
    %27 = arith.divf %25, %26 : vector<256x64xf32>
    %28 = arith.mulf %22, %27 : vector<256x64xf32>
    %29 = arith.truncf %28 : vector<256x64xf32> to vector<256x64xbf16>
    %c0_18 = arith.constant 0 : index
    %c0_19 = arith.constant 0 : index
    %30 = vector.load %arg13[%c0_18, %c0_19] : memref<64x64xbf16, #tpu.memory_space<vmem>>, vector<64x64xbf16>
    %cst_20 = arith.constant dense<0.000000e+00> : vector<256x64xf32>
    %31 = tpu.matmul %29, %30, %cst_20 {dimension_numbers = #tpu.dot_dimension_numbers<[1], [0], [0], [1], [0, 0, 1, 1], [], []>} : vector<256x64xbf16>, vector<64x64xbf16>, vector<256x64xf32> -> vector<256x64xf32>
    %c0_21 = arith.constant 0 : index
    %c0_22 = arith.constant 0 : index
    %32 = vector.load %arg14[%c0_21, %c0_22] : memref<1x64xf32, #tpu.memory_space<vmem>>, vector<1x64xf32>
    %33 = vector.broadcast %32 : vector<1x64xf32> to vector<256x64xf32>
    %34 = arith.addf %31, %33 : vector<256x64xf32>
    %35 = arith.negf %34 : vector<256x64xf32>
    %36 = math.exp %35 : vector<256x64xf32>
    %cst_23 = arith.constant 1.000000e+00 : f32
    %37 = vector.broadcast %cst_23 : f32 to vector<256x64xf32>
    %38 = arith.addf %37, %36 : vector<256x64xf32>
    %39 = arith.divf %37, %38 : vector<256x64xf32>
    %40 = arith.mulf %34, %39 : vector<256x64xf32>
    %41 = arith.truncf %40 : vector<256x64xf32> to vector<256x64xbf16>
    %c0_24 = arith.constant 0 : index
    %c0_25 = arith.constant 0 : index
    %42 = vector.load %arg15[%c0_24, %c0_25] : memref<64x48xbf16, #tpu.memory_space<vmem>>, vector<64x48xbf16>
    %cst_26 = arith.constant dense<0.000000e+00> : vector<256x48xf32>
    %43 = tpu.matmul %41, %42, %cst_26 {dimension_numbers = #tpu.dot_dimension_numbers<[1], [0], [0], [1], [0, 0, 1, 1], [], []>} : vector<256x64xbf16>, vector<64x48xbf16>, vector<256x48xf32> -> vector<256x48xf32>
    %c0_27 = arith.constant 0 : index
    %c0_28 = arith.constant 0 : index
    %44 = vector.load %arg16[%c0_27, %c0_28] : memref<1x48xf32, #tpu.memory_space<vmem>>, vector<1x48xf32>
    %45 = vector.broadcast %44 : vector<1x48xf32> to vector<256x48xf32>
    %46 = arith.addf %43, %45 : vector<256x48xf32>
    %c0_29 = arith.constant 0 : index
    %c0_30 = arith.constant 0 : index
    %c0_31 = arith.constant 0 : index
    %47 = vector.load %arg18[%c0_29, %c0_30, %c0_31] : memref<1x256x48xf32, #tpu.memory_space<vmem>>, vector<1x256x48xf32>
    %48 = vector.shape_cast %47 : vector<1x256x48xf32> to vector<256x48xf32>
    %49 = vector.shape_cast %46 : vector<256x48xf32> to vector<1x256x48xf32>
    tpu.vector_store %arg18[%c0_29, %c0_30, %c0_31], %49 {strides = array<i32>} : memref<1x256x48xf32, #tpu.memory_space<vmem>>, vector<1x256x48xf32>,
    %cst_32 = arith.constant 0.000000e+00 : f32
    %50 = vector.broadcast %cst_32 : f32 to vector<32x64xf32>
    %51 = tpu.concatenate %50, %16, %50 in 0 : vector<32x64xf32>, vector<256x64xf32>, vector<32x64xf32> -> vector<320x64xf32>
    %cst_33 = arith.constant 0.000000e+00 : f32
    %52 = vector.broadcast %cst_33 : f32 to vector<256x47xf32>
    %53 = vector.extract_strided_slice %51 {offsets = [15, 0], sizes = [256, 64], strides = [1, 1]} : vector<320x64xf32> to vector<256x64xf32>
    %54 = arith.truncf %53 : vector<256x64xf32> to vector<256x64xbf16>
    %55 = vector.broadcast %3 : vector<256x1xbf16> to vector<256x64xbf16>
    %56 = arith.mulf %54, %55 : vector<256x64xbf16>
    %c0_34 = arith.constant 0 : index
    %c0_35 = arith.constant 0 : index
    %c0_36 = arith.constant 0 : index
    %57 = vector.load %arg5[%c0_34, %c0_35, %c0_36] : memref<9x64x47xbf16, #tpu.memory_space<vmem>>, vector<1x64x47xbf16>
    %58 = vector.shape_cast %57 : vector<1x64x47xbf16> to vector<64x47xbf16>
    %cst_37 = arith.constant dense<0.000000e+00> : vector<256x47xf32>
    %59 = tpu.matmul %56, %58, %cst_37 {dimension_numbers = #tpu.dot_dimension_numbers<[1], [0], [0], [1], [0, 0, 1, 1], [], []>} : vector<256x64xbf16>, vector<64x47xbf16>, vector<256x47xf32> -> vector<256x47xf32>
    %60 = arith.addf %52, %59 : vector<256x47xf32>
    %61 = vector.extract_strided_slice %51 {offsets = [16, 0], sizes = [256, 64], strides = [1, 1]} : vector<320x64xf32> to vector<256x64xf32>
    %62 = arith.truncf %61 : vector<256x64xf32> to vector<256x64xbf16>
    %c1_38 = arith.constant 1 : index
    %c0_39 = arith.constant 0 : index
    %c0_40 = arith.constant 0 : index
    %63 = vector.load %arg5[%c1_38, %c0_39, %c0_40] : memref<9x64x47xbf16, #tpu.memory_space<vmem>>, vector<1x64x47xbf16>
    %64 = vector.shape_cast %63 : vector<1x64x47xbf16> to vector<64x47xbf16>
    %cst_41 = arith.constant dense<0.000000e+00> : vector<256x47xf32>
    %65 = tpu.matmul %62, %64, %cst_41 {dimension_numbers = #tpu.dot_dimension_numbers<[1], [0], [0], [1], [0, 0, 1, 1], [], []>} : vector<256x64xbf16>, vector<64x47xbf16>, vector<256x47xf32> -> vector<256x47xf32>
    %66 = arith.addf %60, %65 : vector<256x47xf32>
    %67 = vector.extract_strided_slice %51 {offsets = [17, 0], sizes = [256, 64], strides = [1, 1]} : vector<320x64xf32> to vector<256x64xf32>
    %68 = arith.truncf %67 : vector<256x64xf32> to vector<256x64xbf16>
    %69 = vector.broadcast %5 : vector<256x1xbf16> to vector<256x64xbf16>
    %70 = arith.mulf %68, %69 : vector<256x64xbf16>
    %c2 = arith.constant 2 : index
    %c0_42 = arith.constant 0 : index
    %c0_43 = arith.constant 0 : index
    %71 = vector.load %arg5[%c2, %c0_42, %c0_43] : memref<9x64x47xbf16, #tpu.memory_space<vmem>>, vector<1x64x47xbf16>
    %72 = vector.shape_cast %71 : vector<1x64x47xbf16> to vector<64x47xbf16>
    %cst_44 = arith.constant dense<0.000000e+00> : vector<256x47xf32>
    %73 = tpu.matmul %70, %72, %cst_44 {dimension_numbers = #tpu.dot_dimension_numbers<[1], [0], [0], [1], [0, 0, 1, 1], [], []>} : vector<256x64xbf16>, vector<64x47xbf16>, vector<256x47xf32> -> vector<256x47xf32>
    %74 = arith.addf %66, %73 : vector<256x47xf32>
    %75 = vector.extract_strided_slice %51 {offsets = [31, 0], sizes = [256, 64], strides = [1, 1]} : vector<320x64xf32> to vector<256x64xf32>
    %76 = arith.truncf %75 : vector<256x64xf32> to vector<256x64xbf16>
    %77 = vector.broadcast %3 : vector<256x1xbf16> to vector<256x64xbf16>
    %78 = arith.mulf %76, %77 : vector<256x64xbf16>
    %c3 = arith.constant 3 : index
    %c0_45 = arith.constant 0 : index
    %c0_46 = arith.constant 0 : index
    %79 = vector.load %arg5[%c3, %c0_45, %c0_46] : memref<9x64x47xbf16, #tpu.memory_space<vmem>>, vector<1x64x47xbf16>
    %80 = vector.shape_cast %79 : vector<1x64x47xbf16> to vector<64x47xbf16>
    %cst_47 = arith.constant dense<0.000000e+00> : vector<256x47xf32>
    %81 = tpu.matmul %78, %80, %cst_47 {dimension_numbers = #tpu.dot_dimension_numbers<[1], [0], [0], [1], [0, 0, 1, 1], [], []>} : vector<256x64xbf16>, vector<64x47xbf16>, vector<256x47xf32> -> vector<256x47xf32>
    %82 = arith.addf %74, %81 : vector<256x47xf32>
    %83 = vector.extract_strided_slice %51 {offsets = [32, 0], sizes = [256, 64], strides = [1, 1]} : vector<320x64xf32> to vector<256x64xf32>
    %84 = arith.truncf %83 : vector<256x64xf32> to vector<256x64xbf16>
    %c4 = arith.constant 4 : index
    %c0_48 = arith.constant 0 : index
    %c0_49 = arith.constant 0 : index
    %85 = vector.load %arg5[%c4, %c0_48, %c0_49] : memref<9x64x47xbf16, #tpu.memory_space<vmem>>, vector<1x64x47xbf16>
    %86 = vector.shape_cast %85 : vector<1x64x47xbf16> to vector<64x47xbf16>
    %cst_50 = arith.constant dense<0.000000e+00> : vector<256x47xf32>
    %87 = tpu.matmul %84, %86, %cst_50 {dimension_numbers = #tpu.dot_dimension_numbers<[1], [0], [0], [1], [0, 0, 1, 1], [], []>} : vector<256x64xbf16>, vector<64x47xbf16>, vector<256x47xf32> -> vector<256x47xf32>
    %88 = arith.addf %82, %87 : vector<256x47xf32>
    %89 = vector.extract_strided_slice %51 {offsets = [33, 0], sizes = [256, 64], strides = [1, 1]} : vector<320x64xf32> to vector<256x64xf32>
    %90 = arith.truncf %89 : vector<256x64xf32> to vector<256x64xbf16>
    %91 = vector.broadcast %5 : vector<256x1xbf16> to vector<256x64xbf16>
    %92 = arith.mulf %90, %91 : vector<256x64xbf16>
    %c5 = arith.constant 5 : index
    %c0_51 = arith.constant 0 : index
    %c0_52 = arith.constant 0 : index
    %93 = vector.load %arg5[%c5, %c0_51, %c0_52] : memref<9x64x47xbf16, #tpu.memory_space<vmem>>, vector<1x64x47xbf16>
    %94 = vector.shape_cast %93 : vector<1x64x47xbf16> to vector<64x47xbf16>
    %cst_53 = arith.constant dense<0.000000e+00> : vector<256x47xf32>
    %95 = tpu.matmul %92, %94, %cst_53 {dimension_numbers = #tpu.dot_dimension_numbers<[1], [0], [0], [1], [0, 0, 1, 1], [], []>} : vector<256x64xbf16>, vector<64x47xbf16>, vector<256x47xf32> -> vector<256x47xf32>
    %96 = arith.addf %88, %95 : vector<256x47xf32>
    %97 = vector.extract_strided_slice %51 {offsets = [47, 0], sizes = [256, 64], strides = [1, 1]} : vector<320x64xf32> to vector<256x64xf32>
    %98 = arith.truncf %97 : vector<256x64xf32> to vector<256x64xbf16>
    %99 = vector.broadcast %3 : vector<256x1xbf16> to vector<256x64xbf16>
    %100 = arith.mulf %98, %99 : vector<256x64xbf16>
    %c6 = arith.constant 6 : index
    %c0_54 = arith.constant 0 : index
    %c0_55 = arith.constant 0 : index
    %101 = vector.load %arg5[%c6, %c0_54, %c0_55] : memref<9x64x47xbf16, #tpu.memory_space<vmem>>, vector<1x64x47xbf16>
    %102 = vector.shape_cast %101 : vector<1x64x47xbf16> to vector<64x47xbf16>
    %cst_56 = arith.constant dense<0.000000e+00> : vector<256x47xf32>
    %103 = tpu.matmul %100, %102, %cst_56 {dimension_numbers = #tpu.dot_dimension_numbers<[1], [0], [0], [1], [0, 0, 1, 1], [], []>} : vector<256x64xbf16>, vector<64x47xbf16>, vector<256x47xf32> -> vector<256x47xf32>
    %104 = arith.addf %96, %103 : vector<256x47xf32>
    %105 = vector.extract_strided_slice %51 {offsets = [48, 0], sizes = [256, 64], strides = [1, 1]} : vector<320x64xf32> to vector<256x64xf32>
    %106 = arith.truncf %105 : vector<256x64xf32> to vector<256x64xbf16>
    %c7 = arith.constant 7 : index
    %c0_57 = arith.constant 0 : index
    %c0_58 = arith.constant 0 : index
    %107 = vector.load %arg5[%c7, %c0_57, %c0_58] : memref<9x64x47xbf16, #tpu.memory_space<vmem>>, vector<1x64x47xbf16>
    %108 = vector.shape_cast %107 : vector<1x64x47xbf16> to vector<64x47xbf16>
    %cst_59 = arith.constant dense<0.000000e+00> : vector<256x47xf32>
    %109 = tpu.matmul %106, %108, %cst_59 {dimension_numbers = #tpu.dot_dimension_numbers<[1], [0], [0], [1], [0, 0, 1, 1], [], []>} : vector<256x64xbf16>, vector<64x47xbf16>, vector<256x47xf32> -> vector<256x47xf32>
    %110 = arith.addf %104, %109 : vector<256x47xf32>
    %111 = vector.extract_strided_slice %51 {offsets = [49, 0], sizes = [256, 64], strides = [1, 1]} : vector<320x64xf32> to vector<256x64xf32>
    %112 = arith.truncf %111 : vector<256x64xf32> to vector<256x64xbf16>
    %113 = vector.broadcast %5 : vector<256x1xbf16> to vector<256x64xbf16>
    %114 = arith.mulf %112, %113 : vector<256x64xbf16>
    %c8 = arith.constant 8 : index
    %c0_60 = arith.constant 0 : index
    %c0_61 = arith.constant 0 : index
    %115 = vector.load %arg5[%c8, %c0_60, %c0_61] : memref<9x64x47xbf16, #tpu.memory_space<vmem>>, vector<1x64x47xbf16>
    %116 = vector.shape_cast %115 : vector<1x64x47xbf16> to vector<64x47xbf16>
    %cst_62 = arith.constant dense<0.000000e+00> : vector<256x47xf32>
    %117 = tpu.matmul %114, %116, %cst_62 {dimension_numbers = #tpu.dot_dimension_numbers<[1], [0], [0], [1], [0, 0, 1, 1], [], []>} : vector<256x64xbf16>, vector<64x47xbf16>, vector<256x47xf32> -> vector<256x47xf32>
    %118 = arith.addf %110, %117 : vector<256x47xf32>
    %c0_63 = arith.constant 0 : index
    %c0_64 = arith.constant 0 : index
    %119 = vector.load %arg6[%c0_63, %c0_64] : memref<1x47xf32, #tpu.memory_space<vmem>>, vector<1x47xf32>
    %120 = vector.broadcast %119 : vector<1x47xf32> to vector<256x47xf32>
    %121 = arith.addf %118, %120 : vector<256x47xf32>
    %122 = arith.negf %121 : vector<256x47xf32>
    %123 = math.exp %122 : vector<256x47xf32>
    %cst_65 = arith.constant 1.000000e+00 : f32
    %124 = vector.broadcast %cst_65 : f32 to vector<256x47xf32>
    %125 = arith.addf %124, %123 : vector<256x47xf32>
    %126 = arith.divf %124, %125 : vector<256x47xf32>
    %127 = arith.mulf %121, %126 : vector<256x47xf32>
    %cst_66 = arith.constant 0.000000e+00 : f32
    %128 = vector.broadcast %cst_66 : f32 to vector<32x47xf32>
    %129 = tpu.concatenate %128, %127, %128 in 0 : vector<32x47xf32>, vector<256x47xf32>, vector<32x47xf32> -> vector<320x47xf32>
    %cst_67 = arith.constant 0.000000e+00 : f32
    %130 = vector.broadcast %cst_67 : f32 to vector<256x31xf32>
    %131 = vector.extract_strided_slice %129 {offsets = [15, 0], sizes = [256, 47], strides = [1, 1]} : vector<320x47xf32> to vector<256x47xf32>
    %132 = arith.truncf %131 : vector<256x47xf32> to vector<256x47xbf16>
    %133 = vector.broadcast %3 : vector<256x1xbf16> to vector<256x47xbf16>
    %134 = arith.mulf %132, %133 : vector<256x47xbf16>
    %c0_68 = arith.constant 0 : index
    %c0_69 = arith.constant 0 : index
    %c0_70 = arith.constant 0 : index
    %135 = vector.load %arg7[%c0_68, %c0_69, %c0_70] : memref<9x47x31xbf16, #tpu.memory_space<vmem>>, vector<1x47x31xbf16>
    %136 = vector.shape_cast %135 : vector<1x47x31xbf16> to vector<47x31xbf16>
    %cst_71 = arith.constant dense<0.000000e+00> : vector<256x31xf32>
    %137 = tpu.matmul %134, %136, %cst_71 {dimension_numbers = #tpu.dot_dimension_numbers<[1], [0], [0], [1], [0, 0, 1, 1], [], []>} : vector<256x47xbf16>, vector<47x31xbf16>, vector<256x31xf32> -> vector<256x31xf32>
    %138 = arith.addf %130, %137 : vector<256x31xf32>
    %139 = vector.extract_strided_slice %129 {offsets = [16, 0], sizes = [256, 47], strides = [1, 1]} : vector<320x47xf32> to vector<256x47xf32>
    %140 = arith.truncf %139 : vector<256x47xf32> to vector<256x47xbf16>
    %c1_72 = arith.constant 1 : index
    %c0_73 = arith.constant 0 : index
    %c0_74 = arith.constant 0 : index
    %141 = vector.load %arg7[%c1_72, %c0_73, %c0_74] : memref<9x47x31xbf16, #tpu.memory_space<vmem>>, vector<1x47x31xbf16>
    %142 = vector.shape_cast %141 : vector<1x47x31xbf16> to vector<47x31xbf16>
    %cst_75 = arith.constant dense<0.000000e+00> : vector<256x31xf32>
    %143 = tpu.matmul %140, %142, %cst_75 {dimension_numbers = #tpu.dot_dimension_numbers<[1], [0], [0], [1], [0, 0, 1, 1], [], []>} : vector<256x47xbf16>, vector<47x31xbf16>, vector<256x31xf32> -> vector<256x31xf32>
    %144 = arith.addf %138, %143 : vector<256x31xf32>
    %145 = vector.extract_strided_slice %129 {offsets = [17, 0], sizes = [256, 47], strides = [1, 1]} : vector<320x47xf32> to vector<256x47xf32>
    %146 = arith.truncf %145 : vector<256x47xf32> to vector<256x47xbf16>
    %147 = vector.broadcast %5 : vector<256x1xbf16> to vector<256x47xbf16>
    %148 = arith.mulf %146, %147 : vector<256x47xbf16>
    %c2_76 = arith.constant 2 : index
    %c0_77 = arith.constant 0 : index
    %c0_78 = arith.constant 0 : index
    %149 = vector.load %arg7[%c2_76, %c0_77, %c0_78] : memref<9x47x31xbf16, #tpu.memory_space<vmem>>, vector<1x47x31xbf16>
    %150 = vector.shape_cast %149 : vector<1x47x31xbf16> to vector<47x31xbf16>
    %cst_79 = arith.constant dense<0.000000e+00> : vector<256x31xf32>
    %151 = tpu.matmul %148, %150, %cst_79 {dimension_numbers = #tpu.dot_dimension_numbers<[1], [0], [0], [1], [0, 0, 1, 1], [], []>} : vector<256x47xbf16>, vector<47x31xbf16>, vector<256x31xf32> -> vector<256x31xf32>
    %152 = arith.addf %144, %151 : vector<256x31xf32>
    %153 = vector.extract_strided_slice %129 {offsets = [31, 0], sizes = [256, 47], strides = [1, 1]} : vector<320x47xf32> to vector<256x47xf32>
    %154 = arith.truncf %153 : vector<256x47xf32> to vector<256x47xbf16>
    %155 = vector.broadcast %3 : vector<256x1xbf16> to vector<256x47xbf16>
    %156 = arith.mulf %154, %155 : vector<256x47xbf16>
    %c3_80 = arith.constant 3 : index
    %c0_81 = arith.constant 0 : index
    %c0_82 = arith.constant 0 : index
    %157 = vector.load %arg7[%c3_80, %c0_81, %c0_82] : memref<9x47x31xbf16, #tpu.memory_space<vmem>>, vector<1x47x31xbf16>
    %158 = vector.shape_cast %157 : vector<1x47x31xbf16> to vector<47x31xbf16>
    %cst_83 = arith.constant dense<0.000000e+00> : vector<256x31xf32>
    %159 = tpu.matmul %156, %158, %cst_83 {dimension_numbers = #tpu.dot_dimension_numbers<[1], [0], [0], [1], [0, 0, 1, 1], [], []>} : vector<256x47xbf16>, vector<47x31xbf16>, vector<256x31xf32> -> vector<256x31xf32>
    %160 = arith.addf %152, %159 : vector<256x31xf32>
    %161 = vector.extract_strided_slice %129 {offsets = [32, 0], sizes = [256, 47], strides = [1, 1]} : vector<320x47xf32> to vector<256x47xf32>
    %162 = arith.truncf %161 : vector<256x47xf32> to vector<256x47xbf16>
    %c4_84 = arith.constant 4 : index
    %c0_85 = arith.constant 0 : index
    %c0_86 = arith.constant 0 : index
    %163 = vector.load %arg7[%c4_84, %c0_85, %c0_86] : memref<9x47x31xbf16, #tpu.memory_space<vmem>>, vector<1x47x31xbf16>
    %164 = vector.shape_cast %163 : vector<1x47x31xbf16> to vector<47x31xbf16>
    %cst_87 = arith.constant dense<0.000000e+00> : vector<256x31xf32>
    %165 = tpu.matmul %162, %164, %cst_87 {dimension_numbers = #tpu.dot_dimension_numbers<[1], [0], [0], [1], [0, 0, 1, 1], [], []>} : vector<256x47xbf16>, vector<47x31xbf16>, vector<256x31xf32> -> vector<256x31xf32>
    %166 = arith.addf %160, %165 : vector<256x31xf32>
    %167 = vector.extract_strided_slice %129 {offsets = [33, 0], sizes = [256, 47], strides = [1, 1]} : vector<320x47xf32> to vector<256x47xf32>
    %168 = arith.truncf %167 : vector<256x47xf32> to vector<256x47xbf16>
    %169 = vector.broadcast %5 : vector<256x1xbf16> to vector<256x47xbf16>
    %170 = arith.mulf %168, %169 : vector<256x47xbf16>
    %c5_88 = arith.constant 5 : index
    %c0_89 = arith.constant 0 : index
    %c0_90 = arith.constant 0 : index
    %171 = vector.load %arg7[%c5_88, %c0_89, %c0_90] : memref<9x47x31xbf16, #tpu.memory_space<vmem>>, vector<1x47x31xbf16>
    %172 = vector.shape_cast %171 : vector<1x47x31xbf16> to vector<47x31xbf16>
    %cst_91 = arith.constant dense<0.000000e+00> : vector<256x31xf32>
    %173 = tpu.matmul %170, %172, %cst_91 {dimension_numbers = #tpu.dot_dimension_numbers<[1], [0], [0], [1], [0, 0, 1, 1], [], []>} : vector<256x47xbf16>, vector<47x31xbf16>, vector<256x31xf32> -> vector<256x31xf32>
    %174 = arith.addf %166, %173 : vector<256x31xf32>
    %175 = vector.extract_strided_slice %129 {offsets = [47, 0], sizes = [256, 47], strides = [1, 1]} : vector<320x47xf32> to vector<256x47xf32>
    %176 = arith.truncf %175 : vector<256x47xf32> to vector<256x47xbf16>
    %177 = vector.broadcast %3 : vector<256x1xbf16> to vector<256x47xbf16>
    %178 = arith.mulf %176, %177 : vector<256x47xbf16>
    %c6_92 = arith.constant 6 : index
    %c0_93 = arith.constant 0 : index
    %c0_94 = arith.constant 0 : index
    %179 = vector.load %arg7[%c6_92, %c0_93, %c0_94] : memref<9x47x31xbf16, #tpu.memory_space<vmem>>, vector<1x47x31xbf16>
    %180 = vector.shape_cast %179 : vector<1x47x31xbf16> to vector<47x31xbf16>
    %cst_95 = arith.constant dense<0.000000e+00> : vector<256x31xf32>
    %181 = tpu.matmul %178, %180, %cst_95 {dimension_numbers = #tpu.dot_dimension_numbers<[1], [0], [0], [1], [0, 0, 1, 1], [], []>} : vector<256x47xbf16>, vector<47x31xbf16>, vector<256x31xf32> -> vector<256x31xf32>
    %182 = arith.addf %174, %181 : vector<256x31xf32>
    %183 = vector.extract_strided_slice %129 {offsets = [48, 0], sizes = [256, 47], strides = [1, 1]} : vector<320x47xf32> to vector<256x47xf32>
    %184 = arith.truncf %183 : vector<256x47xf32> to vector<256x47xbf16>
    %c7_96 = arith.constant 7 : index
    %c0_97 = arith.constant 0 : index
    %c0_98 = arith.constant 0 : index
    %185 = vector.load %arg7[%c7_96, %c0_97, %c0_98] : memref<9x47x31xbf16, #tpu.memory_space<vmem>>, vector<1x47x31xbf16>
    %186 = vector.shape_cast %185 : vector<1x47x31xbf16> to vector<47x31xbf16>
    %cst_99 = arith.constant dense<0.000000e+00> : vector<256x31xf32>
    %187 = tpu.matmul %184, %186, %cst_99 {dimension_numbers = #tpu.dot_dimension_numbers<[1], [0], [0], [1], [0, 0, 1, 1], [], []>} : vector<256x47xbf16>, vector<47x31xbf16>, vector<256x31xf32> -> vector<256x31xf32>
    %188 = arith.addf %182, %187 : vector<256x31xf32>
    %189 = vector.extract_strided_slice %129 {offsets = [49, 0], sizes = [256, 47], strides = [1, 1]} : vector<320x47xf32> to vector<256x47xf32>
    %190 = arith.truncf %189 : vector<256x47xf32> to vector<256x47xbf16>
    %191 = vector.broadcast %5 : vector<256x1xbf16> to vector<256x47xbf16>
    %192 = arith.mulf %190, %191 : vector<256x47xbf16>
    %c8_100 = arith.constant 8 : index
    %c0_101 = arith.constant 0 : index
    %c0_102 = arith.constant 0 : index
    %193 = vector.load %arg7[%c8_100, %c0_101, %c0_102] : memref<9x47x31xbf16, #tpu.memory_space<vmem>>, vector<1x47x31xbf16>
    %194 = vector.shape_cast %193 : vector<1x47x31xbf16> to vector<47x31xbf16>
    %cst_103 = arith.constant dense<0.000000e+00> : vector<256x31xf32>
    %195 = tpu.matmul %192, %194, %cst_103 {dimension_numbers = #tpu.dot_dimension_numbers<[1], [0], [0], [1], [0, 0, 1, 1], [], []>} : vector<256x47xbf16>, vector<47x31xbf16>, vector<256x31xf32> -> vector<256x31xf32>
    %196 = arith.addf %188, %195 : vector<256x31xf32>
    %c0_104 = arith.constant 0 : index
    %c0_105 = arith.constant 0 : index
    %197 = vector.load %arg8[%c0_104, %c0_105] : memref<1x31xf32, #tpu.memory_space<vmem>>, vector<1x31xf32>
    %198 = vector.broadcast %197 : vector<1x31xf32> to vector<256x31xf32>
    %199 = arith.addf %196, %198 : vector<256x31xf32>
    %200 = arith.negf %199 : vector<256x31xf32>
    %201 = math.exp %200 : vector<256x31xf32>
    %cst_106 = arith.constant 1.000000e+00 : f32
    %202 = vector.broadcast %cst_106 : f32 to vector<256x31xf32>
    %203 = arith.addf %202, %201 : vector<256x31xf32>
    %204 = arith.divf %202, %203 : vector<256x31xf32>
    %205 = arith.mulf %199, %204 : vector<256x31xf32>
    %206 = arith.truncf %205 : vector<256x31xf32> to vector<256x31xbf16>
    %c0_107 = arith.constant 0 : index
    %c0_108 = arith.constant 0 : index
    %207 = vector.load %arg9[%c0_107, %c0_108] : memref<31x15xbf16, #tpu.memory_space<vmem>>, vector<31x15xbf16>
    %cst_109 = arith.constant dense<0.000000e+00> : vector<256x15xf32>
    %208 = tpu.matmul %206, %207, %cst_109 {dimension_numbers = #tpu.dot_dimension_numbers<[1], [0], [0], [1], [0, 0, 1, 1], [], []>} : vector<256x31xbf16>, vector<31x15xbf16>, vector<256x15xf32> -> vector<256x15xf32>
    %c0_110 = arith.constant 0 : index
    %c0_111 = arith.constant 0 : index
    %209 = vector.load %arg10[%c0_110, %c0_111] : memref<1x15xf32, #tpu.memory_space<vmem>>, vector<1x15xf32>
    %210 = vector.broadcast %209 : vector<1x15xf32> to vector<256x15xf32>
    %211 = arith.addf %208, %210 : vector<256x15xf32>
    %c0_112 = arith.constant 0 : index
    %c0_113 = arith.constant 0 : index
    %c0_114 = arith.constant 0 : index
    %212 = vector.load %arg17[%c0_112, %c0_113, %c0_114] : memref<1x256x15xf32, #tpu.memory_space<vmem>>, vector<1x256x15xf32>
    %213 = vector.shape_cast %212 : vector<1x256x15xf32> to vector<256x15xf32>
    %214 = vector.shape_cast %211 : vector<256x15xf32> to vector<1x256x15xf32>
    tpu.vector_store %arg17[%c0_112, %c0_113, %c0_114], %214 {strides = array<i32>} : memref<1x256x15xf32, #tpu.memory_space<vmem>>, vector<1x256x15xf32>,
    return
  }
  func.func @transform_0(%arg0: i32) -> (i32, i32, i32) {
    %c0_i32 = arith.constant 0 : i32
    %c0_i32_0 = arith.constant 0 : i32
    %c0_i32_1 = arith.constant 0 : i32
    return %arg0, %c0_i32, %c0_i32_0 : i32, i32, i32
  }
  func.func @transform_1(%arg0: i32) -> (i32, i32, i32) {
    %c0_i32 = arith.constant 0 : i32
    %c0_i32_0 = arith.constant 0 : i32
    %c0_i32_1 = arith.constant 0 : i32
    %c0_i32_2 = arith.constant 0 : i32
    return %c0_i32, %c0_i32_0, %c0_i32_1 : i32, i32, i32
  }
  func.func @transform_2(%arg0: i32) -> (i32, i32) {
    %c0_i32 = arith.constant 0 : i32
    %c0_i32_0 = arith.constant 0 : i32
    %c0_i32_1 = arith.constant 0 : i32
    return %c0_i32, %c0_i32_0 : i32, i32
  }
  func.func @transform_3(%arg0: i32) -> (i32, i32) {
    %c0_i32 = arith.constant 0 : i32
    %c0_i32_0 = arith.constant 0 : i32
    %c0_i32_1 = arith.constant 0 : i32
    return %c0_i32, %c0_i32_0 : i32, i32
  }
  func.func @transform_4(%arg0: i32) -> (i32, i32, i32) {
    %c0_i32 = arith.constant 0 : i32
    %c0_i32_0 = arith.constant 0 : i32
    %c0_i32_1 = arith.constant 0 : i32
    %c0_i32_2 = arith.constant 0 : i32
    return %c0_i32, %c0_i32_0, %c0_i32_1 : i32, i32, i32
  }
  func.func @transform_5(%arg0: i32) -> (i32, i32) {
    %c0_i32 = arith.constant 0 : i32
    %c0_i32_0 = arith.constant 0 : i32
    %c0_i32_1 = arith.constant 0 : i32
    return %c0_i32, %c0_i32_0 : i32, i32
  }
  func.func @transform_6(%arg0: i32) -> (i32, i32, i32) {
    %c0_i32 = arith.constant 0 : i32
    %c0_i32_0 = arith.constant 0 : i32
    %c0_i32_1 = arith.constant 0 : i32
    %c0_i32_2 = arith.constant 0 : i32
    return %c0_i32, %c0_i32_0, %c0_i32_1 : i32, i32, i32
  }
  func.func @transform_7(%arg0: i32) -> (i32, i32) {
    %c0_i32 = arith.constant 0 : i32
    %c0_i32_0 = arith.constant 0 : i32
    %c0_i32_1 = arith.constant 0 : i32
    return %c0_i32, %c0_i32_0 : i32, i32
  }
  func.func @transform_8(%arg0: i32) -> (i32, i32) {
    %c0_i32 = arith.constant 0 : i32
    %c0_i32_0 = arith.constant 0 : i32
    %c0_i32_1 = arith.constant 0 : i32
    return %c0_i32, %c0_i32_0 : i32, i32
  }
  func.func @transform_9(%arg0: i32) -> (i32, i32) {
    %c0_i32 = arith.constant 0 : i32
    %c0_i32_0 = arith.constant 0 : i32
    %c0_i32_1 = arith.constant 0 : i32
    return %c0_i32, %c0_i32_0 : i32, i32
  }
  func.func @transform_10(%arg0: i32) -> (i32, i32) {
    %c0_i32 = arith.constant 0 : i32
    %c0_i32_0 = arith.constant 0 : i32
    %c0_i32_1 = arith.constant 0 : i32
    return %c0_i32, %c0_i32_0 : i32, i32
  }
  func.func @transform_11(%arg0: i32) -> (i32, i32) {
    %c0_i32 = arith.constant 0 : i32
    %c0_i32_0 = arith.constant 0 : i32
    %c0_i32_1 = arith.constant 0 : i32
    return %c0_i32, %c0_i32_0 : i32, i32
  }
  func.func @transform_12(%arg0: i32) -> (i32, i32) {
    %c0_i32 = arith.constant 0 : i32
    %c0_i32_0 = arith.constant 0 : i32
    %c0_i32_1 = arith.constant 0 : i32
    return %c0_i32, %c0_i32_0 : i32, i32
  }
  func.func @transform_13(%arg0: i32) -> (i32, i32) {
    %c0_i32 = arith.constant 0 : i32
    %c0_i32_0 = arith.constant 0 : i32
    %c0_i32_1 = arith.constant 0 : i32
    return %c0_i32, %c0_i32_0 : i32, i32
  }
  func.func @transform_14(%arg0: i32) -> (i32, i32) {
    %c0_i32 = arith.constant 0 : i32
    %c0_i32_0 = arith.constant 0 : i32
    %c0_i32_1 = arith.constant 0 : i32
    return %c0_i32, %c0_i32_0 : i32, i32
  }
  func.func @transform_15(%arg0: i32) -> (i32, i32) {
    %c0_i32 = arith.constant 0 : i32
    %c0_i32_0 = arith.constant 0 : i32
    %c0_i32_1 = arith.constant 0 : i32
    return %c0_i32, %c0_i32_0 : i32, i32
  }
  func.func @transform_16(%arg0: i32) -> (i32, i32, i32) {
    %c0_i32 = arith.constant 0 : i32
    %c0_i32_0 = arith.constant 0 : i32
    %c0_i32_1 = arith.constant 0 : i32
    return %arg0, %c0_i32, %c0_i32_0 : i32, i32, i32
  }
  func.func @transform_17(%arg0: i32) -> (i32, i32, i32) {
    %c0_i32 = arith.constant 0 : i32
    %c0_i32_0 = arith.constant 0 : i32
    %c0_i32_1 = arith.constant 0 : i32
    return %arg0, %c0_i32, %c0_i32_0 : i32, i32, i32
  }
}

</mosaic_0001>

<llo_original>
// kernel: decouple_forward.1
$region0: #{decouple_forward.1}
  #allocation0 [shape = 'u32[]', space=smem, size = 0x4, offset = 0x4, fixed_abs, tag = 'smem constant byte address 0x4 - core index']
  #allocation1 [shape = 'u32[144,128]{1,0:T(1,128)}', space=vmem, size = 0x12000, scoped, tag = 'internal scratch']
  %s0 = inlined_call_operand.vmem [shape: bf16[2,256,64], index: 0, kind: input, shape index: {}]
  %s1 = inlined_call_operand.vmem [shape: bf16[2,256,1], index: 1, kind: input, shape index: {}]
  %s2 = inlined_call_operand.vmem [shape: bf16[64,64], index: 2, kind: input, shape index: {}]
  %s3 = inlined_call_operand.vmem [shape: f32[1,64], index: 3, kind: input, shape index: {}]
  %s4 = inlined_call_operand.vmem [shape: bf16[9,64,47], index: 4, kind: input, shape index: {}]
  %s5 = inlined_call_operand.vmem [shape: f32[1,47], index: 5, kind: input, shape index: {}]
  %s6 = inlined_call_operand.vmem [shape: bf16[9,47,31], index: 6, kind: input, shape index: {}]
  %s7 = inlined_call_operand.vmem [shape: f32[1,31], index: 7, kind: input, shape index: {}]
  %s8 = inlined_call_operand.vmem [shape: bf16[31,15], index: 8, kind: input, shape index: {}]
  %s9 = inlined_call_operand.vmem [shape: f32[1,15], index: 9, kind: input, shape index: {}]
  %s10 = inlined_call_operand.vmem [shape: bf16[64,64], index: 10, kind: input, shape index: {}]
  %s11 = inlined_call_operand.vmem [shape: f32[1,64], index: 11, kind: input, shape index: {}]
  %s12 = inlined_call_operand.vmem [shape: bf16[64,64], index: 12, kind: input, shape index: {}]
  %s13 = inlined_call_operand.vmem [shape: f32[1,64], index: 13, kind: input, shape index: {}]
  %s14 = inlined_call_operand.vmem [shape: bf16[64,48], index: 14, kind: input, shape index: {}]
  %s15 = inlined_call_operand.vmem [shape: f32[1,48], index: 15, kind: input, shape index: {}]
  %s16 = inlined_call_operand.vmem [shape: f32[2,256,15], index: 16, kind: output, shape index: {0}]
  %s17 = inlined_call_operand.vmem [shape: f32[2,256,48], index: 17, kind: output, shape index: {1}]
  %18 = xla_tuple %s16, %s17
  %s19 = sld [smem:[#allocation0]]
  $region105: #{decouple_forward.1} parent=0
    _
  %s21 = ssub.s32 1, %s19
  %s22 = scalar_select 0, %s21, %s19
  loop: start=0, step=1, limit=4
  $region2: #{decouple_forward.1} parent=0 // loop_pre_header
    _
  $region3: #{decouple_forward.1} parent=0 // loop_header
    %s24 = sphi 0, %s28
    %p25 = scmp.ge.s32.totalorder %s24, 4
    %s34 = sphi 0, %s36
    %s37 = sphi 0, %s34
    %s38 = sphi 0, %s37
    %s54 = sphi 0, %s38
    %s58 = sphi 0, %s58
    %s60 = sphi 0, %s58
    %s61 = sphi 0, %s60
    %s75 = sphi 0, %s61
    %s79 = sphi 0, %s79
    %s81 = sphi 0, %s79
    %s82 = sphi 0, %s81
    %s96 = sphi 0, %s82
    %s100 = sphi 0, %s100
    %s102 = sphi 0, %s100
    %s103 = sphi 0, %s102
    %s117 = sphi 0, %s103
    %s121 = sphi 0, %s121
    %s123 = sphi 0, %s121
    %s124 = sphi 0, %s123
    %s138 = sphi 0, %s124
    %s142 = sphi 0, %s142
    %s144 = sphi 0, %s142
    %s145 = sphi 0, %s144
    %s159 = sphi 0, %s145
    %s163 = sphi 0, %s163
    %s165 = sphi 0, %s163
    %s166 = sphi 0, %s165
    %s180 = sphi 0, %s166
    %s184 = sphi 0, %s184
    %s186 = sphi 0, %s184
    %s187 = sphi 0, %s186
    %s201 = sphi 0, %s187
    %s205 = sphi 0, %s205
    %s207 = sphi 0, %s205
    %s208 = sphi 0, %s207
    %s222 = sphi 0, %s208
    %s226 = sphi 0, %s226
    %s228 = sphi 0, %s226
    %s229 = sphi 0, %s228
    %s243 = sphi 0, %s229
    %s247 = sphi 0, %s247
    %s249 = sphi 0, %s247
    %s250 = sphi 0, %s249
    %s264 = sphi 0, %s250
    %s268 = sphi 0, %s268
    %s270 = sphi 0, %s268
    %s271 = sphi 0, %s270
    %s285 = sphi 0, %s271
    %s289 = sphi 0, %s289
    %s291 = sphi 0, %s289
    %s292 = sphi 0, %s291
    %s306 = sphi 0, %s292
    %s310 = sphi 0, %s310
    %s312 = sphi 0, %s310
    %s313 = sphi 0, %s312
    %s327 = sphi 0, %s313
    %s331 = sphi 0, %s331
    %s333 = sphi 0, %s331
    %s334 = sphi 0, %s333
    %s348 = sphi 0, %s334
    %s352 = sphi 0, %s352
    %s354 = sphi 0, %s352
    %s355 = sphi 0, %s354
    %s369 = sphi 0, %s355
    %s375 = sphi 0, %s377
    %s378 = sphi 0, %s375
    %s379 = sphi 0, %s378
    %s395 = sphi 0, %s379
    %s401 = sphi 0, %s403
    %s404 = sphi 0, %s401
    %s405 = sphi 0, %s404
    %s421 = sphi 0, %s405
  $region4: #{decouple_forward.1} parent=0 // loop_header_branch
    %27 = sbr.rel (%p25) target = $region8
  $region5: #{decouple_forward.1} parent=0 // loop_body
    %s29 = ssub.s32 %s24, 1
    %s30 = ssub.s32 %s24, 2
    %s31 = sadd.s32 %s24, 1
    %s32 = ssub.s32 %s24, %s31
    %p33 = scmp.eq.s32.totalorder %s32, 0
    %s35 = sadd.s32 %s34, 1
    %s36 = scalar_select %p33, %s34, %s35
    %p39 = pneg %p33
    %p40 = scmp.eq.s32.totalorder %s24, 1
    %p41 = por %p39, %p40
    %p42 = scmp.ne.s32.totalorder %s34, %s37
    %p43 = scmp.eq.s32.totalorder %s24, 0
    %p44 = por %p42, %p43
    %p45 = scmp.ne.s32.totalorder %s34, %s37
    %p46 = scmp.eq.s32.totalorder %s29, 1
    %p47 = por %p45, %p46
    %p48 = scmp.ne.s32.totalorder %s37, %s38
    %p49 = scmp.eq.s32.totalorder %s29, 0
    %p50 = por %p48, %p49
    %p51 = scmp.ne.s32.totalorder %s37, %s38
    %p52 = scmp.eq.s32.totalorder %s30, 1
    %p53 = por %p51, %p52
    %p55 = scmp.ne.s32.totalorder %s38, %s54
    %p56 = scmp.eq.s32.totalorder %s30, 0
    %p57 = por %p55, %p56
    %s59 = sadd.s32 %s58, 1
    %p62 = scmp.eq.s32.totalorder %s24, 1
    %p63 = scmp.ne.s32.totalorder %s58, %s60
    %p64 = scmp.eq.s32.totalorder %s24, 0
    %p65 = por %p63, %p64
    %p66 = scmp.ne.s32.totalorder %s58, %s60
    %p67 = scmp.eq.s32.totalorder %s29, 1
    %p68 = por %p66, %p67
    %p69 = scmp.ne.s32.totalorder %s60, %s61
    %p70 = scmp.eq.s32.totalorder %s29, 0
    %p71 = por %p69, %p70
    %p72 = scmp.ne.s32.totalorder %s60, %s61
    %p73 = scmp.eq.s32.totalorder %s30, 1
    %p74 = por %p72, %p73
    %p76 = scmp.ne.s32.totalorder %s61, %s75
    %p77 = scmp.eq.s32.totalorder %s30, 0
    %p78 = por %p76, %p77
    %s80 = sadd.s32 %s79, 1
    %p83 = scmp.eq.s32.totalorder %s24, 1
    %p84 = scmp.ne.s32.totalorder %s79, %s81
    %p85 = scmp.eq.s32.totalorder %s24, 0
    %p86 = por %p84, %p85
    %p87 = scmp.ne.s32.totalorder %s79, %s81
    %p88 = scmp.eq.s32.totalorder %s29, 1
    %p89 = por %p87, %p88
    %p90 = scmp.ne.s32.totalorder %s81, %s82
    %p91 = scmp.eq.s32.totalorder %s29, 0
    %p92 = por %p90, %p91
    %p93 = scmp.ne.s32.totalorder %s81, %s82
    %p94 = scmp.eq.s32.totalorder %s30, 1
    %p95 = por %p93, %p94
    %p97 = scmp.ne.s32.totalorder %s82, %s96
    %p98 = scmp.eq.s32.totalorder %s30, 0
    %p99 = por %p97, %p98
    %s101 = sadd.s32 %s100, 1
    %p104 = scmp.eq.s32.totalorder %s24, 1
    %p105 = scmp.ne.s32.totalorder %s100, %s102
    %p106 = scmp.eq.s32.totalorder %s24, 0
    %p107 = por %p105, %p106
    %p108 = scmp.ne.s32.totalorder %s100, %s102
    %p109 = scmp.eq.s32.totalorder %s29, 1
    %p110 = por %p108, %p109
    %p111 = scmp.ne.s32.totalorder %s102, %s103
    %p112 = scmp.eq.s32.totalorder %s29, 0
    %p113 = por %p111, %p112
    %p114 = scmp.ne.s32.totalorder %s102, %s103
    %p115 = scmp.eq.s32.totalorder %s30, 1
    %p116 = por %p114, %p115
    %p118 = scmp.ne.s32.totalorder %s103, %s117
    %p119 = scmp.eq.s32.totalorder %s30, 0
    %p120 = por %p118, %p119
    %s122 = sadd.s32 %s121, 1
    %p125 = scmp.eq.s32.totalorder %s24, 1
    %p126 = scmp.ne.s32.totalorder %s121, %s123
    %p127 = scmp.eq.s32.totalorder %s24, 0
    %p128 = por %p126, %p127
    %p129 = scmp.ne.s32.totalorder %s121, %s123
    %p130 = scmp.eq.s32.totalorder %s29, 1
    %p131 = por %p129, %p130
    %p132 = scmp.ne.s32.totalorder %s123, %s124
    %p133 = scmp.eq.s32.totalorder %s29, 0
    %p134 = por %p132, %p133
    %p135 = scmp.ne.s32.totalorder %s123, %s124
    %p136 = scmp.eq.s32.totalorder %s30, 1
    %p137 = por %p135, %p136
    %p139 = scmp.ne.s32.totalorder %s124, %s138
    %p140 = scmp.eq.s32.totalorder %s30, 0
    %p141 = por %p139, %p140
    %s143 = sadd.s32 %s142, 1
    %p146 = scmp.eq.s32.totalorder %s24, 1
    %p147 = scmp.ne.s32.totalorder %s142, %s144
    %p148 = scmp.eq.s32.totalorder %s24, 0
    %p149 = por %p147, %p148
    %p150 = scmp.ne.s32.totalorder %s142, %s144
    %p151 = scmp.eq.s32.totalorder %s29, 1
    %p152 = por %p150, %p151
    %p153 = scmp.ne.s32.totalorder %s144, %s145
    %p154 = scmp.eq.s32.totalorder %s29, 0
    %p155 = por %p153, %p154
    %p156 = scmp.ne.s32.totalorder %s144, %s145
    %p157 = scmp.eq.s32.totalorder %s30, 1
    %p158 = por %p156, %p157
    %p160 = scmp.ne.s32.totalorder %s145, %s159
    %p161 = scmp.eq.s32.totalorder %s30, 0
    %p162 = por %p160, %p161
    %s164 = sadd.s32 %s163, 1
    %p167 = scmp.eq.s32.totalorder %s24, 1
    %p168 = scmp.ne.s32.totalorder %s163, %s165
    %p169 = scmp.eq.s32.totalorder %s24, 0
    %p170 = por %p168, %p169
    %p171 = scmp.ne.s32.totalorder %s163, %s165
    %p172 = scmp.eq.s32.totalorder %s29, 1
    %p173 = por %p171, %p172
    %p174 = scmp.ne.s32.totalorder %s165, %s166
    %p175 = scmp.eq.s32.totalorder %s29, 0
    %p176 = por %p174, %p175
    %p177 = scmp.ne.s32.totalorder %s165, %s166
    %p178 = scmp.eq.s32.totalorder %s30, 1
    %p179 = por %p177, %p178
    %p181 = scmp.ne.s32.totalorder %s166, %s180
    %p182 = scmp.eq.s32.totalorder %s30, 0
    %p183 = por %p181, %p182
    %s185 = sadd.s32 %s184, 1
    %p188 = scmp.eq.s32.totalorder %s24, 1
    %p189 = scmp.ne.s32.totalorder %s184, %s186
    %p190 = scmp.eq.s32.totalorder %s24, 0
    %p191 = por %p189, %p190
    %p192 = scmp.ne.s32.totalorder %s184, %s186
    %p193 = scmp.eq.s32.totalorder %s29, 1
    %p194 = por %p192, %p193
    %p195 = scmp.ne.s32.totalorder %s186, %s187
    %p196 = scmp.eq.s32.totalorder %s29, 0
    %p197 = por %p195, %p196
    %p198 = scmp.ne.s32.totalorder %s186, %s187
    %p199 = scmp.eq.s32.totalorder %s30, 1
    %p200 = por %p198, %p199
    %p202 = scmp.ne.s32.totalorder %s187, %s201
    %p203 = scmp.eq.s32.totalorder %s30, 0
    %p204 = por %p202, %p203
    %s206 = sadd.s32 %s205, 1
    %p209 = scmp.eq.s32.totalorder %s24, 1
    %p210 = scmp.ne.s32.totalorder %s205, %s207
    %p211 = scmp.eq.s32.totalorder %s24, 0
    %p212 = por %p210, %p211
    %p213 = scmp.ne.s32.totalorder %s205, %s207
    %p214 = scmp.eq.s32.totalorder %s29, 1
    %p215 = por %p213, %p214
    %p216 = scmp.ne.s32.totalorder %s207, %s208
    %p217 = scmp.eq.s32.totalorder %s29, 0
    %p218 = por %p216, %p217
    %p219 = scmp.ne.s32.totalorder %s207, %s208
    %p220 = scmp.eq.s32.totalorder %s30, 1
    %p221 = por %p219, %p220
    %p223 = scmp.ne.s32.totalorder %s208, %s222
    %p224 = scmp.eq.s32.totalorder %s30, 0
    %p225 = por %p223, %p224
    %s227 = sadd.s32 %s226, 1
    %p230 = scmp.eq.s32.totalorder %s24, 1
    %p231 = scmp.ne.s32.totalorder %s226, %s228
    %p232 = scmp.eq.s32.totalorder %s24, 0
    %p233 = por %p231, %p232
    %p234 = scmp.ne.s32.totalorder %s226, %s228
    %p235 = scmp.eq.s32.totalorder %s29, 1
    %p236 = por %p234, %p235
    %p237 = scmp.ne.s32.totalorder %s228, %s229
    %p238 = scmp.eq.s32.totalorder %s29, 0
    %p239 = por %p237, %p238
    %p240 = scmp.ne.s32.totalorder %s228, %s229
    %p241 = scmp.eq.s32.totalorder %s30, 1
    %p242 = por %p240, %p241
    %p244 = scmp.ne.s32.totalorder %s229, %s243
    %p245 = scmp.eq.s32.totalorder %s30, 0
    %p246 = por %p244, %p245
    %s248 = sadd.s32 %s247, 1
    %p251 = scmp.eq.s32.totalorder %s24, 1
    %p252 = scmp.ne.s32.totalorder %s247, %s249
    %p253 = scmp.eq.s32.totalorder %s24, 0
    %p254 = por %p252, %p253
    %p255 = scmp.ne.s32.totalorder %s247, %s249
    %p256 = scmp.eq.s32.totalorder %s29, 1
    %p257 = por %p255, %p256
    %p258 = scmp.ne.s32.totalorder %s249, %s250
    %p259 = scmp.eq.s32.totalorder %s29, 0
    %p260 = por %p258, %p259
    %p261 = scmp.ne.s32.totalorder %s249, %s250
    %p262 = scmp.eq.s32.totalorder %s30, 1
    %p263 = por %p261, %p262
    %p265 = scmp.ne.s32.totalorder %s250, %s264
    %p266 = scmp.eq.s32.totalorder %s30, 0
    %p267 = por %p265, %p266
    %s269 = sadd.s32 %s268, 1
    %p272 = scmp.eq.s32.totalorder %s24, 1
    %p273 = scmp.ne.s32.totalorder %s268, %s270
    %p274 = scmp.eq.s32.totalorder %s24, 0
    %p275 = por %p273, %p274
    %p276 = scmp.ne.s32.totalorder %s268, %s270
    %p277 = scmp.eq.s32.totalorder %s29, 1
    %p278 = por %p276, %p277
    %p279 = scmp.ne.s32.totalorder %s270, %s271
    %p280 = scmp.eq.s32.totalorder %s29, 0
    %p281 = por %p279, %p280
    %p282 = scmp.ne.s32.totalorder %s270, %s271
    %p283 = scmp.eq.s32.totalorder %s30, 1
    %p284 = por %p282, %p283
    %p286 = scmp.ne.s32.totalorder %s271, %s285
    %p287 = scmp.eq.s32.totalorder %s30, 0
    %p288 = por %p286, %p287
    %s290 = sadd.s32 %s289, 1
    %p293 = scmp.eq.s32.totalorder %s24, 1
    %p294 = scmp.ne.s32.totalorder %s289, %s291
    %p295 = scmp.eq.s32.totalorder %s24, 0
    %p296 = por %p294, %p295
    %p297 = scmp.ne.s32.totalorder %s289, %s291
    %p298 = scmp.eq.s32.totalorder %s29, 1
    %p299 = por %p297, %p298
    %p300 = scmp.ne.s32.totalorder %s291, %s292
    %p301 = scmp.eq.s32.totalorder %s29, 0
    %p302 = por %p300, %p301
    %p303 = scmp.ne.s32.totalorder %s291, %s292
    %p304 = scmp.eq.s32.totalorder %s30, 1
    %p305 = por %p303, %p304
    %p307 = scmp.ne.s32.totalorder %s292, %s306
    %p308 = scmp.eq.s32.totalorder %s30, 0
    %p309 = por %p307, %p308
    %s311 = sadd.s32 %s310, 1
    %p314 = scmp.eq.s32.totalorder %s24, 1
    %p315 = scmp.ne.s32.totalorder %s310, %s312
    %p316 = scmp.eq.s32.totalorder %s24, 0
    %p317 = por %p315, %p316
    %p318 = scmp.ne.s32.totalorder %s310, %s312
    %p319 = scmp.eq.s32.totalorder %s29, 1
    %p320 = por %p318, %p319
    %p321 = scmp.ne.s32.totalorder %s312, %s313
    %p322 = scmp.eq.s32.totalorder %s29, 0
    %p323 = por %p321, %p322
    %p324 = scmp.ne.s32.totalorder %s312, %s313
    %p325 = scmp.eq.s32.totalorder %s30, 1
    %p326 = por %p324, %p325
    %p328 = scmp.ne.s32.totalorder %s313, %s327
    %p329 = scmp.eq.s32.totalorder %s30, 0
    %p330 = por %p328, %p329
    %s332 = sadd.s32 %s331, 1
    %p335 = scmp.eq.s32.totalorder %s24, 1
    %p336 = scmp.ne.s32.totalorder %s331, %s333
    %p337 = scmp.eq.s32.totalorder %s24, 0
    %p338 = por %p336, %p337
    %p339 = scmp.ne.s32.totalorder %s331, %s333
    %p340 = scmp.eq.s32.totalorder %s29, 1
    %p341 = por %p339, %p340
    %p342 = scmp.ne.s32.totalorder %s333, %s334
    %p343 = scmp.eq.s32.totalorder %s29, 0
    %p344 = por %p342, %p343
    %p345 = scmp.ne.s32.totalorder %s333, %s334
    %p346 = scmp.eq.s32.totalorder %s30, 1
    %p347 = por %p345, %p346
    %p349 = scmp.ne.s32.totalorder %s334, %s348
    %p350 = scmp.eq.s32.totalorder %s30, 0
    %p351 = por %p349, %p350
    %s353 = sadd.s32 %s352, 1
    %p356 = scmp.eq.s32.totalorder %s24, 1
    %p357 = scmp.ne.s32.totalorder %s352, %s354
    %p358 = scmp.eq.s32.totalorder %s24, 0
    %p359 = por %p357, %p358
    %p360 = scmp.ne.s32.totalorder %s352, %s354
    %p361 = scmp.eq.s32.totalorder %s29, 1
    %p362 = por %p360, %p361
    %p363 = scmp.ne.s32.totalorder %s354, %s355
    %p364 = scmp.eq.s32.totalorder %s29, 0
    %p365 = por %p363, %p364
    %p366 = scmp.ne.s32.totalorder %s354, %s355
    %p367 = scmp.eq.s32.totalorder %s30, 1
    %p368 = por %p366, %p367
    %p370 = scmp.ne.s32.totalorder %s355, %s369
    %p371 = scmp.eq.s32.totalorder %s30, 0
    %p372 = por %p370, %p371
    %s373 = ssub.s32 %s24, %s31
    %p374 = scmp.eq.s32.totalorder %s373, 0
    %s376 = sadd.s32 %s375, 1
    %s377 = scalar_select %p374, %s375, %s376
    %p380 = pneg %p374
    %p381 = scmp.eq.s32.totalorder %s24, 1
    %p382 = por %p380, %p381
    %p383 = scmp.ne.s32.totalorder %s375, %s378
    %p384 = scmp.eq.s32.totalorder %s24, 0
    %p385 = por %p383, %p384
    %p386 = scmp.ne.s32.totalorder %s375, %s378
    %p387 = scmp.eq.s32.totalorder %s29, 1
    %p388 = por %p386, %p387
    %p389 = scmp.ne.s32.totalorder %s378, %s379
    %p390 = scmp.eq.s32.totalorder %s29, 0
    %p391 = por %p389, %p390
    %p392 = scmp.ne.s32.totalorder %s378, %s379
    %p393 = scmp.eq.s32.totalorder %s30, 1
    %p394 = por %p392, %p393
    %p396 = scmp.ne.s32.totalorder %s379, %s395
    %p397 = scmp.eq.s32.totalorder %s30, 0
    %p398 = por %p396, %p397
    %s399 = ssub.s32 %s24, %s31
    %p400 = scmp.eq.s32.totalorder %s399, 0
    %s402 = sadd.s32 %s401, 1
    %s403 = scalar_select %p400, %s401, %s402
    %p406 = pneg %p400
    %p407 = scmp.eq.s32.totalorder %s24, 1
    %p408 = por %p406, %p407
    %p409 = scmp.ne.s32.totalorder %s401, %s404
    %p410 = scmp.eq.s32.totalorder %s24, 0
    %p411 = por %p409, %p410
    %p412 = scmp.ne.s32.totalorder %s401, %s404
    %p413 = scmp.eq.s32.totalorder %s29, 1
    %p414 = por %p412, %p413
    %p415 = scmp.ne.s32.totalorder %s404, %s405
    %p416 = scmp.eq.s32.totalorder %s29, 0
    %p417 = por %p415, %p416
    %p418 = scmp.ne.s32.totalorder %s404, %s405
    %p419 = scmp.eq.s32.totalorder %s30, 1
    %p420 = por %p418, %p419
    %p422 = scmp.ne.s32.totalorder %s405, %s421
    %p423 = scmp.eq.s32.totalorder %s30, 0
    %p424 = por %p422, %p423
    %p425 = scmp.le.s32.totalorder 1, %s24
    %p426 = scmp.lt.s32.totalorder %s24, 3
    %p427 = pnand %p425, %p426
    %p428 = pneg %p427
    // Predicated region
    $region9: #{decouple_forward.1} parent=5 // pred_check
      _
    $region10: #{decouple_forward.1} parent=5 // pred_check_branch
      %430 = sbr.rel (%p427) target = $region12
    $region11: #{decouple_forward.1} parent=5 // pred_region
      %s431 = ssub.s32 %s24, 1
      // Predicated region
      $region13: #{decouple_forward.1} parent=11 // pred_check
        %p432 = pneg %p71
      $region14: #{decouple_forward.1} parent=11 // pred_check_branch
        %434 = sbr.rel (%p432) target = $region16
      $region15: #{decouple_forward.1} parent=11 // pred_region
        _
      $region16: #{decouple_forward.1} parent=11 // pred_fallthru
        _
      // Predicated region
      $region17: #{decouple_forward.1} parent=11 // pred_check
        %p435 = pneg %p92
      $region18: #{decouple_forward.1} parent=11 // pred_check_branch
        %437 = sbr.rel (%p435) target = $region20
      $region19: #{decouple_forward.1} parent=11 // pred_region
        _
      $region20: #{decouple_forward.1} parent=11 // pred_fallthru
        _
      // Predicated region
      $region21: #{decouple_forward.1} parent=11 // pred_check
        %p438 = pneg %p113
      $region22: #{decouple_forward.1} parent=11 // pred_check_branch
        %440 = sbr.rel (%p438) target = $region24
      $region23: #{decouple_forward.1} parent=11 // pred_region
        _
      $region24: #{decouple_forward.1} parent=11 // pred_fallthru
        _
      // Predicated region
      $region25: #{decouple_forward.1} parent=11 // pred_check
        %p441 = pneg %p134
      $region26: #{decouple_forward.1} parent=11 // pred_check_branch
        %443 = sbr.rel (%p441) target = $region28
      $region27: #{decouple_forward.1} parent=11 // pred_region
        _
      $region28: #{decouple_forward.1} parent=11 // pred_fallthru
        _
      // Predicated region
      $region29: #{decouple_forward.1} parent=11 // pred_check
        %p444 = pneg %p155
      $region30: #{decouple_forward.1} parent=11 // pred_check_branch
        %446 = sbr.rel (%p444) target = $region32
      $region31: #{decouple_forward.1} parent=11 // pred_region
        _
      $region32: #{decouple_forward.1} parent=11 // pred_fallthru
        _
      // Predicated region
      $region33: #{decouple_forward.1} parent=11 // pred_check
        %p447 = pneg %p176
      $region34: #{decouple_forward.1} parent=11 // pred_check_branch
        %449 = sbr.rel (%p447) target = $region36
      $region35: #{decouple_forward.1} parent=11 // pred_region
        _
      $region36: #{decouple_forward.1} parent=11 // pred_fallthru
        _
      // Predicated region
      $region37: #{decouple_forward.1} parent=11 // pred_check
        %p450 = pneg %p197
      $region38: #{decouple_forward.1} parent=11 // pred_check_branch
        %452 = sbr.rel (%p450) target = $region40
      $region39: #{decouple_forward.1} parent=11 // pred_region
        _
      $region40: #{decouple_forward.1} parent=11 // pred_fallthru
        _
      // Predicated region
      $region41: #{decouple_forward.1} parent=11 // pred_check
        %p453 = pneg %p218
      $region42: #{decouple_forward.1} parent=11 // pred_check_branch
        %455 = sbr.rel (%p453) target = $region44
      $region43: #{decouple_forward.1} parent=11 // pred_region
        _
      $region44: #{decouple_forward.1} parent=11 // pred_fallthru
        _
      // Predicated region
      $region45: #{decouple_forward.1} parent=11 // pred_check
        %p456 = pneg %p239
      $region46: #{decouple_forward.1} parent=11 // pred_check_branch
        %458 = sbr.rel (%p456) target = $region48
      $region47: #{decouple_forward.1} parent=11 // pred_region
        _
      $region48: #{decouple_forward.1} parent=11 // pred_fallthru
        _
      // Predicated region
      $region49: #{decouple_forward.1} parent=11 // pred_check
        %p459 = pneg %p260
      $region50: #{decouple_forward.1} parent=11 // pred_check_branch
        %461 = sbr.rel (%p459) target = $region52
      $region51: #{decouple_forward.1} parent=11 // pred_region
        _
      $region52: #{decouple_forward.1} parent=11 // pred_fallthru
        _
      // Predicated region
      $region53: #{decouple_forward.1} parent=11 // pred_check
        %p462 = pneg %p281
      $region54: #{decouple_forward.1} parent=11 // pred_check_branch
        %464 = sbr.rel (%p462) target = $region56
      $region55: #{decouple_forward.1} parent=11 // pred_region
        _
      $region56: #{decouple_forward.1} parent=11 // pred_fallthru
        _
      // Predicated region
      $region57: #{decouple_forward.1} parent=11 // pred_check
        %p465 = pneg %p302
      $region58: #{decouple_forward.1} parent=11 // pred_check_branch
        %467 = sbr.rel (%p465) target = $region60
      $region59: #{decouple_forward.1} parent=11 // pred_region
        _
      $region60: #{decouple_forward.1} parent=11 // pred_fallthru
        _
      // Predicated region
      $region61: #{decouple_forward.1} parent=11 // pred_check
        %p468 = pneg %p323
      $region62: #{decouple_forward.1} parent=11 // pred_check_branch
        %470 = sbr.rel (%p468) target = $region64
      $region63: #{decouple_forward.1} parent=11 // pred_region
        _
      $region64: #{decouple_forward.1} parent=11 // pred_fallthru
        _
      // Predicated region
      $region65: #{decouple_forward.1} parent=11 // pred_check
        %p471 = pneg %p344
      $region66: #{decouple_forward.1} parent=11 // pred_check_branch
        %473 = sbr.rel (%p471) target = $region68
      $region67: #{decouple_forward.1} parent=11 // pred_region
        _
      $region68: #{decouple_forward.1} parent=11 // pred_fallthru
        _
      // Predicated region
      $region69: #{decouple_forward.1} parent=11 // pred_check
        %p474 = pneg %p365
      $region70: #{decouple_forward.1} parent=11 // pred_check_branch
        %476 = sbr.rel (%p474) target = $region72
      $region71: #{decouple_forward.1} parent=11 // pred_region
        _
      $region72: #{decouple_forward.1} parent=11 // pred_fallthru
        _
    $region12: #{decouple_forward.1} parent=5 // pred_fallthru
      _
    %p477 = scmp.lt.s32.totalorder %s24, 2
    // Predicated region
    $region73: #{decouple_forward.1} parent=5 // pred_check
      %p478 = pneg %p477
    $region74: #{decouple_forward.1} parent=5 // pred_check_branch
      %480 = sbr.rel (%p478) target = $region76
    $region75: #{decouple_forward.1} parent=5 // pred_region
      // Predicated region
      $region77: #{decouple_forward.1} parent=75 // pred_check
        %p481 = pneg %p44
      $region78: #{decouple_forward.1} parent=75 // pred_check_branch
        %483 = sbr.rel (%p481) target = $region80
      $region79: #{decouple_forward.1} parent=75 // pred_region
        %p484 = scmp.lt.s32.totalorder %s24, 1
        %s485 = scalar_select %p484, %s24, 1
        %s486 = smul.addr %s485, 32
        %s487 = smul.addr %s486, 4
        %s488 = scalar_lea.vmem %s0, %s487
      $region80: #{decouple_forward.1} parent=75 // pred_fallthru
        _
    $region76: #{decouple_forward.1} parent=5 // pred_fallthru
      _
    %p489 = scmp.le.s32.totalorder 1, %s24
    %p490 = scmp.lt.s32.totalorder %s24, 3
    %p491 = pnand %p489, %p490
    %p492 = pneg %p491
    // Predicated region
    $region81: #{decouple_forward.1} parent=5 // pred_check
      _
    $region82: #{decouple_forward.1} parent=5 // pred_check_branch
      %494 = sbr.rel (%p491) target = $region84
    $region83: #{decouple_forward.1} parent=5 // pred_region
      %s495 = ssub.s32 %s24, 1
      %p496 = scmp.lt.s32.totalorder %s29, 1
      %s497 = scalar_select %p496, %s29, 1
      %s498 = smul.addr %s497, 32
      %s499 = smul.addr %s498, 4
      %s500 = scalar_lea.vmem %s0, %s499
      %p501 = pneg %p50
      %p502 = pneg %p47
      %p503 = pneg %p71
      %p504 = pneg %p68
      %p505 = pneg %p92
      %p506 = pneg %p89
      %p507 = pneg %p113
      %p508 = pneg %p110
      %p509 = pneg %p134
      %p510 = pneg %p131
      %p511 = pneg %p155
      %p512 = pneg %p152
      %p513 = pneg %p176
      %p514 = pneg %p173
      %p515 = pneg %p197
      %p516 = pneg %p194
      %p517 = pneg %p218
      %p518 = pneg %p215
      %p519 = pneg %p239
      %p520 = pneg %p236
      %p521 = pneg %p260
      %p522 = pneg %p257
      %p523 = pneg %p281
      %p524 = pneg %p278
      %p525 = pneg %p302
      %p526 = pneg %p299
      %p527 = pneg %p323
      %p528 = pneg %p320
      %p529 = pneg %p344
      %p530 = pneg %p341
      %p531 = pneg %p365
      %p532 = pneg %p362
      %p533 = pneg %p391
      %p534 = pneg %p388
      %p535 = scmp.lt.s32.totalorder %s29, 1
      %s536 = scalar_select %p535, %s29, 1
      %s537 = smul.addr %s536, 32
      %s538 = smul.addr %s537, 8
      %s539 = scalar_lea.vmem %s16, %s538
      %p540 = pneg %p417
      %p541 = pneg %p414
      %p542 = scmp.lt.s32.totalorder %s29, 1
      %s543 = scalar_select %p542, %s29, 1
      %s544 = smul.addr %s543, 32
      %s545 = smul.addr %s544, 8
      %s546 = scalar_lea.vmem %s17, %s545
      %p547 = scmp.lt.s32.totalorder %s29, 1
      %s548 = scalar_select %p547, %s29, 1
      %s549 = smul.addr %s548, 32
      %s550 = smul.addr %s549, 4
      %s551 = scalar_lea.vmem %s0, %s550
      %p552 = scmp.lt.s32.totalorder %s29, 1
      %s553 = scalar_select %p552, %s29, 1
      %s554 = smul.addr %s553, 32
      %s555 = smul.addr %s554, 8
      %s556 = scalar_lea.vmem %s16, %s555
      %p557 = scmp.lt.s32.totalorder %s29, 1
      %s558 = scalar_select %p557, %s29, 1
      %s559 = smul.addr %s558, 32
      %s560 = smul.addr %s559, 8
      %s561 = scalar_lea.vmem %s17, %s560
      %v563 = vld [vmem:[%s551] sm:$0xf]
      %v564 = vld [vmem:[%s551 + $0x4] sm:$0xf]
      %v565 = vld [vmem:[%s551 + $0x8] sm:$0xf]
      %v566 = vld [vmem:[%s551 + $0xc] sm:$0xf]
      %v567 = vld [vmem:[%s551 + $0x10] sm:$0xf]
      %v568 = vld [vmem:[%s551 + $0x14] sm:$0xf]
      %v569 = vld [vmem:[%s551 + $0x18] sm:$0xf]
      %v570 = vld [vmem:[%s551 + $0x1c] sm:$0xf]
      %v571 = vld [vmem:[%s551 + $0x20] sm:$0xf]
      %v572 = vld [vmem:[%s551 + $0x24] sm:$0xf]
      %v573 = vld [vmem:[%s551 + $0x28] sm:$0xf]
      %v574 = vld [vmem:[%s551 + $0x2c] sm:$0xf]
      %v575 = vld [vmem:[%s551 + $0x30] sm:$0xf]
      %v576 = vld [vmem:[%s551 + $0x34] sm:$0xf]
      %v577 = vld [vmem:[%s551 + $0x38] sm:$0xf]
      %v578 = vld [vmem:[%s551 + $0x3c] sm:$0xf]
      %v579 = vld [vmem:[%s551 + $0x40] sm:$0xf]
      %v580 = vld [vmem:[%s551 + $0x44] sm:$0xf]
      %v581 = vld [vmem:[%s551 + $0x48] sm:$0xf]
      %v582 = vld [vmem:[%s551 + $0x4c] sm:$0xf]
      %v583 = vld [vmem:[%s551 + $0x50] sm:$0xf]
      %v584 = vld [vmem:[%s551 + $0x54] sm:$0xf]
      %v585 = vld [vmem:[%s551 + $0x58] sm:$0xf]
      %v586 = vld [vmem:[%s551 + $0x5c] sm:$0xf]
      %v587 = vld [vmem:[%s551 + $0x60] sm:$0xf]
      %v588 = vld [vmem:[%s551 + $0x64] sm:$0xf]
      %v589 = vld [vmem:[%s551 + $0x68] sm:$0xf]
      %v590 = vld [vmem:[%s551 + $0x6c] sm:$0xf]
      %v591 = vld [vmem:[%s551 + $0x70] sm:$0xf]
      %v592 = vld [vmem:[%s551 + $0x74] sm:$0xf]
      %v593 = vld [vmem:[%s551 + $0x78] sm:$0xf]
      %v594 = vld [vmem:[%s551 + $0x7c] sm:$0xf]
      %v595 = vld [vmem:[%s1] sm:$0xf]
      %v596 = vld [vmem:[%s1 + $0x4] sm:$0xf]
      %v597 = vld [vmem:[%s1 + $0x8] sm:$0xf]
      %v598 = vld [vmem:[%s1 + $0xc] sm:$0xf]
      %v599 = vld [vmem:[%s1 + $0x10] sm:$0xf]
      %v600 = vld [vmem:[%s1 + $0x14] sm:$0xf]
      %v601 = vld [vmem:[%s1 + $0x18] sm:$0xf]
      %v602 = vld [vmem:[%s1 + $0x1c] sm:$0xf]
      %v603 = vld [vmem:[%s1 + $0x20] sm:$0xf]
      %v604 = vld [vmem:[%s1 + $0x24] sm:$0xf]
      %v605 = vld [vmem:[%s1 + $0x28] sm:$0xf]
      %v606 = vld [vmem:[%s1 + $0x2c] sm:$0xf]
      %v607 = vld [vmem:[%s1 + $0x30] sm:$0xf]
      %v608 = vld [vmem:[%s1 + $0x34] sm:$0xf]
      %v609 = vld [vmem:[%s1 + $0x38] sm:$0xf]
      %v610 = vld [vmem:[%s1 + $0x3c] sm:$0xf]
      %v611 = vld [vmem:[%s1 + $0x40] sm:$0xf]
      %v612 = vld [vmem:[%s1 + $0x44] sm:$0xf]
      %v613 = vld [vmem:[%s1 + $0x48] sm:$0xf]
      %v614 = vld [vmem:[%s1 + $0x4c] sm:$0xf]
      %v615 = vld [vmem:[%s1 + $0x50] sm:$0xf]
      %v616 = vld [vmem:[%s1 + $0x54] sm:$0xf]
      %v617 = vld [vmem:[%s1 + $0x58] sm:$0xf]
      %v618 = vld [vmem:[%s1 + $0x5c] sm:$0xf]
      %v619 = vld [vmem:[%s1 + $0x60] sm:$0xf]
      %v620 = vld [vmem:[%s1 + $0x64] sm:$0xf]
      %v621 = vld [vmem:[%s1 + $0x68] sm:$0xf]
      %v622 = vld [vmem:[%s1 + $0x6c] sm:$0xf]
      %v623 = vld [vmem:[%s1 + $0x70] sm:$0xf]
      %v624 = vld [vmem:[%s1 + $0x74] sm:$0xf]
      %v625 = vld [vmem:[%s1 + $0x78] sm:$0xf]
      %v626 = vld [vmem:[%s1 + $0x7c] sm:$0xf]
      %s627 = scalar_lea.vmem %s1, 128
      %v628 = vld [vmem:[%s627] sm:$0xf]
      %v629 = vld [vmem:[%s627 + $0x4] sm:$0xf]
      %v630 = vld [vmem:[%s627 + $0x8] sm:$0xf]
      %v631 = vld [vmem:[%s627 + $0xc] sm:$0xf]
      %v632 = vld [vmem:[%s627 + $0x10] sm:$0xf]
      %v633 = vld [vmem:[%s627 + $0x14] sm:$0xf]
      %v634 = vld [vmem:[%s627 + $0x18] sm:$0xf]
      %v635 = vld [vmem:[%s627 + $0x1c] sm:$0xf]
      %v636 = vld [vmem:[%s627 + $0x20] sm:$0xf]
      %v637 = vld [vmem:[%s627 + $0x24] sm:$0xf]
      %v638 = vld [vmem:[%s627 + $0x28] sm:$0xf]
      %v639 = vld [vmem:[%s627 + $0x2c] sm:$0xf]
      %v640 = vld [vmem:[%s627 + $0x30] sm:$0xf]
      %v641 = vld [vmem:[%s627 + $0x34] sm:$0xf]
      %v642 = vld [vmem:[%s627 + $0x38] sm:$0xf]
      %v643 = vld [vmem:[%s627 + $0x3c] sm:$0xf]
      %v644 = vld [vmem:[%s627 + $0x40] sm:$0xf]
      %v645 = vld [vmem:[%s627 + $0x44] sm:$0xf]
      %v646 = vld [vmem:[%s627 + $0x48] sm:$0xf]
      %v647 = vld [vmem:[%s627 + $0x4c] sm:$0xf]
      %v648 = vld [vmem:[%s627 + $0x50] sm:$0xf]
      %v649 = vld [vmem:[%s627 + $0x54] sm:$0xf]
      %v650 = vld [vmem:[%s627 + $0x58] sm:$0xf]
      %v651 = vld [vmem:[%s627 + $0x5c] sm:$0xf]
      %v652 = vld [vmem:[%s627 + $0x60] sm:$0xf]
      %v653 = vld [vmem:[%s627 + $0x64] sm:$0xf]
      %v654 = vld [vmem:[%s627 + $0x68] sm:$0xf]
      %v655 = vld [vmem:[%s627 + $0x6c] sm:$0xf]
      %v656 = vld [vmem:[%s627 + $0x70] sm:$0xf]
      %v657 = vld [vmem:[%s627 + $0x74] sm:$0xf]
      %v658 = vld [vmem:[%s627 + $0x78] sm:$0xf]
      %v659 = vld [vmem:[%s627 + $0x7c] sm:$0xf]
      %v660 = vld [vmem:[%s2] sm:$0xf]
      %v661 = vld [vmem:[%s2 + $0x4] sm:$0xf]
      %v662 = vld [vmem:[%s2 + $0x8] sm:$0xf]
      %v663 = vld [vmem:[%s2 + $0xc] sm:$0xf]
      %v664 = vld [vmem:[%s2 + $0x10] sm:$0xf]
      %v665 = vld [vmem:[%s2 + $0x14] sm:$0xf]
      %v666 = vld [vmem:[%s2 + $0x18] sm:$0xf]
      %v667 = vld [vmem:[%s2 + $0x1c] sm:$0xf]
      %v668 = vld [vmem:[%s3] sm:$0x1]
      %v670 = vlaneseq
      %v671 = vshrl.u32 %v670, 7
      %v672 = vsub.s32 0, %v671
      %v673 = vrot.slane %v668, %v672
      %v707 = vunpack.c.l.b16 %v563
      %v708 = vunpack.c.l.b16 %v564
      %v709 = vunpack.c.l.b16 %v565
      %v710 = vunpack.c.l.b16 %v566
      %v711 = vunpack.c.l.b16 %v567
      %v712 = vunpack.c.l.b16 %v568
      %v713 = vunpack.c.l.b16 %v569
      %v714 = vunpack.c.l.b16 %v570
      %v715 = vunpack.c.l.b16 %v571
      %v716 = vunpack.c.l.b16 %v572
      %v717 = vunpack.c.l.b16 %v573
      %v718 = vunpack.c.l.b16 %v574
      %v719 = vunpack.c.l.b16 %v575
      %v720 = vunpack.c.l.b16 %v576
      %v721 = vunpack.c.l.b16 %v577
      %v722 = vunpack.c.l.b16 %v578
      %v723 = vunpack.c.l.b16 %v579
      %v724 = vunpack.c.l.b16 %v580
      %v725 = vunpack.c.l.b16 %v581
      %v726 = vunpack.c.l.b16 %v582
      %v727 = vunpack.c.l.b16 %v583
      %v728 = vunpack.c.l.b16 %v584
      %v729 = vunpack.c.l.b16 %v585
      %v730 = vunpack.c.l.b16 %v586
      %v731 = vunpack.c.l.b16 %v587
      %v732 = vunpack.c.l.b16 %v588
      %v733 = vunpack.c.l.b16 %v589
      %v734 = vunpack.c.l.b16 %v590
      %v735 = vunpack.c.l.b16 %v591
      %v736 = vunpack.c.l.b16 %v592
      %v737 = vunpack.c.l.b16 %v593
      %v738 = vunpack.c.l.b16 %v594
      %v739 = vpack.c.b16 %v708, %v707
      %v740 = vpack.c.b16 %v710, %v709
      %v741 = vpack.c.b16 %v712, %v711
      %v742 = vpack.c.b16 %v714, %v713
      %v743 = vpack.c.b16 %v716, %v715
      %v744 = vpack.c.b16 %v718, %v717
      %v745 = vpack.c.b16 %v720, %v719
      %v746 = vpack.c.b16 %v722, %v721
      %v747 = vpack.c.b16 %v724, %v723
      %v748 = vpack.c.b16 %v726, %v725
      %v749 = vpack.c.b16 %v728, %v727
      %v750 = vpack.c.b16 %v730, %v729
      %v751 = vpack.c.b16 %v732, %v731
      %v752 = vpack.c.b16 %v734, %v733
      %v753 = vpack.c.b16 %v736, %v735
      %v754 = vpack.c.b16 %v738, %v737
      %v763 = vunpack.c.l.b16 %v660
      %v764 = vunpack.c.l.b16 %v661
      %v765 = vunpack.c.l.b16 %v662
      %v766 = vunpack.c.l.b16 %v663
      %v767 = vunpack.c.l.b16 %v664
      %v768 = vunpack.c.l.b16 %v665
      %v769 = vunpack.c.l.b16 %v666
      %v770 = vunpack.c.l.b16 %v667
      %v771 = vpack.c.b16 %v764, %v763
      %v772 = vpack.c.b16 %v766, %v765
      %v773 = vpack.c.b16 %v768, %v767
      %v774 = vpack.c.b16 %v770, %v769
      %vm779 = vcmask 523264
      %v781 = vsel %vm779, %v739, 0
      %v784 = vsel %vm779, %v740, 0
      %v787 = vsel %vm779, %v741, 0
      %v790 = vsel %vm779, %v742, 0
      %v793 = vsel %vm779, %v743, 0
      %v796 = vsel %vm779, %v744, 0
      %v799 = vsel %vm779, %v745, 0
      %v802 = vsel %vm779, %v746, 0
      %v805 = vsel %vm779, %v747, 0
      %v808 = vsel %vm779, %v748, 0
      %v811 = vsel %vm779, %v749, 0
      %v814 = vsel %vm779, %v750, 0
      %v817 = vsel %vm779, %v751, 0
      %v820 = vsel %vm779, %v752, 0
      %v823 = vsel %vm779, %v753, 0
      %v826 = vsel %vm779, %v754, 0
      %828 = vmatprep.subr.bf16.mxu0 0
      %829 = vmatpush1.bf16.msra.mxu0 %v771
      %830 = vmatprep.subr.bf16.mxu0 0
      %831 = vmatpush1.bf16.msra.mxu0 %v772
      %832 = vmatprep.subr.bf16.mxu0 0
      %833 = vmatpush1.bf16.msra.mxu0 %v773
      %834 = vmatprep.subr.bf16.mxu0 0
      %835 = vmatpush1.bf16.msra.mxu0 %v774
      %836 = vmatprep.subr.bf16.mxu0 0
      %837 = vmatpush1.bf16.msra.mxu0 0
      %838 = vmatprep.subr.bf16.mxu0 0
      %839 = vmatpush1.bf16.msra.mxu0 0
      %840 = vmatprep.subr.bf16.mxu0 0
      %841 = vmatpush1.bf16.msra.mxu0 0
      %842 = vmatprep.subr.bf16.mxu0 0
      %843 = vmatpush1.bf16.msra.mxu0 0
      %844 = vmatprep.subr.bf16.mxu0 0
      %845 = vmatpush1.bf16.msra.mxu0 0
      %846 = vmatprep.subr.bf16.mxu0 0
      %847 = vmatpush1.bf16.msra.mxu0 0
      %848 = vmatprep.subr.bf16.mxu0 0
      %849 = vmatpush1.bf16.msra.mxu0 0
      %850 = vmatprep.subr.bf16.mxu0 0
      %851 = vmatpush1.bf16.msra.mxu0 0
      %852 = vmatprep.subr.bf16.mxu0 0
      %853 = vmatpush1.bf16.msra.mxu0 0
      %854 = vmatprep.subr.bf16.mxu0 0
      %855 = vmatpush1.bf16.msra.mxu0 0
      %856 = vmatprep.subr.bf16.mxu0 0
      %857 = vmatpush1.bf16.msra.mxu0 0
      %858 = vmatprep.subr.bf16.mxu0 0
      %859 = vmatpush1.bf16.msra.mxu0 0
      %860 = vmatprep.mubr.bf16.mxu0 0
      %861 = vmatmul.mubr.bf16.gmra.mrb[0].mxu0 %v781
      %v862 = vpop.f32.mrb[0].mxu0
      %v863 = vadd.f32 %v673, %v862
      %v864 = vpop.f32.mrb[0].mxu0
      %v865 = vpop.f32.mrb[0].mxu0
      %v866 = vadd.f32 %v673, %v865
      %v867 = vpop.f32.mrb[0].mxu0
      %868 = vmatprep.mubr.bf16.mxu0 0
      %869 = vmatmul.mubr.bf16.gmra.mrb[0].mxu0 %v784
      %v870 = vpop.f32.mrb[0].mxu0
      %v871 = vadd.f32 %v673, %v870
      %v872 = vpop.f32.mrb[0].mxu0
      %v873 = vpop.f32.mrb[0].mxu0
      %v874 = vadd.f32 %v673, %v873
      %v875 = vpop.f32.mrb[0].mxu0
      %876 = vmatprep.mubr.bf16.mxu0 0
      %877 = vmatmul.mubr.bf16.gmra.mrb[0].mxu0 %v787
      %v878 = vpop.f32.mrb[0].mxu0
      %v879 = vadd.f32 %v673, %v878
      %v880 = vpop.f32.mrb[0].mxu0
      %v881 = vpop.f32.mrb[0].mxu0
      %v882 = vadd.f32 %v673, %v881
      %v883 = vpop.f32.mrb[0].mxu0
      %884 = vmatprep.mubr.bf16.mxu0 0
      %885 = vmatmul.mubr.bf16.gmra.mrb[0].mxu0 %v790
      %v886 = vpop.f32.mrb[0].mxu0
      %v887 = vadd.f32 %v673, %v886
      %v888 = vpop.f32.mrb[0].mxu0
      %v889 = vpop.f32.mrb[0].mxu0
      %v890 = vadd.f32 %v673, %v889
      %v891 = vpop.f32.mrb[0].mxu0
      %892 = vmatprep.mubr.bf16.mxu0 0
      %893 = vmatmul.mubr.bf16.gmra.mrb[0].mxu0 %v793
      %v894 = vpop.f32.mrb[0].mxu0
      %v895 = vadd.f32 %v673, %v894
      %v896 = vpop.f32.mrb[0].mxu0
      %v897 = vpop.f32.mrb[0].mxu0
      %v898 = vadd.f32 %v673, %v897
      %v899 = vpop.f32.mrb[0].mxu0
      %900 = vmatprep.mubr.bf16.mxu0 0
      %901 = vmatmul.mubr.bf16.gmra.mrb[0].mxu0 %v796
      %v902 = vpop.f32.mrb[0].mxu0
      %v903 = vadd.f32 %v673, %v902
      %v904 = vpop.f32.mrb[0].mxu0
      %v905 = vpop.f32.mrb[0].mxu0
      %v906 = vadd.f32 %v673, %v905
      %v907 = vpop.f32.mrb[0].mxu0
      %908 = vmatprep.mubr.bf16.mxu0 0
      %909 = vmatmul.mubr.bf16.gmra.mrb[0].mxu0 %v799
      %v910 = vpop.f32.mrb[0].mxu0
      %v911 = vadd.f32 %v673, %v910
      %v912 = vpop.f32.mrb[0].mxu0
      %v913 = vpop.f32.mrb[0].mxu0
      %v914 = vadd.f32 %v673, %v913
      %v915 = vpop.f32.mrb[0].mxu0
      %916 = vmatprep.mubr.bf16.mxu0 0
      %917 = vmatmul.mubr.bf16.gmra.mrb[0].mxu0 %v802
      %v918 = vpop.f32.mrb[0].mxu0
      %v919 = vadd.f32 %v673, %v918
      %v920 = vpop.f32.mrb[0].mxu0
      %v921 = vpop.f32.mrb[0].mxu0
      %v922 = vadd.f32 %v673, %v921
      %v923 = vpop.f32.mrb[0].mxu0
      %924 = vmatprep.mubr.bf16.mxu0 0
      %925 = vmatmul.mubr.bf16.gmra.mrb[0].mxu0 %v805
      %v926 = vpop.f32.mrb[0].mxu0
      %v927 = vadd.f32 %v673, %v926
      %v928 = vpop.f32.mrb[0].mxu0
      %v929 = vpop.f32.mrb[0].mxu0
      %v930 = vadd.f32 %v673, %v929
      %v931 = vpop.f32.mrb[0].mxu0
      %932 = vmatprep.mubr.bf16.mxu0 0
      %933 = vmatmul.mubr.bf16.gmra.mrb[0].mxu0 %v808
      %v934 = vpop.f32.mrb[0].mxu0
      %v935 = vadd.f32 %v673, %v934
      %v936 = vpop.f32.mrb[0].mxu0
      %v937 = vpop.f32.mrb[0].mxu0
      %v938 = vadd.f32 %v673, %v937
      %v939 = vpop.f32.mrb[0].mxu0
      %940 = vmatprep.mubr.bf16.mxu0 0
      %941 = vmatmul.mubr.bf16.gmra.mrb[0].mxu0 %v811
      %v942 = vpop.f32.mrb[0].mxu0
      %v943 = vadd.f32 %v673, %v942
      %v944 = vpop.f32.mrb[0].mxu0
      %v945 = vpop.f32.mrb[0].mxu0
      %v946 = vadd.f32 %v673, %v945
      %v947 = vpop.f32.mrb[0].mxu0
      %948 = vmatprep.mubr.bf16.mxu0 0
      %949 = vmatmul.mubr.bf16.gmra.mrb[0].mxu0 %v814
      %v950 = vpop.f32.mrb[0].mxu0
      %v951 = vadd.f32 %v673, %v950
      %v952 = vpop.f32.mrb[0].mxu0
      %v953 = vpop.f32.mrb[0].mxu0
      %v954 = vadd.f32 %v673, %v953
      %v955 = vpop.f32.mrb[0].mxu0
      %956 = vmatprep.mubr.bf16.mxu0 0
      %957 = vmatmul.mubr.bf16.gmra.mrb[0].mxu0 %v817
      %v958 = vpop.f32.mrb[0].mxu0
      %v959 = vadd.f32 %v673, %v958
      %v960 = vpop.f32.mrb[0].mxu0
      %v961 = vpop.f32.mrb[0].mxu0
      %v962 = vadd.f32 %v673, %v961
      %v963 = vpop.f32.mrb[0].mxu0
      %964 = vmatprep.mubr.bf16.mxu0 0
      %965 = vmatmul.mubr.bf16.gmra.mrb[0].mxu0 %v820
      %v966 = vpop.f32.mrb[0].mxu0
      %v967 = vadd.f32 %v673, %v966
      %v968 = vpop.f32.mrb[0].mxu0
      %v969 = vpop.f32.mrb[0].mxu0
      %v970 = vadd.f32 %v673, %v969
      %v971 = vpop.f32.mrb[0].mxu0
      %972 = vmatprep.mubr.bf16.mxu0 0
      %973 = vmatmul.mubr.bf16.gmra.mrb[0].mxu0 %v823
      %v974 = vpop.f32.mrb[0].mxu0
      %v975 = vadd.f32 %v673, %v974
      %v976 = vpop.f32.mrb[0].mxu0
      %v977 = vpop.f32.mrb[0].mxu0
      %v978 = vadd.f32 %v673, %v977
      %v979 = vpop.f32.mrb[0].mxu0
      %980 = vmatprep.mubr.bf16.mxu0 0
      %981 = vmatmul.mubr.bf16.gmra.mrb[0].mxu0 %v826
      %v982 = vpop.f32.mrb[0].mxu0
      %v983 = vadd.f32 %v673, %v982
      %v984 = vpop.f32.mrb[0].mxu0
      %v985 = vpop.f32.mrb[0].mxu0
      %v986 = vadd.f32 %v673, %v985
      %v987 = vpop.f32.mrb[0].mxu0
      %988 = vdwg.mxu0
      %v989 = vxor.u32 %v863, 2147483648
      %v990 = vxor.u32 %v866, 2147483648
      %v991 = vxor.u32 %v871, 2147483648
      %v992 = vxor.u32 %v874, 2147483648
      %v993 = vxor.u32 %v879, 2147483648
      %v994 = vxor.u32 %v882, 2147483648
      %v995 = vxor.u32 %v887, 2147483648
      %v996 = vxor.u32 %v890, 2147483648
      %v997 = vxor.u32 %v895, 2147483648
      %v998 = vxor.u32 %v898, 2147483648
      %v999 = vxor.u32 %v903, 2147483648
      %v1000 = vxor.u32 %v906, 2147483648
      %v1001 = vxor.u32 %v911, 2147483648
      %v1002 = vxor.u32 %v914, 2147483648
      %v1003 = vxor.u32 %v919, 2147483648
      %v1004 = vxor.u32 %v922, 2147483648
      %v1005 = vxor.u32 %v927, 2147483648
      %v1006 = vxor.u32 %v930, 2147483648
      %v1007 = vxor.u32 %v935, 2147483648
      %v1008 = vxor.u32 %v938, 2147483648
      %v1009 = vxor.u32 %v943, 2147483648
      %v1010 = vxor.u32 %v946, 2147483648
      %v1011 = vxor.u32 %v951, 2147483648
      %v1012 = vxor.u32 %v954, 2147483648
      %v1013 = vxor.u32 %v959, 2147483648
      %v1014 = vxor.u32 %v962, 2147483648
      %v1015 = vxor.u32 %v967, 2147483648
      %v1016 = vxor.u32 %v970, 2147483648
      %v1017 = vxor.u32 %v975, 2147483648
      %v1018 = vxor.u32 %v978, 2147483648
      %v1019 = vxor.u32 %v983, 2147483648
      %v1020 = vxor.u32 %v986, 2147483648
      %v1021 = vmul.f32 %v989, 1.442695
      %v1022 = vpow.pop %v1021
      %v1023 = vmul.f32 %v990, 1.442695
      %v1024 = vpow.pop %v1023
      %v1025 = vmul.f32 %v991, 1.442695
      %v1026 = vpow.pop %v1025
      %v1027 = vmul.f32 %v992, 1.442695
      %v1028 = vpow.pop %v1027
      %v1029 = vmul.f32 %v993, 1.442695
      %v1030 = vpow.pop %v1029
      %v1031 = vmul.f32 %v994, 1.442695
      %v1032 = vpow.pop %v1031
      %v1033 = vmul.f32 %v995, 1.442695
      %v1034 = vpow.pop %v1033
      %v1035 = vmul.f32 %v996, 1.442695
      %v1036 = vpow.pop %v1035
      %v1037 = vmul.f32 %v997, 1.442695
      %v1038 = vpow.pop %v1037
      %v1039 = vmul.f32 %v998, 1.442695
      %v1040 = vpow.pop %v1039
      %v1041 = vmul.f32 %v999, 1.442695
      %v1042 = vpow.pop %v1041
      %v1043 = vmul.f32 %v1000, 1.442695
      %v1044 = vpow.pop %v1043
      %v1045 = vmul.f32 %v1001, 1.442695
      %v1046 = vpow.pop %v1045
      %v1047 = vmul.f32 %v1002, 1.442695
      %v1048 = vpow.pop %v1047
      %v1049 = vmul.f32 %v1003, 1.442695
      %v1050 = vpow.pop %v1049
      %v1051 = vmul.f32 %v1004, 1.442695
      %v1052 = vpow.pop %v1051
      %v1053 = vmul.f32 %v1005, 1.442695
      %v1054 = vpow.pop %v1053
      %v1055 = vmul.f32 %v1006, 1.442695
      %v1056 = vpow.pop %v1055
      %v1057 = vmul.f32 %v1007, 1.442695
      %v1058 = vpow.pop %v1057
      %v1059 = vmul.f32 %v1008, 1.442695
      %v1060 = vpow.pop %v1059
      %v1061 = vmul.f32 %v1009, 1.442695
      %v1062 = vpow.pop %v1061
      %v1063 = vmul.f32 %v1010, 1.442695
      %v1064 = vpow.pop %v1063
      %v1065 = vmul.f32 %v1011, 1.442695
      %v1066 = vpow.pop %v1065
      %v1067 = vmul.f32 %v1012, 1.442695
      %v1068 = vpow.pop %v1067
      %v1069 = vmul.f32 %v1013, 1.442695
      %v1070 = vpow.pop %v1069
      %v1071 = vmul.f32 %v1014, 1.442695
      %v1072 = vpow.pop %v1071
      %v1073 = vmul.f32 %v1015, 1.442695
      %v1074 = vpow.pop %v1073
      %v1075 = vmul.f32 %v1016, 1.442695
      %v1076 = vpow.pop %v1075
      %v1077 = vmul.f32 %v1017, 1.442695
      %v1078 = vpow.pop %v1077
      %v1079 = vmul.f32 %v1018, 1.442695
      %v1080 = vpow.pop %v1079
      %v1081 = vmul.f32 %v1019, 1.442695
      %v1082 = vpow.pop %v1081
      %v1083 = vmul.f32 %v1020, 1.442695
      %v1084 = vpow.pop %v1083
      %v1085 = vadd.f32 %v1022, 1.0
      %v1086 = vadd.f32 %v1024, 1.0
      %v1087 = vadd.f32 %v1026, 1.0
      %v1088 = vadd.f32 %v1028, 1.0
      %v1089 = vadd.f32 %v1030, 1.0
      %v1090 = vadd.f32 %v1032, 1.0
      %v1091 = vadd.f32 %v1034, 1.0
      %v1092 = vadd.f32 %v1036, 1.0
      %v1093 = vadd.f32 %v1038, 1.0
      %v1094 = vadd.f32 %v1040, 1.0
      %v1095 = vadd.f32 %v1042, 1.0
      %v1096 = vadd.f32 %v1044, 1.0
      %v1097 = vadd.f32 %v1046, 1.0
      %v1098 = vadd.f32 %v1048, 1.0
      %v1099 = vadd.f32 %v1050, 1.0
      %v1100 = vadd.f32 %v1052, 1.0
      %v1101 = vadd.f32 %v1054, 1.0
      %v1102 = vadd.f32 %v1056, 1.0
      %v1103 = vadd.f32 %v1058, 1.0
      %v1104 = vadd.f32 %v1060, 1.0
      %v1105 = vadd.f32 %v1062, 1.0
      %v1106 = vadd.f32 %v1064, 1.0
      %v1107 = vadd.f32 %v1066, 1.0
      %v1108 = vadd.f32 %v1068, 1.0
      %v1109 = vadd.f32 %v1070, 1.0
      %v1110 = vadd.f32 %v1072, 1.0
      %v1111 = vadd.f32 %v1074, 1.0
      %v1112 = vadd.f32 %v1076, 1.0
      %v1113 = vadd.f32 %v1078, 1.0
      %v1114 = vadd.f32 %v1080, 1.0
      %v1115 = vadd.f32 %v1082, 1.0
      %v1116 = vadd.f32 %v1084, 1.0
      %v1117 = vrcp.pop %v1085
      %v1118 = vmul.f32 1.0, %v1117
      %v1119 = vrcp.pop %v1086
      %v1120 = vmul.f32 1.0, %v1119
      %v1121 = vrcp.pop %v1087
      %v1122 = vmul.f32 1.0, %v1121
      %v1123 = vrcp.pop %v1088
      %v1124 = vmul.f32 1.0, %v1123
      %v1125 = vrcp.pop %v1089
      %v1126 = vmul.f32 1.0, %v1125
      %v1127 = vrcp.pop %v1090
      %v1128 = vmul.f32 1.0, %v1127
      %v1129 = vrcp.pop %v1091
      %v1130 = vmul.f32 1.0, %v1129
      %v1131 = vrcp.pop %v1092
      %v1132 = vmul.f32 1.0, %v1131
      %v1133 = vrcp.pop %v1093
      %v1134 = vmul.f32 1.0, %v1133
      %v1135 = vrcp.pop %v1094
      %v1136 = vmul.f32 1.0, %v1135
      %v1137 = vrcp.pop %v1095
      %v1138 = vmul.f32 1.0, %v1137
      %v1139 = vrcp.pop %v1096
      %v1140 = vmul.f32 1.0, %v1139
      %v1141 = vrcp.pop %v1097
      %v1142 = vmul.f32 1.0, %v1141
      %v1143 = vrcp.pop %v1098
      %v1144 = vmul.f32 1.0, %v1143
      %v1145 = vrcp.pop %v1099
      %v1146 = vmul.f32 1.0, %v1145
      %v1147 = vrcp.pop %v1100
      %v1148 = vmul.f32 1.0, %v1147
      %v1149 = vrcp.pop %v1101
      %v1150 = vmul.f32 1.0, %v1149
      %v1151 = vrcp.pop %v1102
      %v1152 = vmul.f32 1.0, %v1151
      %v1153 = vrcp.pop %v1103
      %v1154 = vmul.f32 1.0, %v1153
      %v1155 = vrcp.pop %v1104
      %v1156 = vmul.f32 1.0, %v1155
      %v1157 = vrcp.pop %v1105
      %v1158 = vmul.f32 1.0, %v1157
      %v1159 = vrcp.pop %v1106
      %v1160 = vmul.f32 1.0, %v1159
      %v1161 = vrcp.pop %v1107
      %v1162 = vmul.f32 1.0, %v1161
      %v1163 = vrcp.pop %v1108
      %v1164 = vmul.f32 1.0, %v1163
      %v1165 = vrcp.pop %v1109
      %v1166 = vmul.f32 1.0, %v1165
      %v1167 = vrcp.pop %v1110
      %v1168 = vmul.f32 1.0, %v1167
      %v1169 = vrcp.pop %v1111
      %v1170 = vmul.f32 1.0, %v1169
      %v1171 = vrcp.pop %v1112
      %v1172 = vmul.f32 1.0, %v1171
      %v1173 = vrcp.pop %v1113
      %v1174 = vmul.f32 1.0, %v1173
      %v1175 = vrcp.pop %v1114
      %v1176 = vmul.f32 1.0, %v1175
      %v1177 = vrcp.pop %v1115
      %v1178 = vmul.f32 1.0, %v1177
      %v1179 = vrcp.pop %v1116
      %v1180 = vmul.f32 1.0, %v1179
      %v1181 = vmul.f32 %v863, %v1118
      %v1182 = vmul.f32 %v866, %v1120
      %v1183 = vmul.f32 %v871, %v1122
      %v1184 = vmul.f32 %v874, %v1124
      %v1185 = vmul.f32 %v879, %v1126
      %v1186 = vmul.f32 %v882, %v1128
      %v1187 = vmul.f32 %v887, %v1130
      %v1188 = vmul.f32 %v890, %v1132
      %v1189 = vmul.f32 %v895, %v1134
      %v1190 = vmul.f32 %v898, %v1136
      %v1191 = vmul.f32 %v903, %v1138
      %v1192 = vmul.f32 %v906, %v1140
      %v1193 = vmul.f32 %v911, %v1142
      %v1194 = vmul.f32 %v914, %v1144
      %v1195 = vmul.f32 %v919, %v1146
      %v1196 = vmul.f32 %v922, %v1148
      %v1197 = vmul.f32 %v927, %v1150
      %v1198 = vmul.f32 %v930, %v1152
      %v1199 = vmul.f32 %v935, %v1154
      %v1200 = vmul.f32 %v938, %v1156
      %v1201 = vmul.f32 %v943, %v1158
      %v1202 = vmul.f32 %v946, %v1160
      %v1203 = vmul.f32 %v951, %v1162
      %v1204 = vmul.f32 %v954, %v1164
      %v1205 = vmul.f32 %v959, %v1166
      %v1206 = vmul.f32 %v962, %v1168
      %v1207 = vmul.f32 %v967, %v1170
      %v1208 = vmul.f32 %v970, %v1172
      %v1209 = vmul.f32 %v975, %v1174
      %v1210 = vmul.f32 %v978, %v1176
      %v1211 = vmul.f32 %v983, %v1178
      %v1212 = vmul.f32 %v986, %v1180
      %v1213 = vpack.c.bf16 %v1182, %v1181
      %v1214 = vpack.c.bf16 %v1184, %v1183
      %v1215 = vpack.c.bf16 %v1186, %v1185
      %v1216 = vpack.c.bf16 %v1188, %v1187
      %v1217 = vpack.c.bf16 %v1190, %v1189
      %v1218 = vpack.c.bf16 %v1192, %v1191
      %v1219 = vpack.c.bf16 %v1194, %v1193
      %v1220 = vpack.c.bf16 %v1196, %v1195
      %v1221 = vpack.c.bf16 %v1198, %v1197
      %v1222 = vpack.c.bf16 %v1200, %v1199
      %v1223 = vpack.c.bf16 %v1202, %v1201
      %v1224 = vpack.c.bf16 %v1204, %v1203
      %v1225 = vpack.c.bf16 %v1206, %v1205
      %v1226 = vpack.c.bf16 %v1208, %v1207
      %v1227 = vpack.c.bf16 %v1210, %v1209
      %v1228 = vpack.c.bf16 %v1212, %v1211
      %v1229 = vld [vmem:[%s10] sm:$0xf]
      %v1230 = vld [vmem:[%s10 + $0x4] sm:$0xf]
      %v1231 = vld [vmem:[%s10 + $0x8] sm:$0xf]
      %v1232 = vld [vmem:[%s10 + $0xc] sm:$0xf]
      %v1233 = vld [vmem:[%s10 + $0x10] sm:$0xf]
      %v1234 = vld [vmem:[%s10 + $0x14] sm:$0xf]
      %v1235 = vld [vmem:[%s10 + $0x18] sm:$0xf]
      %v1236 = vld [vmem:[%s10 + $0x1c] sm:$0xf]
      %v1237 = vld [vmem:[%s11] sm:$0x1]
      %v1239 = vlaneseq
      %v1240 = vshrl.u32 %v1239, 7
      %v1241 = vsub.s32 0, %v1240
      %v1242 = vrot.slane %v1237, %v1241
      %v1252 = vunpack.c.l.b16 %v1229
      %v1253 = vunpack.c.l.b16 %v1230
      %v1254 = vunpack.c.l.b16 %v1231
      %v1255 = vunpack.c.l.b16 %v1232
      %v1256 = vunpack.c.l.b16 %v1233
      %v1257 = vunpack.c.l.b16 %v1234
      %v1258 = vunpack.c.l.b16 %v1235
      %v1259 = vunpack.c.l.b16 %v1236
      %v1260 = vpack.c.b16 %v1253, %v1252
      %v1261 = vpack.c.b16 %v1255, %v1254
      %v1262 = vpack.c.b16 %v1257, %v1256
      %v1263 = vpack.c.b16 %v1259, %v1258
      %v1269 = vsel %vm779, %v1213, 0
      %v1272 = vsel %vm779, %v1214, 0
      %v1275 = vsel %vm779, %v1215, 0
      %v1278 = vsel %vm779, %v1216, 0
      %v1281 = vsel %vm779, %v1217, 0
      %v1284 = vsel %vm779, %v1218, 0
      %v1287 = vsel %vm779, %v1219, 0
      %v1290 = vsel %vm779, %v1220, 0
      %v1293 = vsel %vm779, %v1221, 0
      %v1296 = vsel %vm779, %v1222, 0
      %v1299 = vsel %vm779, %v1223, 0
      %v1302 = vsel %vm779, %v1224, 0
      %v1305 = vsel %vm779, %v1225, 0
      %v1308 = vsel %vm779, %v1226, 0
      %v1311 = vsel %vm779, %v1227, 0
      %v1314 = vsel %vm779, %v1228, 0
      %1316 = vmatprep.subr.bf16.mxu0 0
      %1317 = vmatpush1.bf16.msra.mxu0 %v1260
      %1318 = vmatprep.subr.bf16.mxu0 0
      %1319 = vmatpush1.bf16.msra.mxu0 %v1261
      %1320 = vmatprep.subr.bf16.mxu0 0
      %1321 = vmatpush1.bf16.msra.mxu0 %v1262
      %1322 = vmatprep.subr.bf16.mxu0 0
      %1323 = vmatpush1.bf16.msra.mxu0 %v1263
      %1324 = vmatprep.subr.bf16.mxu0 0
      %1325 = vmatpush1.bf16.msra.mxu0 0
      %1326 = vmatprep.subr.bf16.mxu0 0
      %1327 = vmatpush1.bf16.msra.mxu0 0
      %1328 = vmatprep.subr.bf16.mxu0 0
      %1329 = vmatpush1.bf16.msra.mxu0 0
      %1330 = vmatprep.subr.bf16.mxu0 0
      %1331 = vmatpush1.bf16.msra.mxu0 0
      %1332 = vmatprep.subr.bf16.mxu0 0
      %1333 = vmatpush1.bf16.msra.mxu0 0
      %1334 = vmatprep.subr.bf16.mxu0 0
      %1335 = vmatpush1.bf16.msra.mxu0 0
      %1336 = vmatprep.subr.bf16.mxu0 0
      %1337 = vmatpush1.bf16.msra.mxu0 0
      %1338 = vmatprep.subr.bf16.mxu0 0
      %1339 = vmatpush1.bf16.msra.mxu0 0
      %1340 = vmatprep.subr.bf16.mxu0 0
      %1341 = vmatpush1.bf16.msra.mxu0 0
      %1342 = vmatprep.subr.bf16.mxu0 0
      %1343 = vmatpush1.bf16.msra.mxu0 0
      %1344 = vmatprep.subr.bf16.mxu0 0
      %1345 = vmatpush1.bf16.msra.mxu0 0
      %1346 = vmatprep.subr.bf16.mxu0 0
      %1347 = vmatpush1.bf16.msra.mxu0 0
      %1348 = vmatprep.mubr.bf16.mxu0 0
      %1349 = vmatmul.mubr.bf16.gmra.mrb[0].mxu0 %v1269
      %v1350 = vpop.f32.mrb[0].mxu0
      %v1351 = vadd.f32 %v1242, %v1350
      %v1352 = vpop.f32.mrb[0].mxu0
      %v1353 = vpop.f32.mrb[0].mxu0
      %v1354 = vadd.f32 %v1242, %v1353
      %v1355 = vpop.f32.mrb[0].mxu0
      %1356 = vmatprep.mubr.bf16.mxu0 0
      %1357 = vmatmul.mubr.bf16.gmra.mrb[0].mxu0 %v1272
      %v1358 = vpop.f32.mrb[0].mxu0
      %v1359 = vadd.f32 %v1242, %v1358
      %v1360 = vpop.f32.mrb[0].mxu0
      %v1361 = vpop.f32.mrb[0].mxu0
      %v1362 = vadd.f32 %v1242, %v1361
      %v1363 = vpop.f32.mrb[0].mxu0
      %1364 = vmatprep.mubr.bf16.mxu0 0
      %1365 = vmatmul.mubr.bf16.gmra.mrb[0].mxu0 %v1275
      %v1366 = vpop.f32.mrb[0].mxu0
      %v1367 = vadd.f32 %v1242, %v1366
      %v1368 = vpop.f32.mrb[0].mxu0
      %v1369 = vpop.f32.mrb[0].mxu0
      %v1370 = vadd.f32 %v1242, %v1369
      %v1371 = vpop.f32.mrb[0].mxu0
      %1372 = vmatprep.mubr.bf16.mxu0 0
      %1373 = vmatmul.mubr.bf16.gmra.mrb[0].mxu0 %v1278
      %v1374 = vpop.f32.mrb[0].mxu0
      %v1375 = vadd.f32 %v1242, %v1374
      %v1376 = vpop.f32.mrb[0].mxu0
      %v1377 = vpop.f32.mrb[0].mxu0
      %v1378 = vadd.f32 %v1242, %v1377
      %v1379 = vpop.f32.mrb[0].mxu0
      %1380 = vmatprep.mubr.bf16.mxu0 0
      %1381 = vmatmul.mubr.bf16.gmra.mrb[0].mxu0 %v1281
      %v1382 = vpop.f32.mrb[0].mxu0
      %v1383 = vadd.f32 %v1242, %v1382
      %v1384 = vpop.f32.mrb[0].mxu0
      %v1385 = vpop.f32.mrb[0].mxu0
      %v1386 = vadd.f32 %v1242, %v1385
      %v1387 = vpop.f32.mrb[0].mxu0
      %1388 = vmatprep.mubr.bf16.mxu0 0
      %1389 = vmatmul.mubr.bf16.gmra.mrb[0].mxu0 %v1284
      %v1390 = vpop.f32.mrb[0].mxu0
      %v1391 = vadd.f32 %v1242, %v1390
      %v1392 = vpop.f32.mrb[0].mxu0
      %v1393 = vpop.f32.mrb[0].mxu0
      %v1394 = vadd.f32 %v1242, %v1393
      %v1395 = vpop.f32.mrb[0].mxu0
      %1396 = vmatprep.mubr.bf16.mxu0 0
      %1397 = vmatmul.mubr.bf16.gmra.mrb[0].mxu0 %v1287
      %v1398 = vpop.f32.mrb[0].mxu0
      %v1399 = vadd.f32 %v1242, %v1398
      %v1400 = vpop.f32.mrb[0].mxu0
      %v1401 = vpop.f32.mrb[0].mxu0
      %v1402 = vadd.f32 %v1242, %v1401
      %v1403 = vpop.f32.mrb[0].mxu0
      %1404 = vmatprep.mubr.bf16.mxu0 0
      %1405 = vmatmul.mubr.bf16.gmra.mrb[0].mxu0 %v1290
      %v1406 = vpop.f32.mrb[0].mxu0
      %v1407 = vadd.f32 %v1242, %v1406
      %v1408 = vpop.f32.mrb[0].mxu0
      %v1409 = vpop.f32.mrb[0].mxu0
      %v1410 = vadd.f32 %v1242, %v1409
      %v1411 = vpop.f32.mrb[0].mxu0
      %1412 = vmatprep.mubr.bf16.mxu0 0
      %1413 = vmatmul.mubr.bf16.gmra.mrb[0].mxu0 %v1293
      %v1414 = vpop.f32.mrb[0].mxu0
      %v1415 = vadd.f32 %v1242, %v1414
      %v1416 = vpop.f32.mrb[0].mxu0
      %v1417 = vpop.f32.mrb[0].mxu0
      %v1418 = vadd.f32 %v1242, %v1417
      %v1419 = vpop.f32.mrb[0].mxu0
      %1420 = vmatprep.mubr.bf16.mxu0 0
      %1421 = vmatmul.mubr.bf16.gmra.mrb[0].mxu0 %v1296
      %v1422 = vpop.f32.mrb[0].mxu0
      %v1423 = vadd.f32 %v1242, %v1422
      %v1424 = vpop.f32.mrb[0].mxu0
      %v1425 = vpop.f32.mrb[0].mxu0
      %v1426 = vadd.f32 %v1242, %v1425
      %v1427 = vpop.f32.mrb[0].mxu0
      %1428 = vmatprep.mubr.bf16.mxu0 0
      %1429 = vmatmul.mubr.bf16.gmra.mrb[0].mxu0 %v1299
      %v1430 = vpop.f32.mrb[0].mxu0
      %v1431 = vadd.f32 %v1242, %v1430
      %v1432 = vpop.f32.mrb[0].mxu0
      %v1433 = vpop.f32.mrb[0].mxu0
      %v1434 = vadd.f32 %v1242, %v1433
      %v1435 = vpop.f32.mrb[0].mxu0
      %1436 = vmatprep.mubr.bf16.mxu0 0
      %1437 = vmatmul.mubr.bf16.gmra.mrb[0].mxu0 %v1302
      %v1438 = vpop.f32.mrb[0].mxu0
      %v1439 = vadd.f32 %v1242, %v1438
      %v1440 = vpop.f32.mrb[0].mxu0
      %v1441 = vpop.f32.mrb[0].mxu0
      %v1442 = vadd.f32 %v1242, %v1441
      %v1443 = vpop.f32.mrb[0].mxu0
      %1444 = vmatprep.mubr.bf16.mxu0 0
      %1445 = vmatmul.mubr.bf16.gmra.mrb[0].mxu0 %v1305
      %v1446 = vpop.f32.mrb[0].mxu0
      %v1447 = vadd.f32 %v1242, %v1446
      %v1448 = vpop.f32.mrb[0].mxu0
      %v1449 = vpop.f32.mrb[0].mxu0
      %v1450 = vadd.f32 %v1242, %v1449
      %v1451 = vpop.f32.mrb[0].mxu0
      %1452 = vmatprep.mubr.bf16.mxu0 0
      %1453 = vmatmul.mubr.bf16.gmra.mrb[0].mxu0 %v1308
      %v1454 = vpop.f32.mrb[0].mxu0
      %v1455 = vadd.f32 %v1242, %v1454
      %v1456 = vpop.f32.mrb[0].mxu0
      %v1457 = vpop.f32.mrb[0].mxu0
      %v1458 = vadd.f32 %v1242, %v1457
      %v1459 = vpop.f32.mrb[0].mxu0
      %1460 = vmatprep.mubr.bf16.mxu0 0
      %1461 = vmatmul.mubr.bf16.gmra.mrb[0].mxu0 %v1311
      %v1462 = vpop.f32.mrb[0].mxu0
      %v1463 = vadd.f32 %v1242, %v1462
      %v1464 = vpop.f32.mrb[0].mxu0
      %v1465 = vpop.f32.mrb[0].mxu0
      %v1466 = vadd.f32 %v1242, %v1465
      %v1467 = vpop.f32.mrb[0].mxu0
      %1468 = vmatprep.mubr.bf16.mxu0 0
      %1469 = vmatmul.mubr.bf16.gmra.mrb[0].mxu0 %v1314
      %v1470 = vpop.f32.mrb[0].mxu0
      %v1471 = vadd.f32 %v1242, %v1470
      %v1472 = vpop.f32.mrb[0].mxu0
      %v1473 = vpop.f32.mrb[0].mxu0
      %v1474 = vadd.f32 %v1242, %v1473
      %v1475 = vpop.f32.mrb[0].mxu0
      %1476 = vdwg.mxu0
      %v1477 = vxor.u32 %v1351, 2147483648
      %v1478 = vxor.u32 %v1354, 2147483648
      %v1479 = vxor.u32 %v1359, 2147483648
      %v1480 = vxor.u32 %v1362, 2147483648
      %v1481 = vxor.u32 %v1367, 2147483648
      %v1482 = vxor.u32 %v1370, 2147483648
      %v1483 = vxor.u32 %v1375, 2147483648
      %v1484 = vxor.u32 %v1378, 2147483648
      %v1485 = vxor.u32 %v1383, 2147483648
      %v1486 = vxor.u32 %v1386, 2147483648
      %v1487 = vxor.u32 %v1391, 2147483648
      %v1488 = vxor.u32 %v1394, 2147483648
      %v1489 = vxor.u32 %v1399, 2147483648
      %v1490 = vxor.u32 %v1402, 2147483648
      %v1491 = vxor.u32 %v1407, 2147483648
      %v1492 = vxor.u32 %v1410, 2147483648
      %v1493 = vxor.u32 %v1415, 2147483648
      %v1494 = vxor.u32 %v1418, 2147483648
      %v1495 = vxor.u32 %v1423, 2147483648
      %v1496 = vxor.u32 %v1426, 2147483648
      %v1497 = vxor.u32 %v1431, 2147483648
      %v1498 = vxor.u32 %v1434, 2147483648
      %v1499 = vxor.u32 %v1439, 2147483648
      %v1500 = vxor.u32 %v1442, 2147483648
      %v1501 = vxor.u32 %v1447, 2147483648
      %v1502 = vxor.u32 %v1450, 2147483648
      %v1503 = vxor.u32 %v1455, 2147483648
      %v1504 = vxor.u32 %v1458, 2147483648
      %v1505 = vxor.u32 %v1463, 2147483648
      %v1506 = vxor.u32 %v1466, 2147483648
      %v1507 = vxor.u32 %v1471, 2147483648
      %v1508 = vxor.u32 %v1474, 2147483648
      %v1509 = vmul.f32 %v1477, 1.442695
      %v1510 = vpow.pop %v1509
      %v1511 = vmul.f32 %v1478, 1.442695
      %v1512 = vpow.pop %v1511
      %v1513 = vmul.f32 %v1479, 1.442695
      %v1514 = vpow.pop %v1513
      %v1515 = vmul.f32 %v1480, 1.442695
      %v1516 = vpow.pop %v1515
      %v1517 = vmul.f32 %v1481, 1.442695
      %v1518 = vpow.pop %v1517
      %v1519 = vmul.f32 %v1482, 1.442695
      %v1520 = vpow.pop %v1519
      %v1521 = vmul.f32 %v1483, 1.442695
      %v1522 = vpow.pop %v1521
      %v1523 = vmul.f32 %v1484, 1.442695
      %v1524 = vpow.pop %v1523
      %v1525 = vmul.f32 %v1485, 1.442695
      %v1526 = vpow.pop %v1525
      %v1527 = vmul.f32 %v1486, 1.442695
      %v1528 = vpow.pop %v1527
      %v1529 = vmul.f32 %v1487, 1.442695
      %v1530 = vpow.pop %v1529
      %v1531 = vmul.f32 %v1488, 1.442695
      %v1532 = vpow.pop %v1531
      %v1533 = vmul.f32 %v1489, 1.442695
      %v1534 = vpow.pop %v1533
      %v1535 = vmul.f32 %v1490, 1.442695
      %v1536 = vpow.pop %v1535
      %v1537 = vmul.f32 %v1491, 1.442695
      %v1538 = vpow.pop %v1537
      %v1539 = vmul.f32 %v1492, 1.442695
      %v1540 = vpow.pop %v1539
      %v1541 = vmul.f32 %v1493, 1.442695
      %v1542 = vpow.pop %v1541
      %v1543 = vmul.f32 %v1494, 1.442695
      %v1544 = vpow.pop %v1543
      %v1545 = vmul.f32 %v1495, 1.442695
      %v1546 = vpow.pop %v1545
      %v1547 = vmul.f32 %v1496, 1.442695
      %v1548 = vpow.pop %v1547
      %v1549 = vmul.f32 %v1497, 1.442695
      %v1550 = vpow.pop %v1549
      %v1551 = vmul.f32 %v1498, 1.442695
      %v1552 = vpow.pop %v1551
      %v1553 = vmul.f32 %v1499, 1.442695
      %v1554 = vpow.pop %v1553
      %v1555 = vmul.f32 %v1500, 1.442695
      %v1556 = vpow.pop %v1555
      %v1557 = vmul.f32 %v1501, 1.442695
      %v1558 = vpow.pop %v1557
      %v1559 = vmul.f32 %v1502, 1.442695
      %v1560 = vpow.pop %v1559
      %v1561 = vmul.f32 %v1503, 1.442695
      %v1562 = vpow.pop %v1561
      %v1563 = vmul.f32 %v1504, 1.442695
      %v1564 = vpow.pop %v1563
      %v1565 = vmul.f32 %v1505, 1.442695
      %v1566 = vpow.pop %v1565
      %v1567 = vmul.f32 %v1506, 1.442695
      %v1568 = vpow.pop %v1567
      %v1569 = vmul.f32 %v1507, 1.442695
      %v1570 = vpow.pop %v1569
      %v1571 = vmul.f32 %v1508, 1.442695
      %v1572 = vpow.pop %v1571
      %v1573 = vadd.f32 %v1510, 1.0
      %v1574 = vadd.f32 %v1512, 1.0
      %v1575 = vadd.f32 %v1514, 1.0
      %v1576 = vadd.f32 %v1516, 1.0
      %v1577 = vadd.f32 %v1518, 1.0
      %v1578 = vadd.f32 %v1520, 1.0
      %v1579 = vadd.f32 %v1522, 1.0
      %v1580 = vadd.f32 %v1524, 1.0
      %v1581 = vadd.f32 %v1526, 1.0
      %v1582 = vadd.f32 %v1528, 1.0
      %v1583 = vadd.f32 %v1530, 1.0
      %v1584 = vadd.f32 %v1532, 1.0
      %v1585 = vadd.f32 %v1534, 1.0
      %v1586 = vadd.f32 %v1536, 1.0
      %v1587 = vadd.f32 %v1538, 1.0
      %v1588 = vadd.f32 %v1540, 1.0
      %v1589 = vadd.f32 %v1542, 1.0
      %v1590 = vadd.f32 %v1544, 1.0
      %v1591 = vadd.f32 %v1546, 1.0
      %v1592 = vadd.f32 %v1548, 1.0
      %v1593 = vadd.f32 %v1550, 1.0
      %v1594 = vadd.f32 %v1552, 1.0
      %v1595 = vadd.f32 %v1554, 1.0
      %v1596 = vadd.f32 %v1556, 1.0
      %v1597 = vadd.f32 %v1558, 1.0
      %v1598 = vadd.f32 %v1560, 1.0
      %v1599 = vadd.f32 %v1562, 1.0
      %v1600 = vadd.f32 %v1564, 1.0
      %v1601 = vadd.f32 %v1566, 1.0
      %v1602 = vadd.f32 %v1568, 1.0
      %v1603 = vadd.f32 %v1570, 1.0
      %v1604 = vadd.f32 %v1572, 1.0
      %v1605 = vrcp.pop %v1573
      %v1606 = vmul.f32 1.0, %v1605
      %v1607 = vrcp.pop %v1574
      %v1608 = vmul.f32 1.0, %v1607
      %v1609 = vrcp.pop %v1575
      %v1610 = vmul.f32 1.0, %v1609
      %v1611 = vrcp.pop %v1576
      %v1612 = vmul.f32 1.0, %v1611
      %v1613 = vrcp.pop %v1577
      %v1614 = vmul.f32 1.0, %v1613
      %v1615 = vrcp.pop %v1578
      %v1616 = vmul.f32 1.0, %v1615
      %v1617 = vrcp.pop %v1579
      %v1618 = vmul.f32 1.0, %v1617
      %v1619 = vrcp.pop %v1580
      %v1620 = vmul.f32 1.0, %v1619
      %v1621 = vrcp.pop %v1581
      %v1622 = vmul.f32 1.0, %v1621
      %v1623 = vrcp.pop %v1582
      %v1624 = vmul.f32 1.0, %v1623
      %v1625 = vrcp.pop %v1583
      %v1626 = vmul.f32 1.0, %v1625
      %v1627 = vrcp.pop %v1584
      %v1628 = vmul.f32 1.0, %v1627
      %v1629 = vrcp.pop %v1585
      %v1630 = vmul.f32 1.0, %v1629
      %v1631 = vrcp.pop %v1586
      %v1632 = vmul.f32 1.0, %v1631
      %v1633 = vrcp.pop %v1587
      %v1634 = vmul.f32 1.0, %v1633
      %v1635 = vrcp.pop %v1588
      %v1636 = vmul.f32 1.0, %v1635
      %v1637 = vrcp.pop %v1589
      %v1638 = vmul.f32 1.0, %v1637
      %v1639 = vrcp.pop %v1590
      %v1640 = vmul.f32 1.0, %v1639
      %v1641 = vrcp.pop %v1591
      %v1642 = vmul.f32 1.0, %v1641
      %v1643 = vrcp.pop %v1592
      %v1644 = vmul.f32 1.0, %v1643
      %v1645 = vrcp.pop %v1593
      %v1646 = vmul.f32 1.0, %v1645
      %v1647 = vrcp.pop %v1594
      %v1648 = vmul.f32 1.0, %v1647
      %v1649 = vrcp.pop %v1595
      %v1650 = vmul.f32 1.0, %v1649
      %v1651 = vrcp.pop %v1596
      %v1652 = vmul.f32 1.0, %v1651
      %v1653 = vrcp.pop %v1597
      %v1654 = vmul.f32 1.0, %v1653
      %v1655 = vrcp.pop %v1598
      %v1656 = vmul.f32 1.0, %v1655
      %v1657 = vrcp.pop %v1599
      %v1658 = vmul.f32 1.0, %v1657
      %v1659 = vrcp.pop %v1600
      %v1660 = vmul.f32 1.0, %v1659
      %v1661 = vrcp.pop %v1601
      %v1662 = vmul.f32 1.0, %v1661
      %v1663 = vrcp.pop %v1602
      %v1664 = vmul.f32 1.0, %v1663
      %v1665 = vrcp.pop %v1603
      %v1666 = vmul.f32 1.0, %v1665
      %v1667 = vrcp.pop %v1604
      %v1668 = vmul.f32 1.0, %v1667
      %v1669 = vmul.f32 %v1351, %v1606
      %v1670 = vmul.f32 %v1354, %v1608
      %v1671 = vmul.f32 %v1359, %v1610
      %v1672 = vmul.f32 %v1362, %v1612
      %v1673 = vmul.f32 %v1367, %v1614
      %v1674 = vmul.f32 %v1370, %v1616
      %v1675 = vmul.f32 %v1375, %v1618
      %v1676 = vmul.f32 %v1378, %v1620
      %v1677 = vmul.f32 %v1383, %v1622
      %v1678 = vmul.f32 %v1386, %v1624
      %v1679 = vmul.f32 %v1391, %v1626
      %v1680 = vmul.f32 %v1394, %v1628
      %v1681 = vmul.f32 %v1399, %v1630
      %v1682 = vmul.f32 %v1402, %v1632
      %v1683 = vmul.f32 %v1407, %v1634
      %v1684 = vmul.f32 %v1410, %v1636
      %v1685 = vmul.f32 %v1415, %v1638
      %v1686 = vmul.f32 %v1418, %v1640
      %v1687 = vmul.f32 %v1423, %v1642
      %v1688 = vmul.f32 %v1426, %v1644
      %v1689 = vmul.f32 %v1431, %v1646
      %v1690 = vmul.f32 %v1434, %v1648
      %v1691 = vmul.f32 %v1439, %v1650
      %v1692 = vmul.f32 %v1442, %v1652
      %v1693 = vmul.f32 %v1447, %v1654
      %v1694 = vmul.f32 %v1450, %v1656
      %v1695 = vmul.f32 %v1455, %v1658
      %v1696 = vmul.f32 %v1458, %v1660
      %v1697 = vmul.f32 %v1463, %v1662
      %v1698 = vmul.f32 %v1466, %v1664
      %v1699 = vmul.f32 %v1471, %v1666
      %v1700 = vmul.f32 %v1474, %v1668
      %v1701 = vpack.c.bf16 %v1670, %v1669
      %v1702 = vpack.c.bf16 %v1672, %v1671
      %v1703 = vpack.c.bf16 %v1674, %v1673
      %v1704 = vpack.c.bf16 %v1676, %v1675
      %v1705 = vpack.c.bf16 %v1678, %v1677
      %v1706 = vpack.c.bf16 %v1680, %v1679
      %v1707 = vpack.c.bf16 %v1682, %v1681
      %v1708 = vpack.c.bf16 %v1684, %v1683
      %v1709 = vpack.c.bf16 %v1686, %v1685
      %v1710 = vpack.c.bf16 %v1688, %v1687
      %v1711 = vpack.c.bf16 %v1690, %v1689
      %v1712 = vpack.c.bf16 %v1692, %v1691
      %v1713 = vpack.c.bf16 %v1694, %v1693
      %v1714 = vpack.c.bf16 %v1696, %v1695
      %v1715 = vpack.c.bf16 %v1698, %v1697
      %v1716 = vpack.c.bf16 %v1700, %v1699
      %v1717 = vld [vmem:[%s12] sm:$0xf]
      %v1718 = vld [vmem:[%s12 + $0x4] sm:$0xf]
      %v1719 = vld [vmem:[%s12 + $0x8] sm:$0xf]
      %v1720 = vld [vmem:[%s12 + $0xc] sm:$0xf]
      %v1721 = vld [vmem:[%s12 + $0x10] sm:$0xf]
      %v1722 = vld [vmem:[%s12 + $0x14] sm:$0xf]
      %v1723 = vld [vmem:[%s12 + $0x18] sm:$0xf]
      %v1724 = vld [vmem:[%s12 + $0x1c] sm:$0xf]
      %v1725 = vld [vmem:[%s13] sm:$0x1]
      %v1727 = vlaneseq
      %v1728 = vshrl.u32 %v1727, 7
      %v1729 = vsub.s32 0, %v1728
      %v1730 = vrot.slane %v1725, %v1729
      %v1740 = vunpack.c.l.b16 %v1717
      %v1741 = vunpack.c.l.b16 %v1718
      %v1742 = vunpack.c.l.b16 %v1719
      %v1743 = vunpack.c.l.b16 %v1720
      %v1744 = vunpack.c.l.b16 %v1721
      %v1745 = vunpack.c.l.b16 %v1722
      %v1746 = vunpack.c.l.b16 %v1723
      %v1747 = vunpack.c.l.b16 %v1724
      %v1748 = vpack.c.b16 %v1741, %v1740
      %v1749 = vpack.c.b16 %v1743, %v1742
      %v1750 = vpack.c.b16 %v1745, %v1744
      %v1751 = vpack.c.b16 %v1747, %v1746
      %v1757 = vsel %vm779, %v1701, 0
      %v1760 = vsel %vm779, %v1702, 0
      %v1763 = vsel %vm779, %v1703, 0
      %v1766 = vsel %vm779, %v1704, 0
      %v1769 = vsel %vm779, %v1705, 0
      %v1772 = vsel %vm779, %v1706, 0
      %v1775 = vsel %vm779, %v1707, 0
      %v1778 = vsel %vm779, %v1708, 0
      %v1781 = vsel %vm779, %v1709, 0
      %v1784 = vsel %vm779, %v1710, 0
      %v1787 = vsel %vm779, %v1711, 0
      %v1790 = vsel %vm779, %v1712, 0
      %v1793 = vsel %vm779, %v1713, 0
      %v1796 = vsel %vm779, %v1714, 0
      %v1799 = vsel %vm779, %v1715, 0
      %v1802 = vsel %vm779, %v1716, 0
      %1804 = vmatprep.subr.bf16.mxu0 0
      %1805 = vmatpush1.bf16.msra.mxu0 %v1748
      %1806 = vmatprep.subr.bf16.mxu0 0
      %1807 = vmatpush1.bf16.msra.mxu0 %v1749
      %1808 = vmatprep.subr.bf16.mxu0 0
      %1809 = vmatpush1.bf16.msra.mxu0 %v1750
      %1810 = vmatprep.subr.bf16.mxu0 0
      %1811 = vmatpush1.bf16.msra.mxu0 %v1751
      %1812 = vmatprep.subr.bf16.mxu0 0
      %1813 = vmatpush1.bf16.msra.mxu0 0
      %1814 = vmatprep.subr.bf16.mxu0 0
      %1815 = vmatpush1.bf16.msra.mxu0 0
      %1816 = vmatprep.subr.bf16.mxu0 0
      %1817 = vmatpush1.bf16.msra.mxu0 0
      %1818 = vmatprep.subr.bf16.mxu0 0
      %1819 = vmatpush1.bf16.msra.mxu0 0
      %1820 = vmatprep.subr.bf16.mxu0 0
      %1821 = vmatpush1.bf16.msra.mxu0 0
      %1822 = vmatprep.subr.bf16.mxu0 0
      %1823 = vmatpush1.bf16.msra.mxu0 0
      %1824 = vmatprep.subr.bf16.mxu0 0
      %1825 = vmatpush1.bf16.msra.mxu0 0
      %1826 = vmatprep.subr.bf16.mxu0 0
      %1827 = vmatpush1.bf16.msra.mxu0 0
      %1828 = vmatprep.subr.bf16.mxu0 0
      %1829 = vmatpush1.bf16.msra.mxu0 0
      %1830 = vmatprep.subr.bf16.mxu0 0
      %1831 = vmatpush1.bf16.msra.mxu0 0
      %1832 = vmatprep.subr.bf16.mxu0 0
      %1833 = vmatpush1.bf16.msra.mxu0 0
      %1834 = vmatprep.subr.bf16.mxu0 0
      %1835 = vmatpush1.bf16.msra.mxu0 0
      %1836 = vmatprep.mubr.bf16.mxu0 0
      %1837 = vmatmul.mubr.bf16.gmra.mrb[0].mxu0 %v1757
      %v1838 = vpop.f32.mrb[0].mxu0
      %v1839 = vadd.f32 %v1730, %v1838
      %v1840 = vpop.f32.mrb[0].mxu0
      %v1841 = vpop.f32.mrb[0].mxu0
      %v1842 = vadd.f32 %v1730, %v1841
      %v1843 = vpop.f32.mrb[0].mxu0
      %1844 = vmatprep.mubr.bf16.mxu0 0
      %1845 = vmatmul.mubr.bf16.gmra.mrb[0].mxu0 %v1760
      %v1846 = vpop.f32.mrb[0].mxu0
      %v1847 = vadd.f32 %v1730, %v1846
      %v1848 = vpop.f32.mrb[0].mxu0
      %v1849 = vpop.f32.mrb[0].mxu0
      %v1850 = vadd.f32 %v1730, %v1849
      %v1851 = vpop.f32.mrb[0].mxu0
      %1852 = vmatprep.mubr.bf16.mxu0 0
      %1853 = vmatmul.mubr.bf16.gmra.mrb[0].mxu0 %v1763
      %v1854 = vpop.f32.mrb[0].mxu0
      %v1855 = vadd.f32 %v1730, %v1854
      %v1856 = vpop.f32.mrb[0].mxu0
      %v1857 = vpop.f32.mrb[0].mxu0
      %v1858 = vadd.f32 %v1730, %v1857
      %v1859 = vpop.f32.mrb[0].mxu0
      %1860 = vmatprep.mubr.bf16.mxu0 0
      %1861 = vmatmul.mubr.bf16.gmra.mrb[0].mxu0 %v1766
      %v1862 = vpop.f32.mrb[0].mxu0
      %v1863 = vadd.f32 %v1730, %v1862
      %v1864 = vpop.f32.mrb[0].mxu0
      %v1865 = vpop.f32.mrb[0].mxu0
      %v1866 = vadd.f32 %v1730, %v1865
      %v1867 = vpop.f32.mrb[0].mxu0
      %1868 = vmatprep.mubr.bf16.mxu0 0
      %1869 = vmatmul.mubr.bf16.gmra.mrb[0].mxu0 %v1769
      %v1870 = vpop.f32.mrb[0].mxu0
      %v1871 = vadd.f32 %v1730, %v1870
      %v1872 = vpop.f32.mrb[0].mxu0
      %v1873 = vpop.f32.mrb[0].mxu0
      %v1874 = vadd.f32 %v1730, %v1873
      %v1875 = vpop.f32.mrb[0].mxu0
      %1876 = vmatprep.mubr.bf16.mxu0 0
      %1877 = vmatmul.mubr.bf16.gmra.mrb[0].mxu0 %v1772
      %v1878 = vpop.f32.mrb[0].mxu0
      %v1879 = vadd.f32 %v1730, %v1878
      %v1880 = vpop.f32.mrb[0].mxu0
      %v1881 = vpop.f32.mrb[0].mxu0
      %v1882 = vadd.f32 %v1730, %v1881
      %v1883 = vpop.f32.mrb[0].mxu0
      %1884 = vmatprep.mubr.bf16.mxu0 0
      %1885 = vmatmul.mubr.bf16.gmra.mrb[0].mxu0 %v1775
      %v1886 = vpop.f32.mrb[0].mxu0
      %v1887 = vadd.f32 %v1730, %v1886
      %v1888 = vpop.f32.mrb[0].mxu0
      %v1889 = vpop.f32.mrb[0].mxu0
      %v1890 = vadd.f32 %v1730, %v1889
      %v1891 = vpop.f32.mrb[0].mxu0
      %1892 = vmatprep.mubr.bf16.mxu0 0
      %1893 = vmatmul.mubr.bf16.gmra.mrb[0].mxu0 %v1778
      %v1894 = vpop.f32.mrb[0].mxu0
      %v1895 = vadd.f32 %v1730, %v1894
      %v1896 = vpop.f32.mrb[0].mxu0
      %v1897 = vpop.f32.mrb[0].mxu0
      %v1898 = vadd.f32 %v1730, %v1897
      %v1899 = vpop.f32.mrb[0].mxu0
      %1900 = vmatprep.mubr.bf16.mxu0 0
      %1901 = vmatmul.mubr.bf16.gmra.mrb[0].mxu0 %v1781
      %v1902 = vpop.f32.mrb[0].mxu0
      %v1903 = vadd.f32 %v1730, %v1902
      %v1904 = vpop.f32.mrb[0].mxu0
      %v1905 = vpop.f32.mrb[0].mxu0
      %v1906 = vadd.f32 %v1730, %v1905
      %v1907 = vpop.f32.mrb[0].mxu0
      %1908 = vmatprep.mubr.bf16.mxu0 0
      %1909 = vmatmul.mubr.bf16.gmra.mrb[0].mxu0 %v1784
      %v1910 = vpop.f32.mrb[0].mxu0
      %v1911 = vadd.f32 %v1730, %v1910
      %v1912 = vpop.f32.mrb[0].mxu0
      %v1913 = vpop.f32.mrb[0].mxu0
      %v1914 = vadd.f32 %v1730, %v1913
      %v1915 = vpop.f32.mrb[0].mxu0
      %1916 = vmatprep.mubr.bf16.mxu0 0
      %1917 = vmatmul.mubr.bf16.gmra.mrb[0].mxu0 %v1787
      %v1918 = vpop.f32.mrb[0].mxu0
      %v1919 = vadd.f32 %v1730, %v1918
      %v1920 = vpop.f32.mrb[0].mxu0
      %v1921 = vpop.f32.mrb[0].mxu0
      %v1922 = vadd.f32 %v1730, %v1921
      %v1923 = vpop.f32.mrb[0].mxu0
      %1924 = vmatprep.mubr.bf16.mxu0 0
      %1925 = vmatmul.mubr.bf16.gmra.mrb[0].mxu0 %v1790
      %v1926 = vpop.f32.mrb[0].mxu0
      %v1927 = vadd.f32 %v1730, %v1926
      %v1928 = vpop.f32.mrb[0].mxu0
      %v1929 = vpop.f32.mrb[0].mxu0
      %v1930 = vadd.f32 %v1730, %v1929
      %v1931 = vpop.f32.mrb[0].mxu0
      %1932 = vmatprep.mubr.bf16.mxu0 0
      %1933 = vmatmul.mubr.bf16.gmra.mrb[0].mxu0 %v1793
      %v1934 = vpop.f32.mrb[0].mxu0
      %v1935 = vadd.f32 %v1730, %v1934
      %v1936 = vpop.f32.mrb[0].mxu0
      %v1937 = vpop.f32.mrb[0].mxu0
      %v1938 = vadd.f32 %v1730, %v1937
      %v1939 = vpop.f32.mrb[0].mxu0
      %1940 = vmatprep.mubr.bf16.mxu0 0
      %1941 = vmatmul.mubr.bf16.gmra.mrb[0].mxu0 %v1796
      %v1942 = vpop.f32.mrb[0].mxu0
      %v1943 = vadd.f32 %v1730, %v1942
      %v1944 = vpop.f32.mrb[0].mxu0
      %v1945 = vpop.f32.mrb[0].mxu0
      %v1946 = vadd.f32 %v1730, %v1945
      %v1947 = vpop.f32.mrb[0].mxu0
      %1948 = vmatprep.mubr.bf16.mxu0 0
      %1949 = vmatmul.mubr.bf16.gmra.mrb[0].mxu0 %v1799
      %v1950 = vpop.f32.mrb[0].mxu0
      %v1951 = vadd.f32 %v1730, %v1950
      %v1952 = vpop.f32.mrb[0].mxu0
      %v1953 = vpop.f32.mrb[0].mxu0
      %v1954 = vadd.f32 %v1730, %v1953
      %v1955 = vpop.f32.mrb[0].mxu0
      %1956 = vmatprep.mubr.bf16.mxu0 0
      %1957 = vmatmul.mubr.bf16.gmra.mrb[0].mxu0 %v1802
      %v1958 = vpop.f32.mrb[0].mxu0
      %v1959 = vadd.f32 %v1730, %v1958
      %v1960 = vpop.f32.mrb[0].mxu0
      %v1961 = vpop.f32.mrb[0].mxu0
      %v1962 = vadd.f32 %v1730, %v1961
      %v1963 = vpop.f32.mrb[0].mxu0
      %1964 = vdwg.mxu0
      %v1965 = vxor.u32 %v1839, 2147483648
      %v1966 = vxor.u32 %v1842, 2147483648
      %v1967 = vxor.u32 %v1847, 2147483648
      %v1968 = vxor.u32 %v1850, 2147483648
      %v1969 = vxor.u32 %v1855, 2147483648
      %v1970 = vxor.u32 %v1858, 2147483648
      %v1971 = vxor.u32 %v1863, 2147483648
      %v1972 = vxor.u32 %v1866, 2147483648
      %v1973 = vxor.u32 %v1871, 2147483648
      %v1974 = vxor.u32 %v1874, 2147483648
      %v1975 = vxor.u32 %v1879, 2147483648
      %v1976 = vxor.u32 %v1882, 2147483648
      %v1977 = vxor.u32 %v1887, 2147483648
      %v1978 = vxor.u32 %v1890, 2147483648
      %v1979 = vxor.u32 %v1895, 2147483648
      %v1980 = vxor.u32 %v1898, 2147483648
      %v1981 = vxor.u32 %v1903, 2147483648
      %v1982 = vxor.u32 %v1906, 2147483648
      %v1983 = vxor.u32 %v1911, 2147483648
      %v1984 = vxor.u32 %v1914, 2147483648
      %v1985 = vxor.u32 %v1919, 2147483648
      %v1986 = vxor.u32 %v1922, 2147483648
      %v1987 = vxor.u32 %v1927, 2147483648
      %v1988 = vxor.u32 %v1930, 2147483648
      %v1989 = vxor.u32 %v1935, 2147483648
      %v1990 = vxor.u32 %v1938, 2147483648
      %v1991 = vxor.u32 %v1943, 2147483648
      %v1992 = vxor.u32 %v1946, 2147483648
      %v1993 = vxor.u32 %v1951, 2147483648
      %v1994 = vxor.u32 %v1954, 2147483648
      %v1995 = vxor.u32 %v1959, 2147483648
      %v1996 = vxor.u32 %v1962, 2147483648
      %v1997 = vmul.f32 %v1965, 1.442695
      %v1998 = vpow.pop %v1997
      %v1999 = vmul.f32 %v1966, 1.442695
      %v2000 = vpow.pop %v1999
      %v2001 = vmul.f32 %v1967, 1.442695
      %v2002 = vpow.pop %v2001
      %v2003 = vmul.f32 %v1968, 1.442695
      %v2004 = vpow.pop %v2003
      %v2005 = vmul.f32 %v1969, 1.442695
      %v2006 = vpow.pop %v2005
      %v2007 = vmul.f32 %v1970, 1.442695
      %v2008 = vpow.pop %v2007
      %v2009 = vmul.f32 %v1971, 1.442695
      %v2010 = vpow.pop %v2009
      %v2011 = vmul.f32 %v1972, 1.442695
      %v2012 = vpow.pop %v2011
      %v2013 = vmul.f32 %v1973, 1.442695
      %v2014 = vpow.pop %v2013
      %v2015 = vmul.f32 %v1974, 1.442695
      %v2016 = vpow.pop %v2015
      %v2017 = vmul.f32 %v1975, 1.442695
      %v2018 = vpow.pop %v2017
      %v2019 = vmul.f32 %v1976, 1.442695
      %v2020 = vpow.pop %v2019
      %v2021 = vmul.f32 %v1977, 1.442695
      %v2022 = vpow.pop %v2021
      %v2023 = vmul.f32 %v1978, 1.442695
      %v2024 = vpow.pop %v2023
      %v2025 = vmul.f32 %v1979, 1.442695
      %v2026 = vpow.pop %v2025
      %v2027 = vmul.f32 %v1980, 1.442695
      %v2028 = vpow.pop %v2027
      %v2029 = vmul.f32 %v1981, 1.442695
      %v2030 = vpow.pop %v2029
      %v2031 = vmul.f32 %v1982, 1.442695
      %v2032 = vpow.pop %v2031
      %v2033 = vmul.f32 %v1983, 1.442695
      %v2034 = vpow.pop %v2033
      %v2035 = vmul.f32 %v1984, 1.442695
      %v2036 = vpow.pop %v2035
      %v2037 = vmul.f32 %v1985, 1.442695
      %v2038 = vpow.pop %v2037
      %v2039 = vmul.f32 %v1986, 1.442695
      %v2040 = vpow.pop %v2039
      %v2041 = vmul.f32 %v1987, 1.442695
      %v2042 = vpow.pop %v2041
      %v2043 = vmul.f32 %v1988, 1.442695
      %v2044 = vpow.pop %v2043
      %v2045 = vmul.f32 %v1989, 1.442695
      %v2046 = vpow.pop %v2045
      %v2047 = vmul.f32 %v1990, 1.442695
      %v2048 = vpow.pop %v2047
      %v2049 = vmul.f32 %v1991, 1.442695
      %v2050 = vpow.pop %v2049
      %v2051 = vmul.f32 %v1992, 1.442695
      %v2052 = vpow.pop %v2051
      %v2053 = vmul.f32 %v1993, 1.442695
      %v2054 = vpow.pop %v2053
      %v2055 = vmul.f32 %v1994, 1.442695
      %v2056 = vpow.pop %v2055
      %v2057 = vmul.f32 %v1995, 1.442695
      %v2058 = vpow.pop %v2057
      %v2059 = vmul.f32 %v1996, 1.442695
      %v2060 = vpow.pop %v2059
      %v2061 = vadd.f32 %v1998, 1.0
      %v2062 = vadd.f32 %v2000, 1.0
      %v2063 = vadd.f32 %v2002, 1.0
      %v2064 = vadd.f32 %v2004, 1.0
      %v2065 = vadd.f32 %v2006, 1.0
      %v2066 = vadd.f32 %v2008, 1.0
      %v2067 = vadd.f32 %v2010, 1.0
      %v2068 = vadd.f32 %v2012, 1.0
      %v2069 = vadd.f32 %v2014, 1.0
      %v2070 = vadd.f32 %v2016, 1.0
      %v2071 = vadd.f32 %v2018, 1.0
      %v2072 = vadd.f32 %v2020, 1.0
      %v2073 = vadd.f32 %v2022, 1.0
      %v2074 = vadd.f32 %v2024, 1.0
      %v2075 = vadd.f32 %v2026, 1.0
      %v2076 = vadd.f32 %v2028, 1.0
      %v2077 = vadd.f32 %v2030, 1.0
      %v2078 = vadd.f32 %v2032, 1.0
      %v2079 = vadd.f32 %v2034, 1.0
      %v2080 = vadd.f32 %v2036, 1.0
      %v2081 = vadd.f32 %v2038, 1.0
      %v2082 = vadd.f32 %v2040, 1.0
      %v2083 = vadd.f32 %v2042, 1.0
      %v2084 = vadd.f32 %v2044, 1.0
      %v2085 = vadd.f32 %v2046, 1.0
      %v2086 = vadd.f32 %v2048, 1.0
      %v2087 = vadd.f32 %v2050, 1.0
      %v2088 = vadd.f32 %v2052, 1.0
      %v2089 = vadd.f32 %v2054, 1.0
      %v2090 = vadd.f32 %v2056, 1.0
      %v2091 = vadd.f32 %v2058, 1.0
      %v2092 = vadd.f32 %v2060, 1.0
      %v2093 = vrcp.pop %v2061
      %v2094 = vmul.f32 1.0, %v2093
      %v2095 = vrcp.pop %v2062
      %v2096 = vmul.f32 1.0, %v2095
      %v2097 = vrcp.pop %v2063
      %v2098 = vmul.f32 1.0, %v2097
      %v2099 = vrcp.pop %v2064
      %v2100 = vmul.f32 1.0, %v2099
      %v2101 = vrcp.pop %v2065
      %v2102 = vmul.f32 1.0, %v2101
      %v2103 = vrcp.pop %v2066
      %v2104 = vmul.f32 1.0, %v2103
      %v2105 = vrcp.pop %v2067
      %v2106 = vmul.f32 1.0, %v2105
      %v2107 = vrcp.pop %v2068
      %v2108 = vmul.f32 1.0, %v2107
      %v2109 = vrcp.pop %v2069
      %v2110 = vmul.f32 1.0, %v2109
      %v2111 = vrcp.pop %v2070
      %v2112 = vmul.f32 1.0, %v2111
      %v2113 = vrcp.pop %v2071
      %v2114 = vmul.f32 1.0, %v2113
      %v2115 = vrcp.pop %v2072
      %v2116 = vmul.f32 1.0, %v2115
      %v2117 = vrcp.pop %v2073
      %v2118 = vmul.f32 1.0, %v2117
      %v2119 = vrcp.pop %v2074
      %v2120 = vmul.f32 1.0, %v2119
      %v2121 = vrcp.pop %v2075
      %v2122 = vmul.f32 1.0, %v2121
      %v2123 = vrcp.pop %v2076
      %v2124 = vmul.f32 1.0, %v2123
      %v2125 = vrcp.pop %v2077
      %v2126 = vmul.f32 1.0, %v2125
      %v2127 = vrcp.pop %v2078
      %v2128 = vmul.f32 1.0, %v2127
      %v2129 = vrcp.pop %v2079
      %v2130 = vmul.f32 1.0, %v2129
      %v2131 = vrcp.pop %v2080
      %v2132 = vmul.f32 1.0, %v2131
      %v2133 = vrcp.pop %v2081
      %v2134 = vmul.f32 1.0, %v2133
      %v2135 = vrcp.pop %v2082
      %v2136 = vmul.f32 1.0, %v2135
      %v2137 = vrcp.pop %v2083
      %v2138 = vmul.f32 1.0, %v2137
      %v2139 = vrcp.pop %v2084
      %v2140 = vmul.f32 1.0, %v2139
      %v2141 = vrcp.pop %v2085
      %v2142 = vmul.f32 1.0, %v2141
      %v2143 = vrcp.pop %v2086
      %v2144 = vmul.f32 1.0, %v2143
      %v2145 = vrcp.pop %v2087
      %v2146 = vmul.f32 1.0, %v2145
      %v2147 = vrcp.pop %v2088
      %v2148 = vmul.f32 1.0, %v2147
      %v2149 = vrcp.pop %v2089
      %v2150 = vmul.f32 1.0, %v2149
      %v2151 = vrcp.pop %v2090
      %v2152 = vmul.f32 1.0, %v2151
      %v2153 = vrcp.pop %v2091
      %v2154 = vmul.f32 1.0, %v2153
      %v2155 = vrcp.pop %v2092
      %v2156 = vmul.f32 1.0, %v2155
      %v2157 = vmul.f32 %v1839, %v2094
      %v2158 = vmul.f32 %v1842, %v2096
      %v2159 = vmul.f32 %v1847, %v2098
      %v2160 = vmul.f32 %v1850, %v2100
      %v2161 = vmul.f32 %v1855, %v2102
      %v2162 = vmul.f32 %v1858, %v2104
      %v2163 = vmul.f32 %v1863, %v2106
      %v2164 = vmul.f32 %v1866, %v2108
      %v2165 = vmul.f32 %v1871, %v2110
      %v2166 = vmul.f32 %v1874, %v2112
      %v2167 = vmul.f32 %v1879, %v2114
      %v2168 = vmul.f32 %v1882, %v2116
      %v2169 = vmul.f32 %v1887, %v2118
      %v2170 = vmul.f32 %v1890, %v2120
      %v2171 = vmul.f32 %v1895, %v2122
      %v2172 = vmul.f32 %v1898, %v2124
      %v2173 = vmul.f32 %v1903, %v2126
      %v2174 = vmul.f32 %v1906, %v2128
      %v2175 = vmul.f32 %v1911, %v2130
      %v2176 = vmul.f32 %v1914, %v2132
      %v2177 = vmul.f32 %v1919, %v2134
      %v2178 = vmul.f32 %v1922, %v2136
      %v2179 = vmul.f32 %v1927, %v2138
      %v2180 = vmul.f32 %v1930, %v2140
      %v2181 = vmul.f32 %v1935, %v2142
      %v2182 = vmul.f32 %v1938, %v2144
      %v2183 = vmul.f32 %v1943, %v2146
      %v2184 = vmul.f32 %v1946, %v2148
      %v2185 = vmul.f32 %v1951, %v2150
      %v2186 = vmul.f32 %v1954, %v2152
      %v2187 = vmul.f32 %v1959, %v2154
      %v2188 = vmul.f32 %v1962, %v2156
      %v2189 = vpack.c.bf16 %v2158, %v2157
      %v2190 = vpack.c.bf16 %v2160, %v2159
      %v2191 = vpack.c.bf16 %v2162, %v2161
      %v2192 = vpack.c.bf16 %v2164, %v2163
      %v2193 = vpack.c.bf16 %v2166, %v2165
      %v2194 = vpack.c.bf16 %v2168, %v2167
      %v2195 = vpack.c.bf16 %v2170, %v2169
      %v2196 = vpack.c.bf16 %v2172, %v2171
      %v2197 = vpack.c.bf16 %v2174, %v2173
      %v2198 = vpack.c.bf16 %v2176, %v2175
      %v2199 = vpack.c.bf16 %v2178, %v2177
      %v2200 = vpack.c.bf16 %v2180, %v2179
      %v2201 = vpack.c.bf16 %v2182, %v2181
      %v2202 = vpack.c.bf16 %v2184, %v2183
      %v2203 = vpack.c.bf16 %v2186, %v2185
      %v2204 = vpack.c.bf16 %v2188, %v2187
      %v2205 = vld [vmem:[%s14] sm:$0xf]
      %v2206 = vld [vmem:[%s14 + $0x4] sm:$0xf]
      %v2207 = vld [vmem:[%s14 + $0x8] sm:$0xf]
      %v2208 = vld [vmem:[%s14 + $0xc] sm:$0xf]
      %v2209 = vld [vmem:[%s14 + $0x10] sm:$0xf]
      %v2210 = vld [vmem:[%s14 + $0x14] sm:$0xf]
      %v2211 = vld [vmem:[%s14 + $0x18] sm:$0xf]
      %v2212 = vld [vmem:[%s14 + $0x1c] sm:$0xf]
      %v2213 = vld [vmem:[%s15] sm:$0x1]
      %v2215 = vlaneseq
      %v2216 = vshrl.u32 %v2215, 7
      %v2217 = vsub.s32 0, %v2216
      %v2218 = vrot.slane %v2213, %v2217
      %v2228 = vunpack.c.l.b16 %v2205
      %v2229 = vunpack.c.l.b16 %v2206
      %v2230 = vunpack.c.l.b16 %v2207
      %v2231 = vunpack.c.l.b16 %v2208
      %v2232 = vunpack.c.l.b16 %v2209
      %v2233 = vunpack.c.l.b16 %v2210
      %v2234 = vunpack.c.l.b16 %v2211
      %v2235 = vunpack.c.l.b16 %v2212
      %v2236 = vpack.c.b16 %v2229, %v2228
      %v2237 = vpack.c.b16 %v2231, %v2230
      %v2238 = vpack.c.b16 %v2233, %v2232
      %v2239 = vpack.c.b16 %v2235, %v2234
      %v2245 = vsel %vm779, %v2189, 0
      %v2248 = vsel %vm779, %v2190, 0
      %v2251 = vsel %vm779, %v2191, 0
      %v2254 = vsel %vm779, %v2192, 0
      %v2257 = vsel %vm779, %v2193, 0
      %v2260 = vsel %vm779, %v2194, 0
      %v2263 = vsel %vm779, %v2195, 0
      %v2266 = vsel %vm779, %v2196, 0
      %v2269 = vsel %vm779, %v2197, 0
      %v2272 = vsel %vm779, %v2198, 0
      %v2275 = vsel %vm779, %v2199, 0
      %v2278 = vsel %vm779, %v2200, 0
      %v2281 = vsel %vm779, %v2201, 0
      %v2284 = vsel %vm779, %v2202, 0
      %v2287 = vsel %vm779, %v2203, 0
      %v2290 = vsel %vm779, %v2204, 0
      %2292 = vmatprep.subr.bf16.mxu0 0
      %2293 = vmatpush1.bf16.msra.mxu0 %v2236
      %2294 = vmatprep.subr.bf16.mxu0 0
      %2295 = vmatpush1.bf16.msra.mxu0 %v2237
      %2296 = vmatprep.subr.bf16.mxu0 0
      %2297 = vmatpush1.bf16.msra.mxu0 %v2238
      %2298 = vmatprep.subr.bf16.mxu0 0
      %2299 = vmatpush1.bf16.msra.mxu0 %v2239
      %2300 = vmatprep.subr.bf16.mxu0 0
      %2301 = vmatpush1.bf16.msra.mxu0 0
      %2302 = vmatprep.subr.bf16.mxu0 0
      %2303 = vmatpush1.bf16.msra.mxu0 0
      %2304 = vmatprep.subr.bf16.mxu0 0
      %2305 = vmatpush1.bf16.msra.mxu0 0
      %2306 = vmatprep.subr.bf16.mxu0 0
      %2307 = vmatpush1.bf16.msra.mxu0 0
      %2308 = vmatprep.subr.bf16.mxu0 0
      %2309 = vmatpush1.bf16.msra.mxu0 0
      %2310 = vmatprep.subr.bf16.mxu0 0
      %2311 = vmatpush1.bf16.msra.mxu0 0
      %2312 = vmatprep.subr.bf16.mxu0 0
      %2313 = vmatpush1.bf16.msra.mxu0 0
      %2314 = vmatprep.subr.bf16.mxu0 0
      %2315 = vmatpush1.bf16.msra.mxu0 0
      %2316 = vmatprep.subr.bf16.mxu0 0
      %2317 = vmatpush1.bf16.msra.mxu0 0
      %2318 = vmatprep.subr.bf16.mxu0 0
      %2319 = vmatpush1.bf16.msra.mxu0 0
      %2320 = vmatprep.subr.bf16.mxu0 0
      %2321 = vmatpush1.bf16.msra.mxu0 0
      %2322 = vmatprep.subr.bf16.mxu0 0
      %2323 = vmatpush1.bf16.msra.mxu0 0
      %2324 = vmatprep.mubr.bf16.mxu0 0
      %2325 = vmatmul.mubr.bf16.gmra.mrb[0].mxu0 %v2245
      %v2326 = vpop.f32.mrb[0].mxu0
      %v2327 = vadd.f32 %v2218, %v2326
      %v2328 = vpop.f32.mrb[0].mxu0
      %v2329 = vpop.f32.mrb[0].mxu0
      %v2330 = vadd.f32 %v2218, %v2329
      %v2331 = vpop.f32.mrb[0].mxu0
      %2332 = vmatprep.mubr.bf16.mxu0 0
      %2333 = vmatmul.mubr.bf16.gmra.mrb[0].mxu0 %v2248
      %v2334 = vpop.f32.mrb[0].mxu0
      %v2335 = vadd.f32 %v2218, %v2334
      %v2336 = vpop.f32.mrb[0].mxu0
      %v2337 = vpop.f32.mrb[0].mxu0
      %v2338 = vadd.f32 %v2218, %v2337
      %v2339 = vpop.f32.mrb[0].mxu0
      %2340 = vmatprep.mubr.bf16.mxu0 0
      %2341 = vmatmul.mubr.bf16.gmra.mrb[0].mxu0 %v2251
      %v2342 = vpop.f32.mrb[0].mxu0
      %v2343 = vadd.f32 %v2218, %v2342
      %v2344 = vpop.f32.mrb[0].mxu0
      %v2345 = vpop.f32.mrb[0].mxu0
      %v2346 = vadd.f32 %v2218, %v2345
      %v2347 = vpop.f32.mrb[0].mxu0
      %2348 = vmatprep.mubr.bf16.mxu0 0
      %2349 = vmatmul.mubr.bf16.gmra.mrb[0].mxu0 %v2254
      %v2350 = vpop.f32.mrb[0].mxu0
      %v2351 = vadd.f32 %v2218, %v2350
      %v2352 = vpop.f32.mrb[0].mxu0
      %v2353 = vpop.f32.mrb[0].mxu0
      %v2354 = vadd.f32 %v2218, %v2353
      %v2355 = vpop.f32.mrb[0].mxu0
      %2356 = vmatprep.mubr.bf16.mxu0 0
      %2357 = vmatmul.mubr.bf16.gmra.mrb[0].mxu0 %v2257
      %v2358 = vpop.f32.mrb[0].mxu0
      %v2359 = vadd.f32 %v2218, %v2358
      %v2360 = vpop.f32.mrb[0].mxu0
      %v2361 = vpop.f32.mrb[0].mxu0
      %v2362 = vadd.f32 %v2218, %v2361
      %v2363 = vpop.f32.mrb[0].mxu0
      %2364 = vmatprep.mubr.bf16.mxu0 0
      %2365 = vmatmul.mubr.bf16.gmra.mrb[0].mxu0 %v2260
      %v2366 = vpop.f32.mrb[0].mxu0
      %v2367 = vadd.f32 %v2218, %v2366
      %v2368 = vpop.f32.mrb[0].mxu0
      %v2369 = vpop.f32.mrb[0].mxu0
      %v2370 = vadd.f32 %v2218, %v2369
      %v2371 = vpop.f32.mrb[0].mxu0
      %2372 = vmatprep.mubr.bf16.mxu0 0
      %2373 = vmatmul.mubr.bf16.gmra.mrb[0].mxu0 %v2263
      %v2374 = vpop.f32.mrb[0].mxu0
      %v2375 = vadd.f32 %v2218, %v2374
      %v2376 = vpop.f32.mrb[0].mxu0
      %v2377 = vpop.f32.mrb[0].mxu0
      %v2378 = vadd.f32 %v2218, %v2377
      %v2379 = vpop.f32.mrb[0].mxu0
      %2380 = vmatprep.mubr.bf16.mxu0 0
      %2381 = vmatmul.mubr.bf16.gmra.mrb[0].mxu0 %v2266
      %v2382 = vpop.f32.mrb[0].mxu0
      %v2383 = vadd.f32 %v2218, %v2382
      %v2384 = vpop.f32.mrb[0].mxu0
      %v2385 = vpop.f32.mrb[0].mxu0
      %v2386 = vadd.f32 %v2218, %v2385
      %v2387 = vpop.f32.mrb[0].mxu0
      %2388 = vmatprep.mubr.bf16.mxu0 0
      %2389 = vmatmul.mubr.bf16.gmra.mrb[0].mxu0 %v2269
      %v2390 = vpop.f32.mrb[0].mxu0
      %v2391 = vadd.f32 %v2218, %v2390
      %v2392 = vpop.f32.mrb[0].mxu0
      %v2393 = vpop.f32.mrb[0].mxu0
      %v2394 = vadd.f32 %v2218, %v2393
      %v2395 = vpop.f32.mrb[0].mxu0
      %2396 = vmatprep.mubr.bf16.mxu0 0
      %2397 = vmatmul.mubr.bf16.gmra.mrb[0].mxu0 %v2272
      %v2398 = vpop.f32.mrb[0].mxu0
      %v2399 = vadd.f32 %v2218, %v2398
      %v2400 = vpop.f32.mrb[0].mxu0
      %v2401 = vpop.f32.mrb[0].mxu0
      %v2402 = vadd.f32 %v2218, %v2401
      %v2403 = vpop.f32.mrb[0].mxu0
      %2404 = vmatprep.mubr.bf16.mxu0 0
      %2405 = vmatmul.mubr.bf16.gmra.mrb[0].mxu0 %v2275
      %v2406 = vpop.f32.mrb[0].mxu0
      %v2407 = vadd.f32 %v2218, %v2406
      %v2408 = vpop.f32.mrb[0].mxu0
      %v2409 = vpop.f32.mrb[0].mxu0
      %v2410 = vadd.f32 %v2218, %v2409
      %v2411 = vpop.f32.mrb[0].mxu0
      %2412 = vmatprep.mubr.bf16.mxu0 0
      %2413 = vmatmul.mubr.bf16.gmra.mrb[0].mxu0 %v2278
      %v2414 = vpop.f32.mrb[0].mxu0
      %v2415 = vadd.f32 %v2218, %v2414
      %v2416 = vpop.f32.mrb[0].mxu0
      %v2417 = vpop.f32.mrb[0].mxu0
      %v2418 = vadd.f32 %v2218, %v2417
      %v2419 = vpop.f32.mrb[0].mxu0
      %2420 = vmatprep.mubr.bf16.mxu0 0
      %2421 = vmatmul.mubr.bf16.gmra.mrb[0].mxu0 %v2281
      %v2422 = vpop.f32.mrb[0].mxu0
      %v2423 = vadd.f32 %v2218, %v2422
      %v2424 = vpop.f32.mrb[0].mxu0
      %v2425 = vpop.f32.mrb[0].mxu0
      %v2426 = vadd.f32 %v2218, %v2425
      %v2427 = vpop.f32.mrb[0].mxu0
      %2428 = vmatprep.mubr.bf16.mxu0 0
      %2429 = vmatmul.mubr.bf16.gmra.mrb[0].mxu0 %v2284
      %v2430 = vpop.f32.mrb[0].mxu0
      %v2431 = vadd.f32 %v2218, %v2430
      %v2432 = vpop.f32.mrb[0].mxu0
      %v2433 = vpop.f32.mrb[0].mxu0
      %v2434 = vadd.f32 %v2218, %v2433
      %v2435 = vpop.f32.mrb[0].mxu0
      %2436 = vmatprep.mubr.bf16.mxu0 0
      %2437 = vmatmul.mubr.bf16.gmra.mrb[0].mxu0 %v2287
      %v2438 = vpop.f32.mrb[0].mxu0
      %v2439 = vadd.f32 %v2218, %v2438
      %v2440 = vpop.f32.mrb[0].mxu0
      %v2441 = vpop.f32.mrb[0].mxu0
      %v2442 = vadd.f32 %v2218, %v2441
      %v2443 = vpop.f32.mrb[0].mxu0
      %2444 = vmatprep.mubr.bf16.mxu0 0
      %2445 = vmatmul.mubr.bf16.gmra.mrb[0].mxu0 %v2290
      %v2446 = vpop.f32.mrb[0].mxu0
      %v2447 = vadd.f32 %v2218, %v2446
      %v2448 = vpop.f32.mrb[0].mxu0
      %v2449 = vpop.f32.mrb[0].mxu0
      %v2450 = vadd.f32 %v2218, %v2449
      %v2451 = vpop.f32.mrb[0].mxu0
      %2452 = vdwg.mxu0
      %vm2453 = vcmask 392192
      %2454 = vst.msk [vmem:[%s561] sm:$0xff] %vm2453, %v2327
      %2455 = vst.msk [vmem:[%s561 + $0x8] sm:$0xff] %vm2453, %v2330
      %2456 = vst.msk [vmem:[%s561 + $0x10] sm:$0xff] %vm2453, %v2335
      %2457 = vst.msk [vmem:[%s561 + $0x18] sm:$0xff] %vm2453, %v2338
      %2458 = vst.msk [vmem:[%s561 + $0x20] sm:$0xff] %vm2453, %v2343
      %2459 = vst.msk [vmem:[%s561 + $0x28] sm:$0xff] %vm2453, %v2346
      %2460 = vst.msk [vmem:[%s561 + $0x30] sm:$0xff] %vm2453, %v2351
      %2461 = vst.msk [vmem:[%s561 + $0x38] sm:$0xff] %vm2453, %v2354
      %2462 = vst.msk [vmem:[%s561 + $0x40] sm:$0xff] %vm2453, %v2359
      %2463 = vst.msk [vmem:[%s561 + $0x48] sm:$0xff] %vm2453, %v2362
      %2464 = vst.msk [vmem:[%s561 + $0x50] sm:$0xff] %vm2453, %v2367
      %2465 = vst.msk [vmem:[%s561 + $0x58] sm:$0xff] %vm2453, %v2370
      %2466 = vst.msk [vmem:[%s561 + $0x60] sm:$0xff] %vm2453, %v2375
      %2467 = vst.msk [vmem:[%s561 + $0x68] sm:$0xff] %vm2453, %v2378
      %2468 = vst.msk [vmem:[%s561 + $0x70] sm:$0xff] %vm2453, %v2383
      %2469 = vst.msk [vmem:[%s561 + $0x78] sm:$0xff] %vm2453, %v2386
      %2470 = vst.msk [vmem:[%s561 + $0x80] sm:$0xff] %vm2453, %v2391
      %2471 = vst.msk [vmem:[%s561 + $0x88] sm:$0xff] %vm2453, %v2394
      %2472 = vst.msk [vmem:[%s561 + $0x90] sm:$0xff] %vm2453, %v2399
      %2473 = vst.msk [vmem:[%s561 + $0x98] sm:$0xff] %vm2453, %v2402
      %2474 = vst.msk [vmem:[%s561 + $0xa0] sm:$0xff] %vm2453, %v2407
      %2475 = vst.msk [vmem:[%s561 + $0xa8] sm:$0xff] %vm2453, %v2410
      %2476 = vst.msk [vmem:[%s561 + $0xb0] sm:$0xff] %vm2453, %v2415
      %2477 = vst.msk [vmem:[%s561 + $0xb8] sm:$0xff] %vm2453, %v2418
      %2478 = vst.msk [vmem:[%s561 + $0xc0] sm:$0xff] %vm2453, %v2423
      %2479 = vst.msk [vmem:[%s561 + $0xc8] sm:$0xff] %vm2453, %v2426
      %2480 = vst.msk [vmem:[%s561 + $0xd0] sm:$0xff] %vm2453, %v2431
      %2481 = vst.msk [vmem:[%s561 + $0xd8] sm:$0xff] %vm2453, %v2434
      %2482 = vst.msk [vmem:[%s561 + $0xe0] sm:$0xff] %vm2453, %v2439
      %2483 = vst.msk [vmem:[%s561 + $0xe8] sm:$0xff] %vm2453, %v2442
      %2484 = vst.msk [vmem:[%s561 + $0xf0] sm:$0xff] %vm2453, %v2447
      %2485 = vst.msk [vmem:[%s561 + $0xf8] sm:$0xff] %vm2453, %v2450
      %v2486 = vpack.c.bf16 0.0, 0.0
      %v2487 = vpack.c.bf16 %v1181, 0.0
      %v2488 = vpack.c.bf16 %v1183, %v1182
      %v2489 = vpack.c.bf16 %v1185, %v1184
      %v2490 = vpack.c.bf16 %v1187, %v1186
      %v2491 = vpack.c.bf16 %v1189, %v1188
      %v2492 = vpack.c.bf16 %v1191, %v1190
      %v2493 = vpack.c.bf16 %v1193, %v1192
      %v2494 = vpack.c.bf16 %v1195, %v1194
      %v2495 = vpack.c.bf16 %v1197, %v1196
      %v2496 = vpack.c.bf16 %v1199, %v1198
      %v2497 = vpack.c.bf16 %v1201, %v1200
      %v2498 = vpack.c.bf16 %v1203, %v1202
      %v2499 = vpack.c.bf16 %v1205, %v1204
      %v2500 = vpack.c.bf16 %v1207, %v1206
      %v2501 = vpack.c.bf16 %v1209, %v1208
      %v2502 = vpack.c.bf16 %v1210, %v1210
      %2504 = vset.pattern.permute.xlu0 0
      %2505 = vperm.xlu0 %2504, %v595
      %v2506 = vpop.permute.xlu0 %2505
      %v2509 = vunpack.c.l.s4 839922192
      %v2510 = vunpack.c.0.s8 %v2509
      %v2511 = vlaneseq
      %v2512 = vshrl.u32 %v2511, 7
      %v2513 = vsub.s32 %v2510, %v2512
      %v2514 = vrot.slane %v2506, %v2513
      %2516 = vset.pattern.permute.xlu0 0
      %2517 = vperm.xlu0 %2516, %v596
      %v2518 = vpop.permute.xlu0 %2517
      %v2521 = vunpack.c.l.s4 839922192
      %v2522 = vunpack.c.0.s8 %v2521
      %v2523 = vlaneseq
      %v2524 = vshrl.u32 %v2523, 7
      %v2525 = vsub.s32 %v2522, %v2524
      %v2526 = vrot.slane %v2518, %v2525
      %2528 = vset.pattern.permute.xlu0 0
      %2529 = vperm.xlu0 %2528, %v597
      %v2530 = vpop.permute.xlu0 %2529
      %v2533 = vunpack.c.l.s4 839922192
      %v2534 = vunpack.c.0.s8 %v2533
      %v2535 = vlaneseq
      %v2536 = vshrl.u32 %v2535, 7
      %v2537 = vsub.s32 %v2534, %v2536
      %v2538 = vrot.slane %v2530, %v2537
      %2540 = vset.pattern.permute.xlu0 0
      %2541 = vperm.xlu0 %2540, %v598
      %v2542 = vpop.permute.xlu0 %2541
      %v2545 = vunpack.c.l.s4 839922192
      %v2546 = vunpack.c.0.s8 %v2545
      %v2547 = vlaneseq
      %v2548 = vshrl.u32 %v2547, 7
      %v2549 = vsub.s32 %v2546, %v2548
      %v2550 = vrot.slane %v2542, %v2549
      %2552 = vset.pattern.permute.xlu0 0
      %2553 = vperm.xlu0 %2552, %v599
      %v2554 = vpop.permute.xlu0 %2553
      %v2557 = vunpack.c.l.s4 839922192
      %v2558 = vunpack.c.0.s8 %v2557
      %v2559 = vlaneseq
      %v2560 = vshrl.u32 %v2559, 7
      %v2561 = vsub.s32 %v2558, %v2560
      %v2562 = vrot.slane %v2554, %v2561
      %2564 = vset.pattern.permute.xlu0 0
      %2565 = vperm.xlu0 %2564, %v600
      %v2566 = vpop.permute.xlu0 %2565
      %v2569 = vunpack.c.l.s4 839922192
      %v2570 = vunpack.c.0.s8 %v2569
      %v2571 = vlaneseq
      %v2572 = vshrl.u32 %v2571, 7
      %v2573 = vsub.s32 %v2570, %v2572
      %v2574 = vrot.slane %v2566, %v2573
      %2576 = vset.pattern.permute.xlu0 0
      %2577 = vperm.xlu0 %2576, %v601
      %v2578 = vpop.permute.xlu0 %2577
      %v2581 = vunpack.c.l.s4 839922192
      %v2582 = vunpack.c.0.s8 %v2581
      %v2583 = vlaneseq
      %v2584 = vshrl.u32 %v2583, 7
      %v2585 = vsub.s32 %v2582, %v2584
      %v2586 = vrot.slane %v2578, %v2585
      %2588 = vset.pattern.permute.xlu0 0
      %2589 = vperm.xlu0 %2588, %v602
      %v2590 = vpop.permute.xlu0 %2589
      %v2593 = vunpack.c.l.s4 839922192
      %v2594 = vunpack.c.0.s8 %v2593
      %v2595 = vlaneseq
      %v2596 = vshrl.u32 %v2595, 7
      %v2597 = vsub.s32 %v2594, %v2596
      %v2598 = vrot.slane %v2590, %v2597
      %2600 = vset.pattern.permute.xlu0 0
      %2601 = vperm.xlu0 %2600, %v603
      %v2602 = vpop.permute.xlu0 %2601
      %v2605 = vunpack.c.l.s4 839922192
      %v2606 = vunpack.c.0.s8 %v2605
      %v2607 = vlaneseq
      %v2608 = vshrl.u32 %v2607, 7
      %v2609 = vsub.s32 %v2606, %v2608
      %v2610 = vrot.slane %v2602, %v2609
      %2612 = vset.pattern.permute.xlu0 0
      %2613 = vperm.xlu0 %2612, %v604
      %v2614 = vpop.permute.xlu0 %2613
      %v2617 = vunpack.c.l.s4 839922192
      %v2618 = vunpack.c.0.s8 %v2617
      %v2619 = vlaneseq
      %v2620 = vshrl.u32 %v2619, 7
      %v2621 = vsub.s32 %v2618, %v2620
      %v2622 = vrot.slane %v2614, %v2621
      %2624 = vset.pattern.permute.xlu0 0
      %2625 = vperm.xlu0 %2624, %v605
      %v2626 = vpop.permute.xlu0 %2625
      %v2629 = vunpack.c.l.s4 839922192
      %v2630 = vunpack.c.0.s8 %v2629
      %v2631 = vlaneseq
      %v2632 = vshrl.u32 %v2631, 7
      %v2633 = vsub.s32 %v2630, %v2632
      %v2634 = vrot.slane %v2626, %v2633
      %2636 = vset.pattern.permute.xlu0 0
      %2637 = vperm.xlu0 %2636, %v606
      %v2638 = vpop.permute.xlu0 %2637
      %v2641 = vunpack.c.l.s4 839922192
      %v2642 = vunpack.c.0.s8 %v2641
      %v2643 = vlaneseq
      %v2644 = vshrl.u32 %v2643, 7
      %v2645 = vsub.s32 %v2642, %v2644
      %v2646 = vrot.slane %v2638, %v2645
      %2648 = vset.pattern.permute.xlu0 0
      %2649 = vperm.xlu0 %2648, %v607
      %v2650 = vpop.permute.xlu0 %2649
      %v2653 = vunpack.c.l.s4 839922192
      %v2654 = vunpack.c.0.s8 %v2653
      %v2655 = vlaneseq
      %v2656 = vshrl.u32 %v2655, 7
      %v2657 = vsub.s32 %v2654, %v2656
      %v2658 = vrot.slane %v2650, %v2657
      %2660 = vset.pattern.permute.xlu0 0
      %2661 = vperm.xlu0 %2660, %v608
      %v2662 = vpop.permute.xlu0 %2661
      %v2665 = vunpack.c.l.s4 839922192
      %v2666 = vunpack.c.0.s8 %v2665
      %v2667 = vlaneseq
      %v2668 = vshrl.u32 %v2667, 7
      %v2669 = vsub.s32 %v2666, %v2668
      %v2670 = vrot.slane %v2662, %v2669
      %2672 = vset.pattern.permute.xlu0 0
      %2673 = vperm.xlu0 %2672, %v609
      %v2674 = vpop.permute.xlu0 %2673
      %v2677 = vunpack.c.l.s4 839922192
      %v2678 = vunpack.c.0.s8 %v2677
      %v2679 = vlaneseq
      %v2680 = vshrl.u32 %v2679, 7
      %v2681 = vsub.s32 %v2678, %v2680
      %v2682 = vrot.slane %v2674, %v2681
      %2684 = vset.pattern.permute.xlu0 0
      %2685 = vperm.xlu0 %2684, %v610
      %v2686 = vpop.permute.xlu0 %2685
      %v2689 = vunpack.c.l.s4 839922192
      %v2690 = vunpack.c.0.s8 %v2689
      %v2691 = vlaneseq
      %v2692 = vshrl.u32 %v2691, 7
      %v2693 = vsub.s32 %v2690, %v2692
      %v2694 = vrot.slane %v2686, %v2693
      %2696 = vset.pattern.permute.xlu0 0
      %2697 = vperm.xlu0 %2696, %v611
      %v2698 = vpop.permute.xlu0 %2697
      %v2701 = vunpack.c.l.s4 839922192
      %v2702 = vunpack.c.0.s8 %v2701
      %v2703 = vlaneseq
      %v2704 = vshrl.u32 %v2703, 7
      %v2705 = vsub.s32 %v2702, %v2704
      %v2706 = vrot.slane %v2698, %v2705
      %2708 = vset.pattern.permute.xlu0 0
      %2709 = vperm.xlu0 %2708, %v612
      %v2710 = vpop.permute.xlu0 %2709
      %v2713 = vunpack.c.l.s4 839922192
      %v2714 = vunpack.c.0.s8 %v2713
      %v2715 = vlaneseq
      %v2716 = vshrl.u32 %v2715, 7
      %v2717 = vsub.s32 %v2714, %v2716
      %v2718 = vrot.slane %v2710, %v2717
      %2720 = vset.pattern.permute.xlu0 0
      %2721 = vperm.xlu0 %2720, %v613
      %v2722 = vpop.permute.xlu0 %2721
      %v2725 = vunpack.c.l.s4 839922192
      %v2726 = vunpack.c.0.s8 %v2725
      %v2727 = vlaneseq
      %v2728 = vshrl.u32 %v2727, 7
      %v2729 = vsub.s32 %v2726, %v2728
      %v2730 = vrot.slane %v2722, %v2729
      %2732 = vset.pattern.permute.xlu0 0
      %2733 = vperm.xlu0 %2732, %v614
      %v2734 = vpop.permute.xlu0 %2733
      %v2737 = vunpack.c.l.s4 839922192
      %v2738 = vunpack.c.0.s8 %v2737
      %v2739 = vlaneseq
      %v2740 = vshrl.u32 %v2739, 7
      %v2741 = vsub.s32 %v2738, %v2740
      %v2742 = vrot.slane %v2734, %v2741
      %2744 = vset.pattern.permute.xlu0 0
      %2745 = vperm.xlu0 %2744, %v615
      %v2746 = vpop.permute.xlu0 %2745
      %v2749 = vunpack.c.l.s4 839922192
      %v2750 = vunpack.c.0.s8 %v2749
      %v2751 = vlaneseq
      %v2752 = vshrl.u32 %v2751, 7
      %v2753 = vsub.s32 %v2750, %v2752
      %v2754 = vrot.slane %v2746, %v2753
      %2756 = vset.pattern.permute.xlu0 0
      %2757 = vperm.xlu0 %2756, %v616
      %v2758 = vpop.permute.xlu0 %2757
      %v2761 = vunpack.c.l.s4 839922192
      %v2762 = vunpack.c.0.s8 %v2761
      %v2763 = vlaneseq
      %v2764 = vshrl.u32 %v2763, 7
      %v2765 = vsub.s32 %v2762, %v2764
      %v2766 = vrot.slane %v2758, %v2765
      %2768 = vset.pattern.permute.xlu0 0
      %2769 = vperm.xlu0 %2768, %v617
      %v2770 = vpop.permute.xlu0 %2769
      %v2773 = vunpack.c.l.s4 839922192
      %v2774 = vunpack.c.0.s8 %v2773
      %v2775 = vlaneseq
      %v2776 = vshrl.u32 %v2775, 7
      %v2777 = vsub.s32 %v2774, %v2776
      %v2778 = vrot.slane %v2770, %v2777
      %2780 = vset.pattern.permute.xlu0 0
      %2781 = vperm.xlu0 %2780, %v618
      %v2782 = vpop.permute.xlu0 %2781
      %v2785 = vunpack.c.l.s4 839922192
      %v2786 = vunpack.c.0.s8 %v2785
      %v2787 = vlaneseq
      %v2788 = vshrl.u32 %v2787, 7
      %v2789 = vsub.s32 %v2786, %v2788
      %v2790 = vrot.slane %v2782, %v2789
      %2792 = vset.pattern.permute.xlu0 0
      %2793 = vperm.xlu0 %2792, %v619
      %v2794 = vpop.permute.xlu0 %2793
      %v2797 = vunpack.c.l.s4 839922192
      %v2798 = vunpack.c.0.s8 %v2797
      %v2799 = vlaneseq
      %v2800 = vshrl.u32 %v2799, 7
      %v2801 = vsub.s32 %v2798, %v2800
      %v2802 = vrot.slane %v2794, %v2801
      %2804 = vset.pattern.permute.xlu0 0
      %2805 = vperm.xlu0 %2804, %v620
      %v2806 = vpop.permute.xlu0 %2805
      %v2809 = vunpack.c.l.s4 839922192
      %v2810 = vunpack.c.0.s8 %v2809
      %v2811 = vlaneseq
      %v2812 = vshrl.u32 %v2811, 7
      %v2813 = vsub.s32 %v2810, %v2812
      %v2814 = vrot.slane %v2806, %v2813
      %2816 = vset.pattern.permute.xlu0 0
      %2817 = vperm.xlu0 %2816, %v621
      %v2818 = vpop.permute.xlu0 %2817
      %v2821 = vunpack.c.l.s4 839922192
      %v2822 = vunpack.c.0.s8 %v2821
      %v2823 = vlaneseq
      %v2824 = vshrl.u32 %v2823, 7
      %v2825 = vsub.s32 %v2822, %v2824
      %v2826 = vrot.slane %v2818, %v2825
      %2828 = vset.pattern.permute.xlu0 0
      %2829 = vperm.xlu0 %2828, %v622
      %v2830 = vpop.permute.xlu0 %2829
      %v2833 = vunpack.c.l.s4 839922192
      %v2834 = vunpack.c.0.s8 %v2833
      %v2835 = vlaneseq
      %v2836 = vshrl.u32 %v2835, 7
      %v2837 = vsub.s32 %v2834, %v2836
      %v2838 = vrot.slane %v2830, %v2837
      %2840 = vset.pattern.permute.xlu0 0
      %2841 = vperm.xlu0 %2840, %v623
      %v2842 = vpop.permute.xlu0 %2841
      %v2845 = vunpack.c.l.s4 839922192
      %v2846 = vunpack.c.0.s8 %v2845
      %v2847 = vlaneseq
      %v2848 = vshrl.u32 %v2847, 7
      %v2849 = vsub.s32 %v2846, %v2848
      %v2850 = vrot.slane %v2842, %v2849
      %2852 = vset.pattern.permute.xlu0 0
      %2853 = vperm.xlu0 %2852, %v624
      %v2854 = vpop.permute.xlu0 %2853
      %v2857 = vunpack.c.l.s4 839922192
      %v2858 = vunpack.c.0.s8 %v2857
      %v2859 = vlaneseq
      %v2860 = vshrl.u32 %v2859, 7
      %v2861 = vsub.s32 %v2858, %v2860
      %v2862 = vrot.slane %v2854, %v2861
      %2864 = vset.pattern.permute.xlu0 0
      %2865 = vperm.xlu0 %2864, %v625
      %v2866 = vpop.permute.xlu0 %2865
      %v2869 = vunpack.c.l.s4 839922192
      %v2870 = vunpack.c.0.s8 %v2869
      %v2871 = vlaneseq
      %v2872 = vshrl.u32 %v2871, 7
      %v2873 = vsub.s32 %v2870, %v2872
      %v2874 = vrot.slane %v2866, %v2873
      %2876 = vset.pattern.permute.xlu0 0
      %2877 = vperm.xlu0 %2876, %v626
      %v2878 = vpop.permute.xlu0 %2877
      %v2881 = vunpack.c.l.s4 839922192
      %v2882 = vunpack.c.0.s8 %v2881
      %v2883 = vlaneseq
      %v2884 = vshrl.u32 %v2883, 7
      %v2885 = vsub.s32 %v2882, %v2884
      %v2886 = vrot.slane %v2878, %v2885
      %v2919 = vunpack.c.l.b16 %v2514
      %v2920 = vunpack.c.l.b16 %v2526
      %v2921 = vunpack.c.l.b16 %v2538
      %v2922 = vunpack.c.l.b16 %v2550
      %v2923 = vunpack.c.l.b16 %v2562
      %v2924 = vunpack.c.l.b16 %v2574
      %v2925 = vunpack.c.l.b16 %v2586
      %v2926 = vunpack.c.l.b16 %v2598
      %v2927 = vunpack.c.l.b16 %v2610
      %v2928 = vunpack.c.l.b16 %v2622
      %v2929 = vunpack.c.l.b16 %v2634
      %v2930 = vunpack.c.l.b16 %v2646
      %v2931 = vunpack.c.l.b16 %v2658
      %v2932 = vunpack.c.l.b16 %v2670
      %v2933 = vunpack.c.l.b16 %v2682
      %v2934 = vunpack.c.l.b16 %v2694
      %v2935 = vunpack.c.l.b16 %v2706
      %v2936 = vunpack.c.l.b16 %v2718
      %v2937 = vunpack.c.l.b16 %v2730
      %v2938 = vunpack.c.l.b16 %v2742
      %v2939 = vunpack.c.l.b16 %v2754
      %v2940 = vunpack.c.l.b16 %v2766
      %v2941 = vunpack.c.l.b16 %v2778
      %v2942 = vunpack.c.l.b16 %v2790
      %v2943 = vunpack.c.l.b16 %v2802
      %v2944 = vunpack.c.l.b16 %v2814
      %v2945 = vunpack.c.l.b16 %v2826
      %v2946 = vunpack.c.l.b16 %v2838
      %v2947 = vunpack.c.l.b16 %v2850
      %v2948 = vunpack.c.l.b16 %v2862
      %v2949 = vunpack.c.l.b16 %v2874
      %v2950 = vunpack.c.l.b16 %v2886
      %v2951 = vpack.c.b16 %v2920, %v2919
      %v2952 = vpack.c.b16 %v2922, %v2921
      %v2953 = vpack.c.b16 %v2924, %v2923
      %v2954 = vpack.c.b16 %v2926, %v2925
      %v2955 = vpack.c.b16 %v2928, %v2927
      %v2956 = vpack.c.b16 %v2930, %v2929
      %v2957 = vpack.c.b16 %v2932, %v2931
      %v2958 = vpack.c.b16 %v2934, %v2933
      %v2959 = vpack.c.b16 %v2936, %v2935
      %v2960 = vpack.c.b16 %v2938, %v2937
      %v2961 = vpack.c.b16 %v2940, %v2939
      %v2962 = vpack.c.b16 %v2942, %v2941
      %v2963 = vpack.c.b16 %v2944, %v2943
      %v2964 = vpack.c.b16 %v2946, %v2945
      %v2965 = vpack.c.b16 %v2948, %v2947
      %v2966 = vpack.c.b16 %v2950, %v2949
      %vm2967 = vsmask.f32 3328
      %v2969 = vshrl.u32 %v2951, 16
      %v2971 = vrot.slane %v2969, 4
      %v2972 = vshll.u32 %v2951, 16
      %v2974 = vrot.slane %v2972, 5
      %v2975 = vor.u32 %v2971, %v2974
      %v2977 = vshrl.u32 %v2952, 16
      %v2979 = vrot.slane %v2977, 4
      %v2980 = vshll.u32 %v2952, 16
      %v2982 = vrot.slane %v2980, 5
      %v2983 = vor.u32 %v2979, %v2982
      %v2984 = vsel %vm2967, %v2975, %v2983
      %v2986 = vshrl.u32 %v2953, 16
      %v2988 = vrot.slane %v2986, 4
      %v2989 = vshll.u32 %v2953, 16
      %v2991 = vrot.slane %v2989, 5
      %v2992 = vor.u32 %v2988, %v2991
      %v2993 = vsel %vm2967, %v2983, %v2992
      %v2995 = vshrl.u32 %v2954, 16
      %v2997 = vrot.slane %v2995, 4
      %v2998 = vshll.u32 %v2954, 16
      %v3000 = vrot.slane %v2998, 5
      %v3001 = vor.u32 %v2997, %v3000
      %v3002 = vsel %vm2967, %v2992, %v3001
      %v3004 = vshrl.u32 %v2955, 16
      %v3006 = vrot.slane %v3004, 4
      %v3007 = vshll.u32 %v2955, 16
      %v3009 = vrot.slane %v3007, 5
      %v3010 = vor.u32 %v3006, %v3009
      %v3011 = vsel %vm2967, %v3001, %v3010
      %v3013 = vshrl.u32 %v2956, 16
      %v3015 = vrot.slane %v3013, 4
      %v3016 = vshll.u32 %v2956, 16
      %v3018 = vrot.slane %v3016, 5
      %v3019 = vor.u32 %v3015, %v3018
      %v3020 = vsel %vm2967, %v3010, %v3019
      %v3022 = vshrl.u32 %v2957, 16
      %v3024 = vrot.slane %v3022, 4
      %v3025 = vshll.u32 %v2957, 16
      %v3027 = vrot.slane %v3025, 5
      %v3028 = vor.u32 %v3024, %v3027
      %v3029 = vsel %vm2967, %v3019, %v3028
      %v3031 = vshrl.u32 %v2958, 16
      %v3033 = vrot.slane %v3031, 4
      %v3034 = vshll.u32 %v2958, 16
      %v3036 = vrot.slane %v3034, 5
      %v3037 = vor.u32 %v3033, %v3036
      %v3038 = vsel %vm2967, %v3028, %v3037
      %v3040 = vshrl.u32 %v2959, 16
      %v3042 = vrot.slane %v3040, 4
      %v3043 = vshll.u32 %v2959, 16
      %v3045 = vrot.slane %v3043, 5
      %v3046 = vor.u32 %v3042, %v3045
      %v3047 = vsel %vm2967, %v3037, %v3046
      %v3049 = vshrl.u32 %v2960, 16
      %v3051 = vrot.slane %v3049, 4
      %v3052 = vshll.u32 %v2960, 16
      %v3054 = vrot.slane %v3052, 5
      %v3055 = vor.u32 %v3051, %v3054
      %v3056 = vsel %vm2967, %v3046, %v3055
      %v3058 = vshrl.u32 %v2961, 16
      %v3060 = vrot.slane %v3058, 4
      %v3061 = vshll.u32 %v2961, 16
      %v3063 = vrot.slane %v3061, 5
      %v3064 = vor.u32 %v3060, %v3063
      %v3065 = vsel %vm2967, %v3055, %v3064
      %v3067 = vshrl.u32 %v2962, 16
      %v3069 = vrot.slane %v3067, 4
      %v3070 = vshll.u32 %v2962, 16
      %v3072 = vrot.slane %v3070, 5
      %v3073 = vor.u32 %v3069, %v3072
      %v3074 = vsel %vm2967, %v3064, %v3073
      %v3076 = vshrl.u32 %v2963, 16
      %v3078 = vrot.slane %v3076, 4
      %v3079 = vshll.u32 %v2963, 16
      %v3081 = vrot.slane %v3079, 5
      %v3082 = vor.u32 %v3078, %v3081
      %v3083 = vsel %vm2967, %v3073, %v3082
      %v3085 = vshrl.u32 %v2964, 16
      %v3087 = vrot.slane %v3085, 4
      %v3088 = vshll.u32 %v2964, 16
      %v3090 = vrot.slane %v3088, 5
      %v3091 = vor.u32 %v3087, %v3090
      %v3092 = vsel %vm2967, %v3082, %v3091
      %v3094 = vshrl.u32 %v2965, 16
      %v3096 = vrot.slane %v3094, 4
      %v3097 = vshll.u32 %v2965, 16
      %v3099 = vrot.slane %v3097, 5
      %v3100 = vor.u32 %v3096, %v3099
      %v3101 = vsel %vm2967, %v3091, %v3100
      %v3103 = vshrl.u32 %v2966, 16
      %v3105 = vrot.slane %v3103, 4
      %v3106 = vshll.u32 %v2966, 16
      %v3108 = vrot.slane %v3106, 5
      %v3109 = vor.u32 %v3105, %v3108
      %v3110 = vsel %vm2967, %v3100, %v3109
      %v3128 = vmul.bf16 %v2486, %v2975
      %v3129 = vmul.bf16 %v2487, %v2984
      %v3130 = vmul.bf16 %v2488, %v2993
      %v3131 = vmul.bf16 %v2489, %v3002
      %v3132 = vmul.bf16 %v2490, %v3011
      %v3133 = vmul.bf16 %v2491, %v3020
      %v3134 = vmul.bf16 %v2492, %v3029
      %v3135 = vmul.bf16 %v2493, %v3038
      %v3136 = vmul.bf16 %v2494, %v3047
      %v3137 = vmul.bf16 %v2495, %v3056
      %v3138 = vmul.bf16 %v2496, %v3065
      %v3139 = vmul.bf16 %v2497, %v3074
      %v3140 = vmul.bf16 %v2498, %v3083
      %v3141 = vmul.bf16 %v2499, %v3092
      %v3142 = vmul.bf16 %v2500, %v3101
      %v3143 = vmul.bf16 %v2501, %v3110
      %v3144 = vmul.bf16 %v2502, %v3109
      %v3145 = vld [vmem:[%s4] sm:$0xf]
      %v3146 = vld [vmem:[%s4 + $0x4] sm:$0xf]
      %v3147 = vld [vmem:[%s4 + $0x8] sm:$0xf]
      %v3148 = vld [vmem:[%s4 + $0xc] sm:$0xf]
      %v3149 = vld [vmem:[%s4 + $0x10] sm:$0xf]
      %v3150 = vld [vmem:[%s4 + $0x14] sm:$0xf]
      %v3151 = vld [vmem:[%s4 + $0x18] sm:$0xf]
      %v3152 = vld [vmem:[%s4 + $0x1c] sm:$0xf]
      %s3153 = scalar_lea.vmem %s4, 32
      %v3154 = vld [vmem:[%s3153] sm:$0xf]
      %v3155 = vld [vmem:[%s3153 + $0x4] sm:$0xf]
      %v3156 = vld [vmem:[%s3153 + $0x8] sm:$0xf]
      %v3157 = vld [vmem:[%s3153 + $0xc] sm:$0xf]
      %v3158 = vld [vmem:[%s3153 + $0x10] sm:$0xf]
      %v3159 = vld [vmem:[%s3153 + $0x14] sm:$0xf]
      %v3160 = vld [vmem:[%s3153 + $0x18] sm:$0xf]
      %v3161 = vld [vmem:[%s3153 + $0x1c] sm:$0xf]
      %v3170 = vunpack.c.l.b16 %v3154
      %v3171 = vunpack.c.l.b16 %v3155
      %v3172 = vunpack.c.l.b16 %v3156
      %v3173 = vunpack.c.l.b16 %v3157
      %v3174 = vunpack.c.l.b16 %v3158
      %v3175 = vunpack.c.l.b16 %v3159
      %v3176 = vunpack.c.l.b16 %v3160
      %v3177 = vunpack.c.l.b16 %v3161
      %v3178 = vpack.c.b16 %v3171, %v3170
      %v3179 = vpack.c.b16 %v3173, %v3172
      %v3180 = vpack.c.b16 %v3175, %v3174
      %v3181 = vpack.c.b16 %v3177, %v3176
      %v3187 = vsel %vm779, %v2486, 0
      %3189 = vmatprep.subr.bf16.mxu0 0
      %3190 = vmatpush1.bf16.msra.mxu0 %v3178
      %3191 = vmatprep.subr.bf16.mxu0 0
      %3192 = vmatpush1.bf16.msra.mxu0 %v3179
      %3193 = vmatprep.subr.bf16.mxu0 0
      %3194 = vmatpush1.bf16.msra.mxu0 %v3180
      %3195 = vmatprep.subr.bf16.mxu0 0
      %3196 = vmatpush1.bf16.msra.mxu0 %v3181
      %3197 = vmatprep.subr.bf16.mxu0 0
      %3198 = vmatpush1.bf16.msra.mxu0 0
      %3199 = vmatprep.subr.bf16.mxu0 0
      %3200 = vmatpush1.bf16.msra.mxu0 0
      %3201 = vmatprep.subr.bf16.mxu0 0
      %3202 = vmatpush1.bf16.msra.mxu0 0
      %3203 = vmatprep.subr.bf16.mxu0 0
      %3204 = vmatpush1.bf16.msra.mxu0 0
      %3205 = vmatprep.subr.bf16.mxu0 0
      %3206 = vmatpush1.bf16.msra.mxu0 0
      %3207 = vmatprep.subr.bf16.mxu0 0
      %3208 = vmatpush1.bf16.msra.mxu0 0
      %3209 = vmatprep.subr.bf16.mxu0 0
      %3210 = vmatpush1.bf16.msra.mxu0 0
      %3211 = vmatprep.subr.bf16.mxu0 0
      %3212 = vmatpush1.bf16.msra.mxu0 0
      %3213 = vmatprep.subr.bf16.mxu0 0
      %3214 = vmatpush1.bf16.msra.mxu0 0
      %3215 = vmatprep.subr.bf16.mxu0 0
      %3216 = vmatpush1.bf16.msra.mxu0 0
      %3217 = vmatprep.subr.bf16.mxu0 0
      %3218 = vmatpush1.bf16.msra.mxu0 0
      %3219 = vmatprep.subr.bf16.mxu0 0
      %3220 = vmatpush1.bf16.msra.mxu0 0
      %3221 = vmatprep.mubr.bf16.mxu0 0
      %3222 = vmatmul.mubr.bf16.gmra.mrb[0].mxu0 %v3187
      %v3223 = vpop.f32.mrb[0].mxu0
      %v3224 = vadd.f32 0.0, %v3223
      %v3225 = vpop.f32.mrb[0].mxu0
      %v3226 = vpop.f32.mrb[0].mxu0
      %v3227 = vadd.f32 0.0, %v3226
      %v3228 = vpop.f32.mrb[0].mxu0
      %3229 = vmatprep.mubr.bf16.mxu0 0
      %3230 = vmatmul.mubr.bf16.gmra.mrb[0].mxu0 %v1269
      %v3231 = vpop.f32.mrb[0].mxu0
      %v3232 = vadd.f32 0.0, %v3231
      %v3233 = vpop.f32.mrb[0].mxu0
      %v3234 = vpop.f32.mrb[0].mxu0
      %v3235 = vadd.f32 0.0, %v3234
      %v3236 = vpop.f32.mrb[0].mxu0
      %3237 = vmatprep.mubr.bf16.mxu0 0
      %3238 = vmatmul.mubr.bf16.gmra.mrb[0].mxu0 %v1272
      %v3239 = vpop.f32.mrb[0].mxu0
      %v3240 = vadd.f32 0.0, %v3239
      %v3241 = vpop.f32.mrb[0].mxu0
      %v3242 = vpop.f32.mrb[0].mxu0
      %v3243 = vadd.f32 0.0, %v3242
      %v3244 = vpop.f32.mrb[0].mxu0
      %3245 = vmatprep.mubr.bf16.mxu0 0
      %3246 = vmatmul.mubr.bf16.gmra.mrb[0].mxu0 %v1275
      %v3247 = vpop.f32.mrb[0].mxu0
      %v3248 = vadd.f32 0.0, %v3247
      %v3249 = vpop.f32.mrb[0].mxu0
      %v3250 = vpop.f32.mrb[0].mxu0
      %v3251 = vadd.f32 0.0, %v3250
      %v3252 = vpop.f32.mrb[0].mxu0
      %3253 = vmatprep.mubr.bf16.mxu0 0
      %3254 = vmatmul.mubr.bf16.gmra.mrb[0].mxu0 %v1278
      %v3255 = vpop.f32.mrb[0].mxu0
      %v3256 = vadd.f32 0.0, %v3255
      %v3257 = vpop.f32.mrb[0].mxu0
      %v3258 = vpop.f32.mrb[0].mxu0
      %v3259 = vadd.f32 0.0, %v3258
      %v3260 = vpop.f32.mrb[0].mxu0
      %3261 = vmatprep.mubr.bf16.mxu0 0
      %3262 = vmatmul.mubr.bf16.gmra.mrb[0].mxu0 %v1281
      %v3263 = vpop.f32.mrb[0].mxu0
      %v3264 = vadd.f32 0.0, %v3263
      %v3265 = vpop.f32.mrb[0].mxu0
      %v3266 = vpop.f32.mrb[0].mxu0
      %v3267 = vadd.f32 0.0, %v3266
      %v3268 = vpop.f32.mrb[0].mxu0
      %3269 = vmatprep.mubr.bf16.mxu0 0
      %3270 = vmatmul.mubr.bf16.gmra.mrb[0].mxu0 %v1284
      %v3271 = vpop.f32.mrb[0].mxu0
      %v3272 = vadd.f32 0.0, %v3271
      %v3273 = vpop.f32.mrb[0].mxu0
      %v3274 = vpop.f32.mrb[0].mxu0
      %v3275 = vadd.f32 0.0, %v3274
      %v3276 = vpop.f32.mrb[0].mxu0
      %3277 = vmatprep.mubr.bf16.mxu0 0
      %3278 = vmatmul.mubr.bf16.gmra.mrb[0].mxu0 %v1287
      %v3279 = vpop.f32.mrb[0].mxu0
      %v3280 = vadd.f32 0.0, %v3279
      %v3281 = vpop.f32.mrb[0].mxu0
      %v3282 = vpop.f32.mrb[0].mxu0
      %v3283 = vadd.f32 0.0, %v3282
      %v3284 = vpop.f32.mrb[0].mxu0
      %3285 = vmatprep.mubr.bf16.mxu0 0
      %3286 = vmatmul.mubr.bf16.gmra.mrb[0].mxu0 %v1290
      %v3287 = vpop.f32.mrb[0].mxu0
      %v3288 = vadd.f32 0.0, %v3287
      %v3289 = vpop.f32.mrb[0].mxu0
      %v3290 = vpop.f32.mrb[0].mxu0
      %v3291 = vadd.f32 0.0, %v3290
      %v3292 = vpop.f32.mrb[0].mxu0
      %3293 = vmatprep.mubr.bf16.mxu0 0
      %3294 = vmatmul.mubr.bf16.gmra.mrb[0].mxu0 %v1293
      %v3295 = vpop.f32.mrb[0].mxu0
      %v3296 = vadd.f32 0.0, %v3295
      %v3297 = vpop.f32.mrb[0].mxu0
      %v3298 = vpop.f32.mrb[0].mxu0
      %v3299 = vadd.f32 0.0, %v3298
      %v3300 = vpop.f32.mrb[0].mxu0
      %3301 = vmatprep.mubr.bf16.mxu0 0
      %3302 = vmatmul.mubr.bf16.gmra.mrb[0].mxu0 %v1296
      %v3303 = vpop.f32.mrb[0].mxu0
      %v3304 = vadd.f32 0.0, %v3303
      %v3305 = vpop.f32.mrb[0].mxu0
      %v3306 = vpop.f32.mrb[0].mxu0
      %v3307 = vadd.f32 0.0, %v3306
      %v3308 = vpop.f32.mrb[0].mxu0
      %3309 = vmatprep.mubr.bf16.mxu0 0
      %3310 = vmatmul.mubr.bf16.gmra.mrb[0].mxu0 %v1299
      %v3311 = vpop.f32.mrb[0].mxu0
      %v3312 = vadd.f32 0.0, %v3311
      %v3313 = vpop.f32.mrb[0].mxu0
      %v3314 = vpop.f32.mrb[0].mxu0
      %v3315 = vadd.f32 0.0, %v3314
      %v3316 = vpop.f32.mrb[0].mxu0
      %3317 = vmatprep.mubr.bf16.mxu0 0
      %3318 = vmatmul.mubr.bf16.gmra.mrb[0].mxu0 %v1302
      %v3319 = vpop.f32.mrb[0].mxu0
      %v3320 = vadd.f32 0.0, %v3319
      %v3321 = vpop.f32.mrb[0].mxu0
      %v3322 = vpop.f32.mrb[0].mxu0
      %v3323 = vadd.f32 0.0, %v3322
      %v3324 = vpop.f32.mrb[0].mxu0
      %3325 = vmatprep.mubr.bf16.mxu0 0
      %3326 = vmatmul.mubr.bf16.gmra.mrb[0].mxu0 %v1305
      %v3327 = vpop.f32.mrb[0].mxu0
      %v3328 = vadd.f32 0.0, %v3327
      %v3329 = vpop.f32.mrb[0].mxu0
      %v3330 = vpop.f32.mrb[0].mxu0
      %v3331 = vadd.f32 0.0, %v3330
      %v3332 = vpop.f32.mrb[0].mxu0
      %3333 = vmatprep.mubr.bf16.mxu0 0
      %3334 = vmatmul.mubr.bf16.gmra.mrb[0].mxu0 %v1308
      %v3335 = vpop.f32.mrb[0].mxu0
      %v3336 = vadd.f32 0.0, %v3335
      %v3337 = vpop.f32.mrb[0].mxu0
      %v3338 = vpop.f32.mrb[0].mxu0
      %v3339 = vadd.f32 0.0, %v3338
      %v3340 = vpop.f32.mrb[0].mxu0
      %3341 = vmatprep.mubr.bf16.mxu0 0
      %3342 = vmatmul.mubr.bf16.gmra.mrb[0].mxu0 %v1311
      %v3343 = vpop.f32.mrb[0].mxu0
      %v3344 = vadd.f32 0.0, %v3343
      %v3345 = vpop.f32.mrb[0].mxu0
      %v3346 = vpop.f32.mrb[0].mxu0
      %v3347 = vadd.f32 0.0, %v3346
      %v3348 = vpop.f32.mrb[0].mxu0
      %3349 = vdwg.mxu0
      %vm3350 = vsmask.f32 4352
      %v3352 = vshrl.u32 %v3128, 16
      %v3354 = vrot.slane %v3352, 3
      %v3355 = vshll.u32 %v3128, 16
      %v3357 = vrot.slane %v3355, 4
      %v3358 = vor.u32 %v3354, %v3357
      %v3360 = vshrl.u32 %v3129, 16
      %v3362 = vrot.slane %v3360, 3
      %v3363 = vshll.u32 %v3129, 16
      %v3365 = vrot.slane %v3363, 4
      %v3366 = vor.u32 %v3362, %v3365
      %v3367 = vsel %vm3350, %v3358, %v3366
      %v3369 = vshrl.u32 %v3130, 16
      %v3371 = vrot.slane %v3369, 3
      %v3372 = vshll.u32 %v3130, 16
      %v3374 = vrot.slane %v3372, 4
      %v3375 = vor.u32 %v3371, %v3374
      %v3376 = vsel %vm3350, %v3366, %v3375
      %v3378 = vshrl.u32 %v3131, 16
      %v3380 = vrot.slane %v3378, 3
      %v3381 = vshll.u32 %v3131, 16
      %v3383 = vrot.slane %v3381, 4
      %v3384 = vor.u32 %v3380, %v3383
      %v3385 = vsel %vm3350, %v3375, %v3384
      %v3387 = vshrl.u32 %v3132, 16
      %v3389 = vrot.slane %v3387, 3
      %v3390 = vshll.u32 %v3132, 16
      %v3392 = vrot.slane %v3390, 4
      %v3393 = vor.u32 %v3389, %v3392
      %v3394 = vsel %vm3350, %v3384, %v3393
      %v3396 = vshrl.u32 %v3133, 16
      %v3398 = vrot.slane %v3396, 3
      %v3399 = vshll.u32 %v3133, 16
      %v3401 = vrot.slane %v3399, 4
      %v3402 = vor.u32 %v3398, %v3401
      %v3403 = vsel %vm3350, %v3393, %v3402
      %v3405 = vshrl.u32 %v3134, 16
      %v3407 = vrot.slane %v3405, 3
      %v3408 = vshll.u32 %v3134, 16
      %v3410 = vrot.slane %v3408, 4
      %v3411 = vor.u32 %v3407, %v3410
      %v3412 = vsel %vm3350, %v3402, %v3411
      %v3414 = vshrl.u32 %v3135, 16
      %v3416 = vrot.slane %v3414, 3
      %v3417 = vshll.u32 %v3135, 16
      %v3419 = vrot.slane %v3417, 4
      %v3420 = vor.u32 %v3416, %v3419
      %v3421 = vsel %vm3350, %v3411, %v3420
      %v3423 = vshrl.u32 %v3136, 16
      %v3425 = vrot.slane %v3423, 3
      %v3426 = vshll.u32 %v3136, 16
      %v3428 = vrot.slane %v3426, 4
      %v3429 = vor.u32 %v3425, %v3428
      %v3430 = vsel %vm3350, %v3420, %v3429
      %v3432 = vshrl.u32 %v3137, 16
      %v3434 = vrot.slane %v3432, 3
      %v3435 = vshll.u32 %v3137, 16
      %v3437 = vrot.slane %v3435, 4
      %v3438 = vor.u32 %v3434, %v3437
      %v3439 = vsel %vm3350, %v3429, %v3438
      %v3441 = vshrl.u32 %v3138, 16
      %v3443 = vrot.slane %v3441, 3
      %v3444 = vshll.u32 %v3138, 16
      %v3446 = vrot.slane %v3444, 4
      %v3447 = vor.u32 %v3443, %v3446
      %v3448 = vsel %vm3350, %v3438, %v3447
      %v3450 = vshrl.u32 %v3139, 16
      %v3452 = vrot.slane %v3450, 3
      %v3453 = vshll.u32 %v3139, 16
      %v3455 = vrot.slane %v3453, 4
      %v3456 = vor.u32 %v3452, %v3455
      %v3457 = vsel %vm3350, %v3447, %v3456
      %v3459 = vshrl.u32 %v3140, 16
      %v3461 = vrot.slane %v3459, 3
      %v3462 = vshll.u32 %v3140, 16
      %v3464 = vrot.slane %v3462, 4
      %v3465 = vor.u32 %v3461, %v3464
      %v3466 = vsel %vm3350, %v3456, %v3465
      %v3468 = vshrl.u32 %v3141, 16
      %v3470 = vrot.slane %v3468, 3
      %v3471 = vshll.u32 %v3141, 16
      %v3473 = vrot.slane %v3471, 4
      %v3474 = vor.u32 %v3470, %v3473
      %v3475 = vsel %vm3350, %v3465, %v3474
      %v3477 = vshrl.u32 %v3142, 16
      %v3479 = vrot.slane %v3477, 3
      %v3480 = vshll.u32 %v3142, 16
      %v3482 = vrot.slane %v3480, 4
      %v3483 = vor.u32 %v3479, %v3482
      %v3484 = vsel %vm3350, %v3474, %v3483
      %v3486 = vshrl.u32 %v3143, 16
      %v3488 = vrot.slane %v3486, 3
      %v3489 = vshll.u32 %v3143, 16
      %v3491 = vrot.slane %v3489, 4
      %v3492 = vor.u32 %v3488, %v3491
      %v3493 = vsel %vm3350, %v3483, %v3492
      %v3495 = vshrl.u32 %v3144, 16
      %v3497 = vrot.slane %v3495, 3
      %v3498 = vshll.u32 %v3144, 16
      %v3500 = vrot.slane %v3498, 4
      %v3501 = vor.u32 %v3497, %v3500
      %v3502 = vsel %vm3350, %v3492, %v3501
      %v3511 = vunpack.c.l.b16 %v3145
      %v3512 = vunpack.c.l.b16 %v3146
      %v3513 = vunpack.c.l.b16 %v3147
      %v3514 = vunpack.c.l.b16 %v3148
      %v3515 = vunpack.c.l.b16 %v3149
      %v3516 = vunpack.c.l.b16 %v3150
      %v3517 = vunpack.c.l.b16 %v3151
      %v3518 = vunpack.c.l.b16 %v3152
      %v3519 = vpack.c.b16 %v3512, %v3511
      %v3520 = vpack.c.b16 %v3514, %v3513
      %v3521 = vpack.c.b16 %v3516, %v3515
      %v3522 = vpack.c.b16 %v3518, %v3517
      %v3528 = vsel %vm779, %v3367, 0
      %v3531 = vsel %vm779, %v3376, 0
      %v3534 = vsel %vm779, %v3385, 0
      %v3537 = vsel %vm779, %v3394, 0
      %v3540 = vsel %vm779, %v3403, 0
      %v3543 = vsel %vm779, %v3412, 0
      %v3546 = vsel %vm779, %v3421, 0
      %v3549 = vsel %vm779, %v3430, 0
      %v3552 = vsel %vm779, %v3439, 0
      %v3555 = vsel %vm779, %v3448, 0
      %v3558 = vsel %vm779, %v3457, 0
      %v3561 = vsel %vm779, %v3466, 0
      %v3564 = vsel %vm779, %v3475, 0
      %v3567 = vsel %vm779, %v3484, 0
      %v3570 = vsel %vm779, %v3493, 0
      %v3573 = vsel %vm779, %v3502, 0
      %3575 = vmatprep.subr.bf16.mxu0 0
      %3576 = vmatpush1.bf16.msra.mxu0 %v3519
      %3577 = vmatprep.subr.bf16.mxu0 0
      %3578 = vmatpush1.bf16.msra.mxu0 %v3520
      %3579 = vmatprep.subr.bf16.mxu0 0
      %3580 = vmatpush1.bf16.msra.mxu0 %v3521
      %3581 = vmatprep.subr.bf16.mxu0 0
      %3582 = vmatpush1.bf16.msra.mxu0 %v3522
      %3583 = vmatprep.subr.bf16.mxu0 0
      %3584 = vmatpush1.bf16.msra.mxu0 0
      %3585 = vmatprep.subr.bf16.mxu0 0
      %3586 = vmatpush1.bf16.msra.mxu0 0
      %3587 = vmatprep.subr.bf16.mxu0 0
      %3588 = vmatpush1.bf16.msra.mxu0 0
      %3589 = vmatprep.subr.bf16.mxu0 0
      %3590 = vmatpush1.bf16.msra.mxu0 0
      %3591 = vmatprep.subr.bf16.mxu0 0
      %3592 = vmatpush1.bf16.msra.mxu0 0
      %3593 = vmatprep.subr.bf16.mxu0 0
      %3594 = vmatpush1.bf16.msra.mxu0 0
      %3595 = vmatprep.subr.bf16.mxu0 0
      %3596 = vmatpush1.bf16.msra.mxu0 0
      %3597 = vmatprep.subr.bf16.mxu0 0
      %3598 = vmatpush1.bf16.msra.mxu0 0
      %3599 = vmatprep.subr.bf16.mxu0 0
      %3600 = vmatpush1.bf16.msra.mxu0 0
      %3601 = vmatprep.subr.bf16.mxu0 0
      %3602 = vmatpush1.bf16.msra.mxu0 0
      %3603 = vmatprep.subr.bf16.mxu0 0
      %3604 = vmatpush1.bf16.msra.mxu0 0
      %3605 = vmatprep.subr.bf16.mxu0 0
      %3606 = vmatpush1.bf16.msra.mxu0 0
      %3607 = vmatprep.mubr.bf16.mxu0 0
      %3608 = vmatmul.mubr.bf16.gmra.mrb[0].mxu0 %v3528
      %v3609 = vpop.f32.mrb[0].mxu0
      %v3610 = vadd.f32 %v3224, %v3609
      %v3611 = vpop.f32.mrb[0].mxu0
      %v3612 = vpop.f32.mrb[0].mxu0
      %v3613 = vadd.f32 %v3227, %v3612
      %v3614 = vpop.f32.mrb[0].mxu0
      %3615 = vmatprep.mubr.bf16.mxu0 0
      %3616 = vmatmul.mubr.bf16.gmra.mrb[0].mxu0 %v3531
      %v3617 = vpop.f32.mrb[0].mxu0
      %v3618 = vadd.f32 %v3232, %v3617
      %v3619 = vpop.f32.mrb[0].mxu0
      %v3620 = vpop.f32.mrb[0].mxu0
      %v3621 = vadd.f32 %v3235, %v3620
      %v3622 = vpop.f32.mrb[0].mxu0
      %3623 = vmatprep.mubr.bf16.mxu0 0
      %3624 = vmatmul.mubr.bf16.gmra.mrb[0].mxu0 %v3534
      %v3625 = vpop.f32.mrb[0].mxu0
      %v3626 = vadd.f32 %v3240, %v3625
      %v3627 = vpop.f32.mrb[0].mxu0
      %v3628 = vpop.f32.mrb[0].mxu0
      %v3629 = vadd.f32 %v3243, %v3628
      %v3630 = vpop.f32.mrb[0].mxu0
      %3631 = vmatprep.mubr.bf16.mxu0 0
      %3632 = vmatmul.mubr.bf16.gmra.mrb[0].mxu0 %v3537
      %v3633 = vpop.f32.mrb[0].mxu0
      %v3634 = vadd.f32 %v3248, %v3633
      %v3635 = vpop.f32.mrb[0].mxu0
      %v3636 = vpop.f32.mrb[0].mxu0
      %v3637 = vadd.f32 %v3251, %v3636
      %v3638 = vpop.f32.mrb[0].mxu0
      %3639 = vmatprep.mubr.bf16.mxu0 0
      %3640 = vmatmul.mubr.bf16.gmra.mrb[0].mxu0 %v3540
      %v3641 = vpop.f32.mrb[0].mxu0
      %v3642 = vadd.f32 %v3256, %v3641
      %v3643 = vpop.f32.mrb[0].mxu0
      %v3644 = vpop.f32.mrb[0].mxu0
      %v3645 = vadd.f32 %v3259, %v3644
      %v3646 = vpop.f32.mrb[0].mxu0
      %3647 = vmatprep.mubr.bf16.mxu0 0
      %3648 = vmatmul.mubr.bf16.gmra.mrb[0].mxu0 %v3543
      %v3649 = vpop.f32.mrb[0].mxu0
      %v3650 = vadd.f32 %v3264, %v3649
      %v3651 = vpop.f32.mrb[0].mxu0
      %v3652 = vpop.f32.mrb[0].mxu0
      %v3653 = vadd.f32 %v3267, %v3652
      %v3654 = vpop.f32.mrb[0].mxu0
      %3655 = vmatprep.mubr.bf16.mxu0 0
      %3656 = vmatmul.mubr.bf16.gmra.mrb[0].mxu0 %v3546
      %v3657 = vpop.f32.mrb[0].mxu0
      %v3658 = vadd.f32 %v3272, %v3657
      %v3659 = vpop.f32.mrb[0].mxu0
      %v3660 = vpop.f32.mrb[0].mxu0
      %v3661 = vadd.f32 %v3275, %v3660
      %v3662 = vpop.f32.mrb[0].mxu0
      %3663 = vmatprep.mubr.bf16.mxu0 0
      %3664 = vmatmul.mubr.bf16.gmra.mrb[0].mxu0 %v3549
      %v3665 = vpop.f32.mrb[0].mxu0
      %v3666 = vadd.f32 %v3280, %v3665
      %v3667 = vpop.f32.mrb[0].mxu0
      %v3668 = vpop.f32.mrb[0].mxu0
      %v3669 = vadd.f32 %v3283, %v3668
      %v3670 = vpop.f32.mrb[0].mxu0
      %3671 = vmatprep.mubr.bf16.mxu0 0
      %3672 = vmatmul.mubr.bf16.gmra.mrb[0].mxu0 %v3552
      %v3673 = vpop.f32.mrb[0].mxu0
      %v3674 = vadd.f32 %v3288, %v3673
      %v3675 = vpop.f32.mrb[0].mxu0
      %v3676 = vpop.f32.mrb[0].mxu0
      %v3677 = vadd.f32 %v3291, %v3676
      %v3678 = vpop.f32.mrb[0].mxu0
      %3679 = vmatprep.mubr.bf16.mxu0 0
      %3680 = vmatmul.mubr.bf16.gmra.mrb[0].mxu0 %v3555
      %v3681 = vpop.f32.mrb[0].mxu0
      %v3682 = vadd.f32 %v3296, %v3681
      %v3683 = vpop.f32.mrb[0].mxu0
      %v3684 = vpop.f32.mrb[0].mxu0
      %v3685 = vadd.f32 %v3299, %v3684
      %v3686 = vpop.f32.mrb[0].mxu0
      %3687 = vmatprep.mubr.bf16.mxu0 0
      %3688 = vmatmul.mubr.bf16.gmra.mrb[0].mxu0 %v3558
      %v3689 = vpop.f32.mrb[0].mxu0
      %v3690 = vadd.f32 %v3304, %v3689
      %v3691 = vpop.f32.mrb[0].mxu0
      %v3692 = vpop.f32.mrb[0].mxu0
      %v3693 = vadd.f32 %v3307, %v3692
      %v3694 = vpop.f32.mrb[0].mxu0
      %3695 = vmatprep.mubr.bf16.mxu0 0
      %3696 = vmatmul.mubr.bf16.gmra.mrb[0].mxu0 %v3561
      %v3697 = vpop.f32.mrb[0].mxu0
      %v3698 = vadd.f32 %v3312, %v3697
      %v3699 = vpop.f32.mrb[0].mxu0
      %v3700 = vpop.f32.mrb[0].mxu0
      %v3701 = vadd.f32 %v3315, %v3700
      %v3702 = vpop.f32.mrb[0].mxu0
      %3703 = vmatprep.mubr.bf16.mxu0 0
      %3704 = vmatmul.mubr.bf16.gmra.mrb[0].mxu0 %v3564
      %v3705 = vpop.f32.mrb[0].mxu0
      %v3706 = vadd.f32 %v3320, %v3705
      %v3707 = vpop.f32.mrb[0].mxu0
      %v3708 = vpop.f32.mrb[0].mxu0
      %v3709 = vadd.f32 %v3323, %v3708
      %v3710 = vpop.f32.mrb[0].mxu0
      %3711 = vmatprep.mubr.bf16.mxu0 0
      %3712 = vmatmul.mubr.bf16.gmra.mrb[0].mxu0 %v3567
      %v3713 = vpop.f32.mrb[0].mxu0
      %v3714 = vadd.f32 %v3328, %v3713
      %v3715 = vpop.f32.mrb[0].mxu0
      %v3716 = vpop.f32.mrb[0].mxu0
      %v3717 = vadd.f32 %v3331, %v3716
      %v3718 = vpop.f32.mrb[0].mxu0
      %3719 = vmatprep.mubr.bf16.mxu0 0
      %3720 = vmatmul.mubr.bf16.gmra.mrb[0].mxu0 %v3570
      %v3721 = vpop.f32.mrb[0].mxu0
      %v3722 = vadd.f32 %v3336, %v3721
      %v3723 = vpop.f32.mrb[0].mxu0
      %v3724 = vpop.f32.mrb[0].mxu0
      %v3725 = vadd.f32 %v3339, %v3724
      %v3726 = vpop.f32.mrb[0].mxu0
      %3727 = vmatprep.mubr.bf16.mxu0 0
      %3728 = vmatmul.mubr.bf16.gmra.mrb[0].mxu0 %v3573
      %v3729 = vpop.f32.mrb[0].mxu0
      %v3730 = vadd.f32 %v3344, %v3729
      %v3731 = vpop.f32.mrb[0].mxu0
      %v3732 = vpop.f32.mrb[0].mxu0
      %v3733 = vadd.f32 %v3347, %v3732
      %v3734 = vpop.f32.mrb[0].mxu0
      %3735 = vdwg.mxu0
      %v3736 = vpack.c.bf16 %v1211, %v1211
      %3738 = vset.pattern.permute.xlu0 0
      %3739 = vperm.xlu0 %3738, %v628
      %v3740 = vpop.permute.xlu0 %3739
      %v3743 = vunpack.c.l.s4 839922192
      %v3744 = vunpack.c.0.s8 %v3743
      %v3745 = vlaneseq
      %v3746 = vshrl.u32 %v3745, 7
      %v3747 = vsub.s32 %v3744, %v3746
      %v3748 = vrot.slane %v3740, %v3747
      %3750 = vset.pattern.permute.xlu0 0
      %3751 = vperm.xlu0 %3750, %v629
      %v3752 = vpop.permute.xlu0 %3751
      %v3755 = vunpack.c.l.s4 839922192
      %v3756 = vunpack.c.0.s8 %v3755
      %v3757 = vlaneseq
      %v3758 = vshrl.u32 %v3757, 7
      %v3759 = vsub.s32 %v3756, %v3758
      %v3760 = vrot.slane %v3752, %v3759
      %3762 = vset.pattern.permute.xlu0 0
      %3763 = vperm.xlu0 %3762, %v630
      %v3764 = vpop.permute.xlu0 %3763
      %v3767 = vunpack.c.l.s4 839922192
      %v3768 = vunpack.c.0.s8 %v3767
      %v3769 = vlaneseq
      %v3770 = vshrl.u32 %v3769, 7
      %v3771 = vsub.s32 %v3768, %v3770
      %v3772 = vrot.slane %v3764, %v3771
      %3774 = vset.pattern.permute.xlu0 0
      %3775 = vperm.xlu0 %3774, %v631
      %v3776 = vpop.permute.xlu0 %3775
      %v3779 = vunpack.c.l.s4 839922192
      %v3780 = vunpack.c.0.s8 %v3779
      %v3781 = vlaneseq
      %v3782 = vshrl.u32 %v3781, 7
      %v3783 = vsub.s32 %v3780, %v3782
      %v3784 = vrot.slane %v3776, %v3783
      %3786 = vset.pattern.permute.xlu0 0
      %3787 = vperm.xlu0 %3786, %v632
      %v3788 = vpop.permute.xlu0 %3787
      %v3791 = vunpack.c.l.s4 839922192
      %v3792 = vunpack.c.0.s8 %v3791
      %v3793 = vlaneseq
      %v3794 = vshrl.u32 %v3793, 7
      %v3795 = vsub.s32 %v3792, %v3794
      %v3796 = vrot.slane %v3788, %v3795
      %3798 = vset.pattern.permute.xlu0 0
      %3799 = vperm.xlu0 %3798, %v633
      %v3800 = vpop.permute.xlu0 %3799
      %v3803 = vunpack.c.l.s4 839922192
      %v3804 = vunpack.c.0.s8 %v3803
      %v3805 = vlaneseq
      %v3806 = vshrl.u32 %v3805, 7
      %v3807 = vsub.s32 %v3804, %v3806
      %v3808 = vrot.slane %v3800, %v3807
      %3810 = vset.pattern.permute.xlu0 0
      %3811 = vperm.xlu0 %3810, %v634
      %v3812 = vpop.permute.xlu0 %3811
      %v3815 = vunpack.c.l.s4 839922192
      %v3816 = vunpack.c.0.s8 %v3815
      %v3817 = vlaneseq
      %v3818 = vshrl.u32 %v3817, 7
      %v3819 = vsub.s32 %v3816, %v3818
      %v3820 = vrot.slane %v3812, %v3819
      %3822 = vset.pattern.permute.xlu0 0
      %3823 = vperm.xlu0 %3822, %v635
      %v3824 = vpop.permute.xlu0 %3823
      %v3827 = vunpack.c.l.s4 839922192
      %v3828 = vunpack.c.0.s8 %v3827
      %v3829 = vlaneseq
      %v3830 = vshrl.u32 %v3829, 7
      %v3831 = vsub.s32 %v3828, %v3830
      %v3832 = vrot.slane %v3824, %v3831
      %3834 = vset.pattern.permute.xlu0 0
      %3835 = vperm.xlu0 %3834, %v636
      %v3836 = vpop.permute.xlu0 %3835
      %v3839 = vunpack.c.l.s4 839922192
      %v3840 = vunpack.c.0.s8 %v3839
      %v3841 = vlaneseq
      %v3842 = vshrl.u32 %v3841, 7
      %v3843 = vsub.s32 %v3840, %v3842
      %v3844 = vrot.slane %v3836, %v3843
      %3846 = vset.pattern.permute.xlu0 0
      %3847 = vperm.xlu0 %3846, %v637
      %v3848 = vpop.permute.xlu0 %3847
      %v3851 = vunpack.c.l.s4 839922192
      %v3852 = vunpack.c.0.s8 %v3851
      %v3853 = vlaneseq
      %v3854 = vshrl.u32 %v3853, 7
      %v3855 = vsub.s32 %v3852, %v3854
      %v3856 = vrot.slane %v3848, %v3855
      %3858 = vset.pattern.permute.xlu0 0
      %3859 = vperm.xlu0 %3858, %v638
      %v3860 = vpop.permute.xlu0 %3859
      %v3863 = vunpack.c.l.s4 839922192
      %v3864 = vunpack.c.0.s8 %v3863
      %v3865 = vlaneseq
      %v3866 = vshrl.u32 %v3865, 7
      %v3867 = vsub.s32 %v3864, %v3866
      %v3868 = vrot.slane %v3860, %v3867
      %3870 = vset.pattern.permute.xlu0 0
      %3871 = vperm.xlu0 %3870, %v639
      %v3872 = vpop.permute.xlu0 %3871
      %v3875 = vunpack.c.l.s4 839922192
      %v3876 = vunpack.c.0.s8 %v3875
      %v3877 = vlaneseq
      %v3878 = vshrl.u32 %v3877, 7
      %v3879 = vsub.s32 %v3876, %v3878
      %v3880 = vrot.slane %v3872, %v3879
      %3882 = vset.pattern.permute.xlu0 0
      %3883 = vperm.xlu0 %3882, %v640
      %v3884 = vpop.permute.xlu0 %3883
      %v3887 = vunpack.c.l.s4 839922192
      %v3888 = vunpack.c.0.s8 %v3887
      %v3889 = vlaneseq
      %v3890 = vshrl.u32 %v3889, 7
      %v3891 = vsub.s32 %v3888, %v3890
      %v3892 = vrot.slane %v3884, %v3891
      %3894 = vset.pattern.permute.xlu0 0
      %3895 = vperm.xlu0 %3894, %v641
      %v3896 = vpop.permute.xlu0 %3895
      %v3899 = vunpack.c.l.s4 839922192
      %v3900 = vunpack.c.0.s8 %v3899
      %v3901 = vlaneseq
      %v3902 = vshrl.u32 %v3901, 7
      %v3903 = vsub.s32 %v3900, %v3902
      %v3904 = vrot.slane %v3896, %v3903
      %3906 = vset.pattern.permute.xlu0 0
      %3907 = vperm.xlu0 %3906, %v642
      %v3908 = vpop.permute.xlu0 %3907
      %v3911 = vunpack.c.l.s4 839922192
      %v3912 = vunpack.c.0.s8 %v3911
      %v3913 = vlaneseq
      %v3914 = vshrl.u32 %v3913, 7
      %v3915 = vsub.s32 %v3912, %v3914
      %v3916 = vrot.slane %v3908, %v3915
      %3918 = vset.pattern.permute.xlu0 0
      %3919 = vperm.xlu0 %3918, %v643
      %v3920 = vpop.permute.xlu0 %3919
      %v3923 = vunpack.c.l.s4 839922192
      %v3924 = vunpack.c.0.s8 %v3923
      %v3925 = vlaneseq
      %v3926 = vshrl.u32 %v3925, 7
      %v3927 = vsub.s32 %v3924, %v3926
      %v3928 = vrot.slane %v3920, %v3927
      %3930 = vset.pattern.permute.xlu0 0
      %3931 = vperm.xlu0 %3930, %v644
      %v3932 = vpop.permute.xlu0 %3931
      %v3935 = vunpack.c.l.s4 839922192
      %v3936 = vunpack.c.0.s8 %v3935
      %v3937 = vlaneseq
      %v3938 = vshrl.u32 %v3937, 7
      %v3939 = vsub.s32 %v3936, %v3938
      %v3940 = vrot.slane %v3932, %v3939
      %3942 = vset.pattern.permute.xlu0 0
      %3943 = vperm.xlu0 %3942, %v645
      %v3944 = vpop.permute.xlu0 %3943
      %v3947 = vunpack.c.l.s4 839922192
      %v3948 = vunpack.c.0.s8 %v3947
      %v3949 = vlaneseq
      %v3950 = vshrl.u32 %v3949, 7
      %v3951 = vsub.s32 %v3948, %v3950
      %v3952 = vrot.slane %v3944, %v3951
      %3954 = vset.pattern.permute.xlu0 0
      %3955 = vperm.xlu0 %3954, %v646
      %v3956 = vpop.permute.xlu0 %3955
      %v3959 = vunpack.c.l.s4 839922192
      %v3960 = vunpack.c.0.s8 %v3959
      %v3961 = vlaneseq
      %v3962 = vshrl.u32 %v3961, 7
      %v3963 = vsub.s32 %v3960, %v3962
      %v3964 = vrot.slane %v3956, %v3963
      %3966 = vset.pattern.permute.xlu0 0
      %3967 = vperm.xlu0 %3966, %v647
      %v3968 = vpop.permute.xlu0 %3967
      %v3971 = vunpack.c.l.s4 839922192
      %v3972 = vunpack.c.0.s8 %v3971
      %v3973 = vlaneseq
      %v3974 = vshrl.u32 %v3973, 7
      %v3975 = vsub.s32 %v3972, %v3974
      %v3976 = vrot.slane %v3968, %v3975
      %3978 = vset.pattern.permute.xlu0 0
      %3979 = vperm.xlu0 %3978, %v648
      %v3980 = vpop.permute.xlu0 %3979
      %v3983 = vunpack.c.l.s4 839922192
      %v3984 = vunpack.c.0.s8 %v3983
      %v3985 = vlaneseq
      %v3986 = vshrl.u32 %v3985, 7
      %v3987 = vsub.s32 %v3984, %v3986
      %v3988 = vrot.slane %v3980, %v3987
      %3990 = vset.pattern.permute.xlu0 0
      %3991 = vperm.xlu0 %3990, %v649
      %v3992 = vpop.permute.xlu0 %3991
      %v3995 = vunpack.c.l.s4 839922192
      %v3996 = vunpack.c.0.s8 %v3995
      %v3997 = vlaneseq
      %v3998 = vshrl.u32 %v3997, 7
      %v3999 = vsub.s32 %v3996, %v3998
      %v4000 = vrot.slane %v3992, %v3999
      %4002 = vset.pattern.permute.xlu0 0
      %4003 = vperm.xlu0 %4002, %v650
      %v4004 = vpop.permute.xlu0 %4003
      %v4007 = vunpack.c.l.s4 839922192
      %v4008 = vunpack.c.0.s8 %v4007
      %v4009 = vlaneseq
      %v4010 = vshrl.u32 %v4009, 7
      %v4011 = vsub.s32 %v4008, %v4010
      %v4012 = vrot.slane %v4004, %v4011
      %4014 = vset.pattern.permute.xlu0 0
      %4015 = vperm.xlu0 %4014, %v651
      %v4016 = vpop.permute.xlu0 %4015
      %v4019 = vunpack.c.l.s4 839922192
      %v4020 = vunpack.c.0.s8 %v4019
      %v4021 = vlaneseq
      %v4022 = vshrl.u32 %v4021, 7
      %v4023 = vsub.s32 %v4020, %v4022
      %v4024 = vrot.slane %v4016, %v4023
      %4026 = vset.pattern.permute.xlu0 0
      %4027 = vperm.xlu0 %4026, %v652
      %v4028 = vpop.permute.xlu0 %4027
      %v4031 = vunpack.c.l.s4 839922192
      %v4032 = vunpack.c.0.s8 %v4031
      %v4033 = vlaneseq
      %v4034 = vshrl.u32 %v4033, 7
      %v4035 = vsub.s32 %v4032, %v4034
      %v4036 = vrot.slane %v4028, %v4035
      %4038 = vset.pattern.permute.xlu0 0
      %4039 = vperm.xlu0 %4038, %v653
      %v4040 = vpop.permute.xlu0 %4039
      %v4043 = vunpack.c.l.s4 839922192
      %v4044 = vunpack.c.0.s8 %v4043
      %v4045 = vlaneseq
      %v4046 = vshrl.u32 %v4045, 7
      %v4047 = vsub.s32 %v4044, %v4046
      %v4048 = vrot.slane %v4040, %v4047
      %4050 = vset.pattern.permute.xlu0 0
      %4051 = vperm.xlu0 %4050, %v654
      %v4052 = vpop.permute.xlu0 %4051
      %v4055 = vunpack.c.l.s4 839922192
      %v4056 = vunpack.c.0.s8 %v4055
      %v4057 = vlaneseq
      %v4058 = vshrl.u32 %v4057, 7
      %v4059 = vsub.s32 %v4056, %v4058
      %v4060 = vrot.slane %v4052, %v4059
      %4062 = vset.pattern.permute.xlu0 0
      %4063 = vperm.xlu0 %4062, %v655
      %v4064 = vpop.permute.xlu0 %4063
      %v4067 = vunpack.c.l.s4 839922192
      %v4068 = vunpack.c.0.s8 %v4067
      %v4069 = vlaneseq
      %v4070 = vshrl.u32 %v4069, 7
      %v4071 = vsub.s32 %v4068, %v4070
      %v4072 = vrot.slane %v4064, %v4071
      %4074 = vset.pattern.permute.xlu0 0
      %4075 = vperm.xlu0 %4074, %v656
      %v4076 = vpop.permute.xlu0 %4075
      %v4079 = vunpack.c.l.s4 839922192
      %v4080 = vunpack.c.0.s8 %v4079
      %v4081 = vlaneseq
      %v4082 = vshrl.u32 %v4081, 7
      %v4083 = vsub.s32 %v4080, %v4082
      %v4084 = vrot.slane %v4076, %v4083
      %4086 = vset.pattern.permute.xlu0 0
      %4087 = vperm.xlu0 %4086, %v657
      %v4088 = vpop.permute.xlu0 %4087
      %v4091 = vunpack.c.l.s4 839922192
      %v4092 = vunpack.c.0.s8 %v4091
      %v4093 = vlaneseq
      %v4094 = vshrl.u32 %v4093, 7
      %v4095 = vsub.s32 %v4092, %v4094
      %v4096 = vrot.slane %v4088, %v4095
      %4098 = vset.pattern.permute.xlu0 0
      %4099 = vperm.xlu0 %4098, %v658
      %v4100 = vpop.permute.xlu0 %4099
      %v4103 = vunpack.c.l.s4 839922192
      %v4104 = vunpack.c.0.s8 %v4103
      %v4105 = vlaneseq
      %v4106 = vshrl.u32 %v4105, 7
      %v4107 = vsub.s32 %v4104, %v4106
      %v4108 = vrot.slane %v4100, %v4107
      %4110 = vset.pattern.permute.xlu0 0
      %4111 = vperm.xlu0 %4110, %v659
      %v4112 = vpop.permute.xlu0 %4111
      %v4115 = vunpack.c.l.s4 839922192
      %v4116 = vunpack.c.0.s8 %v4115
      %v4117 = vlaneseq
      %v4118 = vshrl.u32 %v4117, 7
      %v4119 = vsub.s32 %v4116, %v4118
      %v4120 = vrot.slane %v4112, %v4119
      %v4153 = vunpack.c.l.b16 %v3748
      %v4154 = vunpack.c.l.b16 %v3760
      %v4155 = vunpack.c.l.b16 %v3772
      %v4156 = vunpack.c.l.b16 %v3784
      %v4157 = vunpack.c.l.b16 %v3796
      %v4158 = vunpack.c.l.b16 %v3808
      %v4159 = vunpack.c.l.b16 %v3820
      %v4160 = vunpack.c.l.b16 %v3832
      %v4161 = vunpack.c.l.b16 %v3844
      %v4162 = vunpack.c.l.b16 %v3856
      %v4163 = vunpack.c.l.b16 %v3868
      %v4164 = vunpack.c.l.b16 %v3880
      %v4165 = vunpack.c.l.b16 %v3892
      %v4166 = vunpack.c.l.b16 %v3904
      %v4167 = vunpack.c.l.b16 %v3916
      %v4168 = vunpack.c.l.b16 %v3928
      %v4169 = vunpack.c.l.b16 %v3940
      %v4170 = vunpack.c.l.b16 %v3952
      %v4171 = vunpack.c.l.b16 %v3964
      %v4172 = vunpack.c.l.b16 %v3976
      %v4173 = vunpack.c.l.b16 %v3988
      %v4174 = vunpack.c.l.b16 %v4000
      %v4175 = vunpack.c.l.b16 %v4012
      %v4176 = vunpack.c.l.b16 %v4024
      %v4177 = vunpack.c.l.b16 %v4036
      %v4178 = vunpack.c.l.b16 %v4048
      %v4179 = vunpack.c.l.b16 %v4060
      %v4180 = vunpack.c.l.b16 %v4072
      %v4181 = vunpack.c.l.b16 %v4084
      %v4182 = vunpack.c.l.b16 %v4096
      %v4183 = vunpack.c.l.b16 %v4108
      %v4184 = vunpack.c.l.b16 %v4120
      %v4185 = vpack.c.b16 %v4154, %v4153
      %v4186 = vpack.c.b16 %v4156, %v4155
      %v4187 = vpack.c.b16 %v4158, %v4157
      %v4188 = vpack.c.b16 %v4160, %v4159
      %v4189 = vpack.c.b16 %v4162, %v4161
      %v4190 = vpack.c.b16 %v4164, %v4163
      %v4191 = vpack.c.b16 %v4166, %v4165
      %v4192 = vpack.c.b16 %v4168, %v4167
      %v4193 = vpack.c.b16 %v4170, %v4169
      %v4194 = vpack.c.b16 %v4172, %v4171
      %v4195 = vpack.c.b16 %v4174, %v4173
      %v4196 = vpack.c.b16 %v4176, %v4175
      %v4197 = vpack.c.b16 %v4178, %v4177
      %v4198 = vpack.c.b16 %v4180, %v4179
      %v4199 = vpack.c.b16 %v4182, %v4181
      %v4200 = vpack.c.b16 %v4184, %v4183
      %vm4201 = vsmask.f32 256
      %v4203 = vshrl.u32 %v4185, 16
      %v4205 = vrot.slane %v4203, 7
      %v4206 = vshll.u32 %v4185, 16
      %v4208 = vor.u32 %v4205, %v4206
      %v4210 = vshrl.u32 %v4186, 16
      %v4212 = vrot.slane %v4210, 7
      %v4213 = vshll.u32 %v4186, 16
      %v4215 = vor.u32 %v4212, %v4213
      %v4216 = vsel %vm4201, %v4205, %v4215
      %v4218 = vshrl.u32 %v4187, 16
      %v4220 = vrot.slane %v4218, 7
      %v4221 = vshll.u32 %v4187, 16
      %v4223 = vor.u32 %v4220, %v4221
      %v4224 = vsel %vm4201, %v4212, %v4223
      %v4226 = vshrl.u32 %v4188, 16
      %v4228 = vrot.slane %v4226, 7
      %v4229 = vshll.u32 %v4188, 16
      %v4231 = vor.u32 %v4228, %v4229
      %v4232 = vsel %vm4201, %v4220, %v4231
      %v4234 = vshrl.u32 %v4189, 16
      %v4236 = vrot.slane %v4234, 7
      %v4237 = vshll.u32 %v4189, 16
      %v4239 = vor.u32 %v4236, %v4237
      %v4240 = vsel %vm4201, %v4228, %v4239
      %v4242 = vshrl.u32 %v4190, 16
      %v4244 = vrot.slane %v4242, 7
      %v4245 = vshll.u32 %v4190, 16
      %v4247 = vor.u32 %v4244, %v4245
      %v4248 = vsel %vm4201, %v4236, %v4247
      %v4250 = vshrl.u32 %v4191, 16
      %v4252 = vrot.slane %v4250, 7
      %v4253 = vshll.u32 %v4191, 16
      %v4255 = vor.u32 %v4252, %v4253
      %v4256 = vsel %vm4201, %v4244, %v4255
      %v4258 = vshrl.u32 %v4192, 16
      %v4260 = vrot.slane %v4258, 7
      %v4261 = vshll.u32 %v4192, 16
      %v4263 = vor.u32 %v4260, %v4261
      %v4264 = vsel %vm4201, %v4252, %v4263
      %v4266 = vshrl.u32 %v4193, 16
      %v4268 = vrot.slane %v4266, 7
      %v4269 = vshll.u32 %v4193, 16
      %v4271 = vor.u32 %v4268, %v4269
      %v4272 = vsel %vm4201, %v4260, %v4271
      %v4274 = vshrl.u32 %v4194, 16
      %v4276 = vrot.slane %v4274, 7
      %v4277 = vshll.u32 %v4194, 16
      %v4279 = vor.u32 %v4276, %v4277
      %v4280 = vsel %vm4201, %v4268, %v4279
      %v4282 = vshrl.u32 %v4195, 16
      %v4284 = vrot.slane %v4282, 7
      %v4285 = vshll.u32 %v4195, 16
      %v4287 = vor.u32 %v4284, %v4285
      %v4288 = vsel %vm4201, %v4276, %v4287
      %v4290 = vshrl.u32 %v4196, 16
      %v4292 = vrot.slane %v4290, 7
      %v4293 = vshll.u32 %v4196, 16
      %v4295 = vor.u32 %v4292, %v4293
      %v4296 = vsel %vm4201, %v4284, %v4295
      %v4298 = vshrl.u32 %v4197, 16
      %v4300 = vrot.slane %v4298, 7
      %v4301 = vshll.u32 %v4197, 16
      %v4303 = vor.u32 %v4300, %v4301
      %v4304 = vsel %vm4201, %v4292, %v4303
      %v4306 = vshrl.u32 %v4198, 16
      %v4308 = vrot.slane %v4306, 7
      %v4309 = vshll.u32 %v4198, 16
      %v4311 = vor.u32 %v4308, %v4309
      %v4312 = vsel %vm4201, %v4300, %v4311
      %v4314 = vshrl.u32 %v4199, 16
      %v4316 = vrot.slane %v4314, 7
      %v4317 = vshll.u32 %v4199, 16
      %v4319 = vor.u32 %v4316, %v4317
      %v4320 = vsel %vm4201, %v4308, %v4319
      %v4322 = vshrl.u32 %v4200, 16
      %v4324 = vrot.slane %v4322, 7
      %v4325 = vshll.u32 %v4200, 16
      %v4327 = vor.u32 %v4324, %v4325
      %v4328 = vsel %vm4201, %v4316, %v4327
      %v4346 = vmul.bf16 %v2486, %v4208
      %v4347 = vmul.bf16 %v1213, %v4216
      %v4348 = vmul.bf16 %v1214, %v4224
      %v4349 = vmul.bf16 %v1215, %v4232
      %v4350 = vmul.bf16 %v1216, %v4240
      %v4351 = vmul.bf16 %v1217, %v4248
      %v4352 = vmul.bf16 %v1218, %v4256
      %v4353 = vmul.bf16 %v1219, %v4264
      %v4354 = vmul.bf16 %v1220, %v4272
      %v4355 = vmul.bf16 %v1221, %v4280
      %v4356 = vmul.bf16 %v1222, %v4288
      %v4357 = vmul.bf16 %v1223, %v4296
      %v4358 = vmul.bf16 %v1224, %v4304
      %v4359 = vmul.bf16 %v1225, %v4312
      %v4360 = vmul.bf16 %v1226, %v4320
      %v4361 = vmul.bf16 %v1227, %v4328
      %v4362 = vmul.bf16 %v3736, %v4324
      %s4363 = scalar_lea.vmem %s4, 64
      %v4364 = vld [vmem:[%s4363] sm:$0xf]
      %v4365 = vld [vmem:[%s4363 + $0x4] sm:$0xf]
      %v4366 = vld [vmem:[%s4363 + $0x8] sm:$0xf]
      %v4367 = vld [vmem:[%s4363 + $0xc] sm:$0xf]
      %v4368 = vld [vmem:[%s4363 + $0x10] sm:$0xf]
      %v4369 = vld [vmem:[%s4363 + $0x14] sm:$0xf]
      %v4370 = vld [vmem:[%s4363 + $0x18] sm:$0xf]
      %v4371 = vld [vmem:[%s4363 + $0x1c] sm:$0xf]
      %vm4372 = vsmask.f32 7424
      %v4374 = vshrl.u32 %v4346, 16
      %v4376 = vshll.u32 %v4346, 16
      %v4378 = vrot.slane %v4376, 1
      %v4379 = vor.u32 %v4374, %v4378
      %v4381 = vshll.u32 %v4347, 16
      %v4383 = vrot.slane %v4381, 1
      %v4384 = vsel %vm4372, %v4379, %v4383
      %v4385 = vshrl.u32 %v4347, 16
      %v4387 = vor.u32 %v4385, %v4383
      %v4389 = vshll.u32 %v4348, 16
      %v4391 = vrot.slane %v4389, 1
      %v4392 = vsel %vm4372, %v4387, %v4391
      %v4393 = vshrl.u32 %v4348, 16
      %v4395 = vor.u32 %v4393, %v4391
      %v4397 = vshll.u32 %v4349, 16
      %v4399 = vrot.slane %v4397, 1
      %v4400 = vsel %vm4372, %v4395, %v4399
      %v4401 = vshrl.u32 %v4349, 16
      %v4403 = vor.u32 %v4401, %v4399
      %v4405 = vshll.u32 %v4350, 16
      %v4407 = vrot.slane %v4405, 1
      %v4408 = vsel %vm4372, %v4403, %v4407
      %v4409 = vshrl.u32 %v4350, 16
      %v4411 = vor.u32 %v4409, %v4407
      %v4413 = vshll.u32 %v4351, 16
      %v4415 = vrot.slane %v4413, 1
      %v4416 = vsel %vm4372, %v4411, %v4415
      %v4417 = vshrl.u32 %v4351, 16
      %v4419 = vor.u32 %v4417, %v4415
      %v4421 = vshll.u32 %v4352, 16
      %v4423 = vrot.slane %v4421, 1
      %v4424 = vsel %vm4372, %v4419, %v4423
      %v4425 = vshrl.u32 %v4352, 16
      %v4427 = vor.u32 %v4425, %v4423
      %v4429 = vshll.u32 %v4353, 16
      %v4431 = vrot.slane %v4429, 1
      %v4432 = vsel %vm4372, %v4427, %v4431
      %v4433 = vshrl.u32 %v4353, 16
      %v4435 = vor.u32 %v4433, %v4431
      %v4437 = vshll.u32 %v4354, 16
      %v4439 = vrot.slane %v4437, 1
      %v4440 = vsel %vm4372, %v4435, %v4439
      %v4441 = vshrl.u32 %v4354, 16
      %v4443 = vor.u32 %v4441, %v4439
      %v4445 = vshll.u32 %v4355, 16
      %v4447 = vrot.slane %v4445, 1
      %v4448 = vsel %vm4372, %v4443, %v4447
      %v4449 = vshrl.u32 %v4355, 16
      %v4451 = vor.u32 %v4449, %v4447
      %v4453 = vshll.u32 %v4356, 16
      %v4455 = vrot.slane %v4453, 1
      %v4456 = vsel %vm4372, %v4451, %v4455
      %v4457 = vshrl.u32 %v4356, 16
      %v4459 = vor.u32 %v4457, %v4455
      %v4461 = vshll.u32 %v4357, 16
      %v4463 = vrot.slane %v4461, 1
      %v4464 = vsel %vm4372, %v4459, %v4463
      %v4465 = vshrl.u32 %v4357, 16
      %v4467 = vor.u32 %v4465, %v4463
      %v4469 = vshll.u32 %v4358, 16
      %v4471 = vrot.slane %v4469, 1
      %v4472 = vsel %vm4372, %v4467, %v4471
      %v4473 = vshrl.u32 %v4358, 16
      %v4475 = vor.u32 %v4473, %v4471
      %v4477 = vshll.u32 %v4359, 16
      %v4479 = vrot.slane %v4477, 1
      %v4480 = vsel %vm4372, %v4475, %v4479
      %v4481 = vshrl.u32 %v4359, 16
      %v4483 = vor.u32 %v4481, %v4479
      %v4485 = vshll.u32 %v4360, 16
      %v4487 = vrot.slane %v4485, 1
      %v4488 = vsel %vm4372, %v4483, %v4487
      %v4489 = vshrl.u32 %v4360, 16
      %v4491 = vor.u32 %v4489, %v4487
      %v4493 = vshll.u32 %v4361, 16
      %v4495 = vrot.slane %v4493, 1
      %v4496 = vsel %vm4372, %v4491, %v4495
      %v4497 = vshrl.u32 %v4361, 16
      %v4499 = vor.u32 %v4497, %v4495
      %v4501 = vshll.u32 %v4362, 16
      %v4503 = vrot.slane %v4501, 1
      %v4504 = vsel %vm4372, %v4499, %v4503
      %v4513 = vunpack.c.l.b16 %v4364
      %v4514 = vunpack.c.l.b16 %v4365
      %v4515 = vunpack.c.l.b16 %v4366
      %v4516 = vunpack.c.l.b16 %v4367
      %v4517 = vunpack.c.l.b16 %v4368
      %v4518 = vunpack.c.l.b16 %v4369
      %v4519 = vunpack.c.l.b16 %v4370
      %v4520 = vunpack.c.l.b16 %v4371
      %v4521 = vpack.c.b16 %v4514, %v4513
      %v4522 = vpack.c.b16 %v4516, %v4515
      %v4523 = vpack.c.b16 %v4518, %v4517
      %v4524 = vpack.c.b16 %v4520, %v4519
      %v4530 = vsel %vm779, %v4384, 0
      %v4533 = vsel %vm779, %v4392, 0
      %v4536 = vsel %vm779, %v4400, 0
      %v4539 = vsel %vm779, %v4408, 0
      %v4542 = vsel %vm779, %v4416, 0
      %v4545 = vsel %vm779, %v4424, 0
      %v4548 = vsel %vm779, %v4432, 0
      %v4551 = vsel %vm779, %v4440, 0
      %v4554 = vsel %vm779, %v4448, 0
      %v4557 = vsel %vm779, %v4456, 0
      %v4560 = vsel %vm779, %v4464, 0
      %v4563 = vsel %vm779, %v4472, 0
      %v4566 = vsel %vm779, %v4480, 0
      %v4569 = vsel %vm779, %v4488, 0
      %v4572 = vsel %vm779, %v4496, 0
      %v4575 = vsel %vm779, %v4504, 0
      %4577 = vmatprep.subr.bf16.mxu0 0
      %4578 = vmatpush1.bf16.msra.mxu0 %v4521
      %4579 = vmatprep.subr.bf16.mxu0 0
      %4580 = vmatpush1.bf16.msra.mxu0 %v4522
      %4581 = vmatprep.subr.bf16.mxu0 0
      %4582 = vmatpush1.bf16.msra.mxu0 %v4523
      %4583 = vmatprep.subr.bf16.mxu0 0
      %4584 = vmatpush1.bf16.msra.mxu0 %v4524
      %4585 = vmatprep.subr.bf16.mxu0 0
      %4586 = vmatpush1.bf16.msra.mxu0 0
      %4587 = vmatprep.subr.bf16.mxu0 0
      %4588 = vmatpush1.bf16.msra.mxu0 0
      %4589 = vmatprep.subr.bf16.mxu0 0
      %4590 = vmatpush1.bf16.msra.mxu0 0
      %4591 = vmatprep.subr.bf16.mxu0 0
      %4592 = vmatpush1.bf16.msra.mxu0 0
      %4593 = vmatprep.subr.bf16.mxu0 0
      %4594 = vmatpush1.bf16.msra.mxu0 0
      %4595 = vmatprep.subr.bf16.mxu0 0
      %4596 = vmatpush1.bf16.msra.mxu0 0
      %4597 = vmatprep.subr.bf16.mxu0 0
      %4598 = vmatpush1.bf16.msra.mxu0 0
      %4599 = vmatprep.subr.bf16.mxu0 0
      %4600 = vmatpush1.bf16.msra.mxu0 0
      %4601 = vmatprep.subr.bf16.mxu0 0
      %4602 = vmatpush1.bf16.msra.mxu0 0
      %4603 = vmatprep.subr.bf16.mxu0 0
      %4604 = vmatpush1.bf16.msra.mxu0 0
      %4605 = vmatprep.subr.bf16.mxu0 0
      %4606 = vmatpush1.bf16.msra.mxu0 0
      %4607 = vmatprep.subr.bf16.mxu0 0
      %4608 = vmatpush1.bf16.msra.mxu0 0
      %4609 = vmatprep.mubr.bf16.mxu0 0
      %4610 = vmatmul.mubr.bf16.gmra.mrb[0].mxu0 %v4530
      %v4611 = vpop.f32.mrb[0].mxu0
      %v4612 = vadd.f32 0.0, %v4611
      %v4613 = vpop.f32.mrb[0].mxu0
      %v4614 = vpop.f32.mrb[0].mxu0
      %v4615 = vadd.f32 0.0, %v4614
      %v4616 = vpop.f32.mrb[0].mxu0
      %4617 = vmatprep.mubr.bf16.mxu0 0
      %4618 = vmatmul.mubr.bf16.gmra.mrb[0].mxu0 %v4533
      %v4619 = vpop.f32.mrb[0].mxu0
      %v4620 = vadd.f32 0.0, %v4619
      %v4621 = vpop.f32.mrb[0].mxu0
      %v4622 = vpop.f32.mrb[0].mxu0
      %v4623 = vadd.f32 0.0, %v4622
      %v4624 = vpop.f32.mrb[0].mxu0
      %4625 = vmatprep.mubr.bf16.mxu0 0
      %4626 = vmatmul.mubr.bf16.gmra.mrb[0].mxu0 %v4536
      %v4627 = vpop.f32.mrb[0].mxu0
      %v4628 = vadd.f32 0.0, %v4627
      %v4629 = vpop.f32.mrb[0].mxu0
      %v4630 = vpop.f32.mrb[0].mxu0
      %v4631 = vadd.f32 0.0, %v4630
      %v4632 = vpop.f32.mrb[0].mxu0
      %4633 = vmatprep.mubr.bf16.mxu0 0
      %4634 = vmatmul.mubr.bf16.gmra.mrb[0].mxu0 %v4539
      %v4635 = vpop.f32.mrb[0].mxu0
      %v4636 = vadd.f32 0.0, %v4635
      %v4637 = vpop.f32.mrb[0].mxu0
      %v4638 = vpop.f32.mrb[0].mxu0
      %v4639 = vadd.f32 0.0, %v4638
      %v4640 = vpop.f32.mrb[0].mxu0
      %4641 = vmatprep.mubr.bf16.mxu0 0
      %4642 = vmatmul.mubr.bf16.gmra.mrb[0].mxu0 %v4542
      %v4643 = vpop.f32.mrb[0].mxu0
      %v4644 = vadd.f32 0.0, %v4643
      %v4645 = vpop.f32.mrb[0].mxu0
      %v4646 = vpop.f32.mrb[0].mxu0
      %v4647 = vadd.f32 0.0, %v4646
      %v4648 = vpop.f32.mrb[0].mxu0
      %4649 = vmatprep.mubr.bf16.mxu0 0
      %4650 = vmatmul.mubr.bf16.gmra.mrb[0].mxu0 %v4545
      %v4651 = vpop.f32.mrb[0].mxu0
      %v4652 = vadd.f32 0.0, %v4651
      %v4653 = vpop.f32.mrb[0].mxu0
      %v4654 = vpop.f32.mrb[0].mxu0
      %v4655 = vadd.f32 0.0, %v4654
      %v4656 = vpop.f32.mrb[0].mxu0
      %4657 = vmatprep.mubr.bf16.mxu0 0
      %4658 = vmatmul.mubr.bf16.gmra.mrb[0].mxu0 %v4548
      %v4659 = vpop.f32.mrb[0].mxu0
      %v4660 = vadd.f32 0.0, %v4659
      %v4661 = vpop.f32.mrb[0].mxu0
      %v4662 = vpop.f32.mrb[0].mxu0
      %v4663 = vadd.f32 0.0, %v4662
      %v4664 = vpop.f32.mrb[0].mxu0
      %4665 = vmatprep.mubr.bf16.mxu0 0
      %4666 = vmatmul.mubr.bf16.gmra.mrb[0].mxu0 %v4551
      %v4667 = vpop.f32.mrb[0].mxu0
      %v4668 = vadd.f32 0.0, %v4667
      %v4669 = vpop.f32.mrb[0].mxu0
      %v4670 = vpop.f32.mrb[0].mxu0
      %v4671 = vadd.f32 0.0, %v4670
      %v4672 = vpop.f32.mrb[0].mxu0
      %4673 = vmatprep.mubr.bf16.mxu0 0
      %4674 = vmatmul.mubr.bf16.gmra.mrb[0].mxu0 %v4554
      %v4675 = vpop.f32.mrb[0].mxu0
      %v4676 = vadd.f32 0.0, %v4675
      %v4677 = vpop.f32.mrb[0].mxu0
      %v4678 = vpop.f32.mrb[0].mxu0
      %v4679 = vadd.f32 0.0, %v4678
      %v4680 = vpop.f32.mrb[0].mxu0
      %4681 = vmatprep.mubr.bf16.mxu0 0
      %4682 = vmatmul.mubr.bf16.gmra.mrb[0].mxu0 %v4557
      %v4683 = vpop.f32.mrb[0].mxu0
      %v4684 = vadd.f32 0.0, %v4683
      %v4685 = vpop.f32.mrb[0].mxu0
      %v4686 = vpop.f32.mrb[0].mxu0
      %v4687 = vadd.f32 0.0, %v4686
      %v4688 = vpop.f32.mrb[0].mxu0
      %4689 = vmatprep.mubr.bf16.mxu0 0
      %4690 = vmatmul.mubr.bf16.gmra.mrb[0].mxu0 %v4560
      %v4691 = vpop.f32.mrb[0].mxu0
      %v4692 = vadd.f32 0.0, %v4691
      %v4693 = vpop.f32.mrb[0].mxu0
      %v4694 = vpop.f32.mrb[0].mxu0
      %v4695 = vadd.f32 0.0, %v4694
      %v4696 = vpop.f32.mrb[0].mxu0
      %4697 = vmatprep.mubr.bf16.mxu0 0
      %4698 = vmatmul.mubr.bf16.gmra.mrb[0].mxu0 %v4563
      %v4699 = vpop.f32.mrb[0].mxu0
      %v4700 = vadd.f32 0.0, %v4699
      %v4701 = vpop.f32.mrb[0].mxu0
      %v4702 = vpop.f32.mrb[0].mxu0
      %v4703 = vadd.f32 0.0, %v4702
      %v4704 = vpop.f32.mrb[0].mxu0
      %4705 = vmatprep.mubr.bf16.mxu0 0
      %4706 = vmatmul.mubr.bf16.gmra.mrb[0].mxu0 %v4566
      %v4707 = vpop.f32.mrb[0].mxu0
      %v4708 = vadd.f32 0.0, %v4707
      %v4709 = vpop.f32.mrb[0].mxu0
      %v4710 = vpop.f32.mrb[0].mxu0
      %v4711 = vadd.f32 0.0, %v4710
      %v4712 = vpop.f32.mrb[0].mxu0
      %4713 = vmatprep.mubr.bf16.mxu0 0
      %4714 = vmatmul.mubr.bf16.gmra.mrb[0].mxu0 %v4569
      %v4715 = vpop.f32.mrb[0].mxu0
      %v4716 = vadd.f32 0.0, %v4715
      %v4717 = vpop.f32.mrb[0].mxu0
      %v4718 = vpop.f32.mrb[0].mxu0
      %v4719 = vadd.f32 0.0, %v4718
      %v4720 = vpop.f32.mrb[0].mxu0
      %4721 = vmatprep.mubr.bf16.mxu0 0
      %4722 = vmatmul.mubr.bf16.gmra.mrb[0].mxu0 %v4572
      %v4723 = vpop.f32.mrb[0].mxu0
      %v4724 = vadd.f32 0.0, %v4723
      %v4725 = vpop.f32.mrb[0].mxu0
      %v4726 = vpop.f32.mrb[0].mxu0
      %v4727 = vadd.f32 0.0, %v4726
      %v4728 = vpop.f32.mrb[0].mxu0
      %4729 = vmatprep.mubr.bf16.mxu0 0
      %4730 = vmatmul.mubr.bf16.gmra.mrb[0].mxu0 %v4575
      %v4731 = vpop.f32.mrb[0].mxu0
      %v4732 = vadd.f32 0.0, %v4731
      %v4733 = vpop.f32.mrb[0].mxu0
      %v4734 = vpop.f32.mrb[0].mxu0
      %v4735 = vadd.f32 0.0, %v4734
      %v4736 = vpop.f32.mrb[0].mxu0
      %4737 = vdwg.mxu0
      %v4738 = vadd.f32 %v3610, %v4612
      %v4739 = vadd.f32 %v3613, %v4615
      %v4740 = vadd.f32 %v3618, %v4620
      %v4741 = vadd.f32 %v3621, %v4623
      %v4742 = vadd.f32 %v3626, %v4628
      %v4743 = vadd.f32 %v3629, %v4631
      %v4744 = vadd.f32 %v3634, %v4636
      %v4745 = vadd.f32 %v3637, %v4639
      %v4746 = vadd.f32 %v3642, %v4644
      %v4747 = vadd.f32 %v3645, %v4647
      %v4748 = vadd.f32 %v3650, %v4652
      %v4749 = vadd.f32 %v3653, %v4655
      %v4750 = vadd.f32 %v3658, %v4660
      %v4751 = vadd.f32 %v3661, %v4663
      %v4752 = vadd.f32 %v3666, %v4668
      %v4753 = vadd.f32 %v3669, %v4671
      %v4754 = vadd.f32 %v3674, %v4676
      %v4755 = vadd.f32 %v3677, %v4679
      %v4756 = vadd.f32 %v3682, %v4684
      %v4757 = vadd.f32 %v3685, %v4687
      %v4758 = vadd.f32 %v3690, %v4692
      %v4759 = vadd.f32 %v3693, %v4695
      %v4760 = vadd.f32 %v3698, %v4700
      %v4761 = vadd.f32 %v3701, %v4703
      %v4762 = vadd.f32 %v3706, %v4708
      %v4763 = vadd.f32 %v3709, %v4711
      %v4764 = vadd.f32 %v3714, %v4716
      %v4765 = vadd.f32 %v3717, %v4719
      %v4766 = vadd.f32 %v3722, %v4724
      %v4767 = vadd.f32 %v3725, %v4727
      %v4768 = vadd.f32 %v3730, %v4732
      %v4769 = vadd.f32 %v3733, %v4735
      %v4770 = vpack.c.bf16 %v1211, %v1210
      %v4771 = vpack.c.bf16 %v1212, %v1212
      %v4772 = vmul.bf16 %v2487, %v2975
      %v4773 = vmul.bf16 %v2488, %v2984
      %v4774 = vmul.bf16 %v2489, %v2993
      %v4775 = vmul.bf16 %v2490, %v3002
      %v4776 = vmul.bf16 %v2491, %v3011
      %v4777 = vmul.bf16 %v2492, %v3020
      %v4778 = vmul.bf16 %v2493, %v3029
      %v4779 = vmul.bf16 %v2494, %v3038
      %v4780 = vmul.bf16 %v2495, %v3047
      %v4781 = vmul.bf16 %v2496, %v3056
      %v4782 = vmul.bf16 %v2497, %v3065
      %v4783 = vmul.bf16 %v2498, %v3074
      %v4784 = vmul.bf16 %v2499, %v3083
      %v4785 = vmul.bf16 %v2500, %v3092
      %v4786 = vmul.bf16 %v2501, %v3101
      %v4787 = vmul.bf16 %v4770, %v3110
      %v4788 = vmul.bf16 %v4771, %v3109
      %s4789 = scalar_lea.vmem %s4, 96
      %v4790 = vld [vmem:[%s4789] sm:$0xf]
      %v4791 = vld [vmem:[%s4789 + $0x4] sm:$0xf]
      %v4792 = vld [vmem:[%s4789 + $0x8] sm:$0xf]
      %v4793 = vld [vmem:[%s4789 + $0xc] sm:$0xf]
      %v4794 = vld [vmem:[%s4789 + $0x10] sm:$0xf]
      %v4795 = vld [vmem:[%s4789 + $0x14] sm:$0xf]
      %v4796 = vld [vmem:[%s4789 + $0x18] sm:$0xf]
      %v4797 = vld [vmem:[%s4789 + $0x1c] sm:$0xf]
      %v4799 = vshrl.u32 %v4772, 16
      %v4801 = vrot.slane %v4799, 3
      %v4802 = vshll.u32 %v4772, 16
      %v4804 = vrot.slane %v4802, 4
      %v4805 = vor.u32 %v4801, %v4804
      %v4807 = vshrl.u32 %v4773, 16
      %v4809 = vrot.slane %v4807, 3
      %v4810 = vshll.u32 %v4773, 16
      %v4812 = vrot.slane %v4810, 4
      %v4813 = vor.u32 %v4809, %v4812
      %v4814 = vsel %vm3350, %v4805, %v4813
      %v4816 = vshrl.u32 %v4774, 16
      %v4818 = vrot.slane %v4816, 3
      %v4819 = vshll.u32 %v4774, 16
      %v4821 = vrot.slane %v4819, 4
      %v4822 = vor.u32 %v4818, %v4821
      %v4823 = vsel %vm3350, %v4813, %v4822
      %v4825 = vshrl.u32 %v4775, 16
      %v4827 = vrot.slane %v4825, 3
      %v4828 = vshll.u32 %v4775, 16
      %v4830 = vrot.slane %v4828, 4
      %v4831 = vor.u32 %v4827, %v4830
      %v4832 = vsel %vm3350, %v4822, %v4831
      %v4834 = vshrl.u32 %v4776, 16
      %v4836 = vrot.slane %v4834, 3
      %v4837 = vshll.u32 %v4776, 16
      %v4839 = vrot.slane %v4837, 4
      %v4840 = vor.u32 %v4836, %v4839
      %v4841 = vsel %vm3350, %v4831, %v4840
      %v4843 = vshrl.u32 %v4777, 16
      %v4845 = vrot.slane %v4843, 3
      %v4846 = vshll.u32 %v4777, 16
      %v4848 = vrot.slane %v4846, 4
      %v4849 = vor.u32 %v4845, %v4848
      %v4850 = vsel %vm3350, %v4840, %v4849
      %v4852 = vshrl.u32 %v4778, 16
      %v4854 = vrot.slane %v4852, 3
      %v4855 = vshll.u32 %v4778, 16
      %v4857 = vrot.slane %v4855, 4
      %v4858 = vor.u32 %v4854, %v4857
      %v4859 = vsel %vm3350, %v4849, %v4858
      %v4861 = vshrl.u32 %v4779, 16
      %v4863 = vrot.slane %v4861, 3
      %v4864 = vshll.u32 %v4779, 16
      %v4866 = vrot.slane %v4864, 4
      %v4867 = vor.u32 %v4863, %v4866
      %v4868 = vsel %vm3350, %v4858, %v4867
      %v4870 = vshrl.u32 %v4780, 16
      %v4872 = vrot.slane %v4870, 3
      %v4873 = vshll.u32 %v4780, 16
      %v4875 = vrot.slane %v4873, 4
      %v4876 = vor.u32 %v4872, %v4875
      %v4877 = vsel %vm3350, %v4867, %v4876
      %v4879 = vshrl.u32 %v4781, 16
      %v4881 = vrot.slane %v4879, 3
      %v4882 = vshll.u32 %v4781, 16
      %v4884 = vrot.slane %v4882, 4
      %v4885 = vor.u32 %v4881, %v4884
      %v4886 = vsel %vm3350, %v4876, %v4885
      %v4888 = vshrl.u32 %v4782, 16
      %v4890 = vrot.slane %v4888, 3
      %v4891 = vshll.u32 %v4782, 16
      %v4893 = vrot.slane %v4891, 4
      %v4894 = vor.u32 %v4890, %v4893
      %v4895 = vsel %vm3350, %v4885, %v4894
      %v4897 = vshrl.u32 %v4783, 16
      %v4899 = vrot.slane %v4897, 3
      %v4900 = vshll.u32 %v4783, 16
      %v4902 = vrot.slane %v4900, 4
      %v4903 = vor.u32 %v4899, %v4902
      %v4904 = vsel %vm3350, %v4894, %v4903
      %v4906 = vshrl.u32 %v4784, 16
      %v4908 = vrot.slane %v4906, 3
      %v4909 = vshll.u32 %v4784, 16
      %v4911 = vrot.slane %v4909, 4
      %v4912 = vor.u32 %v4908, %v4911
      %v4913 = vsel %vm3350, %v4903, %v4912
      %v4915 = vshrl.u32 %v4785, 16
      %v4917 = vrot.slane %v4915, 3
      %v4918 = vshll.u32 %v4785, 16
      %v4920 = vrot.slane %v4918, 4
      %v4921 = vor.u32 %v4917, %v4920
      %v4922 = vsel %vm3350, %v4912, %v4921
      %v4924 = vshrl.u32 %v4786, 16
      %v4926 = vrot.slane %v4924, 3
      %v4927 = vshll.u32 %v4786, 16
      %v4929 = vrot.slane %v4927, 4
      %v4930 = vor.u32 %v4926, %v4929
      %v4931 = vsel %vm3350, %v4921, %v4930
      %v4933 = vshrl.u32 %v4787, 16
      %v4935 = vrot.slane %v4933, 3
      %v4936 = vshll.u32 %v4787, 16
      %v4938 = vrot.slane %v4936, 4
      %v4939 = vor.u32 %v4935, %v4938
      %v4940 = vsel %vm3350, %v4930, %v4939
      %v4942 = vshrl.u32 %v4788, 16
      %v4944 = vrot.slane %v4942, 3
      %v4945 = vshll.u32 %v4788, 16
      %v4947 = vrot.slane %v4945, 4
      %v4948 = vor.u32 %v4944, %v4947
      %v4949 = vsel %vm3350, %v4939, %v4948
      %v4958 = vunpack.c.l.b16 %v4790
      %v4959 = vunpack.c.l.b16 %v4791
      %v4960 = vunpack.c.l.b16 %v4792
      %v4961 = vunpack.c.l.b16 %v4793
      %v4962 = vunpack.c.l.b16 %v4794
      %v4963 = vunpack.c.l.b16 %v4795
      %v4964 = vunpack.c.l.b16 %v4796
      %v4965 = vunpack.c.l.b16 %v4797
      %v4966 = vpack.c.b16 %v4959, %v4958
      %v4967 = vpack.c.b16 %v4961, %v4960
      %v4968 = vpack.c.b16 %v4963, %v4962
      %v4969 = vpack.c.b16 %v4965, %v4964
      %v4975 = vsel %vm779, %v4814, 0
      %v4978 = vsel %vm779, %v4823, 0
      %v4981 = vsel %vm779, %v4832, 0
      %v4984 = vsel %vm779, %v4841, 0
      %v4987 = vsel %vm779, %v4850, 0
      %v4990 = vsel %vm779, %v4859, 0
      %v4993 = vsel %vm779, %v4868, 0
      %v4996 = vsel %vm779, %v4877, 0
      %v4999 = vsel %vm779, %v4886, 0
      %v5002 = vsel %vm779, %v4895, 0
      %v5005 = vsel %vm779, %v4904, 0
      %v5008 = vsel %vm779, %v4913, 0
      %v5011 = vsel %vm779, %v4922, 0
      %v5014 = vsel %vm779, %v4931, 0
      %v5017 = vsel %vm779, %v4940, 0
      %v5020 = vsel %vm779, %v4949, 0
      %5022 = vmatprep.subr.bf16.mxu0 0
      %5023 = vmatpush1.bf16.msra.mxu0 %v4966
      %5024 = vmatprep.subr.bf16.mxu0 0
      %5025 = vmatpush1.bf16.msra.mxu0 %v4967
      %5026 = vmatprep.subr.bf16.mxu0 0
      %5027 = vmatpush1.bf16.msra.mxu0 %v4968
      %5028 = vmatprep.subr.bf16.mxu0 0
      %5029 = vmatpush1.bf16.msra.mxu0 %v4969
      %5030 = vmatprep.subr.bf16.mxu0 0
      %5031 = vmatpush1.bf16.msra.mxu0 0
      %5032 = vmatprep.subr.bf16.mxu0 0
      %5033 = vmatpush1.bf16.msra.mxu0 0
      %5034 = vmatprep.subr.bf16.mxu0 0
      %5035 = vmatpush1.bf16.msra.mxu0 0
      %5036 = vmatprep.subr.bf16.mxu0 0
      %5037 = vmatpush1.bf16.msra.mxu0 0
      %5038 = vmatprep.subr.bf16.mxu0 0
      %5039 = vmatpush1.bf16.msra.mxu0 0
      %5040 = vmatprep.subr.bf16.mxu0 0
      %5041 = vmatpush1.bf16.msra.mxu0 0
      %5042 = vmatprep.subr.bf16.mxu0 0
      %5043 = vmatpush1.bf16.msra.mxu0 0
      %5044 = vmatprep.subr.bf16.mxu0 0
      %5045 = vmatpush1.bf16.msra.mxu0 0
      %5046 = vmatprep.subr.bf16.mxu0 0
      %5047 = vmatpush1.bf16.msra.mxu0 0
      %5048 = vmatprep.subr.bf16.mxu0 0
      %5049 = vmatpush1.bf16.msra.mxu0 0
      %5050 = vmatprep.subr.bf16.mxu0 0
      %5051 = vmatpush1.bf16.msra.mxu0 0
      %5052 = vmatprep.subr.bf16.mxu0 0
      %5053 = vmatpush1.bf16.msra.mxu0 0
      %5054 = vmatprep.mubr.bf16.mxu0 0
      %5055 = vmatmul.mubr.bf16.gmra.mrb[0].mxu0 %v4975
      %v5056 = vpop.f32.mrb[0].mxu0
      %v5057 = vadd.f32 0.0, %v5056
      %v5058 = vpop.f32.mrb[0].mxu0
      %v5059 = vpop.f32.mrb[0].mxu0
      %v5060 = vadd.f32 0.0, %v5059
      %v5061 = vpop.f32.mrb[0].mxu0
      %5062 = vmatprep.mubr.bf16.mxu0 0
      %5063 = vmatmul.mubr.bf16.gmra.mrb[0].mxu0 %v4978
      %v5064 = vpop.f32.mrb[0].mxu0
      %v5065 = vadd.f32 0.0, %v5064
      %v5066 = vpop.f32.mrb[0].mxu0
      %v5067 = vpop.f32.mrb[0].mxu0
      %v5068 = vadd.f32 0.0, %v5067
      %v5069 = vpop.f32.mrb[0].mxu0
      %5070 = vmatprep.mubr.bf16.mxu0 0
      %5071 = vmatmul.mubr.bf16.gmra.mrb[0].mxu0 %v4981
      %v5072 = vpop.f32.mrb[0].mxu0
      %v5073 = vadd.f32 0.0, %v5072
      %v5074 = vpop.f32.mrb[0].mxu0
      %v5075 = vpop.f32.mrb[0].mxu0
      %v5076 = vadd.f32 0.0, %v5075
      %v5077 = vpop.f32.mrb[0].mxu0
      %5078 = vmatprep.mubr.bf16.mxu0 0
      %5079 = vmatmul.mubr.bf16.gmra.mrb[0].mxu0 %v4984
      %v5080 = vpop.f32.mrb[0].mxu0
      %v5081 = vadd.f32 0.0, %v5080
      %v5082 = vpop.f32.mrb[0].mxu0
      %v5083 = vpop.f32.mrb[0].mxu0
      %v5084 = vadd.f32 0.0, %v5083
      %v5085 = vpop.f32.mrb[0].mxu0
      %5086 = vmatprep.mubr.bf16.mxu0 0
      %5087 = vmatmul.mubr.bf16.gmra.mrb[0].mxu0 %v4987
      %v5088 = vpop.f32.mrb[0].mxu0
      %v5089 = vadd.f32 0.0, %v5088
      %v5090 = vpop.f32.mrb[0].mxu0
      %v5091 = vpop.f32.mrb[0].mxu0
      %v5092 = vadd.f32 0.0, %v5091
      %v5093 = vpop.f32.mrb[0].mxu0
      %5094 = vmatprep.mubr.bf16.mxu0 0
      %5095 = vmatmul.mubr.bf16.gmra.mrb[0].mxu0 %v4990
      %v5096 = vpop.f32.mrb[0].mxu0
      %v5097 = vadd.f32 0.0, %v5096
      %v5098 = vpop.f32.mrb[0].mxu0
      %v5099 = vpop.f32.mrb[0].mxu0
      %v5100 = vadd.f32 0.0, %v5099
      %v5101 = vpop.f32.mrb[0].mxu0
      %5102 = vmatprep.mubr.bf16.mxu0 0
      %5103 = vmatmul.mubr.bf16.gmra.mrb[0].mxu0 %v4993
      %v5104 = vpop.f32.mrb[0].mxu0
      %v5105 = vadd.f32 0.0, %v5104
      %v5106 = vpop.f32.mrb[0].mxu0
      %v5107 = vpop.f32.mrb[0].mxu0
      %v5108 = vadd.f32 0.0, %v5107
      %v5109 = vpop.f32.mrb[0].mxu0
      %5110 = vmatprep.mubr.bf16.mxu0 0
      %5111 = vmatmul.mubr.bf16.gmra.mrb[0].mxu0 %v4996
      %v5112 = vpop.f32.mrb[0].mxu0
      %v5113 = vadd.f32 0.0, %v5112
      %v5114 = vpop.f32.mrb[0].mxu0
      %v5115 = vpop.f32.mrb[0].mxu0
      %v5116 = vadd.f32 0.0, %v5115
      %v5117 = vpop.f32.mrb[0].mxu0
      %5118 = vmatprep.mubr.bf16.mxu0 0
      %5119 = vmatmul.mubr.bf16.gmra.mrb[0].mxu0 %v4999
      %v5120 = vpop.f32.mrb[0].mxu0
      %v5121 = vadd.f32 0.0, %v5120
      %v5122 = vpop.f32.mrb[0].mxu0
      %v5123 = vpop.f32.mrb[0].mxu0
      %v5124 = vadd.f32 0.0, %v5123
      %v5125 = vpop.f32.mrb[0].mxu0
      %5126 = vmatprep.mubr.bf16.mxu0 0
      %5127 = vmatmul.mubr.bf16.gmra.mrb[0].mxu0 %v5002
      %v5128 = vpop.f32.mrb[0].mxu0
      %v5129 = vadd.f32 0.0, %v5128
      %v5130 = vpop.f32.mrb[0].mxu0
      %v5131 = vpop.f32.mrb[0].mxu0
      %v5132 = vadd.f32 0.0, %v5131
      %v5133 = vpop.f32.mrb[0].mxu0
      %5134 = vmatprep.mubr.bf16.mxu0 0
      %5135 = vmatmul.mubr.bf16.gmra.mrb[0].mxu0 %v5005
      %v5136 = vpop.f32.mrb[0].mxu0
      %v5137 = vadd.f32 0.0, %v5136
      %v5138 = vpop.f32.mrb[0].mxu0
      %v5139 = vpop.f32.mrb[0].mxu0
      %v5140 = vadd.f32 0.0, %v5139
      %v5141 = vpop.f32.mrb[0].mxu0
      %5142 = vmatprep.mubr.bf16.mxu0 0
      %5143 = vmatmul.mubr.bf16.gmra.mrb[0].mxu0 %v5008
      %v5144 = vpop.f32.mrb[0].mxu0
      %v5145 = vadd.f32 0.0, %v5144
      %v5146 = vpop.f32.mrb[0].mxu0
      %v5147 = vpop.f32.mrb[0].mxu0
      %v5148 = vadd.f32 0.0, %v5147
      %v5149 = vpop.f32.mrb[0].mxu0
      %5150 = vmatprep.mubr.bf16.mxu0 0
      %5151 = vmatmul.mubr.bf16.gmra.mrb[0].mxu0 %v5011
      %v5152 = vpop.f32.mrb[0].mxu0
      %v5153 = vadd.f32 0.0, %v5152
      %v5154 = vpop.f32.mrb[0].mxu0
      %v5155 = vpop.f32.mrb[0].mxu0
      %v5156 = vadd.f32 0.0, %v5155
      %v5157 = vpop.f32.mrb[0].mxu0
      %5158 = vmatprep.mubr.bf16.mxu0 0
      %5159 = vmatmul.mubr.bf16.gmra.mrb[0].mxu0 %v5014
      %v5160 = vpop.f32.mrb[0].mxu0
      %v5161 = vadd.f32 0.0, %v5160
      %v5162 = vpop.f32.mrb[0].mxu0
      %v5163 = vpop.f32.mrb[0].mxu0
      %v5164 = vadd.f32 0.0, %v5163
      %v5165 = vpop.f32.mrb[0].mxu0
      %5166 = vmatprep.mubr.bf16.mxu0 0
      %5167 = vmatmul.mubr.bf16.gmra.mrb[0].mxu0 %v5017
      %v5168 = vpop.f32.mrb[0].mxu0
      %v5169 = vadd.f32 0.0, %v5168
      %v5170 = vpop.f32.mrb[0].mxu0
      %v5171 = vpop.f32.mrb[0].mxu0
      %v5172 = vadd.f32 0.0, %v5171
      %v5173 = vpop.f32.mrb[0].mxu0
      %5174 = vmatprep.mubr.bf16.mxu0 0
      %5175 = vmatmul.mubr.bf16.gmra.mrb[0].mxu0 %v5020
      %v5176 = vpop.f32.mrb[0].mxu0
      %v5177 = vadd.f32 0.0, %v5176
      %v5178 = vpop.f32.mrb[0].mxu0
      %v5179 = vpop.f32.mrb[0].mxu0
      %v5180 = vadd.f32 0.0, %v5179
      %v5181 = vpop.f32.mrb[0].mxu0
      %5182 = vdwg.mxu0
      %v5183 = vadd.f32 %v4738, %v5057
      %v5184 = vadd.f32 %v4739, %v5060
      %v5185 = vadd.f32 %v4740, %v5065
      %v5186 = vadd.f32 %v4741, %v5068
      %v5187 = vadd.f32 %v4742, %v5073
      %v5188 = vadd.f32 %v4743, %v5076
      %v5189 = vadd.f32 %v4744, %v5081
      %v5190 = vadd.f32 %v4745, %v5084
      %v5191 = vadd.f32 %v4746, %v5089
      %v5192 = vadd.f32 %v4747, %v5092
      %v5193 = vadd.f32 %v4748, %v5097
      %v5194 = vadd.f32 %v4749, %v5100
      %v5195 = vadd.f32 %v4750, %v5105
      %v5196 = vadd.f32 %v4751, %v5108
      %v5197 = vadd.f32 %v4752, %v5113
      %v5198 = vadd.f32 %v4753, %v5116
      %v5199 = vadd.f32 %v4754, %v5121
      %v5200 = vadd.f32 %v4755, %v5124
      %v5201 = vadd.f32 %v4756, %v5129
      %v5202 = vadd.f32 %v4757, %v5132
      %v5203 = vadd.f32 %v4758, %v5137
      %v5204 = vadd.f32 %v4759, %v5140
      %v5205 = vadd.f32 %v4760, %v5145
      %v5206 = vadd.f32 %v4761, %v5148
      %v5207 = vadd.f32 %v4762, %v5153
      %v5208 = vadd.f32 %v4763, %v5156
      %v5209 = vadd.f32 %v4764, %v5161
      %v5210 = vadd.f32 %v4765, %v5164
      %v5211 = vadd.f32 %v4766, %v5169
      %v5212 = vadd.f32 %v4767, %v5172
      %v5213 = vadd.f32 %v4768, %v5177
      %v5214 = vadd.f32 %v4769, %v5180
      %s5215 = scalar_lea.vmem %s4, 128
      %v5216 = vld [vmem:[%s5215] sm:$0xf]
      %v5217 = vld [vmem:[%s5215 + $0x4] sm:$0xf]
      %v5218 = vld [vmem:[%s5215 + $0x8] sm:$0xf]
      %v5219 = vld [vmem:[%s5215 + $0xc] sm:$0xf]
      %v5220 = vld [vmem:[%s5215 + $0x10] sm:$0xf]
      %v5221 = vld [vmem:[%s5215 + $0x14] sm:$0xf]
      %v5222 = vld [vmem:[%s5215 + $0x18] sm:$0xf]
      %v5223 = vld [vmem:[%s5215 + $0x1c] sm:$0xf]
      %v5232 = vunpack.c.l.b16 %v5216
      %v5233 = vunpack.c.l.b16 %v5217
      %v5234 = vunpack.c.l.b16 %v5218
      %v5235 = vunpack.c.l.b16 %v5219
      %v5236 = vunpack.c.l.b16 %v5220
      %v5237 = vunpack.c.l.b16 %v5221
      %v5238 = vunpack.c.l.b16 %v5222
      %v5239 = vunpack.c.l.b16 %v5223
      %v5240 = vpack.c.b16 %v5233, %v5232
      %v5241 = vpack.c.b16 %v5235, %v5234
      %v5242 = vpack.c.b16 %v5237, %v5236
      %v5243 = vpack.c.b16 %v5239, %v5238
      %5248 = vmatprep.subr.bf16.mxu0 0
      %5249 = vmatpush1.bf16.msra.mxu0 %v5240
      %5250 = vmatprep.subr.bf16.mxu0 0
      %5251 = vmatpush1.bf16.msra.mxu0 %v5241
      %5252 = vmatprep.subr.bf16.mxu0 0
      %5253 = vmatpush1.bf16.msra.mxu0 %v5242
      %5254 = vmatprep.subr.bf16.mxu0 0
      %5255 = vmatpush1.bf16.msra.mxu0 %v5243
      %5256 = vmatprep.subr.bf16.mxu0 0
      %5257 = vmatpush1.bf16.msra.mxu0 0
      %5258 = vmatprep.subr.bf16.mxu0 0
      %5259 = vmatpush1.bf16.msra.mxu0 0
      %5260 = vmatprep.subr.bf16.mxu0 0
      %5261 = vmatpush1.bf16.msra.mxu0 0
      %5262 = vmatprep.subr.bf16.mxu0 0
      %5263 = vmatpush1.bf16.msra.mxu0 0
      %5264 = vmatprep.subr.bf16.mxu0 0
      %5265 = vmatpush1.bf16.msra.mxu0 0
      %5266 = vmatprep.subr.bf16.mxu0 0
      %5267 = vmatpush1.bf16.msra.mxu0 0
      %5268 = vmatprep.subr.bf16.mxu0 0
      %5269 = vmatpush1.bf16.msra.mxu0 0
      %5270 = vmatprep.subr.bf16.mxu0 0
      %5271 = vmatpush1.bf16.msra.mxu0 0
      %5272 = vmatprep.subr.bf16.mxu0 0
      %5273 = vmatpush1.bf16.msra.mxu0 0
      %5274 = vmatprep.subr.bf16.mxu0 0
      %5275 = vmatpush1.bf16.msra.mxu0 0
      %5276 = vmatprep.subr.bf16.mxu0 0
      %5277 = vmatpush1.bf16.msra.mxu0 0
      %5278 = vmatprep.subr.bf16.mxu0 0
      %5279 = vmatpush1.bf16.msra.mxu0 0
      %5280 = vmatprep.mubr.bf16.mxu0 0
      %5281 = vmatmul.mubr.bf16.gmra.mrb[0].mxu0 %v1269
      %v5282 = vpop.f32.mrb[0].mxu0
      %v5283 = vadd.f32 0.0, %v5282
      %v5284 = vpop.f32.mrb[0].mxu0
      %v5285 = vpop.f32.mrb[0].mxu0
      %v5286 = vadd.f32 0.0, %v5285
      %v5287 = vpop.f32.mrb[0].mxu0
      %5288 = vmatprep.mubr.bf16.mxu0 0
      %5289 = vmatmul.mubr.bf16.gmra.mrb[0].mxu0 %v1272
      %v5290 = vpop.f32.mrb[0].mxu0
      %v5291 = vadd.f32 0.0, %v5290
      %v5292 = vpop.f32.mrb[0].mxu0
      %v5293 = vpop.f32.mrb[0].mxu0
      %v5294 = vadd.f32 0.0, %v5293
      %v5295 = vpop.f32.mrb[0].mxu0
      %5296 = vmatprep.mubr.bf16.mxu0 0
      %5297 = vmatmul.mubr.bf16.gmra.mrb[0].mxu0 %v1275
      %v5298 = vpop.f32.mrb[0].mxu0
      %v5299 = vadd.f32 0.0, %v5298
      %v5300 = vpop.f32.mrb[0].mxu0
      %v5301 = vpop.f32.mrb[0].mxu0
      %v5302 = vadd.f32 0.0, %v5301
      %v5303 = vpop.f32.mrb[0].mxu0
      %5304 = vmatprep.mubr.bf16.mxu0 0
      %5305 = vmatmul.mubr.bf16.gmra.mrb[0].mxu0 %v1278
      %v5306 = vpop.f32.mrb[0].mxu0
      %v5307 = vadd.f32 0.0, %v5306
      %v5308 = vpop.f32.mrb[0].mxu0
      %v5309 = vpop.f32.mrb[0].mxu0
      %v5310 = vadd.f32 0.0, %v5309
      %v5311 = vpop.f32.mrb[0].mxu0
      %5312 = vmatprep.mubr.bf16.mxu0 0
      %5313 = vmatmul.mubr.bf16.gmra.mrb[0].mxu0 %v1281
      %v5314 = vpop.f32.mrb[0].mxu0
      %v5315 = vadd.f32 0.0, %v5314
      %v5316 = vpop.f32.mrb[0].mxu0
      %v5317 = vpop.f32.mrb[0].mxu0
      %v5318 = vadd.f32 0.0, %v5317
      %v5319 = vpop.f32.mrb[0].mxu0
      %5320 = vmatprep.mubr.bf16.mxu0 0
      %5321 = vmatmul.mubr.bf16.gmra.mrb[0].mxu0 %v1284
      %v5322 = vpop.f32.mrb[0].mxu0
      %v5323 = vadd.f32 0.0, %v5322
      %v5324 = vpop.f32.mrb[0].mxu0
      %v5325 = vpop.f32.mrb[0].mxu0
      %v5326 = vadd.f32 0.0, %v5325
      %v5327 = vpop.f32.mrb[0].mxu0
      %5328 = vmatprep.mubr.bf16.mxu0 0
      %5329 = vmatmul.mubr.bf16.gmra.mrb[0].mxu0 %v1287
      %v5330 = vpop.f32.mrb[0].mxu0
      %v5331 = vadd.f32 0.0, %v5330
      %v5332 = vpop.f32.mrb[0].mxu0
      %v5333 = vpop.f32.mrb[0].mxu0
      %v5334 = vadd.f32 0.0, %v5333
      %v5335 = vpop.f32.mrb[0].mxu0
      %5336 = vmatprep.mubr.bf16.mxu0 0
      %5337 = vmatmul.mubr.bf16.gmra.mrb[0].mxu0 %v1290
      %v5338 = vpop.f32.mrb[0].mxu0
      %v5339 = vadd.f32 0.0, %v5338
      %v5340 = vpop.f32.mrb[0].mxu0
      %v5341 = vpop.f32.mrb[0].mxu0
      %v5342 = vadd.f32 0.0, %v5341
      %v5343 = vpop.f32.mrb[0].mxu0
      %5344 = vmatprep.mubr.bf16.mxu0 0
      %5345 = vmatmul.mubr.bf16.gmra.mrb[0].mxu0 %v1293
      %v5346 = vpop.f32.mrb[0].mxu0
      %v5347 = vadd.f32 0.0, %v5346
      %v5348 = vpop.f32.mrb[0].mxu0
      %v5349 = vpop.f32.mrb[0].mxu0
      %v5350 = vadd.f32 0.0, %v5349
      %v5351 = vpop.f32.mrb[0].mxu0
      %5352 = vmatprep.mubr.bf16.mxu0 0
      %5353 = vmatmul.mubr.bf16.gmra.mrb[0].mxu0 %v1296
      %v5354 = vpop.f32.mrb[0].mxu0
      %v5355 = vadd.f32 0.0, %v5354
      %v5356 = vpop.f32.mrb[0].mxu0
      %v5357 = vpop.f32.mrb[0].mxu0
      %v5358 = vadd.f32 0.0, %v5357
      %v5359 = vpop.f32.mrb[0].mxu0
      %5360 = vmatprep.mubr.bf16.mxu0 0
      %5361 = vmatmul.mubr.bf16.gmra.mrb[0].mxu0 %v1299
      %v5362 = vpop.f32.mrb[0].mxu0
      %v5363 = vadd.f32 0.0, %v5362
      %v5364 = vpop.f32.mrb[0].mxu0
      %v5365 = vpop.f32.mrb[0].mxu0
      %v5366 = vadd.f32 0.0, %v5365
      %v5367 = vpop.f32.mrb[0].mxu0
      %5368 = vmatprep.mubr.bf16.mxu0 0
      %5369 = vmatmul.mubr.bf16.gmra.mrb[0].mxu0 %v1302
      %v5370 = vpop.f32.mrb[0].mxu0
      %v5371 = vadd.f32 0.0, %v5370
      %v5372 = vpop.f32.mrb[0].mxu0
      %v5373 = vpop.f32.mrb[0].mxu0
      %v5374 = vadd.f32 0.0, %v5373
      %v5375 = vpop.f32.mrb[0].mxu0
      %5376 = vmatprep.mubr.bf16.mxu0 0
      %5377 = vmatmul.mubr.bf16.gmra.mrb[0].mxu0 %v1305
      %v5378 = vpop.f32.mrb[0].mxu0
      %v5379 = vadd.f32 0.0, %v5378
      %v5380 = vpop.f32.mrb[0].mxu0
      %v5381 = vpop.f32.mrb[0].mxu0
      %v5382 = vadd.f32 0.0, %v5381
      %v5383 = vpop.f32.mrb[0].mxu0
      %5384 = vmatprep.mubr.bf16.mxu0 0
      %5385 = vmatmul.mubr.bf16.gmra.mrb[0].mxu0 %v1308
      %v5386 = vpop.f32.mrb[0].mxu0
      %v5387 = vadd.f32 0.0, %v5386
      %v5388 = vpop.f32.mrb[0].mxu0
      %v5389 = vpop.f32.mrb[0].mxu0
      %v5390 = vadd.f32 0.0, %v5389
      %v5391 = vpop.f32.mrb[0].mxu0
      %5392 = vmatprep.mubr.bf16.mxu0 0
      %5393 = vmatmul.mubr.bf16.gmra.mrb[0].mxu0 %v1311
      %v5394 = vpop.f32.mrb[0].mxu0
      %v5395 = vadd.f32 0.0, %v5394
      %v5396 = vpop.f32.mrb[0].mxu0
      %v5397 = vpop.f32.mrb[0].mxu0
      %v5398 = vadd.f32 0.0, %v5397
      %v5399 = vpop.f32.mrb[0].mxu0
      %5400 = vmatprep.mubr.bf16.mxu0 0
      %5401 = vmatmul.mubr.bf16.gmra.mrb[0].mxu0 %v1314
      %v5402 = vpop.f32.mrb[0].mxu0
      %v5403 = vadd.f32 0.0, %v5402
      %v5404 = vpop.f32.mrb[0].mxu0
      %v5405 = vpop.f32.mrb[0].mxu0
      %v5406 = vadd.f32 0.0, %v5405
      %v5407 = vpop.f32.mrb[0].mxu0
      %5408 = vdwg.mxu0
      %v5409 = vadd.f32 %v5183, %v5283
      %v5410 = vadd.f32 %v5184, %v5286
      %v5411 = vadd.f32 %v5185, %v5291
      %v5412 = vadd.f32 %v5186, %v5294
      %v5413 = vadd.f32 %v5187, %v5299
      %v5414 = vadd.f32 %v5188, %v5302
      %v5415 = vadd.f32 %v5189, %v5307
      %v5416 = vadd.f32 %v5190, %v5310
      %v5417 = vadd.f32 %v5191, %v5315
      %v5418 = vadd.f32 %v5192, %v5318
      %v5419 = vadd.f32 %v5193, %v5323
      %v5420 = vadd.f32 %v5194, %v5326
      %v5421 = vadd.f32 %v5195, %v5331
      %v5422 = vadd.f32 %v5196, %v5334
      %v5423 = vadd.f32 %v5197, %v5339
      %v5424 = vadd.f32 %v5198, %v5342
      %v5425 = vadd.f32 %v5199, %v5347
      %v5426 = vadd.f32 %v5200, %v5350
      %v5427 = vadd.f32 %v5201, %v5355
      %v5428 = vadd.f32 %v5202, %v5358
      %v5429 = vadd.f32 %v5203, %v5363
      %v5430 = vadd.f32 %v5204, %v5366
      %v5431 = vadd.f32 %v5205, %v5371
      %v5432 = vadd.f32 %v5206, %v5374
      %v5433 = vadd.f32 %v5207, %v5379
      %v5434 = vadd.f32 %v5208, %v5382
      %v5435 = vadd.f32 %v5209, %v5387
      %v5436 = vadd.f32 %v5210, %v5390
      %v5437 = vadd.f32 %v5211, %v5395
      %v5438 = vadd.f32 %v5212, %v5398
      %v5439 = vadd.f32 %v5213, %v5403
      %v5440 = vadd.f32 %v5214, %v5406
      %v5441 = vmul.bf16 %v1213, %v4208
      %v5442 = vmul.bf16 %v1214, %v4216
      %v5443 = vmul.bf16 %v1215, %v4224
      %v5444 = vmul.bf16 %v1216, %v4232
      %v5445 = vmul.bf16 %v1217, %v4240
      %v5446 = vmul.bf16 %v1218, %v4248
      %v5447 = vmul.bf16 %v1219, %v4256
      %v5448 = vmul.bf16 %v1220, %v4264
      %v5449 = vmul.bf16 %v1221, %v4272
      %v5450 = vmul.bf16 %v1222, %v4280
      %v5451 = vmul.bf16 %v1223, %v4288
      %v5452 = vmul.bf16 %v1224, %v4296
      %v5453 = vmul.bf16 %v1225, %v4304
      %v5454 = vmul.bf16 %v1226, %v4312
      %v5455 = vmul.bf16 %v1227, %v4320
      %v5456 = vmul.bf16 %v1228, %v4328
      %v5457 = vmul.bf16 %v2486, %v4324
      %s5458 = scalar_lea.vmem %s4, 160
      %v5459 = vld [vmem:[%s5458] sm:$0xf]
      %v5460 = vld [vmem:[%s5458 + $0x4] sm:$0xf]
      %v5461 = vld [vmem:[%s5458 + $0x8] sm:$0xf]
      %v5462 = vld [vmem:[%s5458 + $0xc] sm:$0xf]
      %v5463 = vld [vmem:[%s5458 + $0x10] sm:$0xf]
      %v5464 = vld [vmem:[%s5458 + $0x14] sm:$0xf]
      %v5465 = vld [vmem:[%s5458 + $0x18] sm:$0xf]
      %v5466 = vld [vmem:[%s5458 + $0x1c] sm:$0xf]
      %v5468 = vshrl.u32 %v5441, 16
      %v5470 = vshll.u32 %v5441, 16
      %v5472 = vrot.slane %v5470, 1
      %v5473 = vor.u32 %v5468, %v5472
      %v5475 = vshll.u32 %v5442, 16
      %v5477 = vrot.slane %v5475, 1
      %v5478 = vsel %vm4372, %v5473, %v5477
      %v5479 = vshrl.u32 %v5442, 16
      %v5481 = vor.u32 %v5479, %v5477
      %v5483 = vshll.u32 %v5443, 16
      %v5485 = vrot.slane %v5483, 1
      %v5486 = vsel %vm4372, %v5481, %v5485
      %v5487 = vshrl.u32 %v5443, 16
      %v5489 = vor.u32 %v5487, %v5485
      %v5491 = vshll.u32 %v5444, 16
      %v5493 = vrot.slane %v5491, 1
      %v5494 = vsel %vm4372, %v5489, %v5493
      %v5495 = vshrl.u32 %v5444, 16
      %v5497 = vor.u32 %v5495, %v5493
      %v5499 = vshll.u32 %v5445, 16
      %v5501 = vrot.slane %v5499, 1
      %v5502 = vsel %vm4372, %v5497, %v5501
      %v5503 = vshrl.u32 %v5445, 16
      %v5505 = vor.u32 %v5503, %v5501
      %v5507 = vshll.u32 %v5446, 16
      %v5509 = vrot.slane %v5507, 1
      %v5510 = vsel %vm4372, %v5505, %v5509
      %v5511 = vshrl.u32 %v5446, 16
      %v5513 = vor.u32 %v5511, %v5509
      %v5515 = vshll.u32 %v5447, 16
      %v5517 = vrot.slane %v5515, 1
      %v5518 = vsel %vm4372, %v5513, %v5517
      %v5519 = vshrl.u32 %v5447, 16
      %v5521 = vor.u32 %v5519, %v5517
      %v5523 = vshll.u32 %v5448, 16
      %v5525 = vrot.slane %v5523, 1
      %v5526 = vsel %vm4372, %v5521, %v5525
      %v5527 = vshrl.u32 %v5448, 16
      %v5529 = vor.u32 %v5527, %v5525
      %v5531 = vshll.u32 %v5449, 16
      %v5533 = vrot.slane %v5531, 1
      %v5534 = vsel %vm4372, %v5529, %v5533
      %v5535 = vshrl.u32 %v5449, 16
      %v5537 = vor.u32 %v5535, %v5533
      %v5539 = vshll.u32 %v5450, 16
      %v5541 = vrot.slane %v5539, 1
      %v5542 = vsel %vm4372, %v5537, %v5541
      %v5543 = vshrl.u32 %v5450, 16
      %v5545 = vor.u32 %v5543, %v5541
      %v5547 = vshll.u32 %v5451, 16
      %v5549 = vrot.slane %v5547, 1
      %v5550 = vsel %vm4372, %v5545, %v5549
      %v5551 = vshrl.u32 %v5451, 16
      %v5553 = vor.u32 %v5551, %v5549
      %v5555 = vshll.u32 %v5452, 16
      %v5557 = vrot.slane %v5555, 1
      %v5558 = vsel %vm4372, %v5553, %v5557
      %v5559 = vshrl.u32 %v5452, 16
      %v5561 = vor.u32 %v5559, %v5557
      %v5563 = vshll.u32 %v5453, 16
      %v5565 = vrot.slane %v5563, 1
      %v5566 = vsel %vm4372, %v5561, %v5565
      %v5567 = vshrl.u32 %v5453, 16
      %v5569 = vor.u32 %v5567, %v5565
      %v5571 = vshll.u32 %v5454, 16
      %v5573 = vrot.slane %v5571, 1
      %v5574 = vsel %vm4372, %v5569, %v5573
      %v5575 = vshrl.u32 %v5454, 16
      %v5577 = vor.u32 %v5575, %v5573
      %v5579 = vshll.u32 %v5455, 16
      %v5581 = vrot.slane %v5579, 1
      %v5582 = vsel %vm4372, %v5577, %v5581
      %v5583 = vshrl.u32 %v5455, 16
      %v5585 = vor.u32 %v5583, %v5581
      %v5587 = vshll.u32 %v5456, 16
      %v5589 = vrot.slane %v5587, 1
      %v5590 = vsel %vm4372, %v5585, %v5589
      %v5591 = vshrl.u32 %v5456, 16
      %v5593 = vor.u32 %v5591, %v5589
      %v5595 = vshll.u32 %v5457, 16
      %v5597 = vrot.slane %v5595, 1
      %v5598 = vsel %vm4372, %v5593, %v5597
      %v5607 = vunpack.c.l.b16 %v5459
      %v5608 = vunpack.c.l.b16 %v5460
      %v5609 = vunpack.c.l.b16 %v5461
      %v5610 = vunpack.c.l.b16 %v5462
      %v5611 = vunpack.c.l.b16 %v5463
      %v5612 = vunpack.c.l.b16 %v5464
      %v5613 = vunpack.c.l.b16 %v5465
      %v5614 = vunpack.c.l.b16 %v5466
      %v5615 = vpack.c.b16 %v5608, %v5607
      %v5616 = vpack.c.b16 %v5610, %v5609
      %v5617 = vpack.c.b16 %v5612, %v5611
      %v5618 = vpack.c.b16 %v5614, %v5613
      %v5624 = vsel %vm779, %v5478, 0
      %v5627 = vsel %vm779, %v5486, 0
      %v5630 = vsel %vm779, %v5494, 0
      %v5633 = vsel %vm779, %v5502, 0
      %v5636 = vsel %vm779, %v5510, 0
      %v5639 = vsel %vm779, %v5518, 0
      %v5642 = vsel %vm779, %v5526, 0
      %v5645 = vsel %vm779, %v5534, 0
      %v5648 = vsel %vm779, %v5542, 0
      %v5651 = vsel %vm779, %v5550, 0
      %v5654 = vsel %vm779, %v5558, 0
      %v5657 = vsel %vm779, %v5566, 0
      %v5660 = vsel %vm779, %v5574, 0
      %v5663 = vsel %vm779, %v5582, 0
      %v5666 = vsel %vm779, %v5590, 0
      %v5669 = vsel %vm779, %v5598, 0
      %5671 = vmatprep.subr.bf16.mxu0 0
      %5672 = vmatpush1.bf16.msra.mxu0 %v5615
      %5673 = vmatprep.subr.bf16.mxu0 0
      %5674 = vmatpush1.bf16.msra.mxu0 %v5616
      %5675 = vmatprep.subr.bf16.mxu0 0
      %5676 = vmatpush1.bf16.msra.mxu0 %v5617
      %5677 = vmatprep.subr.bf16.mxu0 0
      %5678 = vmatpush1.bf16.msra.mxu0 %v5618
      %5679 = vmatprep.subr.bf16.mxu0 0
      %5680 = vmatpush1.bf16.msra.mxu0 0
      %5681 = vmatprep.subr.bf16.mxu0 0
      %5682 = vmatpush1.bf16.msra.mxu0 0
      %5683 = vmatprep.subr.bf16.mxu0 0
      %5684 = vmatpush1.bf16.msra.mxu0 0
      %5685 = vmatprep.subr.bf16.mxu0 0
      %5686 = vmatpush1.bf16.msra.mxu0 0
      %5687 = vmatprep.subr.bf16.mxu0 0
      %5688 = vmatpush1.bf16.msra.mxu0 0
      %5689 = vmatprep.subr.bf16.mxu0 0
      %5690 = vmatpush1.bf16.msra.mxu0 0
      %5691 = vmatprep.subr.bf16.mxu0 0
      %5692 = vmatpush1.bf16.msra.mxu0 0
      %5693 = vmatprep.subr.bf16.mxu0 0
      %5694 = vmatpush1.bf16.msra.mxu0 0
      %5695 = vmatprep.subr.bf16.mxu0 0
      %5696 = vmatpush1.bf16.msra.mxu0 0
      %5697 = vmatprep.subr.bf16.mxu0 0
      %5698 = vmatpush1.bf16.msra.mxu0 0
      %5699 = vmatprep.subr.bf16.mxu0 0
      %5700 = vmatpush1.bf16.msra.mxu0 0
      %5701 = vmatprep.subr.bf16.mxu0 0
      %5702 = vmatpush1.bf16.msra.mxu0 0
      %5703 = vmatprep.mubr.bf16.mxu0 0
      %5704 = vmatmul.mubr.bf16.gmra.mrb[0].mxu0 %v5624
      %v5705 = vpop.f32.mrb[0].mxu0
      %v5706 = vadd.f32 0.0, %v5705
      %v5707 = vpop.f32.mrb[0].mxu0
      %v5708 = vpop.f32.mrb[0].mxu0
      %v5709 = vadd.f32 0.0, %v5708
      %v5710 = vpop.f32.mrb[0].mxu0
      %5711 = vmatprep.mubr.bf16.mxu0 0
      %5712 = vmatmul.mubr.bf16.gmra.mrb[0].mxu0 %v5627
      %v5713 = vpop.f32.mrb[0].mxu0
      %v5714 = vadd.f32 0.0, %v5713
      %v5715 = vpop.f32.mrb[0].mxu0
      %v5716 = vpop.f32.mrb[0].mxu0
      %v5717 = vadd.f32 0.0, %v5716
      %v5718 = vpop.f32.mrb[0].mxu0
      %5719 = vmatprep.mubr.bf16.mxu0 0
      %5720 = vmatmul.mubr.bf16.gmra.mrb[0].mxu0 %v5630
      %v5721 = vpop.f32.mrb[0].mxu0
      %v5722 = vadd.f32 0.0, %v5721
      %v5723 = vpop.f32.mrb[0].mxu0
      %v5724 = vpop.f32.mrb[0].mxu0
      %v5725 = vadd.f32 0.0, %v5724
      %v5726 = vpop.f32.mrb[0].mxu0
      %5727 = vmatprep.mubr.bf16.mxu0 0
      %5728 = vmatmul.mubr.bf16.gmra.mrb[0].mxu0 %v5633
      %v5729 = vpop.f32.mrb[0].mxu0
      %v5730 = vadd.f32 0.0, %v5729
      %v5731 = vpop.f32.mrb[0].mxu0
      %v5732 = vpop.f32.mrb[0].mxu0
      %v5733 = vadd.f32 0.0, %v5732
      %v5734 = vpop.f32.mrb[0].mxu0
      %5735 = vmatprep.mubr.bf16.mxu0 0
      %5736 = vmatmul.mubr.bf16.gmra.mrb[0].mxu0 %v5636
      %v5737 = vpop.f32.mrb[0].mxu0
      %v5738 = vadd.f32 0.0, %v5737
      %v5739 = vpop.f32.mrb[0].mxu0
      %v5740 = vpop.f32.mrb[0].mxu0
      %v5741 = vadd.f32 0.0, %v5740
      %v5742 = vpop.f32.mrb[0].mxu0
      %5743 = vmatprep.mubr.bf16.mxu0 0
      %5744 = vmatmul.mubr.bf16.gmra.mrb[0].mxu0 %v5639
      %v5745 = vpop.f32.mrb[0].mxu0
      %v5746 = vadd.f32 0.0, %v5745
      %v5747 = vpop.f32.mrb[0].mxu0
      %v5748 = vpop.f32.mrb[0].mxu0
      %v5749 = vadd.f32 0.0, %v5748
      %v5750 = vpop.f32.mrb[0].mxu0
      %5751 = vmatprep.mubr.bf16.mxu0 0
      %5752 = vmatmul.mubr.bf16.gmra.mrb[0].mxu0 %v5642
      %v5753 = vpop.f32.mrb[0].mxu0
      %v5754 = vadd.f32 0.0, %v5753
      %v5755 = vpop.f32.mrb[0].mxu0
      %v5756 = vpop.f32.mrb[0].mxu0
      %v5757 = vadd.f32 0.0, %v5756
      %v5758 = vpop.f32.mrb[0].mxu0
      %5759 = vmatprep.mubr.bf16.mxu0 0
      %5760 = vmatmul.mubr.bf16.gmra.mrb[0].mxu0 %v5645
      %v5761 = vpop.f32.mrb[0].mxu0
      %v5762 = vadd.f32 0.0, %v5761
      %v5763 = vpop.f32.mrb[0].mxu0
      %v5764 = vpop.f32.mrb[0].mxu0
      %v5765 = vadd.f32 0.0, %v5764
      %v5766 = vpop.f32.mrb[0].mxu0
      %5767 = vmatprep.mubr.bf16.mxu0 0
      %5768 = vmatmul.mubr.bf16.gmra.mrb[0].mxu0 %v5648
      %v5769 = vpop.f32.mrb[0].mxu0
      %v5770 = vadd.f32 0.0, %v5769
      %v5771 = vpop.f32.mrb[0].mxu0
      %v5772 = vpop.f32.mrb[0].mxu0
      %v5773 = vadd.f32 0.0, %v5772
      %v5774 = vpop.f32.mrb[0].mxu0
      %5775 = vmatprep.mubr.bf16.mxu0 0
      %5776 = vmatmul.mubr.bf16.gmra.mrb[0].mxu0 %v5651
      %v5777 = vpop.f32.mrb[0].mxu0
      %v5778 = vadd.f32 0.0, %v5777
      %v5779 = vpop.f32.mrb[0].mxu0
      %v5780 = vpop.f32.mrb[0].mxu0
      %v5781 = vadd.f32 0.0, %v5780
      %v5782 = vpop.f32.mrb[0].mxu0
      %5783 = vmatprep.mubr.bf16.mxu0 0
      %5784 = vmatmul.mubr.bf16.gmra.mrb[0].mxu0 %v5654
      %v5785 = vpop.f32.mrb[0].mxu0
      %v5786 = vadd.f32 0.0, %v5785
      %v5787 = vpop.f32.mrb[0].mxu0
      %v5788 = vpop.f32.mrb[0].mxu0
      %v5789 = vadd.f32 0.0, %v5788
      %v5790 = vpop.f32.mrb[0].mxu0
      %5791 = vmatprep.mubr.bf16.mxu0 0
      %5792 = vmatmul.mubr.bf16.gmra.mrb[0].mxu0 %v5657
      %v5793 = vpop.f32.mrb[0].mxu0
      %v5794 = vadd.f32 0.0, %v5793
      %v5795 = vpop.f32.mrb[0].mxu0
      %v5796 = vpop.f32.mrb[0].mxu0
      %v5797 = vadd.f32 0.0, %v5796
      %v5798 = vpop.f32.mrb[0].mxu0
      %5799 = vmatprep.mubr.bf16.mxu0 0
      %5800 = vmatmul.mubr.bf16.gmra.mrb[0].mxu0 %v5660
      %v5801 = vpop.f32.mrb[0].mxu0
      %v5802 = vadd.f32 0.0, %v5801
      %v5803 = vpop.f32.mrb[0].mxu0
      %v5804 = vpop.f32.mrb[0].mxu0
      %v5805 = vadd.f32 0.0, %v5804
      %v5806 = vpop.f32.mrb[0].mxu0
      %5807 = vmatprep.mubr.bf16.mxu0 0
      %5808 = vmatmul.mubr.bf16.gmra.mrb[0].mxu0 %v5663
      %v5809 = vpop.f32.mrb[0].mxu0
      %v5810 = vadd.f32 0.0, %v5809
      %v5811 = vpop.f32.mrb[0].mxu0
      %v5812 = vpop.f32.mrb[0].mxu0
      %v5813 = vadd.f32 0.0, %v5812
      %v5814 = vpop.f32.mrb[0].mxu0
      %5815 = vmatprep.mubr.bf16.mxu0 0
      %5816 = vmatmul.mubr.bf16.gmra.mrb[0].mxu0 %v5666
      %v5817 = vpop.f32.mrb[0].mxu0
      %v5818 = vadd.f32 0.0, %v5817
      %v5819 = vpop.f32.mrb[0].mxu0
      %v5820 = vpop.f32.mrb[0].mxu0
      %v5821 = vadd.f32 0.0, %v5820
      %v5822 = vpop.f32.mrb[0].mxu0
      %5823 = vmatprep.mubr.bf16.mxu0 0
      %5824 = vmatmul.mubr.bf16.gmra.mrb[0].mxu0 %v5669
      %v5825 = vpop.f32.mrb[0].mxu0
      %v5826 = vadd.f32 0.0, %v5825
      %v5827 = vpop.f32.mrb[0].mxu0
      %v5828 = vpop.f32.mrb[0].mxu0
      %v5829 = vadd.f32 0.0, %v5828
      %v5830 = vpop.f32.mrb[0].mxu0
      %5831 = vdwg.mxu0
      %v5832 = vadd.f32 %v5409, %v5706
      %v5833 = vadd.f32 %v5410, %v5709
      %v5834 = vadd.f32 %v5411, %v5714
      %v5835 = vadd.f32 %v5412, %v5717
      %v5836 = vadd.f32 %v5413, %v5722
      %v5837 = vadd.f32 %v5414, %v5725
      %v5838 = vadd.f32 %v5415, %v5730
      %v5839 = vadd.f32 %v5416, %v5733
      %v5840 = vadd.f32 %v5417, %v5738
      %v5841 = vadd.f32 %v5418, %v5741
      %v5842 = vadd.f32 %v5419, %v5746
      %v5843 = vadd.f32 %v5420, %v5749
      %v5844 = vadd.f32 %v5421, %v5754
      %v5845 = vadd.f32 %v5422, %v5757
      %v5846 = vadd.f32 %v5423, %v5762
      %v5847 = vadd.f32 %v5424, %v5765
      %v5848 = vadd.f32 %v5425, %v5770
      %v5849 = vadd.f32 %v5426, %v5773
      %v5850 = vadd.f32 %v5427, %v5778
      %v5851 = vadd.f32 %v5428, %v5781
      %v5852 = vadd.f32 %v5429, %v5786
      %v5853 = vadd.f32 %v5430, %v5789
      %v5854 = vadd.f32 %v5431, %v5794
      %v5855 = vadd.f32 %v5432, %v5797
      %v5856 = vadd.f32 %v5433, %v5802
      %v5857 = vadd.f32 %v5434, %v5805
      %v5858 = vadd.f32 %v5435, %v5810
      %v5859 = vadd.f32 %v5436, %v5813
      %v5860 = vadd.f32 %v5437, %v5818
      %v5861 = vadd.f32 %v5438, %v5821
      %v5862 = vadd.f32 %v5439, %v5826
      %v5863 = vadd.f32 %v5440, %v5829
      %v5864 = vpack.c.bf16 0.0, %v1212
      %v5865 = vmul.bf16 %v2488, %v2975
      %v5866 = vmul.bf16 %v2489, %v2984
      %v5867 = vmul.bf16 %v2490, %v2993
      %v5868 = vmul.bf16 %v2491, %v3002
      %v5869 = vmul.bf16 %v2492, %v3011
      %v5870 = vmul.bf16 %v2493, %v3020
      %v5871 = vmul.bf16 %v2494, %v3029
      %v5872 = vmul.bf16 %v2495, %v3038
      %v5873 = vmul.bf16 %v2496, %v3047
      %v5874 = vmul.bf16 %v2497, %v3056
      %v5875 = vmul.bf16 %v2498, %v3065
      %v5876 = vmul.bf16 %v2499, %v3074
      %v5877 = vmul.bf16 %v2500, %v3083
      %v5878 = vmul.bf16 %v2501, %v3092
      %v5879 = vmul.bf16 %v4770, %v3101
      %v5880 = vmul.bf16 %v5864, %v3110
      %v5881 = vmul.bf16 %v2486, %v3109
      %s5882 = scalar_lea.vmem %s4, 192
      %v5883 = vld [vmem:[%s5882] sm:$0xf]
      %v5884 = vld [vmem:[%s5882 + $0x4] sm:$0xf]
      %v5885 = vld [vmem:[%s5882 + $0x8] sm:$0xf]
      %v5886 = vld [vmem:[%s5882 + $0xc] sm:$0xf]
      %v5887 = vld [vmem:[%s5882 + $0x10] sm:$0xf]
      %v5888 = vld [vmem:[%s5882 + $0x14] sm:$0xf]
      %v5889 = vld [vmem:[%s5882 + $0x18] sm:$0xf]
      %v5890 = vld [vmem:[%s5882 + $0x1c] sm:$0xf]
      %v5892 = vshrl.u32 %v5865, 16
      %v5894 = vrot.slane %v5892, 3
      %v5895 = vshll.u32 %v5865, 16
      %v5897 = vrot.slane %v5895, 4
      %v5898 = vor.u32 %v5894, %v5897
      %v5900 = vshrl.u32 %v5866, 16
      %v5902 = vrot.slane %v5900, 3
      %v5903 = vshll.u32 %v5866, 16
      %v5905 = vrot.slane %v5903, 4
      %v5906 = vor.u32 %v5902, %v5905
      %v5907 = vsel %vm3350, %v5898, %v5906
      %v5909 = vshrl.u32 %v5867, 16
      %v5911 = vrot.slane %v5909, 3
      %v5912 = vshll.u32 %v5867, 16
      %v5914 = vrot.slane %v5912, 4
      %v5915 = vor.u32 %v5911, %v5914
      %v5916 = vsel %vm3350, %v5906, %v5915
      %v5918 = vshrl.u32 %v5868, 16
      %v5920 = vrot.slane %v5918, 3
      %v5921 = vshll.u32 %v5868, 16
      %v5923 = vrot.slane %v5921, 4
      %v5924 = vor.u32 %v5920, %v5923
      %v5925 = vsel %vm3350, %v5915, %v5924
      %v5927 = vshrl.u32 %v5869, 16
      %v5929 = vrot.slane %v5927, 3
      %v5930 = vshll.u32 %v5869, 16
      %v5932 = vrot.slane %v5930, 4
      %v5933 = vor.u32 %v5929, %v5932
      %v5934 = vsel %vm3350, %v5924, %v5933
      %v5936 = vshrl.u32 %v5870, 16
      %v5938 = vrot.slane %v5936, 3
      %v5939 = vshll.u32 %v5870, 16
      %v5941 = vrot.slane %v5939, 4
      %v5942 = vor.u32 %v5938, %v5941
      %v5943 = vsel %vm3350, %v5933, %v5942
      %v5945 = vshrl.u32 %v5871, 16
      %v5947 = vrot.slane %v5945, 3
      %v5948 = vshll.u32 %v5871, 16
      %v5950 = vrot.slane %v5948, 4
      %v5951 = vor.u32 %v5947, %v5950
      %v5952 = vsel %vm3350, %v5942, %v5951
      %v5954 = vshrl.u32 %v5872, 16
      %v5956 = vrot.slane %v5954, 3
      %v5957 = vshll.u32 %v5872, 16
      %v5959 = vrot.slane %v5957, 4
      %v5960 = vor.u32 %v5956, %v5959
      %v5961 = vsel %vm3350, %v5951, %v5960
      %v5963 = vshrl.u32 %v5873, 16
      %v5965 = vrot.slane %v5963, 3
      %v5966 = vshll.u32 %v5873, 16
      %v5968 = vrot.slane %v5966, 4
      %v5969 = vor.u32 %v5965, %v5968
      %v5970 = vsel %vm3350, %v5960, %v5969
      %v5972 = vshrl.u32 %v5874, 16
      %v5974 = vrot.slane %v5972, 3
      %v5975 = vshll.u32 %v5874, 16
      %v5977 = vrot.slane %v5975, 4
      %v5978 = vor.u32 %v5974, %v5977
      %v5979 = vsel %vm3350, %v5969, %v5978
      %v5981 = vshrl.u32 %v5875, 16
      %v5983 = vrot.slane %v5981, 3
      %v5984 = vshll.u32 %v5875, 16
      %v5986 = vrot.slane %v5984, 4
      %v5987 = vor.u32 %v5983, %v5986
      %v5988 = vsel %vm3350, %v5978, %v5987
      %v5990 = vshrl.u32 %v5876, 16
      %v5992 = vrot.slane %v5990, 3
      %v5993 = vshll.u32 %v5876, 16
      %v5995 = vrot.slane %v5993, 4
      %v5996 = vor.u32 %v5992, %v5995
      %v5997 = vsel %vm3350, %v5987, %v5996
      %v5999 = vshrl.u32 %v5877, 16
      %v6001 = vrot.slane %v5999, 3
      %v6002 = vshll.u32 %v5877, 16
      %v6004 = vrot.slane %v6002, 4
      %v6005 = vor.u32 %v6001, %v6004
      %v6006 = vsel %vm3350, %v5996, %v6005
      %v6008 = vshrl.u32 %v5878, 16
      %v6010 = vrot.slane %v6008, 3
      %v6011 = vshll.u32 %v5878, 16
      %v6013 = vrot.slane %v6011, 4
      %v6014 = vor.u32 %v6010, %v6013
      %v6015 = vsel %vm3350, %v6005, %v6014
      %v6017 = vshrl.u32 %v5879, 16
      %v6019 = vrot.slane %v6017, 3
      %v6020 = vshll.u32 %v5879, 16
      %v6022 = vrot.slane %v6020, 4
      %v6023 = vor.u32 %v6019, %v6022
      %v6024 = vsel %vm3350, %v6014, %v6023
      %v6026 = vshrl.u32 %v5880, 16
      %v6028 = vrot.slane %v6026, 3
      %v6029 = vshll.u32 %v5880, 16
      %v6031 = vrot.slane %v6029, 4
      %v6032 = vor.u32 %v6028, %v6031
      %v6033 = vsel %vm3350, %v6023, %v6032
      %v6035 = vshrl.u32 %v5881, 16
      %v6037 = vrot.slane %v6035, 3
      %v6038 = vshll.u32 %v5881, 16
      %v6040 = vrot.slane %v6038, 4
      %v6041 = vor.u32 %v6037, %v6040
      %v6042 = vsel %vm3350, %v6032, %v6041
      %v6051 = vunpack.c.l.b16 %v5883
      %v6052 = vunpack.c.l.b16 %v5884
      %v6053 = vunpack.c.l.b16 %v5885
      %v6054 = vunpack.c.l.b16 %v5886
      %v6055 = vunpack.c.l.b16 %v5887
      %v6056 = vunpack.c.l.b16 %v5888
      %v6057 = vunpack.c.l.b16 %v5889
      %v6058 = vunpack.c.l.b16 %v5890
      %v6059 = vpack.c.b16 %v6052, %v6051
      %v6060 = vpack.c.b16 %v6054, %v6053
      %v6061 = vpack.c.b16 %v6056, %v6055
      %v6062 = vpack.c.b16 %v6058, %v6057
      %v6068 = vsel %vm779, %v5907, 0
      %v6071 = vsel %vm779, %v5916, 0
      %v6074 = vsel %vm779, %v5925, 0
      %v6077 = vsel %vm779, %v5934, 0
      %v6080 = vsel %vm779, %v5943, 0
      %v6083 = vsel %vm779, %v5952, 0
      %v6086 = vsel %vm779, %v5961, 0
      %v6089 = vsel %vm779, %v5970, 0
      %v6092 = vsel %vm779, %v5979, 0
      %v6095 = vsel %vm779, %v5988, 0
      %v6098 = vsel %vm779, %v5997, 0
      %v6101 = vsel %vm779, %v6006, 0
      %v6104 = vsel %vm779, %v6015, 0
      %v6107 = vsel %vm779, %v6024, 0
      %v6110 = vsel %vm779, %v6033, 0
      %v6113 = vsel %vm779, %v6042, 0
      %6115 = vmatprep.subr.bf16.mxu0 0
      %6116 = vmatpush1.bf16.msra.mxu0 %v6059
      %6117 = vmatprep.subr.bf16.mxu0 0
      %6118 = vmatpush1.bf16.msra.mxu0 %v6060
      %6119 = vmatprep.subr.bf16.mxu0 0
      %6120 = vmatpush1.bf16.msra.mxu0 %v6061
      %6121 = vmatprep.subr.bf16.mxu0 0
      %6122 = vmatpush1.bf16.msra.mxu0 %v6062
      %6123 = vmatprep.subr.bf16.mxu0 0
      %6124 = vmatpush1.bf16.msra.mxu0 0
      %6125 = vmatprep.subr.bf16.mxu0 0
      %6126 = vmatpush1.bf16.msra.mxu0 0
      %6127 = vmatprep.subr.bf16.mxu0 0
      %6128 = vmatpush1.bf16.msra.mxu0 0
      %6129 = vmatprep.subr.bf16.mxu0 0
      %6130 = vmatpush1.bf16.msra.mxu0 0
      %6131 = vmatprep.subr.bf16.mxu0 0
      %6132 = vmatpush1.bf16.msra.mxu0 0
      %6133 = vmatprep.subr.bf16.mxu0 0
      %6134 = vmatpush1.bf16.msra.mxu0 0
      %6135 = vmatprep.subr.bf16.mxu0 0
      %6136 = vmatpush1.bf16.msra.mxu0 0
      %6137 = vmatprep.subr.bf16.mxu0 0
      %6138 = vmatpush1.bf16.msra.mxu0 0
      %6139 = vmatprep.subr.bf16.mxu0 0
      %6140 = vmatpush1.bf16.msra.mxu0 0
      %6141 = vmatprep.subr.bf16.mxu0 0
      %6142 = vmatpush1.bf16.msra.mxu0 0
      %6143 = vmatprep.subr.bf16.mxu0 0
      %6144 = vmatpush1.bf16.msra.mxu0 0
      %6145 = vmatprep.subr.bf16.mxu0 0
      %6146 = vmatpush1.bf16.msra.mxu0 0
      %6147 = vmatprep.mubr.bf16.mxu0 0
      %6148 = vmatmul.mubr.bf16.gmra.mrb[0].mxu0 %v6068
      %v6149 = vpop.f32.mrb[0].mxu0
      %v6150 = vadd.f32 0.0, %v6149
      %v6151 = vpop.f32.mrb[0].mxu0
      %v6152 = vpop.f32.mrb[0].mxu0
      %v6153 = vadd.f32 0.0, %v6152
      %v6154 = vpop.f32.mrb[0].mxu0
      %6155 = vmatprep.mubr.bf16.mxu0 0
      %6156 = vmatmul.mubr.bf16.gmra.mrb[0].mxu0 %v6071
      %v6157 = vpop.f32.mrb[0].mxu0
      %v6158 = vadd.f32 0.0, %v6157
      %v6159 = vpop.f32.mrb[0].mxu0
      %v6160 = vpop.f32.mrb[0].mxu0
      %v6161 = vadd.f32 0.0, %v6160
      %v6162 = vpop.f32.mrb[0].mxu0
      %6163 = vmatprep.mubr.bf16.mxu0 0
      %6164 = vmatmul.mubr.bf16.gmra.mrb[0].mxu0 %v6074
      %v6165 = vpop.f32.mrb[0].mxu0
      %v6166 = vadd.f32 0.0, %v6165
      %v6167 = vpop.f32.mrb[0].mxu0
      %v6168 = vpop.f32.mrb[0].mxu0
      %v6169 = vadd.f32 0.0, %v6168
      %v6170 = vpop.f32.mrb[0].mxu0
      %6171 = vmatprep.mubr.bf16.mxu0 0
      %6172 = vmatmul.mubr.bf16.gmra.mrb[0].mxu0 %v6077
      %v6173 = vpop.f32.mrb[0].mxu0
      %v6174 = vadd.f32 0.0, %v6173
      %v6175 = vpop.f32.mrb[0].mxu0
      %v6176 = vpop.f32.mrb[0].mxu0
      %v6177 = vadd.f32 0.0, %v6176
      %v6178 = vpop.f32.mrb[0].mxu0
      %6179 = vmatprep.mubr.bf16.mxu0 0
      %6180 = vmatmul.mubr.bf16.gmra.mrb[0].mxu0 %v6080
      %v6181 = vpop.f32.mrb[0].mxu0
      %v6182 = vadd.f32 0.0, %v6181
      %v6183 = vpop.f32.mrb[0].mxu0
      %v6184 = vpop.f32.mrb[0].mxu0
      %v6185 = vadd.f32 0.0, %v6184
      %v6186 = vpop.f32.mrb[0].mxu0
      %6187 = vmatprep.mubr.bf16.mxu0 0
      %6188 = vmatmul.mubr.bf16.gmra.mrb[0].mxu0 %v6083
      %v6189 = vpop.f32.mrb[0].mxu0
      %v6190 = vadd.f32 0.0, %v6189
      %v6191 = vpop.f32.mrb[0].mxu0
      %v6192 = vpop.f32.mrb[0].mxu0
      %v6193 = vadd.f32 0.0, %v6192
      %v6194 = vpop.f32.mrb[0].mxu0
      %6195 = vmatprep.mubr.bf16.mxu0 0
      %6196 = vmatmul.mubr.bf16.gmra.mrb[0].mxu0 %v6086
      %v6197 = vpop.f32.mrb[0].mxu0
      %v6198 = vadd.f32 0.0, %v6197
      %v6199 = vpop.f32.mrb[0].mxu0
      %v6200 = vpop.f32.mrb[0].mxu0
      %v6201 = vadd.f32 0.0, %v6200
      %v6202 = vpop.f32.mrb[0].mxu0
      %6203 = vmatprep.mubr.bf16.mxu0 0
      %6204 = vmatmul.mubr.bf16.gmra.mrb[0].mxu0 %v6089
      %v6205 = vpop.f32.mrb[0].mxu0
      %v6206 = vadd.f32 0.0, %v6205
      %v6207 = vpop.f32.mrb[0].mxu0
      %v6208 = vpop.f32.mrb[0].mxu0
      %v6209 = vadd.f32 0.0, %v6208
      %v6210 = vpop.f32.mrb[0].mxu0
      %6211 = vmatprep.mubr.bf16.mxu0 0
      %6212 = vmatmul.mubr.bf16.gmra.mrb[0].mxu0 %v6092
      %v6213 = vpop.f32.mrb[0].mxu0
      %v6214 = vadd.f32 0.0, %v6213
      %v6215 = vpop.f32.mrb[0].mxu0
      %v6216 = vpop.f32.mrb[0].mxu0
      %v6217 = vadd.f32 0.0, %v6216
      %v6218 = vpop.f32.mrb[0].mxu0
      %6219 = vmatprep.mubr.bf16.mxu0 0
      %6220 = vmatmul.mubr.bf16.gmra.mrb[0].mxu0 %v6095
      %v6221 = vpop.f32.mrb[0].mxu0
      %v6222 = vadd.f32 0.0, %v6221
      %v6223 = vpop.f32.mrb[0].mxu0
      %v6224 = vpop.f32.mrb[0].mxu0
      %v6225 = vadd.f32 0.0, %v6224
      %v6226 = vpop.f32.mrb[0].mxu0
      %6227 = vmatprep.mubr.bf16.mxu0 0
      %6228 = vmatmul.mubr.bf16.gmra.mrb[0].mxu0 %v6098
      %v6229 = vpop.f32.mrb[0].mxu0
      %v6230 = vadd.f32 0.0, %v6229
      %v6231 = vpop.f32.mrb[0].mxu0
      %v6232 = vpop.f32.mrb[0].mxu0
      %v6233 = vadd.f32 0.0, %v6232
      %v6234 = vpop.f32.mrb[0].mxu0
      %6235 = vmatprep.mubr.bf16.mxu0 0
      %6236 = vmatmul.mubr.bf16.gmra.mrb[0].mxu0 %v6101
      %v6237 = vpop.f32.mrb[0].mxu0
      %v6238 = vadd.f32 0.0, %v6237
      %v6239 = vpop.f32.mrb[0].mxu0
      %v6240 = vpop.f32.mrb[0].mxu0
      %v6241 = vadd.f32 0.0, %v6240
      %v6242 = vpop.f32.mrb[0].mxu0
      %6243 = vmatprep.mubr.bf16.mxu0 0
      %6244 = vmatmul.mubr.bf16.gmra.mrb[0].mxu0 %v6104
      %v6245 = vpop.f32.mrb[0].mxu0
      %v6246 = vadd.f32 0.0, %v6245
      %v6247 = vpop.f32.mrb[0].mxu0
      %v6248 = vpop.f32.mrb[0].mxu0
      %v6249 = vadd.f32 0.0, %v6248
      %v6250 = vpop.f32.mrb[0].mxu0
      %6251 = vmatprep.mubr.bf16.mxu0 0
      %6252 = vmatmul.mubr.bf16.gmra.mrb[0].mxu0 %v6107
      %v6253 = vpop.f32.mrb[0].mxu0
      %v6254 = vadd.f32 0.0, %v6253
      %v6255 = vpop.f32.mrb[0].mxu0
      %v6256 = vpop.f32.mrb[0].mxu0
      %v6257 = vadd.f32 0.0, %v6256
      %v6258 = vpop.f32.mrb[0].mxu0
      %6259 = vmatprep.mubr.bf16.mxu0 0
      %6260 = vmatmul.mubr.bf16.gmra.mrb[0].mxu0 %v6110
      %v6261 = vpop.f32.mrb[0].mxu0
      %v6262 = vadd.f32 0.0, %v6261
      %v6263 = vpop.f32.mrb[0].mxu0
      %v6264 = vpop.f32.mrb[0].mxu0
      %v6265 = vadd.f32 0.0, %v6264
      %v6266 = vpop.f32.mrb[0].mxu0
      %6267 = vmatprep.mubr.bf16.mxu0 0
      %6268 = vmatmul.mubr.bf16.gmra.mrb[0].mxu0 %v6113
      %v6269 = vpop.f32.mrb[0].mxu0
      %v6270 = vadd.f32 0.0, %v6269
      %v6271 = vpop.f32.mrb[0].mxu0
      %v6272 = vpop.f32.mrb[0].mxu0
      %v6273 = vadd.f32 0.0, %v6272
      %v6274 = vpop.f32.mrb[0].mxu0
      %6275 = vdwg.mxu0
      %v6276 = vadd.f32 %v5832, %v6150
      %v6277 = vadd.f32 %v5833, %v6153
      %v6278 = vadd.f32 %v5834, %v6158
      %v6279 = vadd.f32 %v5835, %v6161
      %v6280 = vadd.f32 %v5836, %v6166
      %v6281 = vadd.f32 %v5837, %v6169
      %v6282 = vadd.f32 %v5838, %v6174
      %v6283 = vadd.f32 %v5839, %v6177
      %v6284 = vadd.f32 %v5840, %v6182
      %v6285 = vadd.f32 %v5841, %v6185
      %v6286 = vadd.f32 %v5842, %v6190
      %v6287 = vadd.f32 %v5843, %v6193
      %v6288 = vadd.f32 %v5844, %v6198
      %v6289 = vadd.f32 %v5845, %v6201
      %v6290 = vadd.f32 %v5846, %v6206
      %v6291 = vadd.f32 %v5847, %v6209
      %v6292 = vadd.f32 %v5848, %v6214
      %v6293 = vadd.f32 %v5849, %v6217
      %v6294 = vadd.f32 %v5850, %v6222
      %v6295 = vadd.f32 %v5851, %v6225
      %v6296 = vadd.f32 %v5852, %v6230
      %v6297 = vadd.f32 %v5853, %v6233
      %v6298 = vadd.f32 %v5854, %v6238
      %v6299 = vadd.f32 %v5855, %v6241
      %v6300 = vadd.f32 %v5856, %v6246
      %v6301 = vadd.f32 %v5857, %v6249
      %v6302 = vadd.f32 %v5858, %v6254
      %v6303 = vadd.f32 %v5859, %v6257
      %v6304 = vadd.f32 %v5860, %v6262
      %v6305 = vadd.f32 %v5861, %v6265
      %v6306 = vadd.f32 %v5862, %v6270
      %v6307 = vadd.f32 %v5863, %v6273
      %s6308 = scalar_lea.vmem %s4, 224
      %v6309 = vld [vmem:[%s6308] sm:$0xf]
      %v6310 = vld [vmem:[%s6308 + $0x4] sm:$0xf]
      %v6311 = vld [vmem:[%s6308 + $0x8] sm:$0xf]
      %v6312 = vld [vmem:[%s6308 + $0xc] sm:$0xf]
      %v6313 = vld [vmem:[%s6308 + $0x10] sm:$0xf]
      %v6314 = vld [vmem:[%s6308 + $0x14] sm:$0xf]
      %v6315 = vld [vmem:[%s6308 + $0x18] sm:$0xf]
      %v6316 = vld [vmem:[%s6308 + $0x1c] sm:$0xf]
      %v6325 = vunpack.c.l.b16 %v6309
      %v6326 = vunpack.c.l.b16 %v6310
      %v6327 = vunpack.c.l.b16 %v6311
      %v6328 = vunpack.c.l.b16 %v6312
      %v6329 = vunpack.c.l.b16 %v6313
      %v6330 = vunpack.c.l.b16 %v6314
      %v6331 = vunpack.c.l.b16 %v6315
      %v6332 = vunpack.c.l.b16 %v6316
      %v6333 = vpack.c.b16 %v6326, %v6325
      %v6334 = vpack.c.b16 %v6328, %v6327
      %v6335 = vpack.c.b16 %v6330, %v6329
      %v6336 = vpack.c.b16 %v6332, %v6331
      %6341 = vmatprep.subr.bf16.mxu0 0
      %6342 = vmatpush1.bf16.msra.mxu0 %v6333
      %6343 = vmatprep.subr.bf16.mxu0 0
      %6344 = vmatpush1.bf16.msra.mxu0 %v6334
      %6345 = vmatprep.subr.bf16.mxu0 0
      %6346 = vmatpush1.bf16.msra.mxu0 %v6335
      %6347 = vmatprep.subr.bf16.mxu0 0
      %6348 = vmatpush1.bf16.msra.mxu0 %v6336
      %6349 = vmatprep.subr.bf16.mxu0 0
      %6350 = vmatpush1.bf16.msra.mxu0 0
      %6351 = vmatprep.subr.bf16.mxu0 0
      %6352 = vmatpush1.bf16.msra.mxu0 0
      %6353 = vmatprep.subr.bf16.mxu0 0
      %6354 = vmatpush1.bf16.msra.mxu0 0
      %6355 = vmatprep.subr.bf16.mxu0 0
      %6356 = vmatpush1.bf16.msra.mxu0 0
      %6357 = vmatprep.subr.bf16.mxu0 0
      %6358 = vmatpush1.bf16.msra.mxu0 0
      %6359 = vmatprep.subr.bf16.mxu0 0
      %6360 = vmatpush1.bf16.msra.mxu0 0
      %6361 = vmatprep.subr.bf16.mxu0 0
      %6362 = vmatpush1.bf16.msra.mxu0 0
      %6363 = vmatprep.subr.bf16.mxu0 0
      %6364 = vmatpush1.bf16.msra.mxu0 0
      %6365 = vmatprep.subr.bf16.mxu0 0
      %6366 = vmatpush1.bf16.msra.mxu0 0
      %6367 = vmatprep.subr.bf16.mxu0 0
      %6368 = vmatpush1.bf16.msra.mxu0 0
      %6369 = vmatprep.subr.bf16.mxu0 0
      %6370 = vmatpush1.bf16.msra.mxu0 0
      %6371 = vmatprep.subr.bf16.mxu0 0
      %6372 = vmatpush1.bf16.msra.mxu0 0
      %6373 = vmatprep.mubr.bf16.mxu0 0
      %6374 = vmatmul.mubr.bf16.gmra.mrb[0].mxu0 %v1272
      %v6375 = vpop.f32.mrb[0].mxu0
      %v6376 = vadd.f32 0.0, %v6375
      %v6377 = vpop.f32.mrb[0].mxu0
      %v6378 = vpop.f32.mrb[0].mxu0
      %v6379 = vadd.f32 0.0, %v6378
      %v6380 = vpop.f32.mrb[0].mxu0
      %6381 = vmatprep.mubr.bf16.mxu0 0
      %6382 = vmatmul.mubr.bf16.gmra.mrb[0].mxu0 %v1275
      %v6383 = vpop.f32.mrb[0].mxu0
      %v6384 = vadd.f32 0.0, %v6383
      %v6385 = vpop.f32.mrb[0].mxu0
      %v6386 = vpop.f32.mrb[0].mxu0
      %v6387 = vadd.f32 0.0, %v6386
      %v6388 = vpop.f32.mrb[0].mxu0
      %6389 = vmatprep.mubr.bf16.mxu0 0
      %6390 = vmatmul.mubr.bf16.gmra.mrb[0].mxu0 %v1278
      %v6391 = vpop.f32.mrb[0].mxu0
      %v6392 = vadd.f32 0.0, %v6391
      %v6393 = vpop.f32.mrb[0].mxu0
      %v6394 = vpop.f32.mrb[0].mxu0
      %v6395 = vadd.f32 0.0, %v6394
      %v6396 = vpop.f32.mrb[0].mxu0
      %6397 = vmatprep.mubr.bf16.mxu0 0
      %6398 = vmatmul.mubr.bf16.gmra.mrb[0].mxu0 %v1281
      %v6399 = vpop.f32.mrb[0].mxu0
      %v6400 = vadd.f32 0.0, %v6399
      %v6401 = vpop.f32.mrb[0].mxu0
      %v6402 = vpop.f32.mrb[0].mxu0
      %v6403 = vadd.f32 0.0, %v6402
      %v6404 = vpop.f32.mrb[0].mxu0
      %6405 = vmatprep.mubr.bf16.mxu0 0
      %6406 = vmatmul.mubr.bf16.gmra.mrb[0].mxu0 %v1284
      %v6407 = vpop.f32.mrb[0].mxu0
      %v6408 = vadd.f32 0.0, %v6407
      %v6409 = vpop.f32.mrb[0].mxu0
      %v6410 = vpop.f32.mrb[0].mxu0
      %v6411 = vadd.f32 0.0, %v6410
      %v6412 = vpop.f32.mrb[0].mxu0
      %6413 = vmatprep.mubr.bf16.mxu0 0
      %6414 = vmatmul.mubr.bf16.gmra.mrb[0].mxu0 %v1287
      %v6415 = vpop.f32.mrb[0].mxu0
      %v6416 = vadd.f32 0.0, %v6415
      %v6417 = vpop.f32.mrb[0].mxu0
      %v6418 = vpop.f32.mrb[0].mxu0
      %v6419 = vadd.f32 0.0, %v6418
      %v6420 = vpop.f32.mrb[0].mxu0
      %6421 = vmatprep.mubr.bf16.mxu0 0
      %6422 = vmatmul.mubr.bf16.gmra.mrb[0].mxu0 %v1290
      %v6423 = vpop.f32.mrb[0].mxu0
      %v6424 = vadd.f32 0.0, %v6423
      %v6425 = vpop.f32.mrb[0].mxu0
      %v6426 = vpop.f32.mrb[0].mxu0
      %v6427 = vadd.f32 0.0, %v6426
      %v6428 = vpop.f32.mrb[0].mxu0
      %6429 = vmatprep.mubr.bf16.mxu0 0
      %6430 = vmatmul.mubr.bf16.gmra.mrb[0].mxu0 %v1293
      %v6431 = vpop.f32.mrb[0].mxu0
      %v6432 = vadd.f32 0.0, %v6431
      %v6433 = vpop.f32.mrb[0].mxu0
      %v6434 = vpop.f32.mrb[0].mxu0
      %v6435 = vadd.f32 0.0, %v6434
      %v6436 = vpop.f32.mrb[0].mxu0
      %6437 = vmatprep.mubr.bf16.mxu0 0
      %6438 = vmatmul.mubr.bf16.gmra.mrb[0].mxu0 %v1296
      %v6439 = vpop.f32.mrb[0].mxu0
      %v6440 = vadd.f32 0.0, %v6439
      %v6441 = vpop.f32.mrb[0].mxu0
      %v6442 = vpop.f32.mrb[0].mxu0
      %v6443 = vadd.f32 0.0, %v6442
      %v6444 = vpop.f32.mrb[0].mxu0
      %6445 = vmatprep.mubr.bf16.mxu0 0
      %6446 = vmatmul.mubr.bf16.gmra.mrb[0].mxu0 %v1299
      %v6447 = vpop.f32.mrb[0].mxu0
      %v6448 = vadd.f32 0.0, %v6447
      %v6449 = vpop.f32.mrb[0].mxu0
      %v6450 = vpop.f32.mrb[0].mxu0
      %v6451 = vadd.f32 0.0, %v6450
      %v6452 = vpop.f32.mrb[0].mxu0
      %6453 = vmatprep.mubr.bf16.mxu0 0
      %6454 = vmatmul.mubr.bf16.gmra.mrb[0].mxu0 %v1302
      %v6455 = vpop.f32.mrb[0].mxu0
      %v6456 = vadd.f32 0.0, %v6455
      %v6457 = vpop.f32.mrb[0].mxu0
      %v6458 = vpop.f32.mrb[0].mxu0
      %v6459 = vadd.f32 0.0, %v6458
      %v6460 = vpop.f32.mrb[0].mxu0
      %6461 = vmatprep.mubr.bf16.mxu0 0
      %6462 = vmatmul.mubr.bf16.gmra.mrb[0].mxu0 %v1305
      %v6463 = vpop.f32.mrb[0].mxu0
      %v6464 = vadd.f32 0.0, %v6463
      %v6465 = vpop.f32.mrb[0].mxu0
      %v6466 = vpop.f32.mrb[0].mxu0
      %v6467 = vadd.f32 0.0, %v6466
      %v6468 = vpop.f32.mrb[0].mxu0
      %6469 = vmatprep.mubr.bf16.mxu0 0
      %6470 = vmatmul.mubr.bf16.gmra.mrb[0].mxu0 %v1308
      %v6471 = vpop.f32.mrb[0].mxu0
      %v6472 = vadd.f32 0.0, %v6471
      %v6473 = vpop.f32.mrb[0].mxu0
      %v6474 = vpop.f32.mrb[0].mxu0
      %v6475 = vadd.f32 0.0, %v6474
      %v6476 = vpop.f32.mrb[0].mxu0
      %6477 = vmatprep.mubr.bf16.mxu0 0
      %6478 = vmatmul.mubr.bf16.gmra.mrb[0].mxu0 %v1311
      %v6479 = vpop.f32.mrb[0].mxu0
      %v6480 = vadd.f32 0.0, %v6479
      %v6481 = vpop.f32.mrb[0].mxu0
      %v6482 = vpop.f32.mrb[0].mxu0
      %v6483 = vadd.f32 0.0, %v6482
      %v6484 = vpop.f32.mrb[0].mxu0
      %6485 = vmatprep.mubr.bf16.mxu0 0
      %6486 = vmatmul.mubr.bf16.gmra.mrb[0].mxu0 %v1314
      %v6487 = vpop.f32.mrb[0].mxu0
      %v6488 = vadd.f32 0.0, %v6487
      %v6489 = vpop.f32.mrb[0].mxu0
      %v6490 = vpop.f32.mrb[0].mxu0
      %v6491 = vadd.f32 0.0, %v6490
      %v6492 = vpop.f32.mrb[0].mxu0
      %6493 = vmatprep.mubr.bf16.mxu0 0
      %6494 = vmatmul.mubr.bf16.gmra.mrb[0].mxu0 %v3187
      %v6495 = vpop.f32.mrb[0].mxu0
      %v6496 = vadd.f32 0.0, %v6495
      %v6497 = vpop.f32.mrb[0].mxu0
      %v6498 = vpop.f32.mrb[0].mxu0
      %v6499 = vadd.f32 0.0, %v6498
      %v6500 = vpop.f32.mrb[0].mxu0
      %6501 = vdwg.mxu0
      %v6502 = vadd.f32 %v6276, %v6376
      %v6503 = vadd.f32 %v6277, %v6379
      %v6504 = vadd.f32 %v6278, %v6384
      %v6505 = vadd.f32 %v6279, %v6387
      %v6506 = vadd.f32 %v6280, %v6392
      %v6507 = vadd.f32 %v6281, %v6395
      %v6508 = vadd.f32 %v6282, %v6400
      %v6509 = vadd.f32 %v6283, %v6403
      %v6510 = vadd.f32 %v6284, %v6408
      %v6511 = vadd.f32 %v6285, %v6411
      %v6512 = vadd.f32 %v6286, %v6416
      %v6513 = vadd.f32 %v6287, %v6419
      %v6514 = vadd.f32 %v6288, %v6424
      %v6515 = vadd.f32 %v6289, %v6427
      %v6516 = vadd.f32 %v6290, %v6432
      %v6517 = vadd.f32 %v6291, %v6435
      %v6518 = vadd.f32 %v6292, %v6440
      %v6519 = vadd.f32 %v6293, %v6443
      %v6520 = vadd.f32 %v6294, %v6448
      %v6521 = vadd.f32 %v6295, %v6451
      %v6522 = vadd.f32 %v6296, %v6456
      %v6523 = vadd.f32 %v6297, %v6459
      %v6524 = vadd.f32 %v6298, %v6464
      %v6525 = vadd.f32 %v6299, %v6467
      %v6526 = vadd.f32 %v6300, %v6472
      %v6527 = vadd.f32 %v6301, %v6475
      %v6528 = vadd.f32 %v6302, %v6480
      %v6529 = vadd.f32 %v6303, %v6483
      %v6530 = vadd.f32 %v6304, %v6488
      %v6531 = vadd.f32 %v6305, %v6491
      %v6532 = vadd.f32 %v6306, %v6496
      %v6533 = vadd.f32 %v6307, %v6499
      %v6534 = vmul.bf16 %v1214, %v4208
      %v6535 = vmul.bf16 %v1215, %v4216
      %v6536 = vmul.bf16 %v1216, %v4224
      %v6537 = vmul.bf16 %v1217, %v4232
      %v6538 = vmul.bf16 %v1218, %v4240
      %v6539 = vmul.bf16 %v1219, %v4248
      %v6540 = vmul.bf16 %v1220, %v4256
      %v6541 = vmul.bf16 %v1221, %v4264
      %v6542 = vmul.bf16 %v1222, %v4272
      %v6543 = vmul.bf16 %v1223, %v4280
      %v6544 = vmul.bf16 %v1224, %v4288
      %v6545 = vmul.bf16 %v1225, %v4296
      %v6546 = vmul.bf16 %v1226, %v4304
      %v6547 = vmul.bf16 %v1227, %v4312
      %v6548 = vmul.bf16 %v1228, %v4320
      %v6549 = vmul.bf16 %v2486, %v4328
      %s6550 = scalar_lea.vmem %s4, 256
      %v6551 = vld [vmem:[%s6550] sm:$0xf]
      %v6552 = vld [vmem:[%s6550 + $0x4] sm:$0xf]
      %v6553 = vld [vmem:[%s6550 + $0x8] sm:$0xf]
      %v6554 = vld [vmem:[%s6550 + $0xc] sm:$0xf]
      %v6555 = vld [vmem:[%s6550 + $0x10] sm:$0xf]
      %v6556 = vld [vmem:[%s6550 + $0x14] sm:$0xf]
      %v6557 = vld [vmem:[%s6550 + $0x18] sm:$0xf]
      %v6558 = vld [vmem:[%s6550 + $0x1c] sm:$0xf]
      %v6560 = vshrl.u32 %v6534, 16
      %v6562 = vshll.u32 %v6534, 16
      %v6564 = vrot.slane %v6562, 1
      %v6565 = vor.u32 %v6560, %v6564
      %v6567 = vshll.u32 %v6535, 16
      %v6569 = vrot.slane %v6567, 1
      %v6570 = vsel %vm4372, %v6565, %v6569
      %v6571 = vshrl.u32 %v6535, 16
      %v6573 = vor.u32 %v6571, %v6569
      %v6575 = vshll.u32 %v6536, 16
      %v6577 = vrot.slane %v6575, 1
      %v6578 = vsel %vm4372, %v6573, %v6577
      %v6579 = vshrl.u32 %v6536, 16
      %v6581 = vor.u32 %v6579, %v6577
      %v6583 = vshll.u32 %v6537, 16
      %v6585 = vrot.slane %v6583, 1
      %v6586 = vsel %vm4372, %v6581, %v6585
      %v6587 = vshrl.u32 %v6537, 16
      %v6589 = vor.u32 %v6587, %v6585
      %v6591 = vshll.u32 %v6538, 16
      %v6593 = vrot.slane %v6591, 1
      %v6594 = vsel %vm4372, %v6589, %v6593
      %v6595 = vshrl.u32 %v6538, 16
      %v6597 = vor.u32 %v6595, %v6593
      %v6599 = vshll.u32 %v6539, 16
      %v6601 = vrot.slane %v6599, 1
      %v6602 = vsel %vm4372, %v6597, %v6601
      %v6603 = vshrl.u32 %v6539, 16
      %v6605 = vor.u32 %v6603, %v6601
      %v6607 = vshll.u32 %v6540, 16
      %v6609 = vrot.slane %v6607, 1
      %v6610 = vsel %vm4372, %v6605, %v6609
      %v6611 = vshrl.u32 %v6540, 16
      %v6613 = vor.u32 %v6611, %v6609
      %v6615 = vshll.u32 %v6541, 16
      %v6617 = vrot.slane %v6615, 1
      %v6618 = vsel %vm4372, %v6613, %v6617
      %v6619 = vshrl.u32 %v6541, 16
      %v6621 = vor.u32 %v6619, %v6617
      %v6623 = vshll.u32 %v6542, 16
      %v6625 = vrot.slane %v6623, 1
      %v6626 = vsel %vm4372, %v6621, %v6625
      %v6627 = vshrl.u32 %v6542, 16
      %v6629 = vor.u32 %v6627, %v6625
      %v6631 = vshll.u32 %v6543, 16
      %v6633 = vrot.slane %v6631, 1
      %v6634 = vsel %vm4372, %v6629, %v6633
      %v6635 = vshrl.u32 %v6543, 16
      %v6637 = vor.u32 %v6635, %v6633
      %v6639 = vshll.u32 %v6544, 16
      %v6641 = vrot.slane %v6639, 1
      %v6642 = vsel %vm4372, %v6637, %v6641
      %v6643 = vshrl.u32 %v6544, 16
      %v6645 = vor.u32 %v6643, %v6641
      %v6647 = vshll.u32 %v6545, 16
      %v6649 = vrot.slane %v6647, 1
      %v6650 = vsel %vm4372, %v6645, %v6649
      %v6651 = vshrl.u32 %v6545, 16
      %v6653 = vor.u32 %v6651, %v6649
      %v6655 = vshll.u32 %v6546, 16
      %v6657 = vrot.slane %v6655, 1
      %v6658 = vsel %vm4372, %v6653, %v6657
      %v6659 = vshrl.u32 %v6546, 16
      %v6661 = vor.u32 %v6659, %v6657
      %v6663 = vshll.u32 %v6547, 16
      %v6665 = vrot.slane %v6663, 1
      %v6666 = vsel %vm4372, %v6661, %v6665
      %v6667 = vshrl.u32 %v6547, 16
      %v6669 = vor.u32 %v6667, %v6665
      %v6671 = vshll.u32 %v6548, 16
      %v6673 = vrot.slane %v6671, 1
      %v6674 = vsel %vm4372, %v6669, %v6673
      %v6675 = vshrl.u32 %v6548, 16
      %v6677 = vor.u32 %v6675, %v6673
      %v6679 = vshll.u32 %v6549, 16
      %v6681 = vrot.slane %v6679, 1
      %v6682 = vsel %vm4372, %v6677, %v6681
      %v6683 = vshrl.u32 %v6549, 16
      %v6685 = vor.u32 %v6683, %v6681
      %v6686 = vsel %vm4372, %v6685, %v5597
      %v6695 = vunpack.c.l.b16 %v6551
      %v6696 = vunpack.c.l.b16 %v6552
      %v6697 = vunpack.c.l.b16 %v6553
      %v6698 = vunpack.c.l.b16 %v6554
      %v6699 = vunpack.c.l.b16 %v6555
      %v6700 = vunpack.c.l.b16 %v6556
      %v6701 = vunpack.c.l.b16 %v6557
      %v6702 = vunpack.c.l.b16 %v6558
      %v6703 = vpack.c.b16 %v6696, %v6695
      %v6704 = vpack.c.b16 %v6698, %v6697
      %v6705 = vpack.c.b16 %v6700, %v6699
      %v6706 = vpack.c.b16 %v6702, %v6701
      %v6712 = vsel %vm779, %v6570, 0
      %v6715 = vsel %vm779, %v6578, 0
      %v6718 = vsel %vm779, %v6586, 0
      %v6721 = vsel %vm779, %v6594, 0
      %v6724 = vsel %vm779, %v6602, 0
      %v6727 = vsel %vm779, %v6610, 0
      %v6730 = vsel %vm779, %v6618, 0
      %v6733 = vsel %vm779, %v6626, 0
      %v6736 = vsel %vm779, %v6634, 0
      %v6739 = vsel %vm779, %v6642, 0
      %v6742 = vsel %vm779, %v6650, 0
      %v6745 = vsel %vm779, %v6658, 0
      %v6748 = vsel %vm779, %v6666, 0
      %v6751 = vsel %vm779, %v6674, 0
      %v6754 = vsel %vm779, %v6682, 0
      %v6757 = vsel %vm779, %v6686, 0
      %6759 = vmatprep.subr.bf16.mxu0 0
      %6760 = vmatpush1.bf16.msra.mxu0 %v6703
      %6761 = vmatprep.subr.bf16.mxu0 0
      %6762 = vmatpush1.bf16.msra.mxu0 %v6704
      %6763 = vmatprep.subr.bf16.mxu0 0
      %6764 = vmatpush1.bf16.msra.mxu0 %v6705
      %6765 = vmatprep.subr.bf16.mxu0 0
      %6766 = vmatpush1.bf16.msra.mxu0 %v6706
      %6767 = vmatprep.subr.bf16.mxu0 0
      %6768 = vmatpush1.bf16.msra.mxu0 0
      %6769 = vmatprep.subr.bf16.mxu0 0
      %6770 = vmatpush1.bf16.msra.mxu0 0
      %6771 = vmatprep.subr.bf16.mxu0 0
      %6772 = vmatpush1.bf16.msra.mxu0 0
      %6773 = vmatprep.subr.bf16.mxu0 0
      %6774 = vmatpush1.bf16.msra.mxu0 0
      %6775 = vmatprep.subr.bf16.mxu0 0
      %6776 = vmatpush1.bf16.msra.mxu0 0
      %6777 = vmatprep.subr.bf16.mxu0 0
      %6778 = vmatpush1.bf16.msra.mxu0 0
      %6779 = vmatprep.subr.bf16.mxu0 0
      %6780 = vmatpush1.bf16.msra.mxu0 0
      %6781 = vmatprep.subr.bf16.mxu0 0
      %6782 = vmatpush1.bf16.msra.mxu0 0
      %6783 = vmatprep.subr.bf16.mxu0 0
      %6784 = vmatpush1.bf16.msra.mxu0 0
      %6785 = vmatprep.subr.bf16.mxu0 0
      %6786 = vmatpush1.bf16.msra.mxu0 0
      %6787 = vmatprep.subr.bf16.mxu0 0
      %6788 = vmatpush1.bf16.msra.mxu0 0
      %6789 = vmatprep.subr.bf16.mxu0 0
      %6790 = vmatpush1.bf16.msra.mxu0 0
      %6791 = vmatprep.mubr.bf16.mxu0 0
      %6792 = vmatmul.mubr.bf16.gmra.mrb[0].mxu0 %v6712
      %v6793 = vpop.f32.mrb[0].mxu0
      %v6794 = vadd.f32 0.0, %v6793
      %v6795 = vpop.f32.mrb[0].mxu0
      %v6796 = vpop.f32.mrb[0].mxu0
      %v6797 = vadd.f32 0.0, %v6796
      %v6798 = vpop.f32.mrb[0].mxu0
      %6799 = vmatprep.mubr.bf16.mxu0 0
      %6800 = vmatmul.mubr.bf16.gmra.mrb[0].mxu0 %v6715
      %v6801 = vpop.f32.mrb[0].mxu0
      %v6802 = vadd.f32 0.0, %v6801
      %v6803 = vpop.f32.mrb[0].mxu0
      %v6804 = vpop.f32.mrb[0].mxu0
      %v6805 = vadd.f32 0.0, %v6804
      %v6806 = vpop.f32.mrb[0].mxu0
      %6807 = vmatprep.mubr.bf16.mxu0 0
      %6808 = vmatmul.mubr.bf16.gmra.mrb[0].mxu0 %v6718
      %v6809 = vpop.f32.mrb[0].mxu0
      %v6810 = vadd.f32 0.0, %v6809
      %v6811 = vpop.f32.mrb[0].mxu0
      %v6812 = vpop.f32.mrb[0].mxu0
      %v6813 = vadd.f32 0.0, %v6812
      %v6814 = vpop.f32.mrb[0].mxu0
      %6815 = vmatprep.mubr.bf16.mxu0 0
      %6816 = vmatmul.mubr.bf16.gmra.mrb[0].mxu0 %v6721
      %v6817 = vpop.f32.mrb[0].mxu0
      %v6818 = vadd.f32 0.0, %v6817
      %v6819 = vpop.f32.mrb[0].mxu0
      %v6820 = vpop.f32.mrb[0].mxu0
      %v6821 = vadd.f32 0.0, %v6820
      %v6822 = vpop.f32.mrb[0].mxu0
      %6823 = vmatprep.mubr.bf16.mxu0 0
      %6824 = vmatmul.mubr.bf16.gmra.mrb[0].mxu0 %v6724
      %v6825 = vpop.f32.mrb[0].mxu0
      %v6826 = vadd.f32 0.0, %v6825
      %v6827 = vpop.f32.mrb[0].mxu0
      %v6828 = vpop.f32.mrb[0].mxu0
      %v6829 = vadd.f32 0.0, %v6828
      %v6830 = vpop.f32.mrb[0].mxu0
      %6831 = vmatprep.mubr.bf16.mxu0 0
      %6832 = vmatmul.mubr.bf16.gmra.mrb[0].mxu0 %v6727
      %v6833 = vpop.f32.mrb[0].mxu0
      %v6834 = vadd.f32 0.0, %v6833
      %v6835 = vpop.f32.mrb[0].mxu0
      %v6836 = vpop.f32.mrb[0].mxu0
      %v6837 = vadd.f32 0.0, %v6836
      %v6838 = vpop.f32.mrb[0].mxu0
      %6839 = vmatprep.mubr.bf16.mxu0 0
      %6840 = vmatmul.mubr.bf16.gmra.mrb[0].mxu0 %v6730
      %v6841 = vpop.f32.mrb[0].mxu0
      %v6842 = vadd.f32 0.0, %v6841
      %v6843 = vpop.f32.mrb[0].mxu0
      %v6844 = vpop.f32.mrb[0].mxu0
      %v6845 = vadd.f32 0.0, %v6844
      %v6846 = vpop.f32.mrb[0].mxu0
      %6847 = vmatprep.mubr.bf16.mxu0 0
      %6848 = vmatmul.mubr.bf16.gmra.mrb[0].mxu0 %v6733
      %v6849 = vpop.f32.mrb[0].mxu0
      %v6850 = vadd.f32 0.0, %v6849
      %v6851 = vpop.f32.mrb[0].mxu0
      %v6852 = vpop.f32.mrb[0].mxu0
      %v6853 = vadd.f32 0.0, %v6852
      %v6854 = vpop.f32.mrb[0].mxu0
      %6855 = vmatprep.mubr.bf16.mxu0 0
      %6856 = vmatmul.mubr.bf16.gmra.mrb[0].mxu0 %v6736
      %v6857 = vpop.f32.mrb[0].mxu0
      %v6858 = vadd.f32 0.0, %v6857
      %v6859 = vpop.f32.mrb[0].mxu0
      %v6860 = vpop.f32.mrb[0].mxu0
      %v6861 = vadd.f32 0.0, %v6860
      %v6862 = vpop.f32.mrb[0].mxu0
      %6863 = vmatprep.mubr.bf16.mxu0 0
      %6864 = vmatmul.mubr.bf16.gmra.mrb[0].mxu0 %v6739
      %v6865 = vpop.f32.mrb[0].mxu0
      %v6866 = vadd.f32 0.0, %v6865
      %v6867 = vpop.f32.mrb[0].mxu0
      %v6868 = vpop.f32.mrb[0].mxu0
      %v6869 = vadd.f32 0.0, %v6868
      %v6870 = vpop.f32.mrb[0].mxu0
      %6871 = vmatprep.mubr.bf16.mxu0 0
      %6872 = vmatmul.mubr.bf16.gmra.mrb[0].mxu0 %v6742
      %v6873 = vpop.f32.mrb[0].mxu0
      %v6874 = vadd.f32 0.0, %v6873
      %v6875 = vpop.f32.mrb[0].mxu0
      %v6876 = vpop.f32.mrb[0].mxu0
      %v6877 = vadd.f32 0.0, %v6876
      %v6878 = vpop.f32.mrb[0].mxu0
      %6879 = vmatprep.mubr.bf16.mxu0 0
      %6880 = vmatmul.mubr.bf16.gmra.mrb[0].mxu0 %v6745
      %v6881 = vpop.f32.mrb[0].mxu0
      %v6882 = vadd.f32 0.0, %v6881
      %v6883 = vpop.f32.mrb[0].mxu0
      %v6884 = vpop.f32.mrb[0].mxu0
      %v6885 = vadd.f32 0.0, %v6884
      %v6886 = vpop.f32.mrb[0].mxu0
      %6887 = vmatprep.mubr.bf16.mxu0 0
      %6888 = vmatmul.mubr.bf16.gmra.mrb[0].mxu0 %v6748
      %v6889 = vpop.f32.mrb[0].mxu0
      %v6890 = vadd.f32 0.0, %v6889
      %v6891 = vpop.f32.mrb[0].mxu0
      %v6892 = vpop.f32.mrb[0].mxu0
      %v6893 = vadd.f32 0.0, %v6892
      %v6894 = vpop.f32.mrb[0].mxu0
      %6895 = vmatprep.mubr.bf16.mxu0 0
      %6896 = vmatmul.mubr.bf16.gmra.mrb[0].mxu0 %v6751
      %v6897 = vpop.f32.mrb[0].mxu0
      %v6898 = vadd.f32 0.0, %v6897
      %v6899 = vpop.f32.mrb[0].mxu0
      %v6900 = vpop.f32.mrb[0].mxu0
      %v6901 = vadd.f32 0.0, %v6900
      %v6902 = vpop.f32.mrb[0].mxu0
      %6903 = vmatprep.mubr.bf16.mxu0 0
      %6904 = vmatmul.mubr.bf16.gmra.mrb[0].mxu0 %v6754
      %v6905 = vpop.f32.mrb[0].mxu0
      %v6906 = vadd.f32 0.0, %v6905
      %v6907 = vpop.f32.mrb[0].mxu0
      %v6908 = vpop.f32.mrb[0].mxu0
      %v6909 = vadd.f32 0.0, %v6908
      %v6910 = vpop.f32.mrb[0].mxu0
      %6911 = vmatprep.mubr.bf16.mxu0 0
      %6912 = vmatmul.mubr.bf16.gmra.mrb[0].mxu0 %v6757
      %v6913 = vpop.f32.mrb[0].mxu0
      %v6914 = vadd.f32 0.0, %v6913
      %v6915 = vpop.f32.mrb[0].mxu0
      %v6916 = vpop.f32.mrb[0].mxu0
      %v6917 = vadd.f32 0.0, %v6916
      %v6918 = vpop.f32.mrb[0].mxu0
      %6919 = vdwg.mxu0
      %v6920 = vadd.f32 %v6502, %v6794
      %v6921 = vadd.f32 %v6503, %v6797
      %v6922 = vadd.f32 %v6504, %v6802
      %v6923 = vadd.f32 %v6505, %v6805
      %v6924 = vadd.f32 %v6506, %v6810
      %v6925 = vadd.f32 %v6507, %v6813
      %v6926 = vadd.f32 %v6508, %v6818
      %v6927 = vadd.f32 %v6509, %v6821
      %v6928 = vadd.f32 %v6510, %v6826
      %v6929 = vadd.f32 %v6511, %v6829
      %v6930 = vadd.f32 %v6512, %v6834
      %v6931 = vadd.f32 %v6513, %v6837
      %v6932 = vadd.f32 %v6514, %v6842
      %v6933 = vadd.f32 %v6515, %v6845
      %v6934 = vadd.f32 %v6516, %v6850
      %v6935 = vadd.f32 %v6517, %v6853
      %v6936 = vadd.f32 %v6518, %v6858
      %v6937 = vadd.f32 %v6519, %v6861
      %v6938 = vadd.f32 %v6520, %v6866
      %v6939 = vadd.f32 %v6521, %v6869
      %v6940 = vadd.f32 %v6522, %v6874
      %v6941 = vadd.f32 %v6523, %v6877
      %v6942 = vadd.f32 %v6524, %v6882
      %v6943 = vadd.f32 %v6525, %v6885
      %v6944 = vadd.f32 %v6526, %v6890
      %v6945 = vadd.f32 %v6527, %v6893
      %v6946 = vadd.f32 %v6528, %v6898
      %v6947 = vadd.f32 %v6529, %v6901
      %v6948 = vadd.f32 %v6530, %v6906
      %v6949 = vadd.f32 %v6531, %v6909
      %v6950 = vadd.f32 %v6532, %v6914
      %v6951 = vadd.f32 %v6533, %v6917
      %v6952 = vld [vmem:[%s5] sm:$0x1]
      %v6954 = vlaneseq
      %v6955 = vshrl.u32 %v6954, 7
      %v6956 = vsub.s32 0, %v6955
      %v6957 = vrot.slane %v6952, %v6956
      %v6959 = vadd.f32 %v6920, %v6957
      %v6960 = vadd.f32 %v6921, %v6957
      %v6961 = vadd.f32 %v6922, %v6957
      %v6962 = vadd.f32 %v6923, %v6957
      %v6963 = vadd.f32 %v6924, %v6957
      %v6964 = vadd.f32 %v6925, %v6957
      %v6965 = vadd.f32 %v6926, %v6957
      %v6966 = vadd.f32 %v6927, %v6957
      %v6967 = vadd.f32 %v6928, %v6957
      %v6968 = vadd.f32 %v6929, %v6957
      %v6969 = vadd.f32 %v6930, %v6957
      %v6970 = vadd.f32 %v6931, %v6957
      %v6971 = vadd.f32 %v6932, %v6957
      %v6972 = vadd.f32 %v6933, %v6957
      %v6973 = vadd.f32 %v6934, %v6957
      %v6974 = vadd.f32 %v6935, %v6957
      %v6975 = vadd.f32 %v6936, %v6957
      %v6976 = vadd.f32 %v6937, %v6957
      %v6977 = vadd.f32 %v6938, %v6957
      %v6978 = vadd.f32 %v6939, %v6957
      %v6979 = vadd.f32 %v6940, %v6957
      %v6980 = vadd.f32 %v6941, %v6957
      %v6981 = vadd.f32 %v6942, %v6957
      %v6982 = vadd.f32 %v6943, %v6957
      %v6983 = vadd.f32 %v6944, %v6957
      %v6984 = vadd.f32 %v6945, %v6957
      %v6985 = vadd.f32 %v6946, %v6957
      %v6986 = vadd.f32 %v6947, %v6957
      %v6987 = vadd.f32 %v6948, %v6957
      %v6988 = vadd.f32 %v6949, %v6957
      %v6989 = vadd.f32 %v6950, %v6957
      %v6990 = vadd.f32 %v6951, %v6957
      %v6991 = vxor.u32 %v6959, 2147483648
      %v6992 = vxor.u32 %v6960, 2147483648
      %v6993 = vxor.u32 %v6961, 2147483648
      %v6994 = vxor.u32 %v6962, 2147483648
      %v6995 = vxor.u32 %v6963, 2147483648
      %v6996 = vxor.u32 %v6964, 2147483648
      %v6997 = vxor.u32 %v6965, 2147483648
      %v6998 = vxor.u32 %v6966, 2147483648
      %v6999 = vxor.u32 %v6967, 2147483648
      %v7000 = vxor.u32 %v6968, 2147483648
      %v7001 = vxor.u32 %v6969, 2147483648
      %v7002 = vxor.u32 %v6970, 2147483648
      %v7003 = vxor.u32 %v6971, 2147483648
      %v7004 = vxor.u32 %v6972, 2147483648
      %v7005 = vxor.u32 %v6973, 2147483648
      %v7006 = vxor.u32 %v6974, 2147483648
      %v7007 = vxor.u32 %v6975, 2147483648
      %v7008 = vxor.u32 %v6976, 2147483648
      %v7009 = vxor.u32 %v6977, 2147483648
      %v7010 = vxor.u32 %v6978, 2147483648
      %v7011 = vxor.u32 %v6979, 2147483648
      %v7012 = vxor.u32 %v6980, 2147483648
      %v7013 = vxor.u32 %v6981, 2147483648
      %v7014 = vxor.u32 %v6982, 2147483648
      %v7015 = vxor.u32 %v6983, 2147483648
      %v7016 = vxor.u32 %v6984, 2147483648
      %v7017 = vxor.u32 %v6985, 2147483648
      %v7018 = vxor.u32 %v6986, 2147483648
      %v7019 = vxor.u32 %v6987, 2147483648
      %v7020 = vxor.u32 %v6988, 2147483648
      %v7021 = vxor.u32 %v6989, 2147483648
      %v7022 = vxor.u32 %v6990, 2147483648
      %v7023 = vmul.f32 %v6991, 1.442695
      %v7024 = vpow.pop %v7023
      %v7025 = vmul.f32 %v6992, 1.442695
      %v7026 = vpow.pop %v7025
      %v7027 = vmul.f32 %v6993, 1.442695
      %v7028 = vpow.pop %v7027
      %v7029 = vmul.f32 %v6994, 1.442695
      %v7030 = vpow.pop %v7029
      %v7031 = vmul.f32 %v6995, 1.442695
      %v7032 = vpow.pop %v7031
      %v7033 = vmul.f32 %v6996, 1.442695
      %v7034 = vpow.pop %v7033
      %v7035 = vmul.f32 %v6997, 1.442695
      %v7036 = vpow.pop %v7035
      %v7037 = vmul.f32 %v6998, 1.442695
      %v7038 = vpow.pop %v7037
      %v7039 = vmul.f32 %v6999, 1.442695
      %v7040 = vpow.pop %v7039
      %v7041 = vmul.f32 %v7000, 1.442695
      %v7042 = vpow.pop %v7041
      %v7043 = vmul.f32 %v7001, 1.442695
      %v7044 = vpow.pop %v7043
      %v7045 = vmul.f32 %v7002, 1.442695
      %v7046 = vpow.pop %v7045
      %v7047 = vmul.f32 %v7003, 1.442695
      %v7048 = vpow.pop %v7047
      %v7049 = vmul.f32 %v7004, 1.442695
      %v7050 = vpow.pop %v7049
      %v7051 = vmul.f32 %v7005, 1.442695
      %v7052 = vpow.pop %v7051
      %v7053 = vmul.f32 %v7006, 1.442695
      %v7054 = vpow.pop %v7053
      %v7055 = vmul.f32 %v7007, 1.442695
      %v7056 = vpow.pop %v7055
      %v7057 = vmul.f32 %v7008, 1.442695
      %v7058 = vpow.pop %v7057
      %v7059 = vmul.f32 %v7009, 1.442695
      %v7060 = vpow.pop %v7059
      %v7061 = vmul.f32 %v7010, 1.442695
      %v7062 = vpow.pop %v7061
      %v7063 = vmul.f32 %v7011, 1.442695
      %v7064 = vpow.pop %v7063
      %v7065 = vmul.f32 %v7012, 1.442695
      %v7066 = vpow.pop %v7065
      %v7067 = vmul.f32 %v7013, 1.442695
      %v7068 = vpow.pop %v7067
      %v7069 = vmul.f32 %v7014, 1.442695
      %v7070 = vpow.pop %v7069
      %v7071 = vmul.f32 %v7015, 1.442695
      %v7072 = vpow.pop %v7071
      %v7073 = vmul.f32 %v7016, 1.442695
      %v7074 = vpow.pop %v7073
      %v7075 = vmul.f32 %v7017, 1.442695
      %v7076 = vpow.pop %v7075
      %v7077 = vmul.f32 %v7018, 1.442695
      %v7078 = vpow.pop %v7077
      %v7079 = vmul.f32 %v7019, 1.442695
      %v7080 = vpow.pop %v7079
      %v7081 = vmul.f32 %v7020, 1.442695
      %v7082 = vpow.pop %v7081
      %v7083 = vmul.f32 %v7021, 1.442695
      %v7084 = vpow.pop %v7083
      %v7085 = vmul.f32 %v7022, 1.442695
      %v7086 = vpow.pop %v7085
      %v7087 = vadd.f32 %v7024, 1.0
      %v7088 = vadd.f32 %v7026, 1.0
      %v7089 = vadd.f32 %v7028, 1.0
      %v7090 = vadd.f32 %v7030, 1.0
      %v7091 = vadd.f32 %v7032, 1.0
      %v7092 = vadd.f32 %v7034, 1.0
      %v7093 = vadd.f32 %v7036, 1.0
      %v7094 = vadd.f32 %v7038, 1.0
      %v7095 = vadd.f32 %v7040, 1.0
      %v7096 = vadd.f32 %v7042, 1.0
      %v7097 = vadd.f32 %v7044, 1.0
      %v7098 = vadd.f32 %v7046, 1.0
      %v7099 = vadd.f32 %v7048, 1.0
      %v7100 = vadd.f32 %v7050, 1.0
      %v7101 = vadd.f32 %v7052, 1.0
      %v7102 = vadd.f32 %v7054, 1.0
      %v7103 = vadd.f32 %v7056, 1.0
      %v7104 = vadd.f32 %v7058, 1.0
      %v7105 = vadd.f32 %v7060, 1.0
      %v7106 = vadd.f32 %v7062, 1.0
      %v7107 = vadd.f32 %v7064, 1.0
      %v7108 = vadd.f32 %v7066, 1.0
      %v7109 = vadd.f32 %v7068, 1.0
      %v7110 = vadd.f32 %v7070, 1.0
      %v7111 = vadd.f32 %v7072, 1.0
      %v7112 = vadd.f32 %v7074, 1.0
      %v7113 = vadd.f32 %v7076, 1.0
      %v7114 = vadd.f32 %v7078, 1.0
      %v7115 = vadd.f32 %v7080, 1.0
      %v7116 = vadd.f32 %v7082, 1.0
      %v7117 = vadd.f32 %v7084, 1.0
      %v7118 = vadd.f32 %v7086, 1.0
      %v7119 = vrcp.pop %v7087
      %v7120 = vmul.f32 1.0, %v7119
      %v7121 = vrcp.pop %v7088
      %v7122 = vmul.f32 1.0, %v7121
      %v7123 = vrcp.pop %v7089
      %v7124 = vmul.f32 1.0, %v7123
      %v7125 = vrcp.pop %v7090
      %v7126 = vmul.f32 1.0, %v7125
      %v7127 = vrcp.pop %v7091
      %v7128 = vmul.f32 1.0, %v7127
      %v7129 = vrcp.pop %v7092
      %v7130 = vmul.f32 1.0, %v7129
      %v7131 = vrcp.pop %v7093
      %v7132 = vmul.f32 1.0, %v7131
      %v7133 = vrcp.pop %v7094
      %v7134 = vmul.f32 1.0, %v7133
      %v7135 = vrcp.pop %v7095
      %v7136 = vmul.f32 1.0, %v7135
      %v7137 = vrcp.pop %v7096
      %v7138 = vmul.f32 1.0, %v7137
      %v7139 = vrcp.pop %v7097
      %v7140 = vmul.f32 1.0, %v7139
      %v7141 = vrcp.pop %v7098
      %v7142 = vmul.f32 1.0, %v7141
      %v7143 = vrcp.pop %v7099
      %v7144 = vmul.f32 1.0, %v7143
      %v7145 = vrcp.pop %v7100
      %v7146 = vmul.f32 1.0, %v7145
      %v7147 = vrcp.pop %v7101
      %v7148 = vmul.f32 1.0, %v7147
      %v7149 = vrcp.pop %v7102
      %v7150 = vmul.f32 1.0, %v7149
      %v7151 = vrcp.pop %v7103
      %v7152 = vmul.f32 1.0, %v7151
      %v7153 = vrcp.pop %v7104
      %v7154 = vmul.f32 1.0, %v7153
      %v7155 = vrcp.pop %v7105
      %v7156 = vmul.f32 1.0, %v7155
      %v7157 = vrcp.pop %v7106
      %v7158 = vmul.f32 1.0, %v7157
      %v7159 = vrcp.pop %v7107
      %v7160 = vmul.f32 1.0, %v7159
      %v7161 = vrcp.pop %v7108
      %v7162 = vmul.f32 1.0, %v7161
      %v7163 = vrcp.pop %v7109
      %v7164 = vmul.f32 1.0, %v7163
      %v7165 = vrcp.pop %v7110
      %v7166 = vmul.f32 1.0, %v7165
      %v7167 = vrcp.pop %v7111
      %v7168 = vmul.f32 1.0, %v7167
      %v7169 = vrcp.pop %v7112
      %v7170 = vmul.f32 1.0, %v7169
      %v7171 = vrcp.pop %v7113
      %v7172 = vmul.f32 1.0, %v7171
      %v7173 = vrcp.pop %v7114
      %v7174 = vmul.f32 1.0, %v7173
      %v7175 = vrcp.pop %v7115
      %v7176 = vmul.f32 1.0, %v7175
      %v7177 = vrcp.pop %v7116
      %v7178 = vmul.f32 1.0, %v7177
      %v7179 = vrcp.pop %v7117
      %v7180 = vmul.f32 1.0, %v7179
      %v7181 = vrcp.pop %v7118
      %v7182 = vmul.f32 1.0, %v7181
      %v7183 = vmul.f32 %v6959, %v7120
      %v7184 = vmul.f32 %v6960, %v7122
      %v7185 = vmul.f32 %v6961, %v7124
      %v7186 = vmul.f32 %v6962, %v7126
      %v7187 = vmul.f32 %v6963, %v7128
      %v7188 = vmul.f32 %v6964, %v7130
      %v7189 = vmul.f32 %v6965, %v7132
      %v7190 = vmul.f32 %v6966, %v7134
      %v7191 = vmul.f32 %v6967, %v7136
      %v7192 = vmul.f32 %v6968, %v7138
      %v7193 = vmul.f32 %v6969, %v7140
      %v7194 = vmul.f32 %v6970, %v7142
      %v7195 = vmul.f32 %v6971, %v7144
      %v7196 = vmul.f32 %v6972, %v7146
      %v7197 = vmul.f32 %v6973, %v7148
      %v7198 = vmul.f32 %v6974, %v7150
      %v7199 = vmul.f32 %v6975, %v7152
      %v7200 = vmul.f32 %v6976, %v7154
      %v7201 = vmul.f32 %v6977, %v7156
      %v7202 = vmul.f32 %v6978, %v7158
      %v7203 = vmul.f32 %v6979, %v7160
      %v7204 = vmul.f32 %v6980, %v7162
      %v7205 = vmul.f32 %v6981, %v7164
      %v7206 = vmul.f32 %v6982, %v7166
      %v7207 = vmul.f32 %v6983, %v7168
      %v7208 = vmul.f32 %v6984, %v7170
      %v7209 = vmul.f32 %v6985, %v7172
      %v7210 = vmul.f32 %v6986, %v7174
      %v7211 = vmul.f32 %v6987, %v7176
      %v7212 = vmul.f32 %v6988, %v7178
      %v7213 = vmul.f32 %v6989, %v7180
      %v7214 = vmul.f32 %v6990, %v7182
      %v7215 = vpack.c.bf16 %v7183, 0.0
      %v7216 = vpack.c.bf16 %v7185, %v7184
      %v7217 = vpack.c.bf16 %v7187, %v7186
      %v7218 = vpack.c.bf16 %v7189, %v7188
      %v7219 = vpack.c.bf16 %v7191, %v7190
      %v7220 = vpack.c.bf16 %v7193, %v7192
      %v7221 = vpack.c.bf16 %v7195, %v7194
      %v7222 = vpack.c.bf16 %v7197, %v7196
      %v7223 = vpack.c.bf16 %v7199, %v7198
      %v7224 = vpack.c.bf16 %v7201, %v7200
      %v7225 = vpack.c.bf16 %v7203, %v7202
      %v7226 = vpack.c.bf16 %v7205, %v7204
      %v7227 = vpack.c.bf16 %v7207, %v7206
      %v7228 = vpack.c.bf16 %v7209, %v7208
      %v7229 = vpack.c.bf16 %v7211, %v7210
      %v7230 = vpack.c.bf16 %v7212, %v7212
      %v7231 = vmul.bf16 %v7215, %v2984
      %v7232 = vmul.bf16 %v7216, %v2993
      %v7233 = vmul.bf16 %v7217, %v3002
      %v7234 = vmul.bf16 %v7218, %v3011
      %v7235 = vmul.bf16 %v7219, %v3020
      %v7236 = vmul.bf16 %v7220, %v3029
      %v7237 = vmul.bf16 %v7221, %v3038
      %v7238 = vmul.bf16 %v7222, %v3047
      %v7239 = vmul.bf16 %v7223, %v3056
      %v7240 = vmul.bf16 %v7224, %v3065
      %v7241 = vmul.bf16 %v7225, %v3074
      %v7242 = vmul.bf16 %v7226, %v3083
      %v7243 = vmul.bf16 %v7227, %v3092
      %v7244 = vmul.bf16 %v7228, %v3101
      %v7245 = vmul.bf16 %v7229, %v3110
      %v7246 = vmul.bf16 %v7230, %v3109
      %v7247 = vld [vmem:[%s6] sm:$0xf]
      %v7248 = vld [vmem:[%s6 + $0x4] sm:$0xf]
      %v7249 = vld [vmem:[%s6 + $0x8] sm:$0xf]
      %v7250 = vld [vmem:[%s6 + $0xc] sm:$0xf]
      %v7251 = vld [vmem:[%s6 + $0x10] sm:$0xf]
      %v7252 = vld [vmem:[%s6 + $0x14] sm:$0xf]
      %v7253 = vpack.c.bf16 %v7184, %v7183
      %v7254 = vpack.c.bf16 %v7186, %v7185
      %v7255 = vpack.c.bf16 %v7188, %v7187
      %v7256 = vpack.c.bf16 %v7190, %v7189
      %v7257 = vpack.c.bf16 %v7192, %v7191
      %v7258 = vpack.c.bf16 %v7194, %v7193
      %v7259 = vpack.c.bf16 %v7196, %v7195
      %v7260 = vpack.c.bf16 %v7198, %v7197
      %v7261 = vpack.c.bf16 %v7200, %v7199
      %v7262 = vpack.c.bf16 %v7202, %v7201
      %v7263 = vpack.c.bf16 %v7204, %v7203
      %v7264 = vpack.c.bf16 %v7206, %v7205
      %v7265 = vpack.c.bf16 %v7208, %v7207
      %v7266 = vpack.c.bf16 %v7210, %v7209
      %v7267 = vpack.c.bf16 %v7212, %v7211
      %s7268 = scalar_lea.vmem %s6, 24
      %v7269 = vld [vmem:[%s7268] sm:$0xf]
      %v7270 = vld [vmem:[%s7268 + $0x4] sm:$0xf]
      %v7271 = vld [vmem:[%s7268 + $0x8] sm:$0xf]
      %v7272 = vld [vmem:[%s7268 + $0xc] sm:$0xf]
      %v7273 = vld [vmem:[%s7268 + $0x10] sm:$0xf]
      %v7274 = vld [vmem:[%s7268 + $0x14] sm:$0xf]
      %v7281 = vunpack.c.l.b16 %v7269
      %v7282 = vunpack.c.l.b16 %v7270
      %v7283 = vunpack.c.l.b16 %v7271
      %v7284 = vunpack.c.l.b16 %v7272
      %v7285 = vunpack.c.l.b16 %v7273
      %v7286 = vunpack.c.l.b16 %v7274
      %v7287 = vpack.c.b16 %v7282, %v7281
      %v7288 = vpack.c.b16 %v7284, %v7283
      %v7289 = vpack.c.b16 %v7286, %v7285
      %vm7292 = vcmask 384000
      %v7293 = vsel %vm7292, %v2486, 0
      %v7296 = vsel %vm7292, %v7253, 0
      %v7299 = vsel %vm7292, %v7254, 0
      %v7302 = vsel %vm7292, %v7255, 0
      %v7305 = vsel %vm7292, %v7256, 0
      %v7308 = vsel %vm7292, %v7257, 0
      %v7311 = vsel %vm7292, %v7258, 0
      %v7314 = vsel %vm7292, %v7259, 0
      %v7317 = vsel %vm7292, %v7260, 0
      %v7320 = vsel %vm7292, %v7261, 0
      %v7323 = vsel %vm7292, %v7262, 0
      %v7326 = vsel %vm7292, %v7263, 0
      %v7329 = vsel %vm7292, %v7264, 0
      %v7332 = vsel %vm7292, %v7265, 0
      %v7335 = vsel %vm7292, %v7266, 0
      %v7338 = vsel %vm7292, %v7267, 0
      %vm7340 = vcmask 1046528
      %vm7341 = vcmask 1047552
      %v7342 = vsel %vm7340, 4294967295, 65535
      %v7343 = vsel %vm7341, %v7342, 0
      %v7345 = vand.u32 %v7289, %v7343
      %7347 = vmatprep.subr.bf16.mxu0 0
      %7348 = vmatpush1.bf16.msra.mxu0 %v7287
      %7349 = vmatprep.subr.bf16.mxu0 0
      %7350 = vmatpush1.bf16.msra.mxu0 %v7288
      %7351 = vmatprep.subr.bf16.mxu0 0
      %7352 = vmatpush1.bf16.msra.mxu0 %v7345
      %7353 = vmatprep.subr.bf16.mxu0 0
      %7354 = vmatpush1.bf16.msra.mxu0 0
      %7355 = vmatprep.subr.bf16.mxu0 0
      %7356 = vmatpush1.bf16.msra.mxu0 0
      %7357 = vmatprep.subr.bf16.mxu0 0
      %7358 = vmatpush1.bf16.msra.mxu0 0
      %7359 = vmatprep.subr.bf16.mxu0 0
      %7360 = vmatpush1.bf16.msra.mxu0 0
      %7361 = vmatprep.subr.bf16.mxu0 0
      %7362 = vmatpush1.bf16.msra.mxu0 0
      %7363 = vmatprep.subr.bf16.mxu0 0
      %7364 = vmatpush1.bf16.msra.mxu0 0
      %7365 = vmatprep.subr.bf16.mxu0 0
      %7366 = vmatpush1.bf16.msra.mxu0 0
      %7367 = vmatprep.subr.bf16.mxu0 0
      %7368 = vmatpush1.bf16.msra.mxu0 0
      %7369 = vmatprep.subr.bf16.mxu0 0
      %7370 = vmatpush1.bf16.msra.mxu0 0
      %7371 = vmatprep.subr.bf16.mxu0 0
      %7372 = vmatpush1.bf16.msra.mxu0 0
      %7373 = vmatprep.subr.bf16.mxu0 0
      %7374 = vmatpush1.bf16.msra.mxu0 0
      %7375 = vmatprep.subr.bf16.mxu0 0
      %7376 = vmatpush1.bf16.msra.mxu0 0
      %7377 = vmatprep.subr.bf16.mxu0 0
      %7378 = vmatpush1.bf16.msra.mxu0 0
      %7379 = vmatprep.mubr.bf16.mxu0 0
      %7380 = vmatmul.mubr.bf16.gmra.mrb[0].mxu0 %v7293
      %v7381 = vpop.f32.mrb[0].mxu0
      %v7382 = vadd.f32 0.0, %v7381
      %v7383 = vpop.f32.mrb[0].mxu0
      %v7384 = vpop.f32.mrb[0].mxu0
      %v7385 = vadd.f32 0.0, %v7384
      %v7386 = vpop.f32.mrb[0].mxu0
      %7387 = vmatprep.mubr.bf16.mxu0 0
      %7388 = vmatmul.mubr.bf16.gmra.mrb[0].mxu0 %v7296
      %v7389 = vpop.f32.mrb[0].mxu0
      %v7390 = vadd.f32 0.0, %v7389
      %v7391 = vpop.f32.mrb[0].mxu0
      %v7392 = vpop.f32.mrb[0].mxu0
      %v7393 = vadd.f32 0.0, %v7392
      %v7394 = vpop.f32.mrb[0].mxu0
      %7395 = vmatprep.mubr.bf16.mxu0 0
      %7396 = vmatmul.mubr.bf16.gmra.mrb[0].mxu0 %v7299
      %v7397 = vpop.f32.mrb[0].mxu0
      %v7398 = vadd.f32 0.0, %v7397
      %v7399 = vpop.f32.mrb[0].mxu0
      %v7400 = vpop.f32.mrb[0].mxu0
      %v7401 = vadd.f32 0.0, %v7400
      %v7402 = vpop.f32.mrb[0].mxu0
      %7403 = vmatprep.mubr.bf16.mxu0 0
      %7404 = vmatmul.mubr.bf16.gmra.mrb[0].mxu0 %v7302
      %v7405 = vpop.f32.mrb[0].mxu0
      %v7406 = vadd.f32 0.0, %v7405
      %v7407 = vpop.f32.mrb[0].mxu0
      %v7408 = vpop.f32.mrb[0].mxu0
      %v7409 = vadd.f32 0.0, %v7408
      %v7410 = vpop.f32.mrb[0].mxu0
      %7411 = vmatprep.mubr.bf16.mxu0 0
      %7412 = vmatmul.mubr.bf16.gmra.mrb[0].mxu0 %v7305
      %v7413 = vpop.f32.mrb[0].mxu0
      %v7414 = vadd.f32 0.0, %v7413
      %v7415 = vpop.f32.mrb[0].mxu0
      %v7416 = vpop.f32.mrb[0].mxu0
      %v7417 = vadd.f32 0.0, %v7416
      %v7418 = vpop.f32.mrb[0].mxu0
      %7419 = vmatprep.mubr.bf16.mxu0 0
      %7420 = vmatmul.mubr.bf16.gmra.mrb[0].mxu0 %v7308
      %v7421 = vpop.f32.mrb[0].mxu0
      %v7422 = vadd.f32 0.0, %v7421
      %v7423 = vpop.f32.mrb[0].mxu0
      %v7424 = vpop.f32.mrb[0].mxu0
      %v7425 = vadd.f32 0.0, %v7424
      %v7426 = vpop.f32.mrb[0].mxu0
      %7427 = vmatprep.mubr.bf16.mxu0 0
      %7428 = vmatmul.mubr.bf16.gmra.mrb[0].mxu0 %v7311
      %v7429 = vpop.f32.mrb[0].mxu0
      %v7430 = vadd.f32 0.0, %v7429
      %v7431 = vpop.f32.mrb[0].mxu0
      %v7432 = vpop.f32.mrb[0].mxu0
      %v7433 = vadd.f32 0.0, %v7432
      %v7434 = vpop.f32.mrb[0].mxu0
      %7435 = vmatprep.mubr.bf16.mxu0 0
      %7436 = vmatmul.mubr.bf16.gmra.mrb[0].mxu0 %v7314
      %v7437 = vpop.f32.mrb[0].mxu0
      %v7438 = vadd.f32 0.0, %v7437
      %v7439 = vpop.f32.mrb[0].mxu0
      %v7440 = vpop.f32.mrb[0].mxu0
      %v7441 = vadd.f32 0.0, %v7440
      %v7442 = vpop.f32.mrb[0].mxu0
      %7443 = vmatprep.mubr.bf16.mxu0 0
      %7444 = vmatmul.mubr.bf16.gmra.mrb[0].mxu0 %v7317
      %v7445 = vpop.f32.mrb[0].mxu0
      %v7446 = vadd.f32 0.0, %v7445
      %v7447 = vpop.f32.mrb[0].mxu0
      %v7448 = vpop.f32.mrb[0].mxu0
      %v7449 = vadd.f32 0.0, %v7448
      %v7450 = vpop.f32.mrb[0].mxu0
      %7451 = vmatprep.mubr.bf16.mxu0 0
      %7452 = vmatmul.mubr.bf16.gmra.mrb[0].mxu0 %v7320
      %v7453 = vpop.f32.mrb[0].mxu0
      %v7454 = vadd.f32 0.0, %v7453
      %v7455 = vpop.f32.mrb[0].mxu0
      %v7456 = vpop.f32.mrb[0].mxu0
      %v7457 = vadd.f32 0.0, %v7456
      %v7458 = vpop.f32.mrb[0].mxu0
      %7459 = vmatprep.mubr.bf16.mxu0 0
      %7460 = vmatmul.mubr.bf16.gmra.mrb[0].mxu0 %v7323
      %v7461 = vpop.f32.mrb[0].mxu0
      %v7462 = vadd.f32 0.0, %v7461
      %v7463 = vpop.f32.mrb[0].mxu0
      %v7464 = vpop.f32.mrb[0].mxu0
      %v7465 = vadd.f32 0.0, %v7464
      %v7466 = vpop.f32.mrb[0].mxu0
      %7467 = vmatprep.mubr.bf16.mxu0 0
      %7468 = vmatmul.mubr.bf16.gmra.mrb[0].mxu0 %v7326
      %v7469 = vpop.f32.mrb[0].mxu0
      %v7470 = vadd.f32 0.0, %v7469
      %v7471 = vpop.f32.mrb[0].mxu0
      %v7472 = vpop.f32.mrb[0].mxu0
      %v7473 = vadd.f32 0.0, %v7472
      %v7474 = vpop.f32.mrb[0].mxu0
      %7475 = vmatprep.mubr.bf16.mxu0 0
      %7476 = vmatmul.mubr.bf16.gmra.mrb[0].mxu0 %v7329
      %v7477 = vpop.f32.mrb[0].mxu0
      %v7478 = vadd.f32 0.0, %v7477
      %v7479 = vpop.f32.mrb[0].mxu0
      %v7480 = vpop.f32.mrb[0].mxu0
      %v7481 = vadd.f32 0.0, %v7480
      %v7482 = vpop.f32.mrb[0].mxu0
      %7483 = vmatprep.mubr.bf16.mxu0 0
      %7484 = vmatmul.mubr.bf16.gmra.mrb[0].mxu0 %v7332
      %v7485 = vpop.f32.mrb[0].mxu0
      %v7486 = vadd.f32 0.0, %v7485
      %v7487 = vpop.f32.mrb[0].mxu0
      %v7488 = vpop.f32.mrb[0].mxu0
      %v7489 = vadd.f32 0.0, %v7488
      %v7490 = vpop.f32.mrb[0].mxu0
      %7491 = vmatprep.mubr.bf16.mxu0 0
      %7492 = vmatmul.mubr.bf16.gmra.mrb[0].mxu0 %v7335
      %v7493 = vpop.f32.mrb[0].mxu0
      %v7494 = vadd.f32 0.0, %v7493
      %v7495 = vpop.f32.mrb[0].mxu0
      %v7496 = vpop.f32.mrb[0].mxu0
      %v7497 = vadd.f32 0.0, %v7496
      %v7498 = vpop.f32.mrb[0].mxu0
      %7499 = vmatprep.mubr.bf16.mxu0 0
      %7500 = vmatmul.mubr.bf16.gmra.mrb[0].mxu0 %v7338
      %v7501 = vpop.f32.mrb[0].mxu0
      %v7502 = vadd.f32 0.0, %v7501
      %v7503 = vpop.f32.mrb[0].mxu0
      %v7504 = vpop.f32.mrb[0].mxu0
      %v7505 = vadd.f32 0.0, %v7504
      %v7506 = vpop.f32.mrb[0].mxu0
      %7507 = vdwg.mxu0
      %v7509 = vshrl.u32 %v7231, 16
      %v7511 = vrot.slane %v7509, 3
      %v7512 = vshll.u32 %v7231, 16
      %v7514 = vrot.slane %v7512, 4
      %v7515 = vor.u32 %v7511, %v7514
      %v7516 = vsel %vm3350, %v3358, %v7515
      %v7518 = vshrl.u32 %v7232, 16
      %v7520 = vrot.slane %v7518, 3
      %v7521 = vshll.u32 %v7232, 16
      %v7523 = vrot.slane %v7521, 4
      %v7524 = vor.u32 %v7520, %v7523
      %v7525 = vsel %vm3350, %v7515, %v7524
      %v7527 = vshrl.u32 %v7233, 16
      %v7529 = vrot.slane %v7527, 3
      %v7530 = vshll.u32 %v7233, 16
      %v7532 = vrot.slane %v7530, 4
      %v7533 = vor.u32 %v7529, %v7532
      %v7534 = vsel %vm3350, %v7524, %v7533
      %v7536 = vshrl.u32 %v7234, 16
      %v7538 = vrot.slane %v7536, 3
      %v7539 = vshll.u32 %v7234, 16
      %v7541 = vrot.slane %v7539, 4
      %v7542 = vor.u32 %v7538, %v7541
      %v7543 = vsel %vm3350, %v7533, %v7542
      %v7545 = vshrl.u32 %v7235, 16
      %v7547 = vrot.slane %v7545, 3
      %v7548 = vshll.u32 %v7235, 16
      %v7550 = vrot.slane %v7548, 4
      %v7551 = vor.u32 %v7547, %v7550
      %v7552 = vsel %vm3350, %v7542, %v7551
      %v7554 = vshrl.u32 %v7236, 16
      %v7556 = vrot.slane %v7554, 3
      %v7557 = vshll.u32 %v7236, 16
      %v7559 = vrot.slane %v7557, 4
      %v7560 = vor.u32 %v7556, %v7559
      %v7561 = vsel %vm3350, %v7551, %v7560
      %v7563 = vshrl.u32 %v7237, 16
      %v7565 = vrot.slane %v7563, 3
      %v7566 = vshll.u32 %v7237, 16
      %v7568 = vrot.slane %v7566, 4
      %v7569 = vor.u32 %v7565, %v7568
      %v7570 = vsel %vm3350, %v7560, %v7569
      %v7572 = vshrl.u32 %v7238, 16
      %v7574 = vrot.slane %v7572, 3
      %v7575 = vshll.u32 %v7238, 16
      %v7577 = vrot.slane %v7575, 4
      %v7578 = vor.u32 %v7574, %v7577
      %v7579 = vsel %vm3350, %v7569, %v7578
      %v7581 = vshrl.u32 %v7239, 16
      %v7583 = vrot.slane %v7581, 3
      %v7584 = vshll.u32 %v7239, 16
      %v7586 = vrot.slane %v7584, 4
      %v7587 = vor.u32 %v7583, %v7586
      %v7588 = vsel %vm3350, %v7578, %v7587
      %v7590 = vshrl.u32 %v7240, 16
      %v7592 = vrot.slane %v7590, 3
      %v7593 = vshll.u32 %v7240, 16
      %v7595 = vrot.slane %v7593, 4
      %v7596 = vor.u32 %v7592, %v7595
      %v7597 = vsel %vm3350, %v7587, %v7596
      %v7599 = vshrl.u32 %v7241, 16
      %v7601 = vrot.slane %v7599, 3
      %v7602 = vshll.u32 %v7241, 16
      %v7604 = vrot.slane %v7602, 4
      %v7605 = vor.u32 %v7601, %v7604
      %v7606 = vsel %vm3350, %v7596, %v7605
      %v7608 = vshrl.u32 %v7242, 16
      %v7610 = vrot.slane %v7608, 3
      %v7611 = vshll.u32 %v7242, 16
      %v7613 = vrot.slane %v7611, 4
      %v7614 = vor.u32 %v7610, %v7613
      %v7615 = vsel %vm3350, %v7605, %v7614
      %v7617 = vshrl.u32 %v7243, 16
      %v7619 = vrot.slane %v7617, 3
      %v7620 = vshll.u32 %v7243, 16
      %v7622 = vrot.slane %v7620, 4
      %v7623 = vor.u32 %v7619, %v7622
      %v7624 = vsel %vm3350, %v7614, %v7623
      %v7626 = vshrl.u32 %v7244, 16
      %v7628 = vrot.slane %v7626, 3
      %v7629 = vshll.u32 %v7244, 16
      %v7631 = vrot.slane %v7629, 4
      %v7632 = vor.u32 %v7628, %v7631
      %v7633 = vsel %vm3350, %v7623, %v7632
      %v7635 = vshrl.u32 %v7245, 16
      %v7637 = vrot.slane %v7635, 3
      %v7638 = vshll.u32 %v7245, 16
      %v7640 = vrot.slane %v7638, 4
      %v7641 = vor.u32 %v7637, %v7640
      %v7642 = vsel %vm3350, %v7632, %v7641
      %v7644 = vshrl.u32 %v7246, 16
      %v7646 = vrot.slane %v7644, 3
      %v7647 = vshll.u32 %v7246, 16
      %v7649 = vrot.slane %v7647, 4
      %v7650 = vor.u32 %v7646, %v7649
      %v7651 = vsel %vm3350, %v7641, %v7650
      %v7658 = vunpack.c.l.b16 %v7247
      %v7659 = vunpack.c.l.b16 %v7248
      %v7660 = vunpack.c.l.b16 %v7249
      %v7661 = vunpack.c.l.b16 %v7250
      %v7662 = vunpack.c.l.b16 %v7251
      %v7663 = vunpack.c.l.b16 %v7252
      %v7664 = vpack.c.b16 %v7659, %v7658
      %v7665 = vpack.c.b16 %v7661, %v7660
      %v7666 = vpack.c.b16 %v7663, %v7662
      %v7670 = vsel %vm7292, %v7516, 0
      %v7673 = vsel %vm7292, %v7525, 0
      %v7676 = vsel %vm7292, %v7534, 0
      %v7679 = vsel %vm7292, %v7543, 0
      %v7682 = vsel %vm7292, %v7552, 0
      %v7685 = vsel %vm7292, %v7561, 0
      %v7688 = vsel %vm7292, %v7570, 0
      %v7691 = vsel %vm7292, %v7579, 0
      %v7694 = vsel %vm7292, %v7588, 0
      %v7697 = vsel %vm7292, %v7597, 0
      %v7700 = vsel %vm7292, %v7606, 0
      %v7703 = vsel %vm7292, %v7615, 0
      %v7706 = vsel %vm7292, %v7624, 0
      %v7709 = vsel %vm7292, %v7633, 0
      %v7712 = vsel %vm7292, %v7642, 0
      %v7715 = vsel %vm7292, %v7651, 0
      %v7718 = vand.u32 %v7666, %v7343
      %7720 = vmatprep.subr.bf16.mxu0 0
      %7721 = vmatpush1.bf16.msra.mxu0 %v7664
      %7722 = vmatprep.subr.bf16.mxu0 0
      %7723 = vmatpush1.bf16.msra.mxu0 %v7665
      %7724 = vmatprep.subr.bf16.mxu0 0
      %7725 = vmatpush1.bf16.msra.mxu0 %v7718
      %7726 = vmatprep.subr.bf16.mxu0 0
      %7727 = vmatpush1.bf16.msra.mxu0 0
      %7728 = vmatprep.subr.bf16.mxu0 0
      %7729 = vmatpush1.bf16.msra.mxu0 0
      %7730 = vmatprep.subr.bf16.mxu0 0
      %7731 = vmatpush1.bf16.msra.mxu0 0
      %7732 = vmatprep.subr.bf16.mxu0 0
      %7733 = vmatpush1.bf16.msra.mxu0 0
      %7734 = vmatprep.subr.bf16.mxu0 0
      %7735 = vmatpush1.bf16.msra.mxu0 0
      %7736 = vmatprep.subr.bf16.mxu0 0
      %7737 = vmatpush1.bf16.msra.mxu0 0
      %7738 = vmatprep.subr.bf16.mxu0 0
      %7739 = vmatpush1.bf16.msra.mxu0 0
      %7740 = vmatprep.subr.bf16.mxu0 0
      %7741 = vmatpush1.bf16.msra.mxu0 0
      %7742 = vmatprep.subr.bf16.mxu0 0
      %7743 = vmatpush1.bf16.msra.mxu0 0
      %7744 = vmatprep.subr.bf16.mxu0 0
      %7745 = vmatpush1.bf16.msra.mxu0 0
      %7746 = vmatprep.subr.bf16.mxu0 0
      %7747 = vmatpush1.bf16.msra.mxu0 0
      %7748 = vmatprep.subr.bf16.mxu0 0
      %7749 = vmatpush1.bf16.msra.mxu0 0
      %7750 = vmatprep.subr.bf16.mxu0 0
      %7751 = vmatpush1.bf16.msra.mxu0 0
      %7752 = vmatprep.mubr.bf16.mxu0 0
      %7753 = vmatmul.mubr.bf16.gmra.mrb[0].mxu0 %v7670
      %v7754 = vpop.f32.mrb[0].mxu0
      %v7755 = vadd.f32 %v7382, %v7754
      %v7756 = vpop.f32.mrb[0].mxu0
      %v7757 = vpop.f32.mrb[0].mxu0
      %v7758 = vadd.f32 %v7385, %v7757
      %v7759 = vpop.f32.mrb[0].mxu0
      %7760 = vmatprep.mubr.bf16.mxu0 0
      %7761 = vmatmul.mubr.bf16.gmra.mrb[0].mxu0 %v7673
      %v7762 = vpop.f32.mrb[0].mxu0
      %v7763 = vadd.f32 %v7390, %v7762
      %v7764 = vpop.f32.mrb[0].mxu0
      %v7765 = vpop.f32.mrb[0].mxu0
      %v7766 = vadd.f32 %v7393, %v7765
      %v7767 = vpop.f32.mrb[0].mxu0
      %7768 = vmatprep.mubr.bf16.mxu0 0
      %7769 = vmatmul.mubr.bf16.gmra.mrb[0].mxu0 %v7676
      %v7770 = vpop.f32.mrb[0].mxu0
      %v7771 = vadd.f32 %v7398, %v7770
      %v7772 = vpop.f32.mrb[0].mxu0
      %v7773 = vpop.f32.mrb[0].mxu0
      %v7774 = vadd.f32 %v7401, %v7773
      %v7775 = vpop.f32.mrb[0].mxu0
      %7776 = vmatprep.mubr.bf16.mxu0 0
      %7777 = vmatmul.mubr.bf16.gmra.mrb[0].mxu0 %v7679
      %v7778 = vpop.f32.mrb[0].mxu0
      %v7779 = vadd.f32 %v7406, %v7778
      %v7780 = vpop.f32.mrb[0].mxu0
      %v7781 = vpop.f32.mrb[0].mxu0
      %v7782 = vadd.f32 %v7409, %v7781
      %v7783 = vpop.f32.mrb[0].mxu0
      %7784 = vmatprep.mubr.bf16.mxu0 0
      %7785 = vmatmul.mubr.bf16.gmra.mrb[0].mxu0 %v7682
      %v7786 = vpop.f32.mrb[0].mxu0
      %v7787 = vadd.f32 %v7414, %v7786
      %v7788 = vpop.f32.mrb[0].mxu0
      %v7789 = vpop.f32.mrb[0].mxu0
      %v7790 = vadd.f32 %v7417, %v7789
      %v7791 = vpop.f32.mrb[0].mxu0
      %7792 = vmatprep.mubr.bf16.mxu0 0
      %7793 = vmatmul.mubr.bf16.gmra.mrb[0].mxu0 %v7685
      %v7794 = vpop.f32.mrb[0].mxu0
      %v7795 = vadd.f32 %v7422, %v7794
      %v7796 = vpop.f32.mrb[0].mxu0
      %v7797 = vpop.f32.mrb[0].mxu0
      %v7798 = vadd.f32 %v7425, %v7797
      %v7799 = vpop.f32.mrb[0].mxu0
      %7800 = vmatprep.mubr.bf16.mxu0 0
      %7801 = vmatmul.mubr.bf16.gmra.mrb[0].mxu0 %v7688
      %v7802 = vpop.f32.mrb[0].mxu0
      %v7803 = vadd.f32 %v7430, %v7802
      %v7804 = vpop.f32.mrb[0].mxu0
      %v7805 = vpop.f32.mrb[0].mxu0
      %v7806 = vadd.f32 %v7433, %v7805
      %v7807 = vpop.f32.mrb[0].mxu0
      %7808 = vmatprep.mubr.bf16.mxu0 0
      %7809 = vmatmul.mubr.bf16.gmra.mrb[0].mxu0 %v7691
      %v7810 = vpop.f32.mrb[0].mxu0
      %v7811 = vadd.f32 %v7438, %v7810
      %v7812 = vpop.f32.mrb[0].mxu0
      %v7813 = vpop.f32.mrb[0].mxu0
      %v7814 = vadd.f32 %v7441, %v7813
      %v7815 = vpop.f32.mrb[0].mxu0
      %7816 = vmatprep.mubr.bf16.mxu0 0
      %7817 = vmatmul.mubr.bf16.gmra.mrb[0].mxu0 %v7694
      %v7818 = vpop.f32.mrb[0].mxu0
      %v7819 = vadd.f32 %v7446, %v7818
      %v7820 = vpop.f32.mrb[0].mxu0
      %v7821 = vpop.f32.mrb[0].mxu0
      %v7822 = vadd.f32 %v7449, %v7821
      %v7823 = vpop.f32.mrb[0].mxu0
      %7824 = vmatprep.mubr.bf16.mxu0 0
      %7825 = vmatmul.mubr.bf16.gmra.mrb[0].mxu0 %v7697
      %v7826 = vpop.f32.mrb[0].mxu0
      %v7827 = vadd.f32 %v7454, %v7826
      %v7828 = vpop.f32.mrb[0].mxu0
      %v7829 = vpop.f32.mrb[0].mxu0
      %v7830 = vadd.f32 %v7457, %v7829
      %v7831 = vpop.f32.mrb[0].mxu0
      %7832 = vmatprep.mubr.bf16.mxu0 0
      %7833 = vmatmul.mubr.bf16.gmra.mrb[0].mxu0 %v7700
      %v7834 = vpop.f32.mrb[0].mxu0
      %v7835 = vadd.f32 %v7462, %v7834
      %v7836 = vpop.f32.mrb[0].mxu0
      %v7837 = vpop.f32.mrb[0].mxu0
      %v7838 = vadd.f32 %v7465, %v7837
      %v7839 = vpop.f32.mrb[0].mxu0
      %7840 = vmatprep.mubr.bf16.mxu0 0
      %7841 = vmatmul.mubr.bf16.gmra.mrb[0].mxu0 %v7703
      %v7842 = vpop.f32.mrb[0].mxu0
      %v7843 = vadd.f32 %v7470, %v7842
      %v7844 = vpop.f32.mrb[0].mxu0
      %v7845 = vpop.f32.mrb[0].mxu0
      %v7846 = vadd.f32 %v7473, %v7845
      %v7847 = vpop.f32.mrb[0].mxu0
      %7848 = vmatprep.mubr.bf16.mxu0 0
      %7849 = vmatmul.mubr.bf16.gmra.mrb[0].mxu0 %v7706
      %v7850 = vpop.f32.mrb[0].mxu0
      %v7851 = vadd.f32 %v7478, %v7850
      %v7852 = vpop.f32.mrb[0].mxu0
      %v7853 = vpop.f32.mrb[0].mxu0
      %v7854 = vadd.f32 %v7481, %v7853
      %v7855 = vpop.f32.mrb[0].mxu0
      %7856 = vmatprep.mubr.bf16.mxu0 0
      %7857 = vmatmul.mubr.bf16.gmra.mrb[0].mxu0 %v7709
      %v7858 = vpop.f32.mrb[0].mxu0
      %v7859 = vadd.f32 %v7486, %v7858
      %v7860 = vpop.f32.mrb[0].mxu0
      %v7861 = vpop.f32.mrb[0].mxu0
      %v7862 = vadd.f32 %v7489, %v7861
      %v7863 = vpop.f32.mrb[0].mxu0
      %7864 = vmatprep.mubr.bf16.mxu0 0
      %7865 = vmatmul.mubr.bf16.gmra.mrb[0].mxu0 %v7712
      %v7866 = vpop.f32.mrb[0].mxu0
      %v7867 = vadd.f32 %v7494, %v7866
      %v7868 = vpop.f32.mrb[0].mxu0
      %v7869 = vpop.f32.mrb[0].mxu0
      %v7870 = vadd.f32 %v7497, %v7869
      %v7871 = vpop.f32.mrb[0].mxu0
      %7872 = vmatprep.mubr.bf16.mxu0 0
      %7873 = vmatmul.mubr.bf16.gmra.mrb[0].mxu0 %v7715
      %v7874 = vpop.f32.mrb[0].mxu0
      %v7875 = vadd.f32 %v7502, %v7874
      %v7876 = vpop.f32.mrb[0].mxu0
      %v7877 = vpop.f32.mrb[0].mxu0
      %v7878 = vadd.f32 %v7505, %v7877
      %v7879 = vpop.f32.mrb[0].mxu0
      %7880 = vdwg.mxu0
      %v7881 = vpack.c.bf16 %v7213, %v7213
      %v7882 = vmul.bf16 %v7253, %v4216
      %v7883 = vmul.bf16 %v7254, %v4224
      %v7884 = vmul.bf16 %v7255, %v4232
      %v7885 = vmul.bf16 %v7256, %v4240
      %v7886 = vmul.bf16 %v7257, %v4248
      %v7887 = vmul.bf16 %v7258, %v4256
      %v7888 = vmul.bf16 %v7259, %v4264
      %v7889 = vmul.bf16 %v7260, %v4272
      %v7890 = vmul.bf16 %v7261, %v4280
      %v7891 = vmul.bf16 %v7262, %v4288
      %v7892 = vmul.bf16 %v7263, %v4296
      %v7893 = vmul.bf16 %v7264, %v4304
      %v7894 = vmul.bf16 %v7265, %v4312
      %v7895 = vmul.bf16 %v7266, %v4320
      %v7896 = vmul.bf16 %v7267, %v4328
      %v7897 = vmul.bf16 %v7881, %v4324
      %s7898 = scalar_lea.vmem %s6, 48
      %v7899 = vld [vmem:[%s7898] sm:$0xf]
      %v7900 = vld [vmem:[%s7898 + $0x4] sm:$0xf]
      %v7901 = vld [vmem:[%s7898 + $0x8] sm:$0xf]
      %v7902 = vld [vmem:[%s7898 + $0xc] sm:$0xf]
      %v7903 = vld [vmem:[%s7898 + $0x10] sm:$0xf]
      %v7904 = vld [vmem:[%s7898 + $0x14] sm:$0xf]
      %v7906 = vshll.u32 %v7882, 16
      %v7908 = vrot.slane %v7906, 1
      %v7909 = vsel %vm4372, %v4379, %v7908
      %v7910 = vshrl.u32 %v7882, 16
      %v7912 = vor.u32 %v7910, %v7908
      %v7914 = vshll.u32 %v7883, 16
      %v7916 = vrot.slane %v7914, 1
      %v7917 = vsel %vm4372, %v7912, %v7916
      %v7918 = vshrl.u32 %v7883, 16
      %v7920 = vor.u32 %v7918, %v7916
      %v7922 = vshll.u32 %v7884, 16
      %v7924 = vrot.slane %v7922, 1
      %v7925 = vsel %vm4372, %v7920, %v7924
      %v7926 = vshrl.u32 %v7884, 16
      %v7928 = vor.u32 %v7926, %v7924
      %v7930 = vshll.u32 %v7885, 16
      %v7932 = vrot.slane %v7930, 1
      %v7933 = vsel %vm4372, %v7928, %v7932
      %v7934 = vshrl.u32 %v7885, 16
      %v7936 = vor.u32 %v7934, %v7932
      %v7938 = vshll.u32 %v7886, 16
      %v7940 = vrot.slane %v7938, 1
      %v7941 = vsel %vm4372, %v7936, %v7940
      %v7942 = vshrl.u32 %v7886, 16
      %v7944 = vor.u32 %v7942, %v7940
      %v7946 = vshll.u32 %v7887, 16
      %v7948 = vrot.slane %v7946, 1
      %v7949 = vsel %vm4372, %v7944, %v7948
      %v7950 = vshrl.u32 %v7887, 16
      %v7952 = vor.u32 %v7950, %v7948
      %v7954 = vshll.u32 %v7888, 16
      %v7956 = vrot.slane %v7954, 1
      %v7957 = vsel %vm4372, %v7952, %v7956
      %v7958 = vshrl.u32 %v7888, 16
      %v7960 = vor.u32 %v7958, %v7956
      %v7962 = vshll.u32 %v7889, 16
      %v7964 = vrot.slane %v7962, 1
      %v7965 = vsel %vm4372, %v7960, %v7964
      %v7966 = vshrl.u32 %v7889, 16
      %v7968 = vor.u32 %v7966, %v7964
      %v7970 = vshll.u32 %v7890, 16
      %v7972 = vrot.slane %v7970, 1
      %v7973 = vsel %vm4372, %v7968, %v7972
      %v7974 = vshrl.u32 %v7890, 16
      %v7976 = vor.u32 %v7974, %v7972
      %v7978 = vshll.u32 %v7891, 16
      %v7980 = vrot.slane %v7978, 1
      %v7981 = vsel %vm4372, %v7976, %v7980
      %v7982 = vshrl.u32 %v7891, 16
      %v7984 = vor.u32 %v7982, %v7980
      %v7986 = vshll.u32 %v7892, 16
      %v7988 = vrot.slane %v7986, 1
      %v7989 = vsel %vm4372, %v7984, %v7988
      %v7990 = vshrl.u32 %v7892, 16
      %v7992 = vor.u32 %v7990, %v7988
      %v7994 = vshll.u32 %v7893, 16
      %v7996 = vrot.slane %v7994, 1
      %v7997 = vsel %vm4372, %v7992, %v7996
      %v7998 = vshrl.u32 %v7893, 16
      %v8000 = vor.u32 %v7998, %v7996
      %v8002 = vshll.u32 %v7894, 16
      %v8004 = vrot.slane %v8002, 1
      %v8005 = vsel %vm4372, %v8000, %v8004
      %v8006 = vshrl.u32 %v7894, 16
      %v8008 = vor.u32 %v8006, %v8004
      %v8010 = vshll.u32 %v7895, 16
      %v8012 = vrot.slane %v8010, 1
      %v8013 = vsel %vm4372, %v8008, %v8012
      %v8014 = vshrl.u32 %v7895, 16
      %v8016 = vor.u32 %v8014, %v8012
      %v8018 = vshll.u32 %v7896, 16
      %v8020 = vrot.slane %v8018, 1
      %v8021 = vsel %vm4372, %v8016, %v8020
      %v8022 = vshrl.u32 %v7896, 16
      %v8024 = vor.u32 %v8022, %v8020
      %v8026 = vshll.u32 %v7897, 16
      %v8028 = vrot.slane %v8026, 1
      %v8029 = vsel %vm4372, %v8024, %v8028
      %v8036 = vunpack.c.l.b16 %v7899
      %v8037 = vunpack.c.l.b16 %v7900
      %v8038 = vunpack.c.l.b16 %v7901
      %v8039 = vunpack.c.l.b16 %v7902
      %v8040 = vunpack.c.l.b16 %v7903
      %v8041 = vunpack.c.l.b16 %v7904
      %v8042 = vpack.c.b16 %v8037, %v8036
      %v8043 = vpack.c.b16 %v8039, %v8038
      %v8044 = vpack.c.b16 %v8041, %v8040
      %v8048 = vsel %vm7292, %v7909, 0
      %v8051 = vsel %vm7292, %v7917, 0
      %v8054 = vsel %vm7292, %v7925, 0
      %v8057 = vsel %vm7292, %v7933, 0
      %v8060 = vsel %vm7292, %v7941, 0
      %v8063 = vsel %vm7292, %v7949, 0
      %v8066 = vsel %vm7292, %v7957, 0
      %v8069 = vsel %vm7292, %v7965, 0
      %v8072 = vsel %vm7292, %v7973, 0
      %v8075 = vsel %vm7292, %v7981, 0
      %v8078 = vsel %vm7292, %v7989, 0
      %v8081 = vsel %vm7292, %v7997, 0
      %v8084 = vsel %vm7292, %v8005, 0
      %v8087 = vsel %vm7292, %v8013, 0
      %v8090 = vsel %vm7292, %v8021, 0
      %v8093 = vsel %vm7292, %v8029, 0
      %v8096 = vand.u32 %v8044, %v7343
      %8098 = vmatprep.subr.bf16.mxu0 0
      %8099 = vmatpush1.bf16.msra.mxu0 %v8042
      %8100 = vmatprep.subr.bf16.mxu0 0
      %8101 = vmatpush1.bf16.msra.mxu0 %v8043
      %8102 = vmatprep.subr.bf16.mxu0 0
      %8103 = vmatpush1.bf16.msra.mxu0 %v8096
      %8104 = vmatprep.subr.bf16.mxu0 0
      %8105 = vmatpush1.bf16.msra.mxu0 0
      %8106 = vmatprep.subr.bf16.mxu0 0
      %8107 = vmatpush1.bf16.msra.mxu0 0
      %8108 = vmatprep.subr.bf16.mxu0 0
      %8109 = vmatpush1.bf16.msra.mxu0 0
      %8110 = vmatprep.subr.bf16.mxu0 0
      %8111 = vmatpush1.bf16.msra.mxu0 0
      %8112 = vmatprep.subr.bf16.mxu0 0
      %8113 = vmatpush1.bf16.msra.mxu0 0
      %8114 = vmatprep.subr.bf16.mxu0 0
      %8115 = vmatpush1.bf16.msra.mxu0 0
      %8116 = vmatprep.subr.bf16.mxu0 0
      %8117 = vmatpush1.bf16.msra.mxu0 0
      %8118 = vmatprep.subr.bf16.mxu0 0
      %8119 = vmatpush1.bf16.msra.mxu0 0
      %8120 = vmatprep.subr.bf16.mxu0 0
      %8121 = vmatpush1.bf16.msra.mxu0 0
      %8122 = vmatprep.subr.bf16.mxu0 0
      %8123 = vmatpush1.bf16.msra.mxu0 0
      %8124 = vmatprep.subr.bf16.mxu0 0
      %8125 = vmatpush1.bf16.msra.mxu0 0
      %8126 = vmatprep.subr.bf16.mxu0 0
      %8127 = vmatpush1.bf16.msra.mxu0 0
      %8128 = vmatprep.subr.bf16.mxu0 0
      %8129 = vmatpush1.bf16.msra.mxu0 0
      %8130 = vmatprep.mubr.bf16.mxu0 0
      %8131 = vmatmul.mubr.bf16.gmra.mrb[0].mxu0 %v8048
      %v8132 = vpop.f32.mrb[0].mxu0
      %v8133 = vadd.f32 0.0, %v8132
      %v8134 = vpop.f32.mrb[0].mxu0
      %v8135 = vpop.f32.mrb[0].mxu0
      %v8136 = vadd.f32 0.0, %v8135
      %v8137 = vpop.f32.mrb[0].mxu0
      %8138 = vmatprep.mubr.bf16.mxu0 0
      %8139 = vmatmul.mubr.bf16.gmra.mrb[0].mxu0 %v8051
      %v8140 = vpop.f32.mrb[0].mxu0
      %v8141 = vadd.f32 0.0, %v8140
      %v8142 = vpop.f32.mrb[0].mxu0
      %v8143 = vpop.f32.mrb[0].mxu0
      %v8144 = vadd.f32 0.0, %v8143
      %v8145 = vpop.f32.mrb[0].mxu0
      %8146 = vmatprep.mubr.bf16.mxu0 0
      %8147 = vmatmul.mubr.bf16.gmra.mrb[0].mxu0 %v8054
      %v8148 = vpop.f32.mrb[0].mxu0
      %v8149 = vadd.f32 0.0, %v8148
      %v8150 = vpop.f32.mrb[0].mxu0
      %v8151 = vpop.f32.mrb[0].mxu0
      %v8152 = vadd.f32 0.0, %v8151
      %v8153 = vpop.f32.mrb[0].mxu0
      %8154 = vmatprep.mubr.bf16.mxu0 0
      %8155 = vmatmul.mubr.bf16.gmra.mrb[0].mxu0 %v8057
      %v8156 = vpop.f32.mrb[0].mxu0
      %v8157 = vadd.f32 0.0, %v8156
      %v8158 = vpop.f32.mrb[0].mxu0
      %v8159 = vpop.f32.mrb[0].mxu0
      %v8160 = vadd.f32 0.0, %v8159
      %v8161 = vpop.f32.mrb[0].mxu0
      %8162 = vmatprep.mubr.bf16.mxu0 0
      %8163 = vmatmul.mubr.bf16.gmra.mrb[0].mxu0 %v8060
      %v8164 = vpop.f32.mrb[0].mxu0
      %v8165 = vadd.f32 0.0, %v8164
      %v8166 = vpop.f32.mrb[0].mxu0
      %v8167 = vpop.f32.mrb[0].mxu0
      %v8168 = vadd.f32 0.0, %v8167
      %v8169 = vpop.f32.mrb[0].mxu0
      %8170 = vmatprep.mubr.bf16.mxu0 0
      %8171 = vmatmul.mubr.bf16.gmra.mrb[0].mxu0 %v8063
      %v8172 = vpop.f32.mrb[0].mxu0
      %v8173 = vadd.f32 0.0, %v8172
      %v8174 = vpop.f32.mrb[0].mxu0
      %v8175 = vpop.f32.mrb[0].mxu0
      %v8176 = vadd.f32 0.0, %v8175
      %v8177 = vpop.f32.mrb[0].mxu0
      %8178 = vmatprep.mubr.bf16.mxu0 0
      %8179 = vmatmul.mubr.bf16.gmra.mrb[0].mxu0 %v8066
      %v8180 = vpop.f32.mrb[0].mxu0
      %v8181 = vadd.f32 0.0, %v8180
      %v8182 = vpop.f32.mrb[0].mxu0
      %v8183 = vpop.f32.mrb[0].mxu0
      %v8184 = vadd.f32 0.0, %v8183
      %v8185 = vpop.f32.mrb[0].mxu0
      %8186 = vmatprep.mubr.bf16.mxu0 0
      %8187 = vmatmul.mubr.bf16.gmra.mrb[0].mxu0 %v8069
      %v8188 = vpop.f32.mrb[0].mxu0
      %v8189 = vadd.f32 0.0, %v8188
      %v8190 = vpop.f32.mrb[0].mxu0
      %v8191 = vpop.f32.mrb[0].mxu0
      %v8192 = vadd.f32 0.0, %v8191
      %v8193 = vpop.f32.mrb[0].mxu0
      %8194 = vmatprep.mubr.bf16.mxu0 0
      %8195 = vmatmul.mubr.bf16.gmra.mrb[0].mxu0 %v8072
      %v8196 = vpop.f32.mrb[0].mxu0
      %v8197 = vadd.f32 0.0, %v8196
      %v8198 = vpop.f32.mrb[0].mxu0
      %v8199 = vpop.f32.mrb[0].mxu0
      %v8200 = vadd.f32 0.0, %v8199
      %v8201 = vpop.f32.mrb[0].mxu0
      %8202 = vmatprep.mubr.bf16.mxu0 0
      %8203 = vmatmul.mubr.bf16.gmra.mrb[0].mxu0 %v8075
      %v8204 = vpop.f32.mrb[0].mxu0
      %v8205 = vadd.f32 0.0, %v8204
      %v8206 = vpop.f32.mrb[0].mxu0
      %v8207 = vpop.f32.mrb[0].mxu0
      %v8208 = vadd.f32 0.0, %v8207
      %v8209 = vpop.f32.mrb[0].mxu0
      %8210 = vmatprep.mubr.bf16.mxu0 0
      %8211 = vmatmul.mubr.bf16.gmra.mrb[0].mxu0 %v8078
      %v8212 = vpop.f32.mrb[0].mxu0
      %v8213 = vadd.f32 0.0, %v8212
      %v8214 = vpop.f32.mrb[0].mxu0
      %v8215 = vpop.f32.mrb[0].mxu0
      %v8216 = vadd.f32 0.0, %v8215
      %v8217 = vpop.f32.mrb[0].mxu0
      %8218 = vmatprep.mubr.bf16.mxu0 0
      %8219 = vmatmul.mubr.bf16.gmra.mrb[0].mxu0 %v8081
      %v8220 = vpop.f32.mrb[0].mxu0
      %v8221 = vadd.f32 0.0, %v8220
      %v8222 = vpop.f32.mrb[0].mxu0
      %v8223 = vpop.f32.mrb[0].mxu0
      %v8224 = vadd.f32 0.0, %v8223
      %v8225 = vpop.f32.mrb[0].mxu0
      %8226 = vmatprep.mubr.bf16.mxu0 0
      %8227 = vmatmul.mubr.bf16.gmra.mrb[0].mxu0 %v8084
      %v8228 = vpop.f32.mrb[0].mxu0
      %v8229 = vadd.f32 0.0, %v8228
      %v8230 = vpop.f32.mrb[0].mxu0
      %v8231 = vpop.f32.mrb[0].mxu0
      %v8232 = vadd.f32 0.0, %v8231
      %v8233 = vpop.f32.mrb[0].mxu0
      %8234 = vmatprep.mubr.bf16.mxu0 0
      %8235 = vmatmul.mubr.bf16.gmra.mrb[0].mxu0 %v8087
      %v8236 = vpop.f32.mrb[0].mxu0
      %v8237 = vadd.f32 0.0, %v8236
      %v8238 = vpop.f32.mrb[0].mxu0
      %v8239 = vpop.f32.mrb[0].mxu0
      %v8240 = vadd.f32 0.0, %v8239
      %v8241 = vpop.f32.mrb[0].mxu0
      %8242 = vmatprep.mubr.bf16.mxu0 0
      %8243 = vmatmul.mubr.bf16.gmra.mrb[0].mxu0 %v8090
      %v8244 = vpop.f32.mrb[0].mxu0
      %v8245 = vadd.f32 0.0, %v8244
      %v8246 = vpop.f32.mrb[0].mxu0
      %v8247 = vpop.f32.mrb[0].mxu0
      %v8248 = vadd.f32 0.0, %v8247
      %v8249 = vpop.f32.mrb[0].mxu0
      %8250 = vmatprep.mubr.bf16.mxu0 0
      %8251 = vmatmul.mubr.bf16.gmra.mrb[0].mxu0 %v8093
      %v8252 = vpop.f32.mrb[0].mxu0
      %v8253 = vadd.f32 0.0, %v8252
      %v8254 = vpop.f32.mrb[0].mxu0
      %v8255 = vpop.f32.mrb[0].mxu0
      %v8256 = vadd.f32 0.0, %v8255
      %v8257 = vpop.f32.mrb[0].mxu0
      %8258 = vdwg.mxu0
      %v8259 = vadd.f32 %v7755, %v8133
      %v8260 = vadd.f32 %v7758, %v8136
      %v8261 = vadd.f32 %v7763, %v8141
      %v8262 = vadd.f32 %v7766, %v8144
      %v8263 = vadd.f32 %v7771, %v8149
      %v8264 = vadd.f32 %v7774, %v8152
      %v8265 = vadd.f32 %v7779, %v8157
      %v8266 = vadd.f32 %v7782, %v8160
      %v8267 = vadd.f32 %v7787, %v8165
      %v8268 = vadd.f32 %v7790, %v8168
      %v8269 = vadd.f32 %v7795, %v8173
      %v8270 = vadd.f32 %v7798, %v8176
      %v8271 = vadd.f32 %v7803, %v8181
      %v8272 = vadd.f32 %v7806, %v8184
      %v8273 = vadd.f32 %v7811, %v8189
      %v8274 = vadd.f32 %v7814, %v8192
      %v8275 = vadd.f32 %v7819, %v8197
      %v8276 = vadd.f32 %v7822, %v8200
      %v8277 = vadd.f32 %v7827, %v8205
      %v8278 = vadd.f32 %v7830, %v8208
      %v8279 = vadd.f32 %v7835, %v8213
      %v8280 = vadd.f32 %v7838, %v8216
      %v8281 = vadd.f32 %v7843, %v8221
      %v8282 = vadd.f32 %v7846, %v8224
      %v8283 = vadd.f32 %v7851, %v8229
      %v8284 = vadd.f32 %v7854, %v8232
      %v8285 = vadd.f32 %v7859, %v8237
      %v8286 = vadd.f32 %v7862, %v8240
      %v8287 = vadd.f32 %v7867, %v8245
      %v8288 = vadd.f32 %v7870, %v8248
      %v8289 = vadd.f32 %v7875, %v8253
      %v8290 = vadd.f32 %v7878, %v8256
      %v8291 = vpack.c.bf16 %v7213, %v7212
      %v8292 = vpack.c.bf16 %v7214, %v7214
      %v8293 = vmul.bf16 %v7215, %v2975
      %v8294 = vmul.bf16 %v7216, %v2984
      %v8295 = vmul.bf16 %v7217, %v2993
      %v8296 = vmul.bf16 %v7218, %v3002
      %v8297 = vmul.bf16 %v7219, %v3011
      %v8298 = vmul.bf16 %v7220, %v3020
      %v8299 = vmul.bf16 %v7221, %v3029
      %v8300 = vmul.bf16 %v7222, %v3038
      %v8301 = vmul.bf16 %v7223, %v3047
      %v8302 = vmul.bf16 %v7224, %v3056
      %v8303 = vmul.bf16 %v7225, %v3065
      %v8304 = vmul.bf16 %v7226, %v3074
      %v8305 = vmul.bf16 %v7227, %v3083
      %v8306 = vmul.bf16 %v7228, %v3092
      %v8307 = vmul.bf16 %v7229, %v3101
      %v8308 = vmul.bf16 %v8291, %v3110
      %v8309 = vmul.bf16 %v8292, %v3109
      %s8310 = scalar_lea.vmem %s6, 72
      %v8311 = vld [vmem:[%s8310] sm:$0xf]
      %v8312 = vld [vmem:[%s8310 + $0x4] sm:$0xf]
      %v8313 = vld [vmem:[%s8310 + $0x8] sm:$0xf]
      %v8314 = vld [vmem:[%s8310 + $0xc] sm:$0xf]
      %v8315 = vld [vmem:[%s8310 + $0x10] sm:$0xf]
      %v8316 = vld [vmem:[%s8310 + $0x14] sm:$0xf]
      %v8318 = vshrl.u32 %v8293, 16
      %v8320 = vrot.slane %v8318, 3
      %v8321 = vshll.u32 %v8293, 16
      %v8323 = vrot.slane %v8321, 4
      %v8324 = vor.u32 %v8320, %v8323
      %v8326 = vshrl.u32 %v8294, 16
      %v8328 = vrot.slane %v8326, 3
      %v8329 = vshll.u32 %v8294, 16
      %v8331 = vrot.slane %v8329, 4
      %v8332 = vor.u32 %v8328, %v8331
      %v8333 = vsel %vm3350, %v8324, %v8332
      %v8335 = vshrl.u32 %v8295, 16
      %v8337 = vrot.slane %v8335, 3
      %v8338 = vshll.u32 %v8295, 16
      %v8340 = vrot.slane %v8338, 4
      %v8341 = vor.u32 %v8337, %v8340
      %v8342 = vsel %vm3350, %v8332, %v8341
      %v8344 = vshrl.u32 %v8296, 16
      %v8346 = vrot.slane %v8344, 3
      %v8347 = vshll.u32 %v8296, 16
      %v8349 = vrot.slane %v8347, 4
      %v8350 = vor.u32 %v8346, %v8349
      %v8351 = vsel %vm3350, %v8341, %v8350
      %v8353 = vshrl.u32 %v8297, 16
      %v8355 = vrot.slane %v8353, 3
      %v8356 = vshll.u32 %v8297, 16
      %v8358 = vrot.slane %v8356, 4
      %v8359 = vor.u32 %v8355, %v8358
      %v8360 = vsel %vm3350, %v8350, %v8359
      %v8362 = vshrl.u32 %v8298, 16
      %v8364 = vrot.slane %v8362, 3
      %v8365 = vshll.u32 %v8298, 16
      %v8367 = vrot.slane %v8365, 4
      %v8368 = vor.u32 %v8364, %v8367
      %v8369 = vsel %vm3350, %v8359, %v8368
      %v8371 = vshrl.u32 %v8299, 16
      %v8373 = vrot.slane %v8371, 3
      %v8374 = vshll.u32 %v8299, 16
      %v8376 = vrot.slane %v8374, 4
      %v8377 = vor.u32 %v8373, %v8376
      %v8378 = vsel %vm3350, %v8368, %v8377
      %v8380 = vshrl.u32 %v8300, 16
      %v8382 = vrot.slane %v8380, 3
      %v8383 = vshll.u32 %v8300, 16
      %v8385 = vrot.slane %v8383, 4
      %v8386 = vor.u32 %v8382, %v8385
      %v8387 = vsel %vm3350, %v8377, %v8386
      %v8389 = vshrl.u32 %v8301, 16
      %v8391 = vrot.slane %v8389, 3
      %v8392 = vshll.u32 %v8301, 16
      %v8394 = vrot.slane %v8392, 4
      %v8395 = vor.u32 %v8391, %v8394
      %v8396 = vsel %vm3350, %v8386, %v8395
      %v8398 = vshrl.u32 %v8302, 16
      %v8400 = vrot.slane %v8398, 3
      %v8401 = vshll.u32 %v8302, 16
      %v8403 = vrot.slane %v8401, 4
      %v8404 = vor.u32 %v8400, %v8403
      %v8405 = vsel %vm3350, %v8395, %v8404
      %v8407 = vshrl.u32 %v8303, 16
      %v8409 = vrot.slane %v8407, 3
      %v8410 = vshll.u32 %v8303, 16
      %v8412 = vrot.slane %v8410, 4
      %v8413 = vor.u32 %v8409, %v8412
      %v8414 = vsel %vm3350, %v8404, %v8413
      %v8416 = vshrl.u32 %v8304, 16
      %v8418 = vrot.slane %v8416, 3
      %v8419 = vshll.u32 %v8304, 16
      %v8421 = vrot.slane %v8419, 4
      %v8422 = vor.u32 %v8418, %v8421
      %v8423 = vsel %vm3350, %v8413, %v8422
      %v8425 = vshrl.u32 %v8305, 16
      %v8427 = vrot.slane %v8425, 3
      %v8428 = vshll.u32 %v8305, 16
      %v8430 = vrot.slane %v8428, 4
      %v8431 = vor.u32 %v8427, %v8430
      %v8432 = vsel %vm3350, %v8422, %v8431
      %v8434 = vshrl.u32 %v8306, 16
      %v8436 = vrot.slane %v8434, 3
      %v8437 = vshll.u32 %v8306, 16
      %v8439 = vrot.slane %v8437, 4
      %v8440 = vor.u32 %v8436, %v8439
      %v8441 = vsel %vm3350, %v8431, %v8440
      %v8443 = vshrl.u32 %v8307, 16
      %v8445 = vrot.slane %v8443, 3
      %v8446 = vshll.u32 %v8307, 16
      %v8448 = vrot.slane %v8446, 4
      %v8449 = vor.u32 %v8445, %v8448
      %v8450 = vsel %vm3350, %v8440, %v8449
      %v8452 = vshrl.u32 %v8308, 16
      %v8454 = vrot.slane %v8452, 3
      %v8455 = vshll.u32 %v8308, 16
      %v8457 = vrot.slane %v8455, 4
      %v8458 = vor.u32 %v8454, %v8457
      %v8459 = vsel %vm3350, %v8449, %v8458
      %v8461 = vshrl.u32 %v8309, 16
      %v8463 = vrot.slane %v8461, 3
      %v8464 = vshll.u32 %v8309, 16
      %v8466 = vrot.slane %v8464, 4
      %v8467 = vor.u32 %v8463, %v8466
      %v8468 = vsel %vm3350, %v8458, %v8467
      %v8475 = vunpack.c.l.b16 %v8311
      %v8476 = vunpack.c.l.b16 %v8312
      %v8477 = vunpack.c.l.b16 %v8313
      %v8478 = vunpack.c.l.b16 %v8314
      %v8479 = vunpack.c.l.b16 %v8315
      %v8480 = vunpack.c.l.b16 %v8316
      %v8481 = vpack.c.b16 %v8476, %v8475
      %v8482 = vpack.c.b16 %v8478, %v8477
      %v8483 = vpack.c.b16 %v8480, %v8479
      %v8487 = vsel %vm7292, %v8333, 0
      %v8490 = vsel %vm7292, %v8342, 0
      %v8493 = vsel %vm7292, %v8351, 0
      %v8496 = vsel %vm7292, %v8360, 0
      %v8499 = vsel %vm7292, %v8369, 0
      %v8502 = vsel %vm7292, %v8378, 0
      %v8505 = vsel %vm7292, %v8387, 0
      %v8508 = vsel %vm7292, %v8396, 0
      %v8511 = vsel %vm7292, %v8405, 0
      %v8514 = vsel %vm7292, %v8414, 0
      %v8517 = vsel %vm7292, %v8423, 0
      %v8520 = vsel %vm7292, %v8432, 0
      %v8523 = vsel %vm7292, %v8441, 0
      %v8526 = vsel %vm7292, %v8450, 0
      %v8529 = vsel %vm7292, %v8459, 0
      %v8532 = vsel %vm7292, %v8468, 0
      %v8535 = vand.u32 %v8483, %v7343
      %8537 = vmatprep.subr.bf16.mxu0 0
      %8538 = vmatpush1.bf16.msra.mxu0 %v8481
      %8539 = vmatprep.subr.bf16.mxu0 0
      %8540 = vmatpush1.bf16.msra.mxu0 %v8482
      %8541 = vmatprep.subr.bf16.mxu0 0
      %8542 = vmatpush1.bf16.msra.mxu0 %v8535
      %8543 = vmatprep.subr.bf16.mxu0 0
      %8544 = vmatpush1.bf16.msra.mxu0 0
      %8545 = vmatprep.subr.bf16.mxu0 0
      %8546 = vmatpush1.bf16.msra.mxu0 0
      %8547 = vmatprep.subr.bf16.mxu0 0
      %8548 = vmatpush1.bf16.msra.mxu0 0
      %8549 = vmatprep.subr.bf16.mxu0 0
      %8550 = vmatpush1.bf16.msra.mxu0 0
      %8551 = vmatprep.subr.bf16.mxu0 0
      %8552 = vmatpush1.bf16.msra.mxu0 0
      %8553 = vmatprep.subr.bf16.mxu0 0
      %8554 = vmatpush1.bf16.msra.mxu0 0
      %8555 = vmatprep.subr.bf16.mxu0 0
      %8556 = vmatpush1.bf16.msra.mxu0 0
      %8557 = vmatprep.subr.bf16.mxu0 0
      %8558 = vmatpush1.bf16.msra.mxu0 0
      %8559 = vmatprep.subr.bf16.mxu0 0
      %8560 = vmatpush1.bf16.msra.mxu0 0
      %8561 = vmatprep.subr.bf16.mxu0 0
      %8562 = vmatpush1.bf16.msra.mxu0 0
      %8563 = vmatprep.subr.bf16.mxu0 0
      %8564 = vmatpush1.bf16.msra.mxu0 0
      %8565 = vmatprep.subr.bf16.mxu0 0
      %8566 = vmatpush1.bf16.msra.mxu0 0
      %8567 = vmatprep.subr.bf16.mxu0 0
      %8568 = vmatpush1.bf16.msra.mxu0 0
      %8569 = vmatprep.mubr.bf16.mxu0 0
      %8570 = vmatmul.mubr.bf16.gmra.mrb[0].mxu0 %v8487
      %v8571 = vpop.f32.mrb[0].mxu0
      %v8572 = vadd.f32 0.0, %v8571
      %v8573 = vpop.f32.mrb[0].mxu0
      %v8574 = vpop.f32.mrb[0].mxu0
      %v8575 = vadd.f32 0.0, %v8574
      %v8576 = vpop.f32.mrb[0].mxu0
      %8577 = vmatprep.mubr.bf16.mxu0 0
      %8578 = vmatmul.mubr.bf16.gmra.mrb[0].mxu0 %v8490
      %v8579 = vpop.f32.mrb[0].mxu0
      %v8580 = vadd.f32 0.0, %v8579
      %v8581 = vpop.f32.mrb[0].mxu0
      %v8582 = vpop.f32.mrb[0].mxu0
      %v8583 = vadd.f32 0.0, %v8582
      %v8584 = vpop.f32.mrb[0].mxu0
      %8585 = vmatprep.mubr.bf16.mxu0 0
      %8586 = vmatmul.mubr.bf16.gmra.mrb[0].mxu0 %v8493
      %v8587 = vpop.f32.mrb[0].mxu0
      %v8588 = vadd.f32 0.0, %v8587
      %v8589 = vpop.f32.mrb[0].mxu0
      %v8590 = vpop.f32.mrb[0].mxu0
      %v8591 = vadd.f32 0.0, %v8590
      %v8592 = vpop.f32.mrb[0].mxu0
      %8593 = vmatprep.mubr.bf16.mxu0 0
      %8594 = vmatmul.mubr.bf16.gmra.mrb[0].mxu0 %v8496
      %v8595 = vpop.f32.mrb[0].mxu0
      %v8596 = vadd.f32 0.0, %v8595
      %v8597 = vpop.f32.mrb[0].mxu0
      %v8598 = vpop.f32.mrb[0].mxu0
      %v8599 = vadd.f32 0.0, %v8598
      %v8600 = vpop.f32.mrb[0].mxu0
      %8601 = vmatprep.mubr.bf16.mxu0 0
      %8602 = vmatmul.mubr.bf16.gmra.mrb[0].mxu0 %v8499
      %v8603 = vpop.f32.mrb[0].mxu0
      %v8604 = vadd.f32 0.0, %v8603
      %v8605 = vpop.f32.mrb[0].mxu0
      %v8606 = vpop.f32.mrb[0].mxu0
      %v8607 = vadd.f32 0.0, %v8606
      %v8608 = vpop.f32.mrb[0].mxu0
      %8609 = vmatprep.mubr.bf16.mxu0 0
      %8610 = vmatmul.mubr.bf16.gmra.mrb[0].mxu0 %v8502
      %v8611 = vpop.f32.mrb[0].mxu0
      %v8612 = vadd.f32 0.0, %v8611
      %v8613 = vpop.f32.mrb[0].mxu0
      %v8614 = vpop.f32.mrb[0].mxu0
      %v8615 = vadd.f32 0.0, %v8614
      %v8616 = vpop.f32.mrb[0].mxu0
      %8617 = vmatprep.mubr.bf16.mxu0 0
      %8618 = vmatmul.mubr.bf16.gmra.mrb[0].mxu0 %v8505
      %v8619 = vpop.f32.mrb[0].mxu0
      %v8620 = vadd.f32 0.0, %v8619
      %v8621 = vpop.f32.mrb[0].mxu0
      %v8622 = vpop.f32.mrb[0].mxu0
      %v8623 = vadd.f32 0.0, %v8622
      %v8624 = vpop.f32.mrb[0].mxu0
      %8625 = vmatprep.mubr.bf16.mxu0 0
      %8626 = vmatmul.mubr.bf16.gmra.mrb[0].mxu0 %v8508
      %v8627 = vpop.f32.mrb[0].mxu0
      %v8628 = vadd.f32 0.0, %v8627
      %v8629 = vpop.f32.mrb[0].mxu0
      %v8630 = vpop.f32.mrb[0].mxu0
      %v8631 = vadd.f32 0.0, %v8630
      %v8632 = vpop.f32.mrb[0].mxu0
      %8633 = vmatprep.mubr.bf16.mxu0 0
      %8634 = vmatmul.mubr.bf16.gmra.mrb[0].mxu0 %v8511
      %v8635 = vpop.f32.mrb[0].mxu0
      %v8636 = vadd.f32 0.0, %v8635
      %v8637 = vpop.f32.mrb[0].mxu0
      %v8638 = vpop.f32.mrb[0].mxu0
      %v8639 = vadd.f32 0.0, %v8638
      %v8640 = vpop.f32.mrb[0].mxu0
      %8641 = vmatprep.mubr.bf16.mxu0 0
      %8642 = vmatmul.mubr.bf16.gmra.mrb[0].mxu0 %v8514
      %v8643 = vpop.f32.mrb[0].mxu0
      %v8644 = vadd.f32 0.0, %v8643
      %v8645 = vpop.f32.mrb[0].mxu0
      %v8646 = vpop.f32.mrb[0].mxu0
      %v8647 = vadd.f32 0.0, %v8646
      %v8648 = vpop.f32.mrb[0].mxu0
      %8649 = vmatprep.mubr.bf16.mxu0 0
      %8650 = vmatmul.mubr.bf16.gmra.mrb[0].mxu0 %v8517
      %v8651 = vpop.f32.mrb[0].mxu0
      %v8652 = vadd.f32 0.0, %v8651
      %v8653 = vpop.f32.mrb[0].mxu0
      %v8654 = vpop.f32.mrb[0].mxu0
      %v8655 = vadd.f32 0.0, %v8654
      %v8656 = vpop.f32.mrb[0].mxu0
      %8657 = vmatprep.mubr.bf16.mxu0 0
      %8658 = vmatmul.mubr.bf16.gmra.mrb[0].mxu0 %v8520
      %v8659 = vpop.f32.mrb[0].mxu0
      %v8660 = vadd.f32 0.0, %v8659
      %v8661 = vpop.f32.mrb[0].mxu0
      %v8662 = vpop.f32.mrb[0].mxu0
      %v8663 = vadd.f32 0.0, %v8662
      %v8664 = vpop.f32.mrb[0].mxu0
      %8665 = vmatprep.mubr.bf16.mxu0 0
      %8666 = vmatmul.mubr.bf16.gmra.mrb[0].mxu0 %v8523
      %v8667 = vpop.f32.mrb[0].mxu0
      %v8668 = vadd.f32 0.0, %v8667
      %v8669 = vpop.f32.mrb[0].mxu0
      %v8670 = vpop.f32.mrb[0].mxu0
      %v8671 = vadd.f32 0.0, %v8670
      %v8672 = vpop.f32.mrb[0].mxu0
      %8673 = vmatprep.mubr.bf16.mxu0 0
      %8674 = vmatmul.mubr.bf16.gmra.mrb[0].mxu0 %v8526
      %v8675 = vpop.f32.mrb[0].mxu0
      %v8676 = vadd.f32 0.0, %v8675
      %v8677 = vpop.f32.mrb[0].mxu0
      %v8678 = vpop.f32.mrb[0].mxu0
      %v8679 = vadd.f32 0.0, %v8678
      %v8680 = vpop.f32.mrb[0].mxu0
      %8681 = vmatprep.mubr.bf16.mxu0 0
      %8682 = vmatmul.mubr.bf16.gmra.mrb[0].mxu0 %v8529
      %v8683 = vpop.f32.mrb[0].mxu0
      %v8684 = vadd.f32 0.0, %v8683
      %v8685 = vpop.f32.mrb[0].mxu0
      %v8686 = vpop.f32.mrb[0].mxu0
      %v8687 = vadd.f32 0.0, %v8686
      %v8688 = vpop.f32.mrb[0].mxu0
      %8689 = vmatprep.mubr.bf16.mxu0 0
      %8690 = vmatmul.mubr.bf16.gmra.mrb[0].mxu0 %v8532
      %v8691 = vpop.f32.mrb[0].mxu0
      %v8692 = vadd.f32 0.0, %v8691
      %v8693 = vpop.f32.mrb[0].mxu0
      %v8694 = vpop.f32.mrb[0].mxu0
      %v8695 = vadd.f32 0.0, %v8694
      %v8696 = vpop.f32.mrb[0].mxu0
      %8697 = vdwg.mxu0
      %v8698 = vadd.f32 %v8259, %v8572
      %v8699 = vadd.f32 %v8260, %v8575
      %v8700 = vadd.f32 %v8261, %v8580
      %v8701 = vadd.f32 %v8262, %v8583
      %v8702 = vadd.f32 %v8263, %v8588
      %v8703 = vadd.f32 %v8264, %v8591
      %v8704 = vadd.f32 %v8265, %v8596
      %v8705 = vadd.f32 %v8266, %v8599
      %v8706 = vadd.f32 %v8267, %v8604
      %v8707 = vadd.f32 %v8268, %v8607
      %v8708 = vadd.f32 %v8269, %v8612
      %v8709 = vadd.f32 %v8270, %v8615
      %v8710 = vadd.f32 %v8271, %v8620
      %v8711 = vadd.f32 %v8272, %v8623
      %v8712 = vadd.f32 %v8273, %v8628
      %v8713 = vadd.f32 %v8274, %v8631
      %v8714 = vadd.f32 %v8275, %v8636
      %v8715 = vadd.f32 %v8276, %v8639
      %v8716 = vadd.f32 %v8277, %v8644
      %v8717 = vadd.f32 %v8278, %v8647
      %v8718 = vadd.f32 %v8279, %v8652
      %v8719 = vadd.f32 %v8280, %v8655
      %v8720 = vadd.f32 %v8281, %v8660
      %v8721 = vadd.f32 %v8282, %v8663
      %v8722 = vadd.f32 %v8283, %v8668
      %v8723 = vadd.f32 %v8284, %v8671
      %v8724 = vadd.f32 %v8285, %v8676
      %v8725 = vadd.f32 %v8286, %v8679
      %v8726 = vadd.f32 %v8287, %v8684
      %v8727 = vadd.f32 %v8288, %v8687
      %v8728 = vadd.f32 %v8289, %v8692
      %v8729 = vadd.f32 %v8290, %v8695
      %v8730 = vpack.c.bf16 %v7214, %v7213
      %s8731 = scalar_lea.vmem %s6, 96
      %v8732 = vld [vmem:[%s8731] sm:$0xf]
      %v8733 = vld [vmem:[%s8731 + $0x4] sm:$0xf]
      %v8734 = vld [vmem:[%s8731 + $0x8] sm:$0xf]
      %v8735 = vld [vmem:[%s8731 + $0xc] sm:$0xf]
      %v8736 = vld [vmem:[%s8731 + $0x10] sm:$0xf]
      %v8737 = vld [vmem:[%s8731 + $0x14] sm:$0xf]
      %v8744 = vunpack.c.l.b16 %v8732
      %v8745 = vunpack.c.l.b16 %v8733
      %v8746 = vunpack.c.l.b16 %v8734
      %v8747 = vunpack.c.l.b16 %v8735
      %v8748 = vunpack.c.l.b16 %v8736
      %v8749 = vunpack.c.l.b16 %v8737
      %v8750 = vpack.c.b16 %v8745, %v8744
      %v8751 = vpack.c.b16 %v8747, %v8746
      %v8752 = vpack.c.b16 %v8749, %v8748
      %v8756 = vsel %vm7292, %v8730, 0
      %v8759 = vand.u32 %v8752, %v7343
      %8761 = vmatprep.subr.bf16.mxu0 0
      %8762 = vmatpush1.bf16.msra.mxu0 %v8750
      %8763 = vmatprep.subr.bf16.mxu0 0
      %8764 = vmatpush1.bf16.msra.mxu0 %v8751
      %8765 = vmatprep.subr.bf16.mxu0 0
      %8766 = vmatpush1.bf16.msra.mxu0 %v8759
      %8767 = vmatprep.subr.bf16.mxu0 0
      %8768 = vmatpush1.bf16.msra.mxu0 0
      %8769 = vmatprep.subr.bf16.mxu0 0
      %8770 = vmatpush1.bf16.msra.mxu0 0
      %8771 = vmatprep.subr.bf16.mxu0 0
      %8772 = vmatpush1.bf16.msra.mxu0 0
      %8773 = vmatprep.subr.bf16.mxu0 0
      %8774 = vmatpush1.bf16.msra.mxu0 0
      %8775 = vmatprep.subr.bf16.mxu0 0
      %8776 = vmatpush1.bf16.msra.mxu0 0
      %8777 = vmatprep.subr.bf16.mxu0 0
      %8778 = vmatpush1.bf16.msra.mxu0 0
      %8779 = vmatprep.subr.bf16.mxu0 0
      %8780 = vmatpush1.bf16.msra.mxu0 0
      %8781 = vmatprep.subr.bf16.mxu0 0
      %8782 = vmatpush1.bf16.msra.mxu0 0
      %8783 = vmatprep.subr.bf16.mxu0 0
      %8784 = vmatpush1.bf16.msra.mxu0 0
      %8785 = vmatprep.subr.bf16.mxu0 0
      %8786 = vmatpush1.bf16.msra.mxu0 0
      %8787 = vmatprep.subr.bf16.mxu0 0
      %8788 = vmatpush1.bf16.msra.mxu0 0
      %8789 = vmatprep.subr.bf16.mxu0 0
      %8790 = vmatpush1.bf16.msra.mxu0 0
      %8791 = vmatprep.subr.bf16.mxu0 0
      %8792 = vmatpush1.bf16.msra.mxu0 0
      %8793 = vmatprep.mubr.bf16.mxu0 0
      %8794 = vmatmul.mubr.bf16.gmra.mrb[0].mxu0 %v7296
      %v8795 = vpop.f32.mrb[0].mxu0
      %v8796 = vadd.f32 0.0, %v8795
      %v8797 = vpop.f32.mrb[0].mxu0
      %v8798 = vpop.f32.mrb[0].mxu0
      %v8799 = vadd.f32 0.0, %v8798
      %v8800 = vpop.f32.mrb[0].mxu0
      %8801 = vmatprep.mubr.bf16.mxu0 0
      %8802 = vmatmul.mubr.bf16.gmra.mrb[0].mxu0 %v7299
      %v8803 = vpop.f32.mrb[0].mxu0
      %v8804 = vadd.f32 0.0, %v8803
      %v8805 = vpop.f32.mrb[0].mxu0
      %v8806 = vpop.f32.mrb[0].mxu0
      %v8807 = vadd.f32 0.0, %v8806
      %v8808 = vpop.f32.mrb[0].mxu0
      %8809 = vmatprep.mubr.bf16.mxu0 0
      %8810 = vmatmul.mubr.bf16.gmra.mrb[0].mxu0 %v7302
      %v8811 = vpop.f32.mrb[0].mxu0
      %v8812 = vadd.f32 0.0, %v8811
      %v8813 = vpop.f32.mrb[0].mxu0
      %v8814 = vpop.f32.mrb[0].mxu0
      %v8815 = vadd.f32 0.0, %v8814
      %v8816 = vpop.f32.mrb[0].mxu0
      %8817 = vmatprep.mubr.bf16.mxu0 0
      %8818 = vmatmul.mubr.bf16.gmra.mrb[0].mxu0 %v7305
      %v8819 = vpop.f32.mrb[0].mxu0
      %v8820 = vadd.f32 0.0, %v8819
      %v8821 = vpop.f32.mrb[0].mxu0
      %v8822 = vpop.f32.mrb[0].mxu0
      %v8823 = vadd.f32 0.0, %v8822
      %v8824 = vpop.f32.mrb[0].mxu0
      %8825 = vmatprep.mubr.bf16.mxu0 0
      %8826 = vmatmul.mubr.bf16.gmra.mrb[0].mxu0 %v7308
      %v8827 = vpop.f32.mrb[0].mxu0
      %v8828 = vadd.f32 0.0, %v8827
      %v8829 = vpop.f32.mrb[0].mxu0
      %v8830 = vpop.f32.mrb[0].mxu0
      %v8831 = vadd.f32 0.0, %v8830
      %v8832 = vpop.f32.mrb[0].mxu0
      %8833 = vmatprep.mubr.bf16.mxu0 0
      %8834 = vmatmul.mubr.bf16.gmra.mrb[0].mxu0 %v7311
      %v8835 = vpop.f32.mrb[0].mxu0
      %v8836 = vadd.f32 0.0, %v8835
      %v8837 = vpop.f32.mrb[0].mxu0
      %v8838 = vpop.f32.mrb[0].mxu0
      %v8839 = vadd.f32 0.0, %v8838
      %v8840 = vpop.f32.mrb[0].mxu0
      %8841 = vmatprep.mubr.bf16.mxu0 0
      %8842 = vmatmul.mubr.bf16.gmra.mrb[0].mxu0 %v7314
      %v8843 = vpop.f32.mrb[0].mxu0
      %v8844 = vadd.f32 0.0, %v8843
      %v8845 = vpop.f32.mrb[0].mxu0
      %v8846 = vpop.f32.mrb[0].mxu0
      %v8847 = vadd.f32 0.0, %v8846
      %v8848 = vpop.f32.mrb[0].mxu0
      %8849 = vmatprep.mubr.bf16.mxu0 0
      %8850 = vmatmul.mubr.bf16.gmra.mrb[0].mxu0 %v7317
      %v8851 = vpop.f32.mrb[0].mxu0
      %v8852 = vadd.f32 0.0, %v8851
      %v8853 = vpop.f32.mrb[0].mxu0
      %v8854 = vpop.f32.mrb[0].mxu0
      %v8855 = vadd.f32 0.0, %v8854
      %v8856 = vpop.f32.mrb[0].mxu0
      %8857 = vmatprep.mubr.bf16.mxu0 0
      %8858 = vmatmul.mubr.bf16.gmra.mrb[0].mxu0 %v7320
      %v8859 = vpop.f32.mrb[0].mxu0
      %v8860 = vadd.f32 0.0, %v8859
      %v8861 = vpop.f32.mrb[0].mxu0
      %v8862 = vpop.f32.mrb[0].mxu0
      %v8863 = vadd.f32 0.0, %v8862
      %v8864 = vpop.f32.mrb[0].mxu0
      %8865 = vmatprep.mubr.bf16.mxu0 0
      %8866 = vmatmul.mubr.bf16.gmra.mrb[0].mxu0 %v7323
      %v8867 = vpop.f32.mrb[0].mxu0
      %v8868 = vadd.f32 0.0, %v8867
      %v8869 = vpop.f32.mrb[0].mxu0
      %v8870 = vpop.f32.mrb[0].mxu0
      %v8871 = vadd.f32 0.0, %v8870
      %v8872 = vpop.f32.mrb[0].mxu0
      %8873 = vmatprep.mubr.bf16.mxu0 0
      %8874 = vmatmul.mubr.bf16.gmra.mrb[0].mxu0 %v7326
      %v8875 = vpop.f32.mrb[0].mxu0
      %v8876 = vadd.f32 0.0, %v8875
      %v8877 = vpop.f32.mrb[0].mxu0
      %v8878 = vpop.f32.mrb[0].mxu0
      %v8879 = vadd.f32 0.0, %v8878
      %v8880 = vpop.f32.mrb[0].mxu0
      %8881 = vmatprep.mubr.bf16.mxu0 0
      %8882 = vmatmul.mubr.bf16.gmra.mrb[0].mxu0 %v7329
      %v8883 = vpop.f32.mrb[0].mxu0
      %v8884 = vadd.f32 0.0, %v8883
      %v8885 = vpop.f32.mrb[0].mxu0
      %v8886 = vpop.f32.mrb[0].mxu0
      %v8887 = vadd.f32 0.0, %v8886
      %v8888 = vpop.f32.mrb[0].mxu0
      %8889 = vmatprep.mubr.bf16.mxu0 0
      %8890 = vmatmul.mubr.bf16.gmra.mrb[0].mxu0 %v7332
      %v8891 = vpop.f32.mrb[0].mxu0
      %v8892 = vadd.f32 0.0, %v8891
      %v8893 = vpop.f32.mrb[0].mxu0
      %v8894 = vpop.f32.mrb[0].mxu0
      %v8895 = vadd.f32 0.0, %v8894
      %v8896 = vpop.f32.mrb[0].mxu0
      %8897 = vmatprep.mubr.bf16.mxu0 0
      %8898 = vmatmul.mubr.bf16.gmra.mrb[0].mxu0 %v7335
      %v8899 = vpop.f32.mrb[0].mxu0
      %v8900 = vadd.f32 0.0, %v8899
      %v8901 = vpop.f32.mrb[0].mxu0
      %v8902 = vpop.f32.mrb[0].mxu0
      %v8903 = vadd.f32 0.0, %v8902
      %v8904 = vpop.f32.mrb[0].mxu0
      %8905 = vmatprep.mubr.bf16.mxu0 0
      %8906 = vmatmul.mubr.bf16.gmra.mrb[0].mxu0 %v7338
      %v8907 = vpop.f32.mrb[0].mxu0
      %v8908 = vadd.f32 0.0, %v8907
      %v8909 = vpop.f32.mrb[0].mxu0
      %v8910 = vpop.f32.mrb[0].mxu0
      %v8911 = vadd.f32 0.0, %v8910
      %v8912 = vpop.f32.mrb[0].mxu0
      %8913 = vmatprep.mubr.bf16.mxu0 0
      %8914 = vmatmul.mubr.bf16.gmra.mrb[0].mxu0 %v8756
      %v8915 = vpop.f32.mrb[0].mxu0
      %v8916 = vadd.f32 0.0, %v8915
      %v8917 = vpop.f32.mrb[0].mxu0
      %v8918 = vpop.f32.mrb[0].mxu0
      %v8919 = vadd.f32 0.0, %v8918
      %v8920 = vpop.f32.mrb[0].mxu0
      %8921 = vdwg.mxu0
      %v8922 = vadd.f32 %v8698, %v8796
      %v8923 = vadd.f32 %v8699, %v8799
      %v8924 = vadd.f32 %v8700, %v8804
      %v8925 = vadd.f32 %v8701, %v8807
      %v8926 = vadd.f32 %v8702, %v8812
      %v8927 = vadd.f32 %v8703, %v8815
      %v8928 = vadd.f32 %v8704, %v8820
      %v8929 = vadd.f32 %v8705, %v8823
      %v8930 = vadd.f32 %v8706, %v8828
      %v8931 = vadd.f32 %v8707, %v8831
      %v8932 = vadd.f32 %v8708, %v8836
      %v8933 = vadd.f32 %v8709, %v8839
      %v8934 = vadd.f32 %v8710, %v8844
      %v8935 = vadd.f32 %v8711, %v8847
      %v8936 = vadd.f32 %v8712, %v8852
      %v8937 = vadd.f32 %v8713, %v8855
      %v8938 = vadd.f32 %v8714, %v8860
      %v8939 = vadd.f32 %v8715, %v8863
      %v8940 = vadd.f32 %v8716, %v8868
      %v8941 = vadd.f32 %v8717, %v8871
      %v8942 = vadd.f32 %v8718, %v8876
      %v8943 = vadd.f32 %v8719, %v8879
      %v8944 = vadd.f32 %v8720, %v8884
      %v8945 = vadd.f32 %v8721, %v8887
      %v8946 = vadd.f32 %v8722, %v8892
      %v8947 = vadd.f32 %v8723, %v8895
      %v8948 = vadd.f32 %v8724, %v8900
      %v8949 = vadd.f32 %v8725, %v8903
      %v8950 = vadd.f32 %v8726, %v8908
      %v8951 = vadd.f32 %v8727, %v8911
      %v8952 = vadd.f32 %v8728, %v8916
      %v8953 = vadd.f32 %v8729, %v8919
      %v8954 = vmul.bf16 %v7253, %v4208
      %v8955 = vmul.bf16 %v7254, %v4216
      %v8956 = vmul.bf16 %v7255, %v4224
      %v8957 = vmul.bf16 %v7256, %v4232
      %v8958 = vmul.bf16 %v7257, %v4240
      %v8959 = vmul.bf16 %v7258, %v4248
      %v8960 = vmul.bf16 %v7259, %v4256
      %v8961 = vmul.bf16 %v7260, %v4264
      %v8962 = vmul.bf16 %v7261, %v4272
      %v8963 = vmul.bf16 %v7262, %v4280
      %v8964 = vmul.bf16 %v7263, %v4288
      %v8965 = vmul.bf16 %v7264, %v4296
      %v8966 = vmul.bf16 %v7265, %v4304
      %v8967 = vmul.bf16 %v7266, %v4312
      %v8968 = vmul.bf16 %v7267, %v4320
      %v8969 = vmul.bf16 %v8730, %v4328
      %s8970 = scalar_lea.vmem %s6, 120
      %v8971 = vld [vmem:[%s8970] sm:$0xf]
      %v8972 = vld [vmem:[%s8970 + $0x4] sm:$0xf]
      %v8973 = vld [vmem:[%s8970 + $0x8] sm:$0xf]
      %v8974 = vld [vmem:[%s8970 + $0xc] sm:$0xf]
      %v8975 = vld [vmem:[%s8970 + $0x10] sm:$0xf]
      %v8976 = vld [vmem:[%s8970 + $0x14] sm:$0xf]
      %v8978 = vshrl.u32 %v8954, 16
      %v8980 = vshll.u32 %v8954, 16
      %v8982 = vrot.slane %v8980, 1
      %v8983 = vor.u32 %v8978, %v8982
      %v8985 = vshll.u32 %v8955, 16
      %v8987 = vrot.slane %v8985, 1
      %v8988 = vsel %vm4372, %v8983, %v8987
      %v8989 = vshrl.u32 %v8955, 16
      %v8991 = vor.u32 %v8989, %v8987
      %v8993 = vshll.u32 %v8956, 16
      %v8995 = vrot.slane %v8993, 1
      %v8996 = vsel %vm4372, %v8991, %v8995
      %v8997 = vshrl.u32 %v8956, 16
      %v8999 = vor.u32 %v8997, %v8995
      %v9001 = vshll.u32 %v8957, 16
      %v9003 = vrot.slane %v9001, 1
      %v9004 = vsel %vm4372, %v8999, %v9003
      %v9005 = vshrl.u32 %v8957, 16
      %v9007 = vor.u32 %v9005, %v9003
      %v9009 = vshll.u32 %v8958, 16
      %v9011 = vrot.slane %v9009, 1
      %v9012 = vsel %vm4372, %v9007, %v9011
      %v9013 = vshrl.u32 %v8958, 16
      %v9015 = vor.u32 %v9013, %v9011
      %v9017 = vshll.u32 %v8959, 16
      %v9019 = vrot.slane %v9017, 1
      %v9020 = vsel %vm4372, %v9015, %v9019
      %v9021 = vshrl.u32 %v8959, 16
      %v9023 = vor.u32 %v9021, %v9019
      %v9025 = vshll.u32 %v8960, 16
      %v9027 = vrot.slane %v9025, 1
      %v9028 = vsel %vm4372, %v9023, %v9027
      %v9029 = vshrl.u32 %v8960, 16
      %v9031 = vor.u32 %v9029, %v9027
      %v9033 = vshll.u32 %v8961, 16
      %v9035 = vrot.slane %v9033, 1
      %v9036 = vsel %vm4372, %v9031, %v9035
      %v9037 = vshrl.u32 %v8961, 16
      %v9039 = vor.u32 %v9037, %v9035
      %v9041 = vshll.u32 %v8962, 16
      %v9043 = vrot.slane %v9041, 1
      %v9044 = vsel %vm4372, %v9039, %v9043
      %v9045 = vshrl.u32 %v8962, 16
      %v9047 = vor.u32 %v9045, %v9043
      %v9049 = vshll.u32 %v8963, 16
      %v9051 = vrot.slane %v9049, 1
      %v9052 = vsel %vm4372, %v9047, %v9051
      %v9053 = vshrl.u32 %v8963, 16
      %v9055 = vor.u32 %v9053, %v9051
      %v9057 = vshll.u32 %v8964, 16
      %v9059 = vrot.slane %v9057, 1
      %v9060 = vsel %vm4372, %v9055, %v9059
      %v9061 = vshrl.u32 %v8964, 16
      %v9063 = vor.u32 %v9061, %v9059
      %v9065 = vshll.u32 %v8965, 16
      %v9067 = vrot.slane %v9065, 1
      %v9068 = vsel %vm4372, %v9063, %v9067
      %v9069 = vshrl.u32 %v8965, 16
      %v9071 = vor.u32 %v9069, %v9067
      %v9073 = vshll.u32 %v8966, 16
      %v9075 = vrot.slane %v9073, 1
      %v9076 = vsel %vm4372, %v9071, %v9075
      %v9077 = vshrl.u32 %v8966, 16
      %v9079 = vor.u32 %v9077, %v9075
      %v9081 = vshll.u32 %v8967, 16
      %v9083 = vrot.slane %v9081, 1
      %v9084 = vsel %vm4372, %v9079, %v9083
      %v9085 = vshrl.u32 %v8967, 16
      %v9087 = vor.u32 %v9085, %v9083
      %v9089 = vshll.u32 %v8968, 16
      %v9091 = vrot.slane %v9089, 1
      %v9092 = vsel %vm4372, %v9087, %v9091
      %v9093 = vshrl.u32 %v8968, 16
      %v9095 = vor.u32 %v9093, %v9091
      %v9097 = vshll.u32 %v8969, 16
      %v9099 = vrot.slane %v9097, 1
      %v9100 = vsel %vm4372, %v9095, %v9099
      %v9101 = vshrl.u32 %v8969, 16
      %v9103 = vor.u32 %v9101, %v9099
      %v9104 = vsel %vm4372, %v9103, %v5597
      %v9111 = vunpack.c.l.b16 %v8971
      %v9112 = vunpack.c.l.b16 %v8972
      %v9113 = vunpack.c.l.b16 %v8973
      %v9114 = vunpack.c.l.b16 %v8974
      %v9115 = vunpack.c.l.b16 %v8975
      %v9116 = vunpack.c.l.b16 %v8976
      %v9117 = vpack.c.b16 %v9112, %v9111
      %v9118 = vpack.c.b16 %v9114, %v9113
      %v9119 = vpack.c.b16 %v9116, %v9115
      %v9123 = vsel %vm7292, %v8988, 0
      %v9126 = vsel %vm7292, %v8996, 0
      %v9129 = vsel %vm7292, %v9004, 0
      %v9132 = vsel %vm7292, %v9012, 0
      %v9135 = vsel %vm7292, %v9020, 0
      %v9138 = vsel %vm7292, %v9028, 0
      %v9141 = vsel %vm7292, %v9036, 0
      %v9144 = vsel %vm7292, %v9044, 0
      %v9147 = vsel %vm7292, %v9052, 0
      %v9150 = vsel %vm7292, %v9060, 0
      %v9153 = vsel %vm7292, %v9068, 0
      %v9156 = vsel %vm7292, %v9076, 0
      %v9159 = vsel %vm7292, %v9084, 0
      %v9162 = vsel %vm7292, %v9092, 0
      %v9165 = vsel %vm7292, %v9100, 0
      %v9168 = vsel %vm7292, %v9104, 0
      %v9171 = vand.u32 %v9119, %v7343
      %9173 = vmatprep.subr.bf16.mxu0 0
      %9174 = vmatpush1.bf16.msra.mxu0 %v9117
      %9175 = vmatprep.subr.bf16.mxu0 0
      %9176 = vmatpush1.bf16.msra.mxu0 %v9118
      %9177 = vmatprep.subr.bf16.mxu0 0
      %9178 = vmatpush1.bf16.msra.mxu0 %v9171
      %9179 = vmatprep.subr.bf16.mxu0 0
      %9180 = vmatpush1.bf16.msra.mxu0 0
      %9181 = vmatprep.subr.bf16.mxu0 0
      %9182 = vmatpush1.bf16.msra.mxu0 0
      %9183 = vmatprep.subr.bf16.mxu0 0
      %9184 = vmatpush1.bf16.msra.mxu0 0
      %9185 = vmatprep.subr.bf16.mxu0 0
      %9186 = vmatpush1.bf16.msra.mxu0 0
      %9187 = vmatprep.subr.bf16.mxu0 0
      %9188 = vmatpush1.bf16.msra.mxu0 0
      %9189 = vmatprep.subr.bf16.mxu0 0
      %9190 = vmatpush1.bf16.msra.mxu0 0
      %9191 = vmatprep.subr.bf16.mxu0 0
      %9192 = vmatpush1.bf16.msra.mxu0 0
      %9193 = vmatprep.subr.bf16.mxu0 0
      %9194 = vmatpush1.bf16.msra.mxu0 0
      %9195 = vmatprep.subr.bf16.mxu0 0
      %9196 = vmatpush1.bf16.msra.mxu0 0
      %9197 = vmatprep.subr.bf16.mxu0 0
      %9198 = vmatpush1.bf16.msra.mxu0 0
      %9199 = vmatprep.subr.bf16.mxu0 0
      %9200 = vmatpush1.bf16.msra.mxu0 0
      %9201 = vmatprep.subr.bf16.mxu0 0
      %9202 = vmatpush1.bf16.msra.mxu0 0
      %9203 = vmatprep.subr.bf16.mxu0 0
      %9204 = vmatpush1.bf16.msra.mxu0 0
      %9205 = vmatprep.mubr.bf16.mxu0 0
      %9206 = vmatmul.mubr.bf16.gmra.mrb[0].mxu0 %v9123
      %v9207 = vpop.f32.mrb[0].mxu0
      %v9208 = vadd.f32 0.0, %v9207
      %v9209 = vpop.f32.mrb[0].mxu0
      %v9210 = vpop.f32.mrb[0].mxu0
      %v9211 = vadd.f32 0.0, %v9210
      %v9212 = vpop.f32.mrb[0].mxu0
      %9213 = vmatprep.mubr.bf16.mxu0 0
      %9214 = vmatmul.mubr.bf16.gmra.mrb[0].mxu0 %v9126
      %v9215 = vpop.f32.mrb[0].mxu0
      %v9216 = vadd.f32 0.0, %v9215
      %v9217 = vpop.f32.mrb[0].mxu0
      %v9218 = vpop.f32.mrb[0].mxu0
      %v9219 = vadd.f32 0.0, %v9218
      %v9220 = vpop.f32.mrb[0].mxu0
      %9221 = vmatprep.mubr.bf16.mxu0 0
      %9222 = vmatmul.mubr.bf16.gmra.mrb[0].mxu0 %v9129
      %v9223 = vpop.f32.mrb[0].mxu0
      %v9224 = vadd.f32 0.0, %v9223
      %v9225 = vpop.f32.mrb[0].mxu0
      %v9226 = vpop.f32.mrb[0].mxu0
      %v9227 = vadd.f32 0.0, %v9226
      %v9228 = vpop.f32.mrb[0].mxu0
      %9229 = vmatprep.mubr.bf16.mxu0 0
      %9230 = vmatmul.mubr.bf16.gmra.mrb[0].mxu0 %v9132
      %v9231 = vpop.f32.mrb[0].mxu0
      %v9232 = vadd.f32 0.0, %v9231
      %v9233 = vpop.f32.mrb[0].mxu0
      %v9234 = vpop.f32.mrb[0].mxu0
      %v9235 = vadd.f32 0.0, %v9234
      %v9236 = vpop.f32.mrb[0].mxu0
      %9237 = vmatprep.mubr.bf16.mxu0 0
      %9238 = vmatmul.mubr.bf16.gmra.mrb[0].mxu0 %v9135
      %v9239 = vpop.f32.mrb[0].mxu0
      %v9240 = vadd.f32 0.0, %v9239
      %v9241 = vpop.f32.mrb[0].mxu0
      %v9242 = vpop.f32.mrb[0].mxu0
      %v9243 = vadd.f32 0.0, %v9242
      %v9244 = vpop.f32.mrb[0].mxu0
      %9245 = vmatprep.mubr.bf16.mxu0 0
      %9246 = vmatmul.mubr.bf16.gmra.mrb[0].mxu0 %v9138
      %v9247 = vpop.f32.mrb[0].mxu0
      %v9248 = vadd.f32 0.0, %v9247
      %v9249 = vpop.f32.mrb[0].mxu0
      %v9250 = vpop.f32.mrb[0].mxu0
      %v9251 = vadd.f32 0.0, %v9250
      %v9252 = vpop.f32.mrb[0].mxu0
      %9253 = vmatprep.mubr.bf16.mxu0 0
      %9254 = vmatmul.mubr.bf16.gmra.mrb[0].mxu0 %v9141
      %v9255 = vpop.f32.mrb[0].mxu0
      %v9256 = vadd.f32 0.0, %v9255
      %v9257 = vpop.f32.mrb[0].mxu0
      %v9258 = vpop.f32.mrb[0].mxu0
      %v9259 = vadd.f32 0.0, %v9258
      %v9260 = vpop.f32.mrb[0].mxu0
      %9261 = vmatprep.mubr.bf16.mxu0 0
      %9262 = vmatmul.mubr.bf16.gmra.mrb[0].mxu0 %v9144
      %v9263 = vpop.f32.mrb[0].mxu0
      %v9264 = vadd.f32 0.0, %v9263
      %v9265 = vpop.f32.mrb[0].mxu0
      %v9266 = vpop.f32.mrb[0].mxu0
      %v9267 = vadd.f32 0.0, %v9266
      %v9268 = vpop.f32.mrb[0].mxu0
      %9269 = vmatprep.mubr.bf16.mxu0 0
      %9270 = vmatmul.mubr.bf16.gmra.mrb[0].mxu0 %v9147
      %v9271 = vpop.f32.mrb[0].mxu0
      %v9272 = vadd.f32 0.0, %v9271
      %v9273 = vpop.f32.mrb[0].mxu0
      %v9274 = vpop.f32.mrb[0].mxu0
      %v9275 = vadd.f32 0.0, %v9274
      %v9276 = vpop.f32.mrb[0].mxu0
      %9277 = vmatprep.mubr.bf16.mxu0 0
      %9278 = vmatmul.mubr.bf16.gmra.mrb[0].mxu0 %v9150
      %v9279 = vpop.f32.mrb[0].mxu0
      %v9280 = vadd.f32 0.0, %v9279
      %v9281 = vpop.f32.mrb[0].mxu0
      %v9282 = vpop.f32.mrb[0].mxu0
      %v9283 = vadd.f32 0.0, %v9282
      %v9284 = vpop.f32.mrb[0].mxu0
      %9285 = vmatprep.mubr.bf16.mxu0 0
      %9286 = vmatmul.mubr.bf16.gmra.mrb[0].mxu0 %v9153
      %v9287 = vpop.f32.mrb[0].mxu0
      %v9288 = vadd.f32 0.0, %v9287
      %v9289 = vpop.f32.mrb[0].mxu0
      %v9290 = vpop.f32.mrb[0].mxu0
      %v9291 = vadd.f32 0.0, %v9290
      %v9292 = vpop.f32.mrb[0].mxu0
      %9293 = vmatprep.mubr.bf16.mxu0 0
      %9294 = vmatmul.mubr.bf16.gmra.mrb[0].mxu0 %v9156
      %v9295 = vpop.f32.mrb[0].mxu0
      %v9296 = vadd.f32 0.0, %v9295
      %v9297 = vpop.f32.mrb[0].mxu0
      %v9298 = vpop.f32.mrb[0].mxu0
      %v9299 = vadd.f32 0.0, %v9298
      %v9300 = vpop.f32.mrb[0].mxu0
      %9301 = vmatprep.mubr.bf16.mxu0 0
      %9302 = vmatmul.mubr.bf16.gmra.mrb[0].mxu0 %v9159
      %v9303 = vpop.f32.mrb[0].mxu0
      %v9304 = vadd.f32 0.0, %v9303
      %v9305 = vpop.f32.mrb[0].mxu0
      %v9306 = vpop.f32.mrb[0].mxu0
      %v9307 = vadd.f32 0.0, %v9306
      %v9308 = vpop.f32.mrb[0].mxu0
      %9309 = vmatprep.mubr.bf16.mxu0 0
      %9310 = vmatmul.mubr.bf16.gmra.mrb[0].mxu0 %v9162
      %v9311 = vpop.f32.mrb[0].mxu0
      %v9312 = vadd.f32 0.0, %v9311
      %v9313 = vpop.f32.mrb[0].mxu0
      %v9314 = vpop.f32.mrb[0].mxu0
      %v9315 = vadd.f32 0.0, %v9314
      %v9316 = vpop.f32.mrb[0].mxu0
      %9317 = vmatprep.mubr.bf16.mxu0 0
      %9318 = vmatmul.mubr.bf16.gmra.mrb[0].mxu0 %v9165
      %v9319 = vpop.f32.mrb[0].mxu0
      %v9320 = vadd.f32 0.0, %v9319
      %v9321 = vpop.f32.mrb[0].mxu0
      %v9322 = vpop.f32.mrb[0].mxu0
      %v9323 = vadd.f32 0.0, %v9322
      %v9324 = vpop.f32.mrb[0].mxu0
      %9325 = vmatprep.mubr.bf16.mxu0 0
      %9326 = vmatmul.mubr.bf16.gmra.mrb[0].mxu0 %v9168
      %v9327 = vpop.f32.mrb[0].mxu0
      %v9328 = vadd.f32 0.0, %v9327
      %v9329 = vpop.f32.mrb[0].mxu0
      %v9330 = vpop.f32.mrb[0].mxu0
      %v9331 = vadd.f32 0.0, %v9330
      %v9332 = vpop.f32.mrb[0].mxu0
      %9333 = vdwg.mxu0
      %v9334 = vadd.f32 %v8922, %v9208
      %v9335 = vadd.f32 %v8923, %v9211
      %v9336 = vadd.f32 %v8924, %v9216
      %v9337 = vadd.f32 %v8925, %v9219
      %v9338 = vadd.f32 %v8926, %v9224
      %v9339 = vadd.f32 %v8927, %v9227
      %v9340 = vadd.f32 %v8928, %v9232
      %v9341 = vadd.f32 %v8929, %v9235
      %v9342 = vadd.f32 %v8930, %v9240
      %v9343 = vadd.f32 %v8931, %v9243
      %v9344 = vadd.f32 %v8932, %v9248
      %v9345 = vadd.f32 %v8933, %v9251
      %v9346 = vadd.f32 %v8934, %v9256
      %v9347 = vadd.f32 %v8935, %v9259
      %v9348 = vadd.f32 %v8936, %v9264
      %v9349 = vadd.f32 %v8937, %v9267
      %v9350 = vadd.f32 %v8938, %v9272
      %v9351 = vadd.f32 %v8939, %v9275
      %v9352 = vadd.f32 %v8940, %v9280
      %v9353 = vadd.f32 %v8941, %v9283
      %v9354 = vadd.f32 %v8942, %v9288
      %v9355 = vadd.f32 %v8943, %v9291
      %v9356 = vadd.f32 %v8944, %v9296
      %v9357 = vadd.f32 %v8945, %v9299
      %v9358 = vadd.f32 %v8946, %v9304
      %v9359 = vadd.f32 %v8947, %v9307
      %v9360 = vadd.f32 %v8948, %v9312
      %v9361 = vadd.f32 %v8949, %v9315
      %v9362 = vadd.f32 %v8950, %v9320
      %v9363 = vadd.f32 %v8951, %v9323
      %v9364 = vadd.f32 %v8952, %v9328
      %v9365 = vadd.f32 %v8953, %v9331
      %v9366 = vpack.c.bf16 0.0, %v7214
      %v9367 = vmul.bf16 %v7216, %v2975
      %v9368 = vmul.bf16 %v7217, %v2984
      %v9369 = vmul.bf16 %v7218, %v2993
      %v9370 = vmul.bf16 %v7219, %v3002
      %v9371 = vmul.bf16 %v7220, %v3011
      %v9372 = vmul.bf16 %v7221, %v3020
      %v9373 = vmul.bf16 %v7222, %v3029
      %v9374 = vmul.bf16 %v7223, %v3038
      %v9375 = vmul.bf16 %v7224, %v3047
      %v9376 = vmul.bf16 %v7225, %v3056
      %v9377 = vmul.bf16 %v7226, %v3065
      %v9378 = vmul.bf16 %v7227, %v3074
      %v9379 = vmul.bf16 %v7228, %v3083
      %v9380 = vmul.bf16 %v7229, %v3092
      %v9381 = vmul.bf16 %v8291, %v3101
      %v9382 = vmul.bf16 %v9366, %v3110
      %s9383 = scalar_lea.vmem %s6, 144
      %v9384 = vld [vmem:[%s9383] sm:$0xf]
      %v9385 = vld [vmem:[%s9383 + $0x4] sm:$0xf]
      %v9386 = vld [vmem:[%s9383 + $0x8] sm:$0xf]
      %v9387 = vld [vmem:[%s9383 + $0xc] sm:$0xf]
      %v9388 = vld [vmem:[%s9383 + $0x10] sm:$0xf]
      %v9389 = vld [vmem:[%s9383 + $0x14] sm:$0xf]
      %v9391 = vshrl.u32 %v9367, 16
      %v9393 = vrot.slane %v9391, 3
      %v9394 = vshll.u32 %v9367, 16
      %v9396 = vrot.slane %v9394, 4
      %v9397 = vor.u32 %v9393, %v9396
      %v9399 = vshrl.u32 %v9368, 16
      %v9401 = vrot.slane %v9399, 3
      %v9402 = vshll.u32 %v9368, 16
      %v9404 = vrot.slane %v9402, 4
      %v9405 = vor.u32 %v9401, %v9404
      %v9406 = vsel %vm3350, %v9397, %v9405
      %v9408 = vshrl.u32 %v9369, 16
      %v9410 = vrot.slane %v9408, 3
      %v9411 = vshll.u32 %v9369, 16
      %v9413 = vrot.slane %v9411, 4
      %v9414 = vor.u32 %v9410, %v9413
      %v9415 = vsel %vm3350, %v9405, %v9414
      %v9417 = vshrl.u32 %v9370, 16
      %v9419 = vrot.slane %v9417, 3
      %v9420 = vshll.u32 %v9370, 16
      %v9422 = vrot.slane %v9420, 4
      %v9423 = vor.u32 %v9419, %v9422
      %v9424 = vsel %vm3350, %v9414, %v9423
      %v9426 = vshrl.u32 %v9371, 16
      %v9428 = vrot.slane %v9426, 3
      %v9429 = vshll.u32 %v9371, 16
      %v9431 = vrot.slane %v9429, 4
      %v9432 = vor.u32 %v9428, %v9431
      %v9433 = vsel %vm3350, %v9423, %v9432
      %v9435 = vshrl.u32 %v9372, 16
      %v9437 = vrot.slane %v9435, 3
      %v9438 = vshll.u32 %v9372, 16
      %v9440 = vrot.slane %v9438, 4
      %v9441 = vor.u32 %v9437, %v9440
      %v9442 = vsel %vm3350, %v9432, %v9441
      %v9444 = vshrl.u32 %v9373, 16
      %v9446 = vrot.slane %v9444, 3
      %v9447 = vshll.u32 %v9373, 16
      %v9449 = vrot.slane %v9447, 4
      %v9450 = vor.u32 %v9446, %v9449
      %v9451 = vsel %vm3350, %v9441, %v9450
      %v9453 = vshrl.u32 %v9374, 16
      %v9455 = vrot.slane %v9453, 3
      %v9456 = vshll.u32 %v9374, 16
      %v9458 = vrot.slane %v9456, 4
      %v9459 = vor.u32 %v9455, %v9458
      %v9460 = vsel %vm3350, %v9450, %v9459
      %v9462 = vshrl.u32 %v9375, 16
      %v9464 = vrot.slane %v9462, 3
      %v9465 = vshll.u32 %v9375, 16
      %v9467 = vrot.slane %v9465, 4
      %v9468 = vor.u32 %v9464, %v9467
      %v9469 = vsel %vm3350, %v9459, %v9468
      %v9471 = vshrl.u32 %v9376, 16
      %v9473 = vrot.slane %v9471, 3
      %v9474 = vshll.u32 %v9376, 16
      %v9476 = vrot.slane %v9474, 4
      %v9477 = vor.u32 %v9473, %v9476
      %v9478 = vsel %vm3350, %v9468, %v9477
      %v9480 = vshrl.u32 %v9377, 16
      %v9482 = vrot.slane %v9480, 3
      %v9483 = vshll.u32 %v9377, 16
      %v9485 = vrot.slane %v9483, 4
      %v9486 = vor.u32 %v9482, %v9485
      %v9487 = vsel %vm3350, %v9477, %v9486
      %v9489 = vshrl.u32 %v9378, 16
      %v9491 = vrot.slane %v9489, 3
      %v9492 = vshll.u32 %v9378, 16
      %v9494 = vrot.slane %v9492, 4
      %v9495 = vor.u32 %v9491, %v9494
      %v9496 = vsel %vm3350, %v9486, %v9495
      %v9498 = vshrl.u32 %v9379, 16
      %v9500 = vrot.slane %v9498, 3
      %v9501 = vshll.u32 %v9379, 16
      %v9503 = vrot.slane %v9501, 4
      %v9504 = vor.u32 %v9500, %v9503
      %v9505 = vsel %vm3350, %v9495, %v9504
      %v9507 = vshrl.u32 %v9380, 16
      %v9509 = vrot.slane %v9507, 3
      %v9510 = vshll.u32 %v9380, 16
      %v9512 = vrot.slane %v9510, 4
      %v9513 = vor.u32 %v9509, %v9512
      %v9514 = vsel %vm3350, %v9504, %v9513
      %v9516 = vshrl.u32 %v9381, 16
      %v9518 = vrot.slane %v9516, 3
      %v9519 = vshll.u32 %v9381, 16
      %v9521 = vrot.slane %v9519, 4
      %v9522 = vor.u32 %v9518, %v9521
      %v9523 = vsel %vm3350, %v9513, %v9522
      %v9525 = vshrl.u32 %v9382, 16
      %v9527 = vrot.slane %v9525, 3
      %v9528 = vshll.u32 %v9382, 16
      %v9530 = vrot.slane %v9528, 4
      %v9531 = vor.u32 %v9527, %v9530
      %v9532 = vsel %vm3350, %v9522, %v9531
      %v9533 = vsel %vm3350, %v9531, %v6041
      %v9540 = vunpack.c.l.b16 %v9384
      %v9541 = vunpack.c.l.b16 %v9385
      %v9542 = vunpack.c.l.b16 %v9386
      %v9543 = vunpack.c.l.b16 %v9387
      %v9544 = vunpack.c.l.b16 %v9388
      %v9545 = vunpack.c.l.b16 %v9389
      %v9546 = vpack.c.b16 %v9541, %v9540
      %v9547 = vpack.c.b16 %v9543, %v9542
      %v9548 = vpack.c.b16 %v9545, %v9544
      %v9552 = vsel %vm7292, %v9406, 0
      %v9555 = vsel %vm7292, %v9415, 0
      %v9558 = vsel %vm7292, %v9424, 0
      %v9561 = vsel %vm7292, %v9433, 0
      %v9564 = vsel %vm7292, %v9442, 0
      %v9567 = vsel %vm7292, %v9451, 0
      %v9570 = vsel %vm7292, %v9460, 0
      %v9573 = vsel %vm7292, %v9469, 0
      %v9576 = vsel %vm7292, %v9478, 0
      %v9579 = vsel %vm7292, %v9487, 0
      %v9582 = vsel %vm7292, %v9496, 0
      %v9585 = vsel %vm7292, %v9505, 0
      %v9588 = vsel %vm7292, %v9514, 0
      %v9591 = vsel %vm7292, %v9523, 0
      %v9594 = vsel %vm7292, %v9532, 0
      %v9597 = vsel %vm7292, %v9533, 0
      %v9600 = vand.u32 %v9548, %v7343
      %9602 = vmatprep.subr.bf16.mxu0 0
      %9603 = vmatpush1.bf16.msra.mxu0 %v9546
      %9604 = vmatprep.subr.bf16.mxu0 0
      %9605 = vmatpush1.bf16.msra.mxu0 %v9547
      %9606 = vmatprep.subr.bf16.mxu0 0
      %9607 = vmatpush1.bf16.msra.mxu0 %v9600
      %9608 = vmatprep.subr.bf16.mxu0 0
      %9609 = vmatpush1.bf16.msra.mxu0 0
      %9610 = vmatprep.subr.bf16.mxu0 0
      %9611 = vmatpush1.bf16.msra.mxu0 0
      %9612 = vmatprep.subr.bf16.mxu0 0
      %9613 = vmatpush1.bf16.msra.mxu0 0
      %9614 = vmatprep.subr.bf16.mxu0 0
      %9615 = vmatpush1.bf16.msra.mxu0 0
      %9616 = vmatprep.subr.bf16.mxu0 0
      %9617 = vmatpush1.bf16.msra.mxu0 0
      %9618 = vmatprep.subr.bf16.mxu0 0
      %9619 = vmatpush1.bf16.msra.mxu0 0
      %9620 = vmatprep.subr.bf16.mxu0 0
      %9621 = vmatpush1.bf16.msra.mxu0 0
      %9622 = vmatprep.subr.bf16.mxu0 0
      %9623 = vmatpush1.bf16.msra.mxu0 0
      %9624 = vmatprep.subr.bf16.mxu0 0
      %9625 = vmatpush1.bf16.msra.mxu0 0
      %9626 = vmatprep.subr.bf16.mxu0 0
      %9627 = vmatpush1.bf16.msra.mxu0 0
      %9628 = vmatprep.subr.bf16.mxu0 0
      %9629 = vmatpush1.bf16.msra.mxu0 0
      %9630 = vmatprep.subr.bf16.mxu0 0
      %9631 = vmatpush1.bf16.msra.mxu0 0
      %9632 = vmatprep.subr.bf16.mxu0 0
      %9633 = vmatpush1.bf16.msra.mxu0 0
      %9634 = vmatprep.mubr.bf16.mxu0 0
      %9635 = vmatmul.mubr.bf16.gmra.mrb[0].mxu0 %v9552
      %v9636 = vpop.f32.mrb[0].mxu0
      %v9637 = vadd.f32 0.0, %v9636
      %v9638 = vpop.f32.mrb[0].mxu0
      %v9639 = vpop.f32.mrb[0].mxu0
      %v9640 = vadd.f32 0.0, %v9639
      %v9641 = vpop.f32.mrb[0].mxu0
      %9642 = vmatprep.mubr.bf16.mxu0 0
      %9643 = vmatmul.mubr.bf16.gmra.mrb[0].mxu0 %v9555
      %v9644 = vpop.f32.mrb[0].mxu0
      %v9645 = vadd.f32 0.0, %v9644
      %v9646 = vpop.f32.mrb[0].mxu0
      %v9647 = vpop.f32.mrb[0].mxu0
      %v9648 = vadd.f32 0.0, %v9647
      %v9649 = vpop.f32.mrb[0].mxu0
      %9650 = vmatprep.mubr.bf16.mxu0 0
      %9651 = vmatmul.mubr.bf16.gmra.mrb[0].mxu0 %v9558
      %v9652 = vpop.f32.mrb[0].mxu0
      %v9653 = vadd.f32 0.0, %v9652
      %v9654 = vpop.f32.mrb[0].mxu0
      %v9655 = vpop.f32.mrb[0].mxu0
      %v9656 = vadd.f32 0.0, %v9655
      %v9657 = vpop.f32.mrb[0].mxu0
      %9658 = vmatprep.mubr.bf16.mxu0 0
      %9659 = vmatmul.mubr.bf16.gmra.mrb[0].mxu0 %v9561
      %v9660 = vpop.f32.mrb[0].mxu0
      %v9661 = vadd.f32 0.0, %v9660
      %v9662 = vpop.f32.mrb[0].mxu0
      %v9663 = vpop.f32.mrb[0].mxu0
      %v9664 = vadd.f32 0.0, %v9663
      %v9665 = vpop.f32.mrb[0].mxu0
      %9666 = vmatprep.mubr.bf16.mxu0 0
      %9667 = vmatmul.mubr.bf16.gmra.mrb[0].mxu0 %v9564
      %v9668 = vpop.f32.mrb[0].mxu0
      %v9669 = vadd.f32 0.0, %v9668
      %v9670 = vpop.f32.mrb[0].mxu0
      %v9671 = vpop.f32.mrb[0].mxu0
      %v9672 = vadd.f32 0.0, %v9671
      %v9673 = vpop.f32.mrb[0].mxu0
      %9674 = vmatprep.mubr.bf16.mxu0 0
      %9675 = vmatmul.mubr.bf16.gmra.mrb[0].mxu0 %v9567
      %v9676 = vpop.f32.mrb[0].mxu0
      %v9677 = vadd.f32 0.0, %v9676
      %v9678 = vpop.f32.mrb[0].mxu0
      %v9679 = vpop.f32.mrb[0].mxu0
      %v9680 = vadd.f32 0.0, %v9679
      %v9681 = vpop.f32.mrb[0].mxu0
      %9682 = vmatprep.mubr.bf16.mxu0 0
      %9683 = vmatmul.mubr.bf16.gmra.mrb[0].mxu0 %v9570
      %v9684 = vpop.f32.mrb[0].mxu0
      %v9685 = vadd.f32 0.0, %v9684
      %v9686 = vpop.f32.mrb[0].mxu0
      %v9687 = vpop.f32.mrb[0].mxu0
      %v9688 = vadd.f32 0.0, %v9687
      %v9689 = vpop.f32.mrb[0].mxu0
      %9690 = vmatprep.mubr.bf16.mxu0 0
      %9691 = vmatmul.mubr.bf16.gmra.mrb[0].mxu0 %v9573
      %v9692 = vpop.f32.mrb[0].mxu0
      %v9693 = vadd.f32 0.0, %v9692
      %v9694 = vpop.f32.mrb[0].mxu0
      %v9695 = vpop.f32.mrb[0].mxu0
      %v9696 = vadd.f32 0.0, %v9695
      %v9697 = vpop.f32.mrb[0].mxu0
      %9698 = vmatprep.mubr.bf16.mxu0 0
      %9699 = vmatmul.mubr.bf16.gmra.mrb[0].mxu0 %v9576
      %v9700 = vpop.f32.mrb[0].mxu0
      %v9701 = vadd.f32 0.0, %v9700
      %v9702 = vpop.f32.mrb[0].mxu0
      %v9703 = vpop.f32.mrb[0].mxu0
      %v9704 = vadd.f32 0.0, %v9703
      %v9705 = vpop.f32.mrb[0].mxu0
      %9706 = vmatprep.mubr.bf16.mxu0 0
      %9707 = vmatmul.mubr.bf16.gmra.mrb[0].mxu0 %v9579
      %v9708 = vpop.f32.mrb[0].mxu0
      %v9709 = vadd.f32 0.0, %v9708
      %v9710 = vpop.f32.mrb[0].mxu0
      %v9711 = vpop.f32.mrb[0].mxu0
      %v9712 = vadd.f32 0.0, %v9711
      %v9713 = vpop.f32.mrb[0].mxu0
      %9714 = vmatprep.mubr.bf16.mxu0 0
      %9715 = vmatmul.mubr.bf16.gmra.mrb[0].mxu0 %v9582
      %v9716 = vpop.f32.mrb[0].mxu0
      %v9717 = vadd.f32 0.0, %v9716
      %v9718 = vpop.f32.mrb[0].mxu0
      %v9719 = vpop.f32.mrb[0].mxu0
      %v9720 = vadd.f32 0.0, %v9719
      %v9721 = vpop.f32.mrb[0].mxu0
      %9722 = vmatprep.mubr.bf16.mxu0 0
      %9723 = vmatmul.mubr.bf16.gmra.mrb[0].mxu0 %v9585
      %v9724 = vpop.f32.mrb[0].mxu0
      %v9725 = vadd.f32 0.0, %v9724
      %v9726 = vpop.f32.mrb[0].mxu0
      %v9727 = vpop.f32.mrb[0].mxu0
      %v9728 = vadd.f32 0.0, %v9727
      %v9729 = vpop.f32.mrb[0].mxu0
      %9730 = vmatprep.mubr.bf16.mxu0 0
      %9731 = vmatmul.mubr.bf16.gmra.mrb[0].mxu0 %v9588
      %v9732 = vpop.f32.mrb[0].mxu0
      %v9733 = vadd.f32 0.0, %v9732
      %v9734 = vpop.f32.mrb[0].mxu0
      %v9735 = vpop.f32.mrb[0].mxu0
      %v9736 = vadd.f32 0.0, %v9735
      %v9737 = vpop.f32.mrb[0].mxu0
      %9738 = vmatprep.mubr.bf16.mxu0 0
      %9739 = vmatmul.mubr.bf16.gmra.mrb[0].mxu0 %v9591
      %v9740 = vpop.f32.mrb[0].mxu0
      %v9741 = vadd.f32 0.0, %v9740
      %v9742 = vpop.f32.mrb[0].mxu0
      %v9743 = vpop.f32.mrb[0].mxu0
      %v9744 = vadd.f32 0.0, %v9743
      %v9745 = vpop.f32.mrb[0].mxu0
      %9746 = vmatprep.mubr.bf16.mxu0 0
      %9747 = vmatmul.mubr.bf16.gmra.mrb[0].mxu0 %v9594
      %v9748 = vpop.f32.mrb[0].mxu0
      %v9749 = vadd.f32 0.0, %v9748
      %v9750 = vpop.f32.mrb[0].mxu0
      %v9751 = vpop.f32.mrb[0].mxu0
      %v9752 = vadd.f32 0.0, %v9751
      %v9753 = vpop.f32.mrb[0].mxu0
      %9754 = vmatprep.mubr.bf16.mxu0 0
      %9755 = vmatmul.mubr.bf16.gmra.mrb[0].mxu0 %v9597
      %v9756 = vpop.f32.mrb[0].mxu0
      %v9757 = vadd.f32 0.0, %v9756
      %v9758 = vpop.f32.mrb[0].mxu0
      %v9759 = vpop.f32.mrb[0].mxu0
      %v9760 = vadd.f32 0.0, %v9759
      %v9761 = vpop.f32.mrb[0].mxu0
      %9762 = vdwg.mxu0
      %v9763 = vadd.f32 %v9334, %v9637
      %v9764 = vadd.f32 %v9335, %v9640
      %v9765 = vadd.f32 %v9336, %v9645
      %v9766 = vadd.f32 %v9337, %v9648
      %v9767 = vadd.f32 %v9338, %v9653
      %v9768 = vadd.f32 %v9339, %v9656
      %v9769 = vadd.f32 %v9340, %v9661
      %v9770 = vadd.f32 %v9341, %v9664
      %v9771 = vadd.f32 %v9342, %v9669
      %v9772 = vadd.f32 %v9343, %v9672
      %v9773 = vadd.f32 %v9344, %v9677
      %v9774 = vadd.f32 %v9345, %v9680
      %v9775 = vadd.f32 %v9346, %v9685
      %v9776 = vadd.f32 %v9347, %v9688
      %v9777 = vadd.f32 %v9348, %v9693
      %v9778 = vadd.f32 %v9349, %v9696
      %v9779 = vadd.f32 %v9350, %v9701
      %v9780 = vadd.f32 %v9351, %v9704
      %v9781 = vadd.f32 %v9352, %v9709
      %v9782 = vadd.f32 %v9353, %v9712
      %v9783 = vadd.f32 %v9354, %v9717
      %v9784 = vadd.f32 %v9355, %v9720
      %v9785 = vadd.f32 %v9356, %v9725
      %v9786 = vadd.f32 %v9357, %v9728
      %v9787 = vadd.f32 %v9358, %v9733
      %v9788 = vadd.f32 %v9359, %v9736
      %v9789 = vadd.f32 %v9360, %v9741
      %v9790 = vadd.f32 %v9361, %v9744
      %v9791 = vadd.f32 %v9362, %v9749
      %v9792 = vadd.f32 %v9363, %v9752
      %v9793 = vadd.f32 %v9364, %v9757
      %v9794 = vadd.f32 %v9365, %v9760
      %s9795 = scalar_lea.vmem %s6, 168
      %v9796 = vld [vmem:[%s9795] sm:$0xf]
      %v9797 = vld [vmem:[%s9795 + $0x4] sm:$0xf]
      %v9798 = vld [vmem:[%s9795 + $0x8] sm:$0xf]
      %v9799 = vld [vmem:[%s9795 + $0xc] sm:$0xf]
      %v9800 = vld [vmem:[%s9795 + $0x10] sm:$0xf]
      %v9801 = vld [vmem:[%s9795 + $0x14] sm:$0xf]
      %v9808 = vunpack.c.l.b16 %v9796
      %v9809 = vunpack.c.l.b16 %v9797
      %v9810 = vunpack.c.l.b16 %v9798
      %v9811 = vunpack.c.l.b16 %v9799
      %v9812 = vunpack.c.l.b16 %v9800
      %v9813 = vunpack.c.l.b16 %v9801
      %v9814 = vpack.c.b16 %v9809, %v9808
      %v9815 = vpack.c.b16 %v9811, %v9810
      %v9816 = vpack.c.b16 %v9813, %v9812
      %v9820 = vand.u32 %v9816, %v7343
      %9822 = vmatprep.subr.bf16.mxu0 0
      %9823 = vmatpush1.bf16.msra.mxu0 %v9814
      %9824 = vmatprep.subr.bf16.mxu0 0
      %9825 = vmatpush1.bf16.msra.mxu0 %v9815
      %9826 = vmatprep.subr.bf16.mxu0 0
      %9827 = vmatpush1.bf16.msra.mxu0 %v9820
      %9828 = vmatprep.subr.bf16.mxu0 0
      %9829 = vmatpush1.bf16.msra.mxu0 0
      %9830 = vmatprep.subr.bf16.mxu0 0
      %9831 = vmatpush1.bf16.msra.mxu0 0
      %9832 = vmatprep.subr.bf16.mxu0 0
      %9833 = vmatpush1.bf16.msra.mxu0 0
      %9834 = vmatprep.subr.bf16.mxu0 0
      %9835 = vmatpush1.bf16.msra.mxu0 0
      %9836 = vmatprep.subr.bf16.mxu0 0
      %9837 = vmatpush1.bf16.msra.mxu0 0
      %9838 = vmatprep.subr.bf16.mxu0 0
      %9839 = vmatpush1.bf16.msra.mxu0 0
      %9840 = vmatprep.subr.bf16.mxu0 0
      %9841 = vmatpush1.bf16.msra.mxu0 0
      %9842 = vmatprep.subr.bf16.mxu0 0
      %9843 = vmatpush1.bf16.msra.mxu0 0
      %9844 = vmatprep.subr.bf16.mxu0 0
      %9845 = vmatpush1.bf16.msra.mxu0 0
      %9846 = vmatprep.subr.bf16.mxu0 0
      %9847 = vmatpush1.bf16.msra.mxu0 0
      %9848 = vmatprep.subr.bf16.mxu0 0
      %9849 = vmatpush1.bf16.msra.mxu0 0
      %9850 = vmatprep.subr.bf16.mxu0 0
      %9851 = vmatpush1.bf16.msra.mxu0 0
      %9852 = vmatprep.subr.bf16.mxu0 0
      %9853 = vmatpush1.bf16.msra.mxu0 0
      %9854 = vmatprep.mubr.bf16.mxu0 0
      %9855 = vmatmul.mubr.bf16.gmra.mrb[0].mxu0 %v7299
      %v9856 = vpop.f32.mrb[0].mxu0
      %v9857 = vadd.f32 0.0, %v9856
      %v9858 = vpop.f32.mrb[0].mxu0
      %v9859 = vpop.f32.mrb[0].mxu0
      %v9860 = vadd.f32 0.0, %v9859
      %v9861 = vpop.f32.mrb[0].mxu0
      %9862 = vmatprep.mubr.bf16.mxu0 0
      %9863 = vmatmul.mubr.bf16.gmra.mrb[0].mxu0 %v7302
      %v9864 = vpop.f32.mrb[0].mxu0
      %v9865 = vadd.f32 0.0, %v9864
      %v9866 = vpop.f32.mrb[0].mxu0
      %v9867 = vpop.f32.mrb[0].mxu0
      %v9868 = vadd.f32 0.0, %v9867
      %v9869 = vpop.f32.mrb[0].mxu0
      %9870 = vmatprep.mubr.bf16.mxu0 0
      %9871 = vmatmul.mubr.bf16.gmra.mrb[0].mxu0 %v7305
      %v9872 = vpop.f32.mrb[0].mxu0
      %v9873 = vadd.f32 0.0, %v9872
      %v9874 = vpop.f32.mrb[0].mxu0
      %v9875 = vpop.f32.mrb[0].mxu0
      %v9876 = vadd.f32 0.0, %v9875
      %v9877 = vpop.f32.mrb[0].mxu0
      %9878 = vmatprep.mubr.bf16.mxu0 0
      %9879 = vmatmul.mubr.bf16.gmra.mrb[0].mxu0 %v7308
      %v9880 = vpop.f32.mrb[0].mxu0
      %v9881 = vadd.f32 0.0, %v9880
      %v9882 = vpop.f32.mrb[0].mxu0
      %v9883 = vpop.f32.mrb[0].mxu0
      %v9884 = vadd.f32 0.0, %v9883
      %v9885 = vpop.f32.mrb[0].mxu0
      %9886 = vmatprep.mubr.bf16.mxu0 0
      %9887 = vmatmul.mubr.bf16.gmra.mrb[0].mxu0 %v7311
      %v9888 = vpop.f32.mrb[0].mxu0
      %v9889 = vadd.f32 0.0, %v9888
      %v9890 = vpop.f32.mrb[0].mxu0
      %v9891 = vpop.f32.mrb[0].mxu0
      %v9892 = vadd.f32 0.0, %v9891
      %v9893 = vpop.f32.mrb[0].mxu0
      %9894 = vmatprep.mubr.bf16.mxu0 0
      %9895 = vmatmul.mubr.bf16.gmra.mrb[0].mxu0 %v7314
      %v9896 = vpop.f32.mrb[0].mxu0
      %v9897 = vadd.f32 0.0, %v9896
      %v9898 = vpop.f32.mrb[0].mxu0
      %v9899 = vpop.f32.mrb[0].mxu0
      %v9900 = vadd.f32 0.0, %v9899
      %v9901 = vpop.f32.mrb[0].mxu0
      %9902 = vmatprep.mubr.bf16.mxu0 0
      %9903 = vmatmul.mubr.bf16.gmra.mrb[0].mxu0 %v7317
      %v9904 = vpop.f32.mrb[0].mxu0
      %v9905 = vadd.f32 0.0, %v9904
      %v9906 = vpop.f32.mrb[0].mxu0
      %v9907 = vpop.f32.mrb[0].mxu0
      %v9908 = vadd.f32 0.0, %v9907
      %v9909 = vpop.f32.mrb[0].mxu0
      %9910 = vmatprep.mubr.bf16.mxu0 0
      %9911 = vmatmul.mubr.bf16.gmra.mrb[0].mxu0 %v7320
      %v9912 = vpop.f32.mrb[0].mxu0
      %v9913 = vadd.f32 0.0, %v9912
      %v9914 = vpop.f32.mrb[0].mxu0
      %v9915 = vpop.f32.mrb[0].mxu0
      %v9916 = vadd.f32 0.0, %v9915
      %v9917 = vpop.f32.mrb[0].mxu0
      %9918 = vmatprep.mubr.bf16.mxu0 0
      %9919 = vmatmul.mubr.bf16.gmra.mrb[0].mxu0 %v7323
      %v9920 = vpop.f32.mrb[0].mxu0
      %v9921 = vadd.f32 0.0, %v9920
      %v9922 = vpop.f32.mrb[0].mxu0
      %v9923 = vpop.f32.mrb[0].mxu0
      %v9924 = vadd.f32 0.0, %v9923
      %v9925 = vpop.f32.mrb[0].mxu0
      %9926 = vmatprep.mubr.bf16.mxu0 0
      %9927 = vmatmul.mubr.bf16.gmra.mrb[0].mxu0 %v7326
      %v9928 = vpop.f32.mrb[0].mxu0
      %v9929 = vadd.f32 0.0, %v9928
      %v9930 = vpop.f32.mrb[0].mxu0
      %v9931 = vpop.f32.mrb[0].mxu0
      %v9932 = vadd.f32 0.0, %v9931
      %v9933 = vpop.f32.mrb[0].mxu0
      %9934 = vmatprep.mubr.bf16.mxu0 0
      %9935 = vmatmul.mubr.bf16.gmra.mrb[0].mxu0 %v7329
      %v9936 = vpop.f32.mrb[0].mxu0
      %v9937 = vadd.f32 0.0, %v9936
      %v9938 = vpop.f32.mrb[0].mxu0
      %v9939 = vpop.f32.mrb[0].mxu0
      %v9940 = vadd.f32 0.0, %v9939
      %v9941 = vpop.f32.mrb[0].mxu0
      %9942 = vmatprep.mubr.bf16.mxu0 0
      %9943 = vmatmul.mubr.bf16.gmra.mrb[0].mxu0 %v7332
      %v9944 = vpop.f32.mrb[0].mxu0
      %v9945 = vadd.f32 0.0, %v9944
      %v9946 = vpop.f32.mrb[0].mxu0
      %v9947 = vpop.f32.mrb[0].mxu0
      %v9948 = vadd.f32 0.0, %v9947
      %v9949 = vpop.f32.mrb[0].mxu0
      %9950 = vmatprep.mubr.bf16.mxu0 0
      %9951 = vmatmul.mubr.bf16.gmra.mrb[0].mxu0 %v7335
      %v9952 = vpop.f32.mrb[0].mxu0
      %v9953 = vadd.f32 0.0, %v9952
      %v9954 = vpop.f32.mrb[0].mxu0
      %v9955 = vpop.f32.mrb[0].mxu0
      %v9956 = vadd.f32 0.0, %v9955
      %v9957 = vpop.f32.mrb[0].mxu0
      %9958 = vmatprep.mubr.bf16.mxu0 0
      %9959 = vmatmul.mubr.bf16.gmra.mrb[0].mxu0 %v7338
      %v9960 = vpop.f32.mrb[0].mxu0
      %v9961 = vadd.f32 0.0, %v9960
      %v9962 = vpop.f32.mrb[0].mxu0
      %v9963 = vpop.f32.mrb[0].mxu0
      %v9964 = vadd.f32 0.0, %v9963
      %v9965 = vpop.f32.mrb[0].mxu0
      %9966 = vmatprep.mubr.bf16.mxu0 0
      %9967 = vmatmul.mubr.bf16.gmra.mrb[0].mxu0 %v8756
      %v9968 = vpop.f32.mrb[0].mxu0
      %v9969 = vadd.f32 0.0, %v9968
      %v9970 = vpop.f32.mrb[0].mxu0
      %v9971 = vpop.f32.mrb[0].mxu0
      %v9972 = vadd.f32 0.0, %v9971
      %v9973 = vpop.f32.mrb[0].mxu0
      %9974 = vmatprep.mubr.bf16.mxu0 0
      %9975 = vmatmul.mubr.bf16.gmra.mrb[0].mxu0 %v7293
      %v9976 = vpop.f32.mrb[0].mxu0
      %v9977 = vadd.f32 0.0, %v9976
      %v9978 = vpop.f32.mrb[0].mxu0
      %v9979 = vpop.f32.mrb[0].mxu0
      %v9980 = vadd.f32 0.0, %v9979
      %v9981 = vpop.f32.mrb[0].mxu0
      %9982 = vdwg.mxu0
      %v9983 = vadd.f32 %v9763, %v9857
      %v9984 = vadd.f32 %v9764, %v9860
      %v9985 = vadd.f32 %v9765, %v9865
      %v9986 = vadd.f32 %v9766, %v9868
      %v9987 = vadd.f32 %v9767, %v9873
      %v9988 = vadd.f32 %v9768, %v9876
      %v9989 = vadd.f32 %v9769, %v9881
      %v9990 = vadd.f32 %v9770, %v9884
      %v9991 = vadd.f32 %v9771, %v9889
      %v9992 = vadd.f32 %v9772, %v9892
      %v9993 = vadd.f32 %v9773, %v9897
      %v9994 = vadd.f32 %v9774, %v9900
      %v9995 = vadd.f32 %v9775, %v9905
      %v9996 = vadd.f32 %v9776, %v9908
      %v9997 = vadd.f32 %v9777, %v9913
      %v9998 = vadd.f32 %v9778, %v9916
      %v9999 = vadd.f32 %v9779, %v9921
      %v10000 = vadd.f32 %v9780, %v9924
      %v10001 = vadd.f32 %v9781, %v9929
      %v10002 = vadd.f32 %v9782, %v9932
      %v10003 = vadd.f32 %v9783, %v9937
      %v10004 = vadd.f32 %v9784, %v9940
      %v10005 = vadd.f32 %v9785, %v9945
      %v10006 = vadd.f32 %v9786, %v9948
      %v10007 = vadd.f32 %v9787, %v9953
      %v10008 = vadd.f32 %v9788, %v9956
      %v10009 = vadd.f32 %v9789, %v9961
      %v10010 = vadd.f32 %v9790, %v9964
      %v10011 = vadd.f32 %v9791, %v9969
      %v10012 = vadd.f32 %v9792, %v9972
      %v10013 = vadd.f32 %v9793, %v9977
      %v10014 = vadd.f32 %v9794, %v9980
      %v10015 = vmul.bf16 %v7254, %v4208
      %v10016 = vmul.bf16 %v7255, %v4216
      %v10017 = vmul.bf16 %v7256, %v4224
      %v10018 = vmul.bf16 %v7257, %v4232
      %v10019 = vmul.bf16 %v7258, %v4240
      %v10020 = vmul.bf16 %v7259, %v4248
      %v10021 = vmul.bf16 %v7260, %v4256
      %v10022 = vmul.bf16 %v7261, %v4264
      %v10023 = vmul.bf16 %v7262, %v4272
      %v10024 = vmul.bf16 %v7263, %v4280
      %v10025 = vmul.bf16 %v7264, %v4288
      %v10026 = vmul.bf16 %v7265, %v4296
      %v10027 = vmul.bf16 %v7266, %v4304
      %v10028 = vmul.bf16 %v7267, %v4312
      %v10029 = vmul.bf16 %v8730, %v4320
      %s10030 = scalar_lea.vmem %s6, 192
      %v10031 = vld [vmem:[%s10030] sm:$0xf]
      %v10032 = vld [vmem:[%s10030 + $0x4] sm:$0xf]
      %v10033 = vld [vmem:[%s10030 + $0x8] sm:$0xf]
      %v10034 = vld [vmem:[%s10030 + $0xc] sm:$0xf]
      %v10035 = vld [vmem:[%s10030 + $0x10] sm:$0xf]
      %v10036 = vld [vmem:[%s10030 + $0x14] sm:$0xf]
      %v10038 = vshrl.u32 %v10015, 16
      %v10040 = vshll.u32 %v10015, 16
      %v10042 = vrot.slane %v10040, 1
      %v10043 = vor.u32 %v10038, %v10042
      %v10045 = vshll.u32 %v10016, 16
      %v10047 = vrot.slane %v10045, 1
      %v10048 = vsel %vm4372, %v10043, %v10047
      %v10049 = vshrl.u32 %v10016, 16
      %v10051 = vor.u32 %v10049, %v10047
      %v10053 = vshll.u32 %v10017, 16
      %v10055 = vrot.slane %v10053, 1
      %v10056 = vsel %vm4372, %v10051, %v10055
      %v10057 = vshrl.u32 %v10017, 16
      %v10059 = vor.u32 %v10057, %v10055
      %v10061 = vshll.u32 %v10018, 16
      %v10063 = vrot.slane %v10061, 1
      %v10064 = vsel %vm4372, %v10059, %v10063
      %v10065 = vshrl.u32 %v10018, 16
      %v10067 = vor.u32 %v10065, %v10063
      %v10069 = vshll.u32 %v10019, 16
      %v10071 = vrot.slane %v10069, 1
      %v10072 = vsel %vm4372, %v10067, %v10071
      %v10073 = vshrl.u32 %v10019, 16
      %v10075 = vor.u32 %v10073, %v10071
      %v10077 = vshll.u32 %v10020, 16
      %v10079 = vrot.slane %v10077, 1
      %v10080 = vsel %vm4372, %v10075, %v10079
      %v10081 = vshrl.u32 %v10020, 16
      %v10083 = vor.u32 %v10081, %v10079
      %v10085 = vshll.u32 %v10021, 16
      %v10087 = vrot.slane %v10085, 1
      %v10088 = vsel %vm4372, %v10083, %v10087
      %v10089 = vshrl.u32 %v10021, 16
      %v10091 = vor.u32 %v10089, %v10087
      %v10093 = vshll.u32 %v10022, 16
      %v10095 = vrot.slane %v10093, 1
      %v10096 = vsel %vm4372, %v10091, %v10095
      %v10097 = vshrl.u32 %v10022, 16
      %v10099 = vor.u32 %v10097, %v10095
      %v10101 = vshll.u32 %v10023, 16
      %v10103 = vrot.slane %v10101, 1
      %v10104 = vsel %vm4372, %v10099, %v10103
      %v10105 = vshrl.u32 %v10023, 16
      %v10107 = vor.u32 %v10105, %v10103
      %v10109 = vshll.u32 %v10024, 16
      %v10111 = vrot.slane %v10109, 1
      %v10112 = vsel %vm4372, %v10107, %v10111
      %v10113 = vshrl.u32 %v10024, 16
      %v10115 = vor.u32 %v10113, %v10111
      %v10117 = vshll.u32 %v10025, 16
      %v10119 = vrot.slane %v10117, 1
      %v10120 = vsel %vm4372, %v10115, %v10119
      %v10121 = vshrl.u32 %v10025, 16
      %v10123 = vor.u32 %v10121, %v10119
      %v10125 = vshll.u32 %v10026, 16
      %v10127 = vrot.slane %v10125, 1
      %v10128 = vsel %vm4372, %v10123, %v10127
      %v10129 = vshrl.u32 %v10026, 16
      %v10131 = vor.u32 %v10129, %v10127
      %v10133 = vshll.u32 %v10027, 16
      %v10135 = vrot.slane %v10133, 1
      %v10136 = vsel %vm4372, %v10131, %v10135
      %v10137 = vshrl.u32 %v10027, 16
      %v10139 = vor.u32 %v10137, %v10135
      %v10141 = vshll.u32 %v10028, 16
      %v10143 = vrot.slane %v10141, 1
      %v10144 = vsel %vm4372, %v10139, %v10143
      %v10145 = vshrl.u32 %v10028, 16
      %v10147 = vor.u32 %v10145, %v10143
      %v10149 = vshll.u32 %v10029, 16
      %v10151 = vrot.slane %v10149, 1
      %v10152 = vsel %vm4372, %v10147, %v10151
      %v10153 = vshrl.u32 %v10029, 16
      %v10155 = vor.u32 %v10153, %v10151
      %v10156 = vsel %vm4372, %v10155, %v6681
      %v10163 = vunpack.c.l.b16 %v10031
      %v10164 = vunpack.c.l.b16 %v10032
      %v10165 = vunpack.c.l.b16 %v10033
      %v10166 = vunpack.c.l.b16 %v10034
      %v10167 = vunpack.c.l.b16 %v10035
      %v10168 = vunpack.c.l.b16 %v10036
      %v10169 = vpack.c.b16 %v10164, %v10163
      %v10170 = vpack.c.b16 %v10166, %v10165
      %v10171 = vpack.c.b16 %v10168, %v10167
      %v10175 = vsel %vm7292, %v10048, 0
      %v10178 = vsel %vm7292, %v10056, 0
      %v10181 = vsel %vm7292, %v10064, 0
      %v10184 = vsel %vm7292, %v10072, 0
      %v10187 = vsel %vm7292, %v10080, 0
      %v10190 = vsel %vm7292, %v10088, 0
      %v10193 = vsel %vm7292, %v10096, 0
      %v10196 = vsel %vm7292, %v10104, 0
      %v10199 = vsel %vm7292, %v10112, 0
      %v10202 = vsel %vm7292, %v10120, 0
      %v10205 = vsel %vm7292, %v10128, 0
      %v10208 = vsel %vm7292, %v10136, 0
      %v10211 = vsel %vm7292, %v10144, 0
      %v10214 = vsel %vm7292, %v10152, 0
      %v10217 = vsel %vm7292, %v10156, 0
      %v10219 = vsel %vm7292, %v6686, 0
      %v10222 = vand.u32 %v10171, %v7343
      %10224 = vmatprep.subr.bf16.mxu0 0
      %10225 = vmatpush1.bf16.msra.mxu0 %v10169
      %10226 = vmatprep.subr.bf16.mxu0 0
      %10227 = vmatpush1.bf16.msra.mxu0 %v10170
      %10228 = vmatprep.subr.bf16.mxu0 0
      %10229 = vmatpush1.bf16.msra.mxu0 %v10222
      %10230 = vmatprep.subr.bf16.mxu0 0
      %10231 = vmatpush1.bf16.msra.mxu0 0
      %10232 = vmatprep.subr.bf16.mxu0 0
      %10233 = vmatpush1.bf16.msra.mxu0 0
      %10234 = vmatprep.subr.bf16.mxu0 0
      %10235 = vmatpush1.bf16.msra.mxu0 0
      %10236 = vmatprep.subr.bf16.mxu0 0
      %10237 = vmatpush1.bf16.msra.mxu0 0
      %10238 = vmatprep.subr.bf16.mxu0 0
      %10239 = vmatpush1.bf16.msra.mxu0 0
      %10240 = vmatprep.subr.bf16.mxu0 0
      %10241 = vmatpush1.bf16.msra.mxu0 0
      %10242 = vmatprep.subr.bf16.mxu0 0
      %10243 = vmatpush1.bf16.msra.mxu0 0
      %10244 = vmatprep.subr.bf16.mxu0 0
      %10245 = vmatpush1.bf16.msra.mxu0 0
      %10246 = vmatprep.subr.bf16.mxu0 0
      %10247 = vmatpush1.bf16.msra.mxu0 0
      %10248 = vmatprep.subr.bf16.mxu0 0
      %10249 = vmatpush1.bf16.msra.mxu0 0
      %10250 = vmatprep.subr.bf16.mxu0 0
      %10251 = vmatpush1.bf16.msra.mxu0 0
      %10252 = vmatprep.subr.bf16.mxu0 0
      %10253 = vmatpush1.bf16.msra.mxu0 0
      %10254 = vmatprep.subr.bf16.mxu0 0
      %10255 = vmatpush1.bf16.msra.mxu0 0
      %10256 = vmatprep.mubr.bf16.mxu0 0
      %10257 = vmatmul.mubr.bf16.gmra.mrb[0].mxu0 %v10175
      %v10258 = vpop.f32.mrb[0].mxu0
      %v10259 = vadd.f32 0.0, %v10258
      %v10260 = vpop.f32.mrb[0].mxu0
      %v10261 = vpop.f32.mrb[0].mxu0
      %v10262 = vadd.f32 0.0, %v10261
      %v10263 = vpop.f32.mrb[0].mxu0
      %10264 = vmatprep.mubr.bf16.mxu0 0
      %10265 = vmatmul.mubr.bf16.gmra.mrb[0].mxu0 %v10178
      %v10266 = vpop.f32.mrb[0].mxu0
      %v10267 = vadd.f32 0.0, %v10266
      %v10268 = vpop.f32.mrb[0].mxu0
      %v10269 = vpop.f32.mrb[0].mxu0
      %v10270 = vadd.f32 0.0, %v10269
      %v10271 = vpop.f32.mrb[0].mxu0
      %10272 = vmatprep.mubr.bf16.mxu0 0
      %10273 = vmatmul.mubr.bf16.gmra.mrb[0].mxu0 %v10181
      %v10274 = vpop.f32.mrb[0].mxu0
      %v10275 = vadd.f32 0.0, %v10274
      %v10276 = vpop.f32.mrb[0].mxu0
      %v10277 = vpop.f32.mrb[0].mxu0
      %v10278 = vadd.f32 0.0, %v10277
      %v10279 = vpop.f32.mrb[0].mxu0
      %10280 = vmatprep.mubr.bf16.mxu0 0
      %10281 = vmatmul.mubr.bf16.gmra.mrb[0].mxu0 %v10184
      %v10282 = vpop.f32.mrb[0].mxu0
      %v10283 = vadd.f32 0.0, %v10282
      %v10284 = vpop.f32.mrb[0].mxu0
      %v10285 = vpop.f32.mrb[0].mxu0
      %v10286 = vadd.f32 0.0, %v10285
      %v10287 = vpop.f32.mrb[0].mxu0
      %10288 = vmatprep.mubr.bf16.mxu0 0
      %10289 = vmatmul.mubr.bf16.gmra.mrb[0].mxu0 %v10187
      %v10290 = vpop.f32.mrb[0].mxu0
      %v10291 = vadd.f32 0.0, %v10290
      %v10292 = vpop.f32.mrb[0].mxu0
      %v10293 = vpop.f32.mrb[0].mxu0
      %v10294 = vadd.f32 0.0, %v10293
      %v10295 = vpop.f32.mrb[0].mxu0
      %10296 = vmatprep.mubr.bf16.mxu0 0
      %10297 = vmatmul.mubr.bf16.gmra.mrb[0].mxu0 %v10190
      %v10298 = vpop.f32.mrb[0].mxu0
      %v10299 = vadd.f32 0.0, %v10298
      %v10300 = vpop.f32.mrb[0].mxu0
      %v10301 = vpop.f32.mrb[0].mxu0
      %v10302 = vadd.f32 0.0, %v10301
      %v10303 = vpop.f32.mrb[0].mxu0
      %10304 = vmatprep.mubr.bf16.mxu0 0
      %10305 = vmatmul.mubr.bf16.gmra.mrb[0].mxu0 %v10193
      %v10306 = vpop.f32.mrb[0].mxu0
      %v10307 = vadd.f32 0.0, %v10306
      %v10308 = vpop.f32.mrb[0].mxu0
      %v10309 = vpop.f32.mrb[0].mxu0
      %v10310 = vadd.f32 0.0, %v10309
      %v10311 = vpop.f32.mrb[0].mxu0
      %10312 = vmatprep.mubr.bf16.mxu0 0
      %10313 = vmatmul.mubr.bf16.gmra.mrb[0].mxu0 %v10196
      %v10314 = vpop.f32.mrb[0].mxu0
      %v10315 = vadd.f32 0.0, %v10314
      %v10316 = vpop.f32.mrb[0].mxu0
      %v10317 = vpop.f32.mrb[0].mxu0
      %v10318 = vadd.f32 0.0, %v10317
      %v10319 = vpop.f32.mrb[0].mxu0
      %10320 = vmatprep.mubr.bf16.mxu0 0
      %10321 = vmatmul.mubr.bf16.gmra.mrb[0].mxu0 %v10199
      %v10322 = vpop.f32.mrb[0].mxu0
      %v10323 = vadd.f32 0.0, %v10322
      %v10324 = vpop.f32.mrb[0].mxu0
      %v10325 = vpop.f32.mrb[0].mxu0
      %v10326 = vadd.f32 0.0, %v10325
      %v10327 = vpop.f32.mrb[0].mxu0
      %10328 = vmatprep.mubr.bf16.mxu0 0
      %10329 = vmatmul.mubr.bf16.gmra.mrb[0].mxu0 %v10202
      %v10330 = vpop.f32.mrb[0].mxu0
      %v10331 = vadd.f32 0.0, %v10330
      %v10332 = vpop.f32.mrb[0].mxu0
      %v10333 = vpop.f32.mrb[0].mxu0
      %v10334 = vadd.f32 0.0, %v10333
      %v10335 = vpop.f32.mrb[0].mxu0
      %10336 = vmatprep.mubr.bf16.mxu0 0
      %10337 = vmatmul.mubr.bf16.gmra.mrb[0].mxu0 %v10205
      %v10338 = vpop.f32.mrb[0].mxu0
      %v10339 = vadd.f32 0.0, %v10338
      %v10340 = vpop.f32.mrb[0].mxu0
      %v10341 = vpop.f32.mrb[0].mxu0
      %v10342 = vadd.f32 0.0, %v10341
      %v10343 = vpop.f32.mrb[0].mxu0
      %10344 = vmatprep.mubr.bf16.mxu0 0
      %10345 = vmatmul.mubr.bf16.gmra.mrb[0].mxu0 %v10208
      %v10346 = vpop.f32.mrb[0].mxu0
      %v10347 = vadd.f32 0.0, %v10346
      %v10348 = vpop.f32.mrb[0].mxu0
      %v10349 = vpop.f32.mrb[0].mxu0
      %v10350 = vadd.f32 0.0, %v10349
      %v10351 = vpop.f32.mrb[0].mxu0
      %10352 = vmatprep.mubr.bf16.mxu0 0
      %10353 = vmatmul.mubr.bf16.gmra.mrb[0].mxu0 %v10211
      %v10354 = vpop.f32.mrb[0].mxu0
      %v10355 = vadd.f32 0.0, %v10354
      %v10356 = vpop.f32.mrb[0].mxu0
      %v10357 = vpop.f32.mrb[0].mxu0
      %v10358 = vadd.f32 0.0, %v10357
      %v10359 = vpop.f32.mrb[0].mxu0
      %10360 = vmatprep.mubr.bf16.mxu0 0
      %10361 = vmatmul.mubr.bf16.gmra.mrb[0].mxu0 %v10214
      %v10362 = vpop.f32.mrb[0].mxu0
      %v10363 = vadd.f32 0.0, %v10362
      %v10364 = vpop.f32.mrb[0].mxu0
      %v10365 = vpop.f32.mrb[0].mxu0
      %v10366 = vadd.f32 0.0, %v10365
      %v10367 = vpop.f32.mrb[0].mxu0
      %10368 = vmatprep.mubr.bf16.mxu0 0
      %10369 = vmatmul.mubr.bf16.gmra.mrb[0].mxu0 %v10217
      %v10370 = vpop.f32.mrb[0].mxu0
      %v10371 = vadd.f32 0.0, %v10370
      %v10372 = vpop.f32.mrb[0].mxu0
      %v10373 = vpop.f32.mrb[0].mxu0
      %v10374 = vadd.f32 0.0, %v10373
      %v10375 = vpop.f32.mrb[0].mxu0
      %10376 = vmatprep.mubr.bf16.mxu0 0
      %10377 = vmatmul.mubr.bf16.gmra.mrb[0].mxu0 %v10219
      %v10378 = vpop.f32.mrb[0].mxu0
      %v10379 = vadd.f32 0.0, %v10378
      %v10380 = vpop.f32.mrb[0].mxu0
      %v10381 = vpop.f32.mrb[0].mxu0
      %v10382 = vadd.f32 0.0, %v10381
      %v10383 = vpop.f32.mrb[0].mxu0
      %10384 = vdwg.mxu0
      %v10385 = vadd.f32 %v9983, %v10259
      %v10386 = vadd.f32 %v9984, %v10262
      %v10387 = vadd.f32 %v9985, %v10267
      %v10388 = vadd.f32 %v9986, %v10270
      %v10389 = vadd.f32 %v9987, %v10275
      %v10390 = vadd.f32 %v9988, %v10278
      %v10391 = vadd.f32 %v9989, %v10283
      %v10392 = vadd.f32 %v9990, %v10286
      %v10393 = vadd.f32 %v9991, %v10291
      %v10394 = vadd.f32 %v9992, %v10294
      %v10395 = vadd.f32 %v9993, %v10299
      %v10396 = vadd.f32 %v9994, %v10302
      %v10397 = vadd.f32 %v9995, %v10307
      %v10398 = vadd.f32 %v9996, %v10310
      %v10399 = vadd.f32 %v9997, %v10315
      %v10400 = vadd.f32 %v9998, %v10318
      %v10401 = vadd.f32 %v9999, %v10323
      %v10402 = vadd.f32 %v10000, %v10326
      %v10403 = vadd.f32 %v10001, %v10331
      %v10404 = vadd.f32 %v10002, %v10334
      %v10405 = vadd.f32 %v10003, %v10339
      %v10406 = vadd.f32 %v10004, %v10342
      %v10407 = vadd.f32 %v10005, %v10347
      %v10408 = vadd.f32 %v10006, %v10350
      %v10409 = vadd.f32 %v10007, %v10355
      %v10410 = vadd.f32 %v10008, %v10358
      %v10411 = vadd.f32 %v10009, %v10363
      %v10412 = vadd.f32 %v10010, %v10366
      %v10413 = vadd.f32 %v10011, %v10371
      %v10414 = vadd.f32 %v10012, %v10374
      %v10415 = vadd.f32 %v10013, %v10379
      %v10416 = vadd.f32 %v10014, %v10382
      %v10417 = vld [vmem:[%s7] sm:$0x1]
      %v10419 = vlaneseq
      %v10420 = vshrl.u32 %v10419, 7
      %v10421 = vsub.s32 0, %v10420
      %v10422 = vrot.slane %v10417, %v10421
      %v10424 = vadd.f32 %v10385, %v10422
      %v10425 = vadd.f32 %v10386, %v10422
      %v10426 = vadd.f32 %v10387, %v10422
      %v10427 = vadd.f32 %v10388, %v10422
      %v10428 = vadd.f32 %v10389, %v10422
      %v10429 = vadd.f32 %v10390, %v10422
      %v10430 = vadd.f32 %v10391, %v10422
      %v10431 = vadd.f32 %v10392, %v10422
      %v10432 = vadd.f32 %v10393, %v10422
      %v10433 = vadd.f32 %v10394, %v10422
      %v10434 = vadd.f32 %v10395, %v10422
      %v10435 = vadd.f32 %v10396, %v10422
      %v10436 = vadd.f32 %v10397, %v10422
      %v10437 = vadd.f32 %v10398, %v10422
      %v10438 = vadd.f32 %v10399, %v10422
      %v10439 = vadd.f32 %v10400, %v10422
      %v10440 = vadd.f32 %v10401, %v10422
      %v10441 = vadd.f32 %v10402, %v10422
      %v10442 = vadd.f32 %v10403, %v10422
      %v10443 = vadd.f32 %v10404, %v10422
      %v10444 = vadd.f32 %v10405, %v10422
      %v10445 = vadd.f32 %v10406, %v10422
      %v10446 = vadd.f32 %v10407, %v10422
      %v10447 = vadd.f32 %v10408, %v10422
      %v10448 = vadd.f32 %v10409, %v10422
      %v10449 = vadd.f32 %v10410, %v10422
      %v10450 = vadd.f32 %v10411, %v10422
      %v10451 = vadd.f32 %v10412, %v10422
      %v10452 = vadd.f32 %v10413, %v10422
      %v10453 = vadd.f32 %v10414, %v10422
      %v10454 = vadd.f32 %v10415, %v10422
      %v10455 = vadd.f32 %v10416, %v10422
      %v10456 = vxor.u32 %v10424, 2147483648
      %v10457 = vxor.u32 %v10425, 2147483648
      %v10458 = vxor.u32 %v10426, 2147483648
      %v10459 = vxor.u32 %v10427, 2147483648
      %v10460 = vxor.u32 %v10428, 2147483648
      %v10461 = vxor.u32 %v10429, 2147483648
      %v10462 = vxor.u32 %v10430, 2147483648
      %v10463 = vxor.u32 %v10431, 2147483648
      %v10464 = vxor.u32 %v10432, 2147483648
      %v10465 = vxor.u32 %v10433, 2147483648
      %v10466 = vxor.u32 %v10434, 2147483648
      %v10467 = vxor.u32 %v10435, 2147483648
      %v10468 = vxor.u32 %v10436, 2147483648
      %v10469 = vxor.u32 %v10437, 2147483648
      %v10470 = vxor.u32 %v10438, 2147483648
      %v10471 = vxor.u32 %v10439, 2147483648
      %v10472 = vxor.u32 %v10440, 2147483648
      %v10473 = vxor.u32 %v10441, 2147483648
      %v10474 = vxor.u32 %v10442, 2147483648
      %v10475 = vxor.u32 %v10443, 2147483648
      %v10476 = vxor.u32 %v10444, 2147483648
      %v10477 = vxor.u32 %v10445, 2147483648
      %v10478 = vxor.u32 %v10446, 2147483648
      %v10479 = vxor.u32 %v10447, 2147483648
      %v10480 = vxor.u32 %v10448, 2147483648
      %v10481 = vxor.u32 %v10449, 2147483648
      %v10482 = vxor.u32 %v10450, 2147483648
      %v10483 = vxor.u32 %v10451, 2147483648
      %v10484 = vxor.u32 %v10452, 2147483648
      %v10485 = vxor.u32 %v10453, 2147483648
      %v10486 = vxor.u32 %v10454, 2147483648
      %v10487 = vxor.u32 %v10455, 2147483648
      %v10488 = vmul.f32 %v10456, 1.442695
      %v10489 = vpow.pop %v10488
      %v10490 = vmul.f32 %v10457, 1.442695
      %v10491 = vpow.pop %v10490
      %v10492 = vmul.f32 %v10458, 1.442695
      %v10493 = vpow.pop %v10492
      %v10494 = vmul.f32 %v10459, 1.442695
      %v10495 = vpow.pop %v10494
      %v10496 = vmul.f32 %v10460, 1.442695
      %v10497 = vpow.pop %v10496
      %v10498 = vmul.f32 %v10461, 1.442695
      %v10499 = vpow.pop %v10498
      %v10500 = vmul.f32 %v10462, 1.442695
      %v10501 = vpow.pop %v10500
      %v10502 = vmul.f32 %v10463, 1.442695
      %v10503 = vpow.pop %v10502
      %v10504 = vmul.f32 %v10464, 1.442695
      %v10505 = vpow.pop %v10504
      %v10506 = vmul.f32 %v10465, 1.442695
      %v10507 = vpow.pop %v10506
      %v10508 = vmul.f32 %v10466, 1.442695
      %v10509 = vpow.pop %v10508
      %v10510 = vmul.f32 %v10467, 1.442695
      %v10511 = vpow.pop %v10510
      %v10512 = vmul.f32 %v10468, 1.442695
      %v10513 = vpow.pop %v10512
      %v10514 = vmul.f32 %v10469, 1.442695
      %v10515 = vpow.pop %v10514
      %v10516 = vmul.f32 %v10470, 1.442695
      %v10517 = vpow.pop %v10516
      %v10518 = vmul.f32 %v10471, 1.442695
      %v10519 = vpow.pop %v10518
      %v10520 = vmul.f32 %v10472, 1.442695
      %v10521 = vpow.pop %v10520
      %v10522 = vmul.f32 %v10473, 1.442695
      %v10523 = vpow.pop %v10522
      %v10524 = vmul.f32 %v10474, 1.442695
      %v10525 = vpow.pop %v10524
      %v10526 = vmul.f32 %v10475, 1.442695
      %v10527 = vpow.pop %v10526
      %v10528 = vmul.f32 %v10476, 1.442695
      %v10529 = vpow.pop %v10528
      %v10530 = vmul.f32 %v10477, 1.442695
      %v10531 = vpow.pop %v10530
      %v10532 = vmul.f32 %v10478, 1.442695
      %v10533 = vpow.pop %v10532
      %v10534 = vmul.f32 %v10479, 1.442695
      %v10535 = vpow.pop %v10534
      %v10536 = vmul.f32 %v10480, 1.442695
      %v10537 = vpow.pop %v10536
      %v10538 = vmul.f32 %v10481, 1.442695
      %v10539 = vpow.pop %v10538
      %v10540 = vmul.f32 %v10482, 1.442695
      %v10541 = vpow.pop %v10540
      %v10542 = vmul.f32 %v10483, 1.442695
      %v10543 = vpow.pop %v10542
      %v10544 = vmul.f32 %v10484, 1.442695
      %v10545 = vpow.pop %v10544
      %v10546 = vmul.f32 %v10485, 1.442695
      %v10547 = vpow.pop %v10546
      %v10548 = vmul.f32 %v10486, 1.442695
      %v10549 = vpow.pop %v10548
      %v10550 = vmul.f32 %v10487, 1.442695
      %v10551 = vpow.pop %v10550
      %v10552 = vadd.f32 %v10489, 1.0
      %v10553 = vadd.f32 %v10491, 1.0
      %v10554 = vadd.f32 %v10493, 1.0
      %v10555 = vadd.f32 %v10495, 1.0
      %v10556 = vadd.f32 %v10497, 1.0
      %v10557 = vadd.f32 %v10499, 1.0
      %v10558 = vadd.f32 %v10501, 1.0
      %v10559 = vadd.f32 %v10503, 1.0
      %v10560 = vadd.f32 %v10505, 1.0
      %v10561 = vadd.f32 %v10507, 1.0
      %v10562 = vadd.f32 %v10509, 1.0
      %v10563 = vadd.f32 %v10511, 1.0
      %v10564 = vadd.f32 %v10513, 1.0
      %v10565 = vadd.f32 %v10515, 1.0
      %v10566 = vadd.f32 %v10517, 1.0
      %v10567 = vadd.f32 %v10519, 1.0
      %v10568 = vadd.f32 %v10521, 1.0
      %v10569 = vadd.f32 %v10523, 1.0
      %v10570 = vadd.f32 %v10525, 1.0
      %v10571 = vadd.f32 %v10527, 1.0
      %v10572 = vadd.f32 %v10529, 1.0
      %v10573 = vadd.f32 %v10531, 1.0
      %v10574 = vadd.f32 %v10533, 1.0
      %v10575 = vadd.f32 %v10535, 1.0
      %v10576 = vadd.f32 %v10537, 1.0
      %v10577 = vadd.f32 %v10539, 1.0
      %v10578 = vadd.f32 %v10541, 1.0
      %v10579 = vadd.f32 %v10543, 1.0
      %v10580 = vadd.f32 %v10545, 1.0
      %v10581 = vadd.f32 %v10547, 1.0
      %v10582 = vadd.f32 %v10549, 1.0
      %v10583 = vadd.f32 %v10551, 1.0
      %v10584 = vrcp.pop %v10552
      %v10585 = vmul.f32 1.0, %v10584
      %v10586 = vrcp.pop %v10553
      %v10587 = vmul.f32 1.0, %v10586
      %v10588 = vrcp.pop %v10554
      %v10589 = vmul.f32 1.0, %v10588
      %v10590 = vrcp.pop %v10555
      %v10591 = vmul.f32 1.0, %v10590
      %v10592 = vrcp.pop %v10556
      %v10593 = vmul.f32 1.0, %v10592
      %v10594 = vrcp.pop %v10557
      %v10595 = vmul.f32 1.0, %v10594
      %v10596 = vrcp.pop %v10558
      %v10597 = vmul.f32 1.0, %v10596
      %v10598 = vrcp.pop %v10559
      %v10599 = vmul.f32 1.0, %v10598
      %v10600 = vrcp.pop %v10560
      %v10601 = vmul.f32 1.0, %v10600
      %v10602 = vrcp.pop %v10561
      %v10603 = vmul.f32 1.0, %v10602
      %v10604 = vrcp.pop %v10562
      %v10605 = vmul.f32 1.0, %v10604
      %v10606 = vrcp.pop %v10563
      %v10607 = vmul.f32 1.0, %v10606
      %v10608 = vrcp.pop %v10564
      %v10609 = vmul.f32 1.0, %v10608
      %v10610 = vrcp.pop %v10565
      %v10611 = vmul.f32 1.0, %v10610
      %v10612 = vrcp.pop %v10566
      %v10613 = vmul.f32 1.0, %v10612
      %v10614 = vrcp.pop %v10567
      %v10615 = vmul.f32 1.0, %v10614
      %v10616 = vrcp.pop %v10568
      %v10617 = vmul.f32 1.0, %v10616
      %v10618 = vrcp.pop %v10569
      %v10619 = vmul.f32 1.0, %v10618
      %v10620 = vrcp.pop %v10570
      %v10621 = vmul.f32 1.0, %v10620
      %v10622 = vrcp.pop %v10571
      %v10623 = vmul.f32 1.0, %v10622
      %v10624 = vrcp.pop %v10572
      %v10625 = vmul.f32 1.0, %v10624
      %v10626 = vrcp.pop %v10573
      %v10627 = vmul.f32 1.0, %v10626
      %v10628 = vrcp.pop %v10574
      %v10629 = vmul.f32 1.0, %v10628
      %v10630 = vrcp.pop %v10575
      %v10631 = vmul.f32 1.0, %v10630
      %v10632 = vrcp.pop %v10576
      %v10633 = vmul.f32 1.0, %v10632
      %v10634 = vrcp.pop %v10577
      %v10635 = vmul.f32 1.0, %v10634
      %v10636 = vrcp.pop %v10578
      %v10637 = vmul.f32 1.0, %v10636
      %v10638 = vrcp.pop %v10579
      %v10639 = vmul.f32 1.0, %v10638
      %v10640 = vrcp.pop %v10580
      %v10641 = vmul.f32 1.0, %v10640
      %v10642 = vrcp.pop %v10581
      %v10643 = vmul.f32 1.0, %v10642
      %v10644 = vrcp.pop %v10582
      %v10645 = vmul.f32 1.0, %v10644
      %v10646 = vrcp.pop %v10583
      %v10647 = vmul.f32 1.0, %v10646
      %v10648 = vmul.f32 %v10424, %v10585
      %v10649 = vmul.f32 %v10425, %v10587
      %v10650 = vmul.f32 %v10426, %v10589
      %v10651 = vmul.f32 %v10427, %v10591
      %v10652 = vmul.f32 %v10428, %v10593
      %v10653 = vmul.f32 %v10429, %v10595
      %v10654 = vmul.f32 %v10430, %v10597
      %v10655 = vmul.f32 %v10431, %v10599
      %v10656 = vmul.f32 %v10432, %v10601
      %v10657 = vmul.f32 %v10433, %v10603
      %v10658 = vmul.f32 %v10434, %v10605
      %v10659 = vmul.f32 %v10435, %v10607
      %v10660 = vmul.f32 %v10436, %v10609
      %v10661 = vmul.f32 %v10437, %v10611
      %v10662 = vmul.f32 %v10438, %v10613
      %v10663 = vmul.f32 %v10439, %v10615
      %v10664 = vmul.f32 %v10440, %v10617
      %v10665 = vmul.f32 %v10441, %v10619
      %v10666 = vmul.f32 %v10442, %v10621
      %v10667 = vmul.f32 %v10443, %v10623
      %v10668 = vmul.f32 %v10444, %v10625
      %v10669 = vmul.f32 %v10445, %v10627
      %v10670 = vmul.f32 %v10446, %v10629
      %v10671 = vmul.f32 %v10447, %v10631
      %v10672 = vmul.f32 %v10448, %v10633
      %v10673 = vmul.f32 %v10449, %v10635
      %v10674 = vmul.f32 %v10450, %v10637
      %v10675 = vmul.f32 %v10451, %v10639
      %v10676 = vmul.f32 %v10452, %v10641
      %v10677 = vmul.f32 %v10453, %v10643
      %v10678 = vmul.f32 %v10454, %v10645
      %v10679 = vmul.f32 %v10455, %v10647
      %v10680 = vpack.c.bf16 %v10649, %v10648
      %v10681 = vpack.c.bf16 %v10651, %v10650
      %v10682 = vpack.c.bf16 %v10653, %v10652
      %v10683 = vpack.c.bf16 %v10655, %v10654
      %v10684 = vpack.c.bf16 %v10657, %v10656
      %v10685 = vpack.c.bf16 %v10659, %v10658
      %v10686 = vpack.c.bf16 %v10661, %v10660
      %v10687 = vpack.c.bf16 %v10663, %v10662
      %v10688 = vpack.c.bf16 %v10665, %v10664
      %v10689 = vpack.c.bf16 %v10667, %v10666
      %v10690 = vpack.c.bf16 %v10669, %v10668
      %v10691 = vpack.c.bf16 %v10671, %v10670
      %v10692 = vpack.c.bf16 %v10673, %v10672
      %v10693 = vpack.c.bf16 %v10675, %v10674
      %v10694 = vpack.c.bf16 %v10677, %v10676
      %v10695 = vpack.c.bf16 %v10679, %v10678
      %v10696 = vld [vmem:[%s8] sm:$0xf]
      %v10697 = vld [vmem:[%s8 + $0x4] sm:$0xf]
      %v10698 = vld [vmem:[%s8 + $0x8] sm:$0xf]
      %v10699 = vld [vmem:[%s8 + $0xc] sm:$0xf]
      %v10700 = vld [vmem:[%s9] sm:$0x1]
      %v10702 = vlaneseq
      %v10703 = vshrl.u32 %v10702, 7
      %v10704 = vsub.s32 0, %v10703
      %v10705 = vrot.slane %v10700, %v10704
      %v10711 = vunpack.c.l.b16 %v10696
      %v10712 = vunpack.c.l.b16 %v10697
      %v10713 = vunpack.c.l.b16 %v10698
      %v10714 = vunpack.c.l.b16 %v10699
      %v10715 = vpack.c.b16 %v10712, %v10711
      %v10716 = vpack.c.b16 %v10714, %v10713
      %vm10718 = vcmask 252928
      %v10720 = vsel %vm10718, %v10680, 0
      %v10723 = vsel %vm10718, %v10681, 0
      %v10726 = vsel %vm10718, %v10682, 0
      %v10729 = vsel %vm10718, %v10683, 0
      %v10732 = vsel %vm10718, %v10684, 0
      %v10735 = vsel %vm10718, %v10685, 0
      %v10738 = vsel %vm10718, %v10686, 0
      %v10741 = vsel %vm10718, %v10687, 0
      %v10744 = vsel %vm10718, %v10688, 0
      %v10747 = vsel %vm10718, %v10689, 0
      %v10750 = vsel %vm10718, %v10690, 0
      %v10753 = vsel %vm10718, %v10691, 0
      %v10756 = vsel %vm10718, %v10692, 0
      %v10759 = vsel %vm10718, %v10693, 0
      %v10762 = vsel %vm10718, %v10694, 0
      %v10765 = vsel %vm10718, %v10695, 0
      %v10768 = vand.u32 %v10716, %v7343
      %10770 = vmatprep.subr.bf16.mxu0 0
      %10771 = vmatpush1.bf16.msra.mxu0 %v10715
      %10772 = vmatprep.subr.bf16.mxu0 0
      %10773 = vmatpush1.bf16.msra.mxu0 %v10768
      %10774 = vmatprep.subr.bf16.mxu0 0
      %10775 = vmatpush1.bf16.msra.mxu0 0
      %10776 = vmatprep.subr.bf16.mxu0 0
      %10777 = vmatpush1.bf16.msra.mxu0 0
      %10778 = vmatprep.subr.bf16.mxu0 0
      %10779 = vmatpush1.bf16.msra.mxu0 0
      %10780 = vmatprep.subr.bf16.mxu0 0
      %10781 = vmatpush1.bf16.msra.mxu0 0
      %10782 = vmatprep.subr.bf16.mxu0 0
      %10783 = vmatpush1.bf16.msra.mxu0 0
      %10784 = vmatprep.subr.bf16.mxu0 0
      %10785 = vmatpush1.bf16.msra.mxu0 0
      %10786 = vmatprep.subr.bf16.mxu0 0
      %10787 = vmatpush1.bf16.msra.mxu0 0
      %10788 = vmatprep.subr.bf16.mxu0 0
      %10789 = vmatpush1.bf16.msra.mxu0 0
      %10790 = vmatprep.subr.bf16.mxu0 0
      %10791 = vmatpush1.bf16.msra.mxu0 0
      %10792 = vmatprep.subr.bf16.mxu0 0
      %10793 = vmatpush1.bf16.msra.mxu0 0
      %10794 = vmatprep.subr.bf16.mxu0 0
      %10795 = vmatpush1.bf16.msra.mxu0 0
      %10796 = vmatprep.subr.bf16.mxu0 0
      %10797 = vmatpush1.bf16.msra.mxu0 0
      %10798 = vmatprep.subr.bf16.mxu0 0
      %10799 = vmatpush1.bf16.msra.mxu0 0
      %10800 = vmatprep.subr.bf16.mxu0 0
      %10801 = vmatpush1.bf16.msra.mxu0 0
      %10802 = vmatprep.mubr.bf16.mxu0 0
      %10803 = vmatmul.mubr.bf16.gmra.mrb[0].mxu0 %v10720
      %v10804 = vpop.f32.mrb[0].mxu0
      %v10805 = vadd.f32 %v10705, %v10804
      %v10806 = vpop.f32.mrb[0].mxu0
      %v10807 = vpop.f32.mrb[0].mxu0
      %v10808 = vadd.f32 %v10705, %v10807
      %v10809 = vpop.f32.mrb[0].mxu0
      %10810 = vmatprep.mubr.bf16.mxu0 0
      %10811 = vmatmul.mubr.bf16.gmra.mrb[0].mxu0 %v10723
      %v10812 = vpop.f32.mrb[0].mxu0
      %v10813 = vadd.f32 %v10705, %v10812
      %v10814 = vpop.f32.mrb[0].mxu0
      %v10815 = vpop.f32.mrb[0].mxu0
      %v10816 = vadd.f32 %v10705, %v10815
      %v10817 = vpop.f32.mrb[0].mxu0
      %10818 = vmatprep.mubr.bf16.mxu0 0
      %10819 = vmatmul.mubr.bf16.gmra.mrb[0].mxu0 %v10726
      %v10820 = vpop.f32.mrb[0].mxu0
      %v10821 = vadd.f32 %v10705, %v10820
      %v10822 = vpop.f32.mrb[0].mxu0
      %v10823 = vpop.f32.mrb[0].mxu0
      %v10824 = vadd.f32 %v10705, %v10823
      %v10825 = vpop.f32.mrb[0].mxu0
      %10826 = vmatprep.mubr.bf16.mxu0 0
      %10827 = vmatmul.mubr.bf16.gmra.mrb[0].mxu0 %v10729
      %v10828 = vpop.f32.mrb[0].mxu0
      %v10829 = vadd.f32 %v10705, %v10828
      %v10830 = vpop.f32.mrb[0].mxu0
      %v10831 = vpop.f32.mrb[0].mxu0
      %v10832 = vadd.f32 %v10705, %v10831
      %v10833 = vpop.f32.mrb[0].mxu0
      %10834 = vmatprep.mubr.bf16.mxu0 0
      %10835 = vmatmul.mubr.bf16.gmra.mrb[0].mxu0 %v10732
      %v10836 = vpop.f32.mrb[0].mxu0
      %v10837 = vadd.f32 %v10705, %v10836
      %v10838 = vpop.f32.mrb[0].mxu0
      %v10839 = vpop.f32.mrb[0].mxu0
      %v10840 = vadd.f32 %v10705, %v10839
      %v10841 = vpop.f32.mrb[0].mxu0
      %10842 = vmatprep.mubr.bf16.mxu0 0
      %10843 = vmatmul.mubr.bf16.gmra.mrb[0].mxu0 %v10735
      %v10844 = vpop.f32.mrb[0].mxu0
      %v10845 = vadd.f32 %v10705, %v10844
      %v10846 = vpop.f32.mrb[0].mxu0
      %v10847 = vpop.f32.mrb[0].mxu0
      %v10848 = vadd.f32 %v10705, %v10847
      %v10849 = vpop.f32.mrb[0].mxu0
      %10850 = vmatprep.mubr.bf16.mxu0 0
      %10851 = vmatmul.mubr.bf16.gmra.mrb[0].mxu0 %v10738
      %v10852 = vpop.f32.mrb[0].mxu0
      %v10853 = vadd.f32 %v10705, %v10852
      %v10854 = vpop.f32.mrb[0].mxu0
      %v10855 = vpop.f32.mrb[0].mxu0
      %v10856 = vadd.f32 %v10705, %v10855
      %v10857 = vpop.f32.mrb[0].mxu0
      %10858 = vmatprep.mubr.bf16.mxu0 0
      %10859 = vmatmul.mubr.bf16.gmra.mrb[0].mxu0 %v10741
      %v10860 = vpop.f32.mrb[0].mxu0
      %v10861 = vadd.f32 %v10705, %v10860
      %v10862 = vpop.f32.mrb[0].mxu0
      %v10863 = vpop.f32.mrb[0].mxu0
      %v10864 = vadd.f32 %v10705, %v10863
      %v10865 = vpop.f32.mrb[0].mxu0
      %10866 = vmatprep.mubr.bf16.mxu0 0
      %10867 = vmatmul.mubr.bf16.gmra.mrb[0].mxu0 %v10744
      %v10868 = vpop.f32.mrb[0].mxu0
      %v10869 = vadd.f32 %v10705, %v10868
      %v10870 = vpop.f32.mrb[0].mxu0
      %v10871 = vpop.f32.mrb[0].mxu0
      %v10872 = vadd.f32 %v10705, %v10871
      %v10873 = vpop.f32.mrb[0].mxu0
      %10874 = vmatprep.mubr.bf16.mxu0 0
      %10875 = vmatmul.mubr.bf16.gmra.mrb[0].mxu0 %v10747
      %v10876 = vpop.f32.mrb[0].mxu0
      %v10877 = vadd.f32 %v10705, %v10876
      %v10878 = vpop.f32.mrb[0].mxu0
      %v10879 = vpop.f32.mrb[0].mxu0
      %v10880 = vadd.f32 %v10705, %v10879
      %v10881 = vpop.f32.mrb[0].mxu0
      %10882 = vmatprep.mubr.bf16.mxu0 0
      %10883 = vmatmul.mubr.bf16.gmra.mrb[0].mxu0 %v10750
      %v10884 = vpop.f32.mrb[0].mxu0
      %v10885 = vadd.f32 %v10705, %v10884
      %v10886 = vpop.f32.mrb[0].mxu0
      %v10887 = vpop.f32.mrb[0].mxu0
      %v10888 = vadd.f32 %v10705, %v10887
      %v10889 = vpop.f32.mrb[0].mxu0
      %10890 = vmatprep.mubr.bf16.mxu0 0
      %10891 = vmatmul.mubr.bf16.gmra.mrb[0].mxu0 %v10753
      %v10892 = vpop.f32.mrb[0].mxu0
      %v10893 = vadd.f32 %v10705, %v10892
      %v10894 = vpop.f32.mrb[0].mxu0
      %v10895 = vpop.f32.mrb[0].mxu0
      %v10896 = vadd.f32 %v10705, %v10895
      %v10897 = vpop.f32.mrb[0].mxu0
      %10898 = vmatprep.mubr.bf16.mxu0 0
      %10899 = vmatmul.mubr.bf16.gmra.mrb[0].mxu0 %v10756
      %v10900 = vpop.f32.mrb[0].mxu0
      %v10901 = vadd.f32 %v10705, %v10900
      %v10902 = vpop.f32.mrb[0].mxu0
      %v10903 = vpop.f32.mrb[0].mxu0
      %v10904 = vadd.f32 %v10705, %v10903
      %v10905 = vpop.f32.mrb[0].mxu0
      %10906 = vmatprep.mubr.bf16.mxu0 0
      %10907 = vmatmul.mubr.bf16.gmra.mrb[0].mxu0 %v10759
      %v10908 = vpop.f32.mrb[0].mxu0
      %v10909 = vadd.f32 %v10705, %v10908
      %v10910 = vpop.f32.mrb[0].mxu0
      %v10911 = vpop.f32.mrb[0].mxu0
      %v10912 = vadd.f32 %v10705, %v10911
      %v10913 = vpop.f32.mrb[0].mxu0
      %10914 = vmatprep.mubr.bf16.mxu0 0
      %10915 = vmatmul.mubr.bf16.gmra.mrb[0].mxu0 %v10762
      %v10916 = vpop.f32.mrb[0].mxu0
      %v10917 = vadd.f32 %v10705, %v10916
      %v10918 = vpop.f32.mrb[0].mxu0
      %v10919 = vpop.f32.mrb[0].mxu0
      %v10920 = vadd.f32 %v10705, %v10919
      %v10921 = vpop.f32.mrb[0].mxu0
      %10922 = vmatprep.mubr.bf16.mxu0 0
      %10923 = vmatmul.mubr.bf16.gmra.mrb[0].mxu0 %v10765
      %v10924 = vpop.f32.mrb[0].mxu0
      %v10925 = vadd.f32 %v10705, %v10924
      %v10926 = vpop.f32.mrb[0].mxu0
      %v10927 = vpop.f32.mrb[0].mxu0
      %v10928 = vadd.f32 %v10705, %v10927
      %v10929 = vpop.f32.mrb[0].mxu0
      %10930 = vdwg.mxu0
      %vm10931 = vcmask 121856
      %10932 = vst.msk [vmem:[%s556] sm:$0xff] %vm10931, %v10805
      %10933 = vst.msk [vmem:[%s556 + $0x8] sm:$0xff] %vm10931, %v10808
      %10934 = vst.msk [vmem:[%s556 + $0x10] sm:$0xff] %vm10931, %v10813
      %10935 = vst.msk [vmem:[%s556 + $0x18] sm:$0xff] %vm10931, %v10816
      %10936 = vst.msk [vmem:[%s556 + $0x20] sm:$0xff] %vm10931, %v10821
      %10937 = vst.msk [vmem:[%s556 + $0x28] sm:$0xff] %vm10931, %v10824
      %10938 = vst.msk [vmem:[%s556 + $0x30] sm:$0xff] %vm10931, %v10829
      %10939 = vst.msk [vmem:[%s556 + $0x38] sm:$0xff] %vm10931, %v10832
      %10940 = vst.msk [vmem:[%s556 + $0x40] sm:$0xff] %vm10931, %v10837
      %10941 = vst.msk [vmem:[%s556 + $0x48] sm:$0xff] %vm10931, %v10840
      %10942 = vst.msk [vmem:[%s556 + $0x50] sm:$0xff] %vm10931, %v10845
      %10943 = vst.msk [vmem:[%s556 + $0x58] sm:$0xff] %vm10931, %v10848
      %10944 = vst.msk [vmem:[%s556 + $0x60] sm:$0xff] %vm10931, %v10853
      %10945 = vst.msk [vmem:[%s556 + $0x68] sm:$0xff] %vm10931, %v10856
      %10946 = vst.msk [vmem:[%s556 + $0x70] sm:$0xff] %vm10931, %v10861
      %10947 = vst.msk [vmem:[%s556 + $0x78] sm:$0xff] %vm10931, %v10864
      %10948 = vst.msk [vmem:[%s556 + $0x80] sm:$0xff] %vm10931, %v10869
      %10949 = vst.msk [vmem:[%s556 + $0x88] sm:$0xff] %vm10931, %v10872
      %10950 = vst.msk [vmem:[%s556 + $0x90] sm:$0xff] %vm10931, %v10877
      %10951 = vst.msk [vmem:[%s556 + $0x98] sm:$0xff] %vm10931, %v10880
      %10952 = vst.msk [vmem:[%s556 + $0xa0] sm:$0xff] %vm10931, %v10885
      %10953 = vst.msk [vmem:[%s556 + $0xa8] sm:$0xff] %vm10931, %v10888
      %10954 = vst.msk [vmem:[%s556 + $0xb0] sm:$0xff] %vm10931, %v10893
      %10955 = vst.msk [vmem:[%s556 + $0xb8] sm:$0xff] %vm10931, %v10896
      %10956 = vst.msk [vmem:[%s556 + $0xc0] sm:$0xff] %vm10931, %v10901
      %10957 = vst.msk [vmem:[%s556 + $0xc8] sm:$0xff] %vm10931, %v10904
      %10958 = vst.msk [vmem:[%s556 + $0xd0] sm:$0xff] %vm10931, %v10909
      %10959 = vst.msk [vmem:[%s556 + $0xd8] sm:$0xff] %vm10931, %v10912
      %10960 = vst.msk [vmem:[%s556 + $0xe0] sm:$0xff] %vm10931, %v10917
      %10961 = vst.msk [vmem:[%s556 + $0xe8] sm:$0xff] %vm10931, %v10920
      %10962 = vst.msk [vmem:[%s556 + $0xf0] sm:$0xff] %vm10931, %v10925
      %10963 = vst.msk [vmem:[%s556 + $0xf8] sm:$0xff] %vm10931, %v10928
      %p10964 = scmp.lt.s32.totalorder %s29, 1
      %s10965 = scalar_select %p10964, %s29, 1
      %s10966 = smul.addr %s10965, 32
      %s10967 = smul.addr %s10966, 8
      %s10968 = scalar_lea.vmem %s16, %s10967
      %p10969 = scmp.lt.s32.totalorder %s29, 1
      %s10970 = scalar_select %p10969, %s29, 1
      %s10971 = smul.addr %s10970, 32
      %s10972 = smul.addr %s10971, 8
      %s10973 = scalar_lea.vmem %s17, %s10972
      // Predicated region
      $region85: #{decouple_forward.1} parent=83 // pred_check
        %p10974 = pneg %p388
      $region86: #{decouple_forward.1} parent=83 // pred_check_branch
        %10976 = sbr.rel (%p10974) target = $region88
      $region87: #{decouple_forward.1} parent=83 // pred_region
        _
      $region88: #{decouple_forward.1} parent=83 // pred_fallthru
        _
      // Predicated region
      $region89: #{decouple_forward.1} parent=83 // pred_check
        %p10977 = pneg %p414
      $region90: #{decouple_forward.1} parent=83 // pred_check_branch
        %10979 = sbr.rel (%p10977) target = $region92
      $region91: #{decouple_forward.1} parent=83 // pred_region
        _
      $region92: #{decouple_forward.1} parent=83 // pred_fallthru
        _
    $region84: #{decouple_forward.1} parent=5 // pred_fallthru
      _
    %p10980 = scmp.le.s32.totalorder 2, %s24
    // Predicated region
    $region93: #{decouple_forward.1} parent=5 // pred_check
      %p10981 = pneg %p10980
    $region94: #{decouple_forward.1} parent=5 // pred_check_branch
      %10983 = sbr.rel (%p10981) target = $region96
    $region95: #{decouple_forward.1} parent=5 // pred_region
      %s10984 = ssub.s32 %s24, 2
      // Predicated region
      $region97: #{decouple_forward.1} parent=95 // pred_check
        %p10985 = pneg %p394
      $region98: #{decouple_forward.1} parent=95 // pred_check_branch
        %10987 = sbr.rel (%p10985) target = $region100
      $region99: #{decouple_forward.1} parent=95 // pred_region
        %p10988 = scmp.lt.s32.totalorder %s30, 1
        %s10989 = scalar_select %p10988, %s30, 1
        %s10990 = smul.addr %s10989, 32
        %s10991 = smul.addr %s10990, 8
        %s10992 = scalar_lea.vmem %s16, %s10991
      $region100: #{decouple_forward.1} parent=95 // pred_fallthru
        _
      // Predicated region
      $region101: #{decouple_forward.1} parent=95 // pred_check
        %p10993 = pneg %p420
      $region102: #{decouple_forward.1} parent=95 // pred_check_branch
        %10995 = sbr.rel (%p10993) target = $region104
      $region103: #{decouple_forward.1} parent=95 // pred_region
        %p10996 = scmp.lt.s32.totalorder %s30, 1
        %s10997 = scalar_select %p10996, %s30, 1
        %s10998 = smul.addr %s10997, 32
        %s10999 = smul.addr %s10998, 8
        %s11000 = scalar_lea.vmem %s17, %s10999
      $region104: #{decouple_forward.1} parent=95 // pred_fallthru
        _
    $region96: #{decouple_forward.1} parent=5 // pred_fallthru
      _
  $region6: #{decouple_forward.1} parent=0 // loop_footer
    %s28 = sadd.s32 1, %s24
  $region7: #{decouple_forward.1} parent=0 // loop_footer_branch
    %23 = sbr.rel target = $region3
  $region8: #{decouple_forward.1} parent=0 // loop_exit
    _

</llo_original>
